<compile_context>
chip_gen: v7x
topology: tpu7x:2x2x1
jax: 0.10.0
libtpu: 0.0.40
codegen_flags: <defaults>
</compile_context>

<pallas_src>
import math
import functools
import jax
import jax.numpy as jnp
from jax.experimental import pallas as pl
from jax.experimental.pallas import tpu as pltpu  # noqa: F401  (TPU backend)


def _layer_norm(x, w, b, eps=1e-5):
    mu = jnp.mean(x, axis=-1, keepdims=True)
    var = jnp.mean((x - mu) ** 2, axis=-1, keepdims=True)
    return (x - mu) * jax.lax.rsqrt(var + eps) * w + b


def make_kernel(nhead, batch):
    def kernel(src_ref, mask_ref, pe_ref,
               enc_w_ref, enc_b_ref,
               qkv_w_ref, qkv_b_ref,
               out_w_ref, out_b_ref,
               lin1_w_ref, lin1_b_ref,
               lin2_w_ref, lin2_b_ref,
               n1_w_ref, n1_b_ref,
               n2_w_ref, n2_b_ref,
               dec_w_ref, dec_b_ref,
               o_ref):
        BS, D = pe_ref.shape
        B = batch
        S = BS // B
        H = nhead
        hd = D // H
        nlayers = qkv_w_ref.shape[0]
        scale = 1.0 / math.sqrt(hd)

        # self.encoder = nn.Linear(12, ninp) on the whole (B*S, F) slab
        # (weights pre-transposed to (F, D) -> no in-kernel transpose).
        x = jnp.dot(src_ref[...], enc_w_ref[...],
                    preferred_element_type=jnp.float32) + enc_b_ref[...]
        x = x * jnp.float32(math.sqrt(D)) + pe_ref[...]        # *sqrt(ninp) + PE

        # additive causal mask, broadcast once (hoisted out of the layer loop)
        mask3 = mask_ref[...][None, :, :]                       # (1, S, S)

        for l in range(nlayers):                                # static unroll
            # ---- multi-head self attention (post-norm layer) ----
            # packed in_proj, single fused bias add over the full (B*S, 3D) slab
            qkv = jnp.dot(x, qkv_w_ref[l],
                          preferred_element_type=jnp.float32) + qkv_b_ref[l]
            q = qkv[:, :D] * scale
            k = qkv[:, D:2 * D]
            v = qkv[:, 2 * D:]

            attn_rows = []
            for b in range(B):                                  # static, in-VMEM
                lo, hi = b * S, (b + 1) * S
                qh = q[lo:hi, :].reshape(S, H, hd)
                kh = k[lo:hi, :].reshape(S, H, hd)
                vh = v[lo:hi, :].reshape(S, H, hd)
                # batched-over-heads contractions (no per-head lane slicing)
                s = jnp.einsum('qhd,khd->hqk', qh, kh,
                               preferred_element_type=jnp.float32)
                s = s + mask3
                s = s - jnp.max(s, axis=-1, keepdims=True)
                p = jnp.exp(s)
                p = p * pl.reciprocal(jnp.sum(p, axis=-1, keepdims=True),
                                      approx=True)
                o = jnp.einsum('hqk,khd->qhd', p, vh,
                               preferred_element_type=jnp.float32)
                attn_rows.append(o.reshape(S, D))
            attn = jnp.concatenate(attn_rows, axis=0)           # (B*S, D)
            attn = jnp.dot(attn, out_w_ref[l],
                           preferred_element_type=jnp.float32) + out_b_ref[l]
            x = _layer_norm(x + attn, n1_w_ref[l], n1_b_ref[l])

            # ---- feed-forward (ReLU) ----
            h1 = jnp.dot(x, lin1_w_ref[l],
                         preferred_element_type=jnp.float32) + lin1_b_ref[l]
            h1 = jnp.maximum(h1, 0.0)
            ff = jnp.dot(h1, lin2_w_ref[l],
                         preferred_element_type=jnp.float32) + lin2_b_ref[l]
            x = _layer_norm(x + ff, n2_w_ref[l], n2_b_ref[l])

        # output.mean(dim=0) then decoder (affine -> order is equivalent):
        xm = jnp.mean(x.reshape(B, S, D), axis=1)               # (B, D)
        o_ref[...] = jnp.dot(xm, dec_w_ref[...],
                             preferred_element_type=jnp.float32) + dec_b_ref[...]

    return kernel


def positional_encoding(seq_len, d_model):
    pos = jnp.arange(seq_len, dtype=jnp.float32)[:, None]
    div = jnp.exp(jnp.arange(0, d_model, 2, dtype=jnp.float32) *
                  (-math.log(10000.0) / d_model))
    pe = jnp.zeros((seq_len, d_model), jnp.float32)
    pe = pe.at[:, 0::2].set(jnp.sin(pos * div))
    pe = pe.at[:, 1::2].set(jnp.cos(pos * div))
    return pe


def square_subsequent_mask(sz):
    tri = jnp.triu(jnp.ones((sz, sz), jnp.float32), 1)
    return jnp.where(tri == 1, -jnp.inf, 0.0).astype(jnp.float32)


def init_params(key, ninp, nhid, nlayers, n_classes, in_features=12):
    ks = jax.random.split(key, 16)
    u = lambda k, shape, a: jax.random.uniform(k, shape, jnp.float32, -a, a)
    return {
        # init_weights(): encoder.weight ~ U(-0.1, 0.1); encoder.bias default
        "enc_w": u(ks[0], (ninp, in_features), 0.1),
        "enc_b": u(ks[1], (1, ninp), 1.0 / math.sqrt(in_features)),
        # stacked per-layer TransformerEncoderLayer params (PyTorch layout)
        "qkv_w": u(ks[2], (nlayers, 3 * ninp, ninp), 1.0 / math.sqrt(ninp)),
        "qkv_b": u(ks[3], (nlayers, 3 * ninp), 1.0 / math.sqrt(ninp)),
        "out_w": u(ks[4], (nlayers, ninp, ninp), 1.0 / math.sqrt(ninp)),
        "out_b": u(ks[5], (nlayers, ninp), 1.0 / math.sqrt(ninp)),
        "lin1_w": u(ks[6], (nlayers, nhid, ninp), 1.0 / math.sqrt(ninp)),
        "lin1_b": u(ks[7], (nlayers, nhid), 1.0 / math.sqrt(ninp)),
        "lin2_w": u(ks[8], (nlayers, ninp, nhid), 1.0 / math.sqrt(nhid)),
        "lin2_b": u(ks[9], (nlayers, ninp), 1.0 / math.sqrt(nhid)),
        "n1_w": jnp.ones((nlayers, ninp), jnp.float32),
        "n1_b": jnp.zeros((nlayers, ninp), jnp.float32),
        "n2_w": jnp.ones((nlayers, ninp), jnp.float32),
        "n2_b": jnp.zeros((nlayers, ninp), jnp.float32),
        # init_weights(): decoder.weight ~ U(-0.1, 0.1); decoder.bias = 0
        "dec_w": u(ks[10], (n_classes, ninp), 0.1),
        "dec_b": jnp.zeros((1, n_classes), jnp.float32),
    }


@functools.partial(jax.jit, static_argnums=(4,))
def transformer_forward(src, src_mask, params, pe, nhead):
    S, B, F = src.shape
    D = pe.shape[1]
    n_classes = params["dec_w"].shape[0]
    L = params["qkv_w"].shape[0]

    # batch-major, flattened to a single (B*S, F) slab for one kernel step
    src_flat = jnp.transpose(src, (1, 0, 2)).reshape(B * S, F)
    pe_tiled = jnp.tile(pe, (B, 1))                              # (B*S, D)

    # pre-transpose every weight to (in, out) so the kernel never transposes
    enc_w = params["enc_w"].T                                    # (F, D)
    qkv_w = jnp.swapaxes(params["qkv_w"], 1, 2)                  # (L, D, 3D)
    out_w = jnp.swapaxes(params["out_w"], 1, 2)                  # (L, D, D)
    lin1_w = jnp.swapaxes(params["lin1_w"], 1, 2)                # (L, D, nhid)
    lin2_w = jnp.swapaxes(params["lin2_w"], 1, 2)                # (L, nhid, D)
    dec_w = params["dec_w"].T                                    # (D, C)

    # per-layer biases / norm params as (L, 1, dim): in-kernel adds/muls are
    # clean 2-D sublane broadcasts.
    r2 = lambda a: a.reshape(L, 1, a.shape[-1])

    ordered = [enc_w, params["enc_b"], qkv_w, r2(params["qkv_b"]),
               out_w, r2(params["out_b"]), lin1_w, r2(params["lin1_b"]),
               lin2_w, r2(params["lin2_b"]), r2(params["n1_w"]), r2(params["n1_b"]),
               r2(params["n2_w"]), r2(params["n2_b"]), dec_w, params["dec_b"]]

    # Single invocation, no grid: every operand is fully VMEM-resident (<1 MiB
    # total at these sizes), so there is no per-step pipeline overhead.
    out = pl.pallas_call(
        make_kernel(nhead, B),
        out_shape=jax.ShapeDtypeStruct((B, n_classes), jnp.float32),
    )(src_flat, src_mask, pe_tiled, *ordered)
    return out                                                   # (B, n_classes)


if __name__ == "__main__":
    # Model hyper-parameters (small, consistent with the module's forward)
    ntoken, ninp, nhead, nhid, nlayers, n_classes = 100, 32, 4, 64, 2, 10
    S, B, F = 8, 2, 12                                           # seq, batch, in-features

    key = jax.random.PRNGKey(0)
    k_x, k_p = jax.random.split(key)
    src = jax.random.normal(k_x, (S, B, F), jnp.float32)         # (seq, batch, 12)
    src_mask = square_subsequent_mask(S)                         # (S, S) causal mask
    pe = positional_encoding(S, ninp)                            # (S, ninp)
    params = init_params(k_p, ninp, nhid, nlayers, n_classes, F)

    # TODO(synk): nn.Dropout(p=0.5) layers are identity (eval-mode forward).
    out = transformer_forward(src, src_mask, params, pe, nhead)
    out = jax.block_until_ready(out)
    assert out.shape == (B, n_classes) and bool(jnp.all(jnp.isfinite(out)))
    print("KERNEL_OK")
</pallas_src>

<mosaic_0001>
module attributes {stable_mosaic.version = 11 : i64} {
  func.func @kernel(%arg0: memref<16x12xf32, #tpu.memory_space<vmem>>, %arg1: memref<8x8xf32, #tpu.memory_space<vmem>>, %arg2: memref<16x32xf32, #tpu.memory_space<vmem>>, %arg3: memref<12x32xf32, #tpu.memory_space<vmem>>, %arg4: memref<1x32xf32, #tpu.memory_space<vmem>>, %arg5: memref<2x32x96xf32, #tpu.memory_space<vmem>>, %arg6: memref<2x1x96xf32, #tpu.memory_space<vmem>>, %arg7: memref<2x32x32xf32, #tpu.memory_space<vmem>>, %arg8: memref<2x1x32xf32, #tpu.memory_space<vmem>>, %arg9: memref<2x32x64xf32, #tpu.memory_space<vmem>>, %arg10: memref<2x1x64xf32, #tpu.memory_space<vmem>>, %arg11: memref<2x64x32xf32, #tpu.memory_space<vmem>>, %arg12: memref<2x1x32xf32, #tpu.memory_space<vmem>>, %arg13: memref<2x1x32xf32, #tpu.memory_space<vmem>>, %arg14: memref<2x1x32xf32, #tpu.memory_space<vmem>>, %arg15: memref<2x1x32xf32, #tpu.memory_space<vmem>>, %arg16: memref<2x1x32xf32, #tpu.memory_space<vmem>>, %arg17: memref<32x10xf32, #tpu.memory_space<vmem>>, %arg18: memref<1x10xf32, #tpu.memory_space<vmem>>, %arg19: memref<2x10xf32, #tpu.memory_space<vmem>>) attributes {dimension_semantics = [], scalar_prefetch = 0 : i64, scratch_operands = 0 : i64, tpu.core_type = #tpu.core_type<tc>} {
    %c0 = arith.constant 0 : index
    %c0_0 = arith.constant 0 : index
    %0 = vector.load %arg0[%c0, %c0_0] : memref<16x12xf32, #tpu.memory_space<vmem>>, vector<16x12xf32>
    %c0_1 = arith.constant 0 : index
    %c0_2 = arith.constant 0 : index
    %1 = vector.load %arg3[%c0_1, %c0_2] : memref<12x32xf32, #tpu.memory_space<vmem>>, vector<12x32xf32>
    %cst = arith.constant dense<0.000000e+00> : vector<16x32xf32>
    %2 = tpu.matmul %0, %1, %cst {dimension_numbers = #tpu.dot_dimension_numbers<[1], [0], [0], [1], [0, 0, 1, 1], [], []>} : vector<16x12xf32>, vector<12x32xf32>, vector<16x32xf32> -> vector<16x32xf32>
    %c0_3 = arith.constant 0 : index
    %c0_4 = arith.constant 0 : index
    %3 = vector.load %arg4[%c0_3, %c0_4] : memref<1x32xf32, #tpu.memory_space<vmem>>, vector<1x32xf32>
    %4 = vector.broadcast %3 : vector<1x32xf32> to vector<16x32xf32>
    %5 = arith.addf %2, %4 : vector<16x32xf32>
    %cst_5 = arith.constant 5.65685415 : f32
    %6 = vector.broadcast %cst_5 : f32 to vector<16x32xf32>
    %7 = arith.mulf %5, %6 : vector<16x32xf32>
    %c0_6 = arith.constant 0 : index
    %c0_7 = arith.constant 0 : index
    %8 = vector.load %arg2[%c0_6, %c0_7] : memref<16x32xf32, #tpu.memory_space<vmem>>, vector<16x32xf32>
    %9 = arith.addf %7, %8 : vector<16x32xf32>
    %c0_8 = arith.constant 0 : index
    %c0_9 = arith.constant 0 : index
    %10 = vector.load %arg1[%c0_8, %c0_9] : memref<8x8xf32, #tpu.memory_space<vmem>>, vector<8x8xf32>
    %11 = vector.shape_cast %10 : vector<8x8xf32> to vector<1x8x8xf32>
    %c0_10 = arith.constant 0 : index
    %c0_11 = arith.constant 0 : index
    %c0_12 = arith.constant 0 : index
    %12 = vector.load %arg5[%c0_10, %c0_11, %c0_12] : memref<2x32x96xf32, #tpu.memory_space<vmem>>, vector<1x32x96xf32>
    %13 = vector.shape_cast %12 : vector<1x32x96xf32> to vector<32x96xf32>
    %cst_13 = arith.constant dense<0.000000e+00> : vector<16x96xf32>
    %14 = tpu.matmul %9, %13, %cst_13 {dimension_numbers = #tpu.dot_dimension_numbers<[1], [0], [0], [1], [0, 0, 1, 1], [], []>} : vector<16x32xf32>, vector<32x96xf32>, vector<16x96xf32> -> vector<16x96xf32>
    %c0_14 = arith.constant 0 : index
    %c0_15 = arith.constant 0 : index
    %c0_16 = arith.constant 0 : index
    %15 = vector.load %arg6[%c0_14, %c0_15, %c0_16] : memref<2x1x96xf32, #tpu.memory_space<vmem>>, vector<1x1x96xf32>
    %16 = vector.shape_cast %15 : vector<1x1x96xf32> to vector<1x96xf32>
    %17 = vector.broadcast %16 : vector<1x96xf32> to vector<16x96xf32>
    %18 = arith.addf %14, %17 : vector<16x96xf32>
    %19 = vector.extract_strided_slice %18 {offsets = [0, 0], sizes = [16, 32], strides = [1, 1]} : vector<16x96xf32> to vector<16x32xf32>
    %cst_17 = arith.constant 0.353553385 : f32
    %20 = vector.broadcast %cst_17 : f32 to vector<16x32xf32>
    %21 = arith.mulf %19, %20 : vector<16x32xf32>
    %22 = vector.extract_strided_slice %18 {offsets = [0, 32], sizes = [16, 32], strides = [1, 1]} : vector<16x96xf32> to vector<16x32xf32>
    %23 = vector.extract_strided_slice %18 {offsets = [0, 64], sizes = [16, 32], strides = [1, 1]} : vector<16x96xf32> to vector<16x32xf32>
    %24 = vector.extract_strided_slice %21 {offsets = [0, 0], sizes = [8, 32], strides = [1, 1]} : vector<16x32xf32> to vector<8x32xf32>
    %25 = vector.shape_cast %24 : vector<8x32xf32> to vector<8x4x8xf32>
    %26 = vector.extract_strided_slice %22 {offsets = [0, 0], sizes = [8, 32], strides = [1, 1]} : vector<16x32xf32> to vector<8x32xf32>
    %27 = vector.shape_cast %26 : vector<8x32xf32> to vector<8x4x8xf32>
    %28 = vector.extract_strided_slice %23 {offsets = [0, 0], sizes = [8, 32], strides = [1, 1]} : vector<16x32xf32> to vector<8x32xf32>
    %29 = vector.shape_cast %28 : vector<8x32xf32> to vector<8x4x8xf32>
    "tpu.trace_start"() <{level = 10 : i32, message = "qhd,khd->hqk"}> : () -> ()
    %cst_18 = arith.constant dense<0.000000e+00> : vector<4x8x8xf32>
    %30 = tpu.matmul %25, %27, %cst_18 {dimension_numbers = #tpu.dot_dimension_numbers<[2], [2], [0], [0], [0, 1, 0, 0, 1, 0], [1], [1]>} : vector<8x4x8xf32>, vector<8x4x8xf32>, vector<4x8x8xf32> -> vector<4x8x8xf32>
    "tpu.trace_stop"() : () -> ()
    %31 = vector.broadcast %11 : vector<1x8x8xf32> to vector<4x8x8xf32>
    %32 = arith.addf %30, %31 : vector<4x8x8xf32>
    %cst_19 = arith.constant dense<0xFF800000> : vector<4x8xf32>
    %33 = vector.multi_reduction <maximumf>, %32, %cst_19 [2] : vector<4x8x8xf32> to vector<4x8xf32>
    %34 = vector.shape_cast %33 : vector<4x8xf32> to vector<4x8x1xf32>
    %35 = vector.broadcast %34 : vector<4x8x1xf32> to vector<4x8x8xf32>
    %36 = arith.subf %32, %35 : vector<4x8x8xf32>
    %37 = math.exp %36 : vector<4x8x8xf32>
    %cst_20 = arith.constant dense<0.000000e+00> : vector<4x8xf32>
    %38 = vector.multi_reduction <add>, %37, %cst_20 [2] : vector<4x8x8xf32> to vector<4x8xf32>
    %39 = vector.shape_cast %38 : vector<4x8xf32> to vector<4x8x1xf32>
    %40 = tpu.reciprocal %39 {approx = true} : vector<4x8x1xf32> -> vector<4x8x1xf32>
    %41 = vector.broadcast %40 : vector<4x8x1xf32> to vector<4x8x8xf32>
    %42 = arith.mulf %37, %41 : vector<4x8x8xf32>
    "tpu.trace_start"() <{level = 10 : i32, message = "hqk,khd->qhd"}> : () -> ()
    %cst_21 = arith.constant dense<0.000000e+00> : vector<4x8x8xf32>
    %43 = tpu.matmul %29, %42, %cst_21 {dimension_numbers = #tpu.dot_dimension_numbers<[0], [2], [2], [1], [0, 1, 0, 2, 1, 1], [1], [0]>} : vector<8x4x8xf32>, vector<4x8x8xf32>, vector<4x8x8xf32> -> vector<4x8x8xf32>
    %44 = tpu.transpose %43, [2, 0, 1] : vector<4x8x8xf32> -> vector<8x4x8xf32>
    "tpu.trace_stop"() : () -> ()
    %45 = vector.shape_cast %44 : vector<8x4x8xf32> to vector<8x32xf32>
    %46 = vector.extract_strided_slice %21 {offsets = [8, 0], sizes = [8, 32], strides = [1, 1]} : vector<16x32xf32> to vector<8x32xf32>
    %47 = vector.shape_cast %46 : vector<8x32xf32> to vector<8x4x8xf32>
    %48 = vector.extract_strided_slice %22 {offsets = [8, 0], sizes = [8, 32], strides = [1, 1]} : vector<16x32xf32> to vector<8x32xf32>
    %49 = vector.shape_cast %48 : vector<8x32xf32> to vector<8x4x8xf32>
    %50 = vector.extract_strided_slice %23 {offsets = [8, 0], sizes = [8, 32], strides = [1, 1]} : vector<16x32xf32> to vector<8x32xf32>
    %51 = vector.shape_cast %50 : vector<8x32xf32> to vector<8x4x8xf32>
    "tpu.trace_start"() <{level = 10 : i32, message = "qhd,khd->hqk"}> : () -> ()
    %cst_22 = arith.constant dense<0.000000e+00> : vector<4x8x8xf32>
    %52 = tpu.matmul %47, %49, %cst_22 {dimension_numbers = #tpu.dot_dimension_numbers<[2], [2], [0], [0], [0, 1, 0, 0, 1, 0], [1], [1]>} : vector<8x4x8xf32>, vector<8x4x8xf32>, vector<4x8x8xf32> -> vector<4x8x8xf32>
    "tpu.trace_stop"() : () -> ()
    %53 = vector.broadcast %11 : vector<1x8x8xf32> to vector<4x8x8xf32>
    %54 = arith.addf %52, %53 : vector<4x8x8xf32>
    %cst_23 = arith.constant dense<0xFF800000> : vector<4x8xf32>
    %55 = vector.multi_reduction <maximumf>, %54, %cst_23 [2] : vector<4x8x8xf32> to vector<4x8xf32>
    %56 = vector.shape_cast %55 : vector<4x8xf32> to vector<4x8x1xf32>
    %57 = vector.broadcast %56 : vector<4x8x1xf32> to vector<4x8x8xf32>
    %58 = arith.subf %54, %57 : vector<4x8x8xf32>
    %59 = math.exp %58 : vector<4x8x8xf32>
    %cst_24 = arith.constant dense<0.000000e+00> : vector<4x8xf32>
    %60 = vector.multi_reduction <add>, %59, %cst_24 [2] : vector<4x8x8xf32> to vector<4x8xf32>
    %61 = vector.shape_cast %60 : vector<4x8xf32> to vector<4x8x1xf32>
    %62 = tpu.reciprocal %61 {approx = true} : vector<4x8x1xf32> -> vector<4x8x1xf32>
    %63 = vector.broadcast %62 : vector<4x8x1xf32> to vector<4x8x8xf32>
    %64 = arith.mulf %59, %63 : vector<4x8x8xf32>
    "tpu.trace_start"() <{level = 10 : i32, message = "hqk,khd->qhd"}> : () -> ()
    %cst_25 = arith.constant dense<0.000000e+00> : vector<4x8x8xf32>
    %65 = tpu.matmul %51, %64, %cst_25 {dimension_numbers = #tpu.dot_dimension_numbers<[0], [2], [2], [1], [0, 1, 0, 2, 1, 1], [1], [0]>} : vector<8x4x8xf32>, vector<4x8x8xf32>, vector<4x8x8xf32> -> vector<4x8x8xf32>
    %66 = tpu.transpose %65, [2, 0, 1] : vector<4x8x8xf32> -> vector<8x4x8xf32>
    "tpu.trace_stop"() : () -> ()
    %67 = vector.shape_cast %66 : vector<8x4x8xf32> to vector<8x32xf32>
    %68 = tpu.concatenate %45, %67 in 0 : vector<8x32xf32>, vector<8x32xf32> -> vector<16x32xf32>
    %c0_26 = arith.constant 0 : index
    %c0_27 = arith.constant 0 : index
    %c0_28 = arith.constant 0 : index
    %69 = vector.load %arg7[%c0_26, %c0_27, %c0_28] : memref<2x32x32xf32, #tpu.memory_space<vmem>>, vector<1x32x32xf32>
    %70 = vector.shape_cast %69 : vector<1x32x32xf32> to vector<32x32xf32>
    %cst_29 = arith.constant dense<0.000000e+00> : vector<16x32xf32>
    %71 = tpu.matmul %68, %70, %cst_29 {dimension_numbers = #tpu.dot_dimension_numbers<[1], [0], [0], [1], [0, 0, 1, 1], [], []>} : vector<16x32xf32>, vector<32x32xf32>, vector<16x32xf32> -> vector<16x32xf32>
    %c0_30 = arith.constant 0 : index
    %c0_31 = arith.constant 0 : index
    %c0_32 = arith.constant 0 : index
    %72 = vector.load %arg8[%c0_30, %c0_31, %c0_32] : memref<2x1x32xf32, #tpu.memory_space<vmem>>, vector<1x1x32xf32>
    %73 = vector.shape_cast %72 : vector<1x1x32xf32> to vector<1x32xf32>
    %74 = vector.broadcast %73 : vector<1x32xf32> to vector<16x32xf32>
    %75 = arith.addf %71, %74 : vector<16x32xf32>
    %76 = arith.addf %9, %75 : vector<16x32xf32>
    %c0_33 = arith.constant 0 : index
    %c0_34 = arith.constant 0 : index
    %c0_35 = arith.constant 0 : index
    %77 = vector.load %arg13[%c0_33, %c0_34, %c0_35] : memref<2x1x32xf32, #tpu.memory_space<vmem>>, vector<1x1x32xf32>
    %78 = vector.shape_cast %77 : vector<1x1x32xf32> to vector<1x32xf32>
    %c0_36 = arith.constant 0 : index
    %c0_37 = arith.constant 0 : index
    %c0_38 = arith.constant 0 : index
    %79 = vector.load %arg14[%c0_36, %c0_37, %c0_38] : memref<2x1x32xf32, #tpu.memory_space<vmem>>, vector<1x1x32xf32>
    %80 = vector.shape_cast %79 : vector<1x1x32xf32> to vector<1x32xf32>
    %cst_39 = arith.constant dense<0.000000e+00> : vector<16xf32>
    %81 = vector.multi_reduction <add>, %76, %cst_39 [1] : vector<16x32xf32> to vector<16xf32>
    %82 = vector.shape_cast %81 : vector<16xf32> to vector<16x1xf32>
    %cst_40 = arith.constant 3.200000e+01 : f32
    %83 = vector.broadcast %cst_40 : f32 to vector<16x1xf32>
    %84 = arith.divf %82, %83 : vector<16x1xf32>
    %85 = vector.broadcast %84 : vector<16x1xf32> to vector<16x32xf32>
    %86 = arith.subf %76, %85 : vector<16x32xf32>
    %87 = arith.mulf %86, %86 : vector<16x32xf32>
    %cst_41 = arith.constant dense<0.000000e+00> : vector<16xf32>
    %88 = vector.multi_reduction <add>, %87, %cst_41 [1] : vector<16x32xf32> to vector<16xf32>
    %89 = vector.shape_cast %88 : vector<16xf32> to vector<16x1xf32>
    %cst_42 = arith.constant 3.200000e+01 : f32
    %90 = vector.broadcast %cst_42 : f32 to vector<16x1xf32>
    %91 = arith.divf %89, %90 : vector<16x1xf32>
    %92 = vector.broadcast %84 : vector<16x1xf32> to vector<16x32xf32>
    %93 = arith.subf %76, %92 : vector<16x32xf32>
    %cst_43 = arith.constant 9.99999974E-6 : f32
    %94 = vector.broadcast %cst_43 : f32 to vector<16x1xf32>
    %95 = arith.addf %91, %94 : vector<16x1xf32>
    %96 = math.rsqrt %95 : vector<16x1xf32>
    %97 = vector.broadcast %96 : vector<16x1xf32> to vector<16x32xf32>
    %98 = arith.mulf %93, %97 : vector<16x32xf32>
    %99 = vector.broadcast %78 : vector<1x32xf32> to vector<16x32xf32>
    %100 = arith.mulf %98, %99 : vector<16x32xf32>
    %101 = vector.broadcast %80 : vector<1x32xf32> to vector<16x32xf32>
    %102 = arith.addf %100, %101 : vector<16x32xf32>
    %c0_44 = arith.constant 0 : index
    %c0_45 = arith.constant 0 : index
    %c0_46 = arith.constant 0 : index
    %103 = vector.load %arg9[%c0_44, %c0_45, %c0_46] : memref<2x32x64xf32, #tpu.memory_space<vmem>>, vector<1x32x64xf32>
    %104 = vector.shape_cast %103 : vector<1x32x64xf32> to vector<32x64xf32>
    %cst_47 = arith.constant dense<0.000000e+00> : vector<16x64xf32>
    %105 = tpu.matmul %102, %104, %cst_47 {dimension_numbers = #tpu.dot_dimension_numbers<[1], [0], [0], [1], [0, 0, 1, 1], [], []>} : vector<16x32xf32>, vector<32x64xf32>, vector<16x64xf32> -> vector<16x64xf32>
    %c0_48 = arith.constant 0 : index
    %c0_49 = arith.constant 0 : index
    %c0_50 = arith.constant 0 : index
    %106 = vector.load %arg10[%c0_48, %c0_49, %c0_50] : memref<2x1x64xf32, #tpu.memory_space<vmem>>, vector<1x1x64xf32>
    %107 = vector.shape_cast %106 : vector<1x1x64xf32> to vector<1x64xf32>
    %108 = vector.broadcast %107 : vector<1x64xf32> to vector<16x64xf32>
    %109 = arith.addf %105, %108 : vector<16x64xf32>
    %cst_51 = arith.constant 0.000000e+00 : f32
    %110 = vector.broadcast %cst_51 : f32 to vector<16x64xf32>
    %111 = arith.maximumf %109, %110 : vector<16x64xf32>
    %c0_52 = arith.constant 0 : index
    %c0_53 = arith.constant 0 : index
    %c0_54 = arith.constant 0 : index
    %112 = vector.load %arg11[%c0_52, %c0_53, %c0_54] : memref<2x64x32xf32, #tpu.memory_space<vmem>>, vector<1x64x32xf32>
    %113 = vector.shape_cast %112 : vector<1x64x32xf32> to vector<64x32xf32>
    %cst_55 = arith.constant dense<0.000000e+00> : vector<16x32xf32>
    %114 = tpu.matmul %111, %113, %cst_55 {dimension_numbers = #tpu.dot_dimension_numbers<[1], [0], [0], [1], [0, 0, 1, 1], [], []>} : vector<16x64xf32>, vector<64x32xf32>, vector<16x32xf32> -> vector<16x32xf32>
    %c0_56 = arith.constant 0 : index
    %c0_57 = arith.constant 0 : index
    %c0_58 = arith.constant 0 : index
    %115 = vector.load %arg12[%c0_56, %c0_57, %c0_58] : memref<2x1x32xf32, #tpu.memory_space<vmem>>, vector<1x1x32xf32>
    %116 = vector.shape_cast %115 : vector<1x1x32xf32> to vector<1x32xf32>
    %117 = vector.broadcast %116 : vector<1x32xf32> to vector<16x32xf32>
    %118 = arith.addf %114, %117 : vector<16x32xf32>
    %119 = arith.addf %102, %118 : vector<16x32xf32>
    %c0_59 = arith.constant 0 : index
    %c0_60 = arith.constant 0 : index
    %c0_61 = arith.constant 0 : index
    %120 = vector.load %arg15[%c0_59, %c0_60, %c0_61] : memref<2x1x32xf32, #tpu.memory_space<vmem>>, vector<1x1x32xf32>
    %121 = vector.shape_cast %120 : vector<1x1x32xf32> to vector<1x32xf32>
    %c0_62 = arith.constant 0 : index
    %c0_63 = arith.constant 0 : index
    %c0_64 = arith.constant 0 : index
    %122 = vector.load %arg16[%c0_62, %c0_63, %c0_64] : memref<2x1x32xf32, #tpu.memory_space<vmem>>, vector<1x1x32xf32>
    %123 = vector.shape_cast %122 : vector<1x1x32xf32> to vector<1x32xf32>
    %cst_65 = arith.constant dense<0.000000e+00> : vector<16xf32>
    %124 = vector.multi_reduction <add>, %119, %cst_65 [1] : vector<16x32xf32> to vector<16xf32>
    %125 = vector.shape_cast %124 : vector<16xf32> to vector<16x1xf32>
    %cst_66 = arith.constant 3.200000e+01 : f32
    %126 = vector.broadcast %cst_66 : f32 to vector<16x1xf32>
    %127 = arith.divf %125, %126 : vector<16x1xf32>
    %128 = vector.broadcast %127 : vector<16x1xf32> to vector<16x32xf32>
    %129 = arith.subf %119, %128 : vector<16x32xf32>
    %130 = arith.mulf %129, %129 : vector<16x32xf32>
    %cst_67 = arith.constant dense<0.000000e+00> : vector<16xf32>
    %131 = vector.multi_reduction <add>, %130, %cst_67 [1] : vector<16x32xf32> to vector<16xf32>
    %132 = vector.shape_cast %131 : vector<16xf32> to vector<16x1xf32>
    %cst_68 = arith.constant 3.200000e+01 : f32
    %133 = vector.broadcast %cst_68 : f32 to vector<16x1xf32>
    %134 = arith.divf %132, %133 : vector<16x1xf32>
    %135 = vector.broadcast %127 : vector<16x1xf32> to vector<16x32xf32>
    %136 = arith.subf %119, %135 : vector<16x32xf32>
    %cst_69 = arith.constant 9.99999974E-6 : f32
    %137 = vector.broadcast %cst_69 : f32 to vector<16x1xf32>
    %138 = arith.addf %134, %137 : vector<16x1xf32>
    %139 = math.rsqrt %138 : vector<16x1xf32>
    %140 = vector.broadcast %139 : vector<16x1xf32> to vector<16x32xf32>
    %141 = arith.mulf %136, %140 : vector<16x32xf32>
    %142 = vector.broadcast %121 : vector<1x32xf32> to vector<16x32xf32>
    %143 = arith.mulf %141, %142 : vector<16x32xf32>
    %144 = vector.broadcast %123 : vector<1x32xf32> to vector<16x32xf32>
    %145 = arith.addf %143, %144 : vector<16x32xf32>
    %c1 = arith.constant 1 : index
    %c0_70 = arith.constant 0 : index
    %c0_71 = arith.constant 0 : index
    %146 = vector.load %arg5[%c1, %c0_70, %c0_71] : memref<2x32x96xf32, #tpu.memory_space<vmem>>, vector<1x32x96xf32>
    %147 = vector.shape_cast %146 : vector<1x32x96xf32> to vector<32x96xf32>
    %cst_72 = arith.constant dense<0.000000e+00> : vector<16x96xf32>
    %148 = tpu.matmul %145, %147, %cst_72 {dimension_numbers = #tpu.dot_dimension_numbers<[1], [0], [0], [1], [0, 0, 1, 1], [], []>} : vector<16x32xf32>, vector<32x96xf32>, vector<16x96xf32> -> vector<16x96xf32>
    %c1_73 = arith.constant 1 : index
    %c0_74 = arith.constant 0 : index
    %c0_75 = arith.constant 0 : index
    %149 = vector.load %arg6[%c1_73, %c0_74, %c0_75] : memref<2x1x96xf32, #tpu.memory_space<vmem>>, vector<1x1x96xf32>
    %150 = vector.shape_cast %149 : vector<1x1x96xf32> to vector<1x96xf32>
    %151 = vector.broadcast %150 : vector<1x96xf32> to vector<16x96xf32>
    %152 = arith.addf %148, %151 : vector<16x96xf32>
    %153 = vector.extract_strided_slice %152 {offsets = [0, 0], sizes = [16, 32], strides = [1, 1]} : vector<16x96xf32> to vector<16x32xf32>
    %cst_76 = arith.constant 0.353553385 : f32
    %154 = vector.broadcast %cst_76 : f32 to vector<16x32xf32>
    %155 = arith.mulf %153, %154 : vector<16x32xf32>
    %156 = vector.extract_strided_slice %152 {offsets = [0, 32], sizes = [16, 32], strides = [1, 1]} : vector<16x96xf32> to vector<16x32xf32>
    %157 = vector.extract_strided_slice %152 {offsets = [0, 64], sizes = [16, 32], strides = [1, 1]} : vector<16x96xf32> to vector<16x32xf32>
    %158 = vector.extract_strided_slice %155 {offsets = [0, 0], sizes = [8, 32], strides = [1, 1]} : vector<16x32xf32> to vector<8x32xf32>
    %159 = vector.shape_cast %158 : vector<8x32xf32> to vector<8x4x8xf32>
    %160 = vector.extract_strided_slice %156 {offsets = [0, 0], sizes = [8, 32], strides = [1, 1]} : vector<16x32xf32> to vector<8x32xf32>
    %161 = vector.shape_cast %160 : vector<8x32xf32> to vector<8x4x8xf32>
    %162 = vector.extract_strided_slice %157 {offsets = [0, 0], sizes = [8, 32], strides = [1, 1]} : vector<16x32xf32> to vector<8x32xf32>
    %163 = vector.shape_cast %162 : vector<8x32xf32> to vector<8x4x8xf32>
    "tpu.trace_start"() <{level = 10 : i32, message = "qhd,khd->hqk"}> : () -> ()
    %cst_77 = arith.constant dense<0.000000e+00> : vector<4x8x8xf32>
    %164 = tpu.matmul %159, %161, %cst_77 {dimension_numbers = #tpu.dot_dimension_numbers<[2], [2], [0], [0], [0, 1, 0, 0, 1, 0], [1], [1]>} : vector<8x4x8xf32>, vector<8x4x8xf32>, vector<4x8x8xf32> -> vector<4x8x8xf32>
    "tpu.trace_stop"() : () -> ()
    %165 = vector.broadcast %11 : vector<1x8x8xf32> to vector<4x8x8xf32>
    %166 = arith.addf %164, %165 : vector<4x8x8xf32>
    %cst_78 = arith.constant dense<0xFF800000> : vector<4x8xf32>
    %167 = vector.multi_reduction <maximumf>, %166, %cst_78 [2] : vector<4x8x8xf32> to vector<4x8xf32>
    %168 = vector.shape_cast %167 : vector<4x8xf32> to vector<4x8x1xf32>
    %169 = vector.broadcast %168 : vector<4x8x1xf32> to vector<4x8x8xf32>
    %170 = arith.subf %166, %169 : vector<4x8x8xf32>
    %171 = math.exp %170 : vector<4x8x8xf32>
    %cst_79 = arith.constant dense<0.000000e+00> : vector<4x8xf32>
    %172 = vector.multi_reduction <add>, %171, %cst_79 [2] : vector<4x8x8xf32> to vector<4x8xf32>
    %173 = vector.shape_cast %172 : vector<4x8xf32> to vector<4x8x1xf32>
    %174 = tpu.reciprocal %173 {approx = true} : vector<4x8x1xf32> -> vector<4x8x1xf32>
    %175 = vector.broadcast %174 : vector<4x8x1xf32> to vector<4x8x8xf32>
    %176 = arith.mulf %171, %175 : vector<4x8x8xf32>
    "tpu.trace_start"() <{level = 10 : i32, message = "hqk,khd->qhd"}> : () -> ()
    %cst_80 = arith.constant dense<0.000000e+00> : vector<4x8x8xf32>
    %177 = tpu.matmul %163, %176, %cst_80 {dimension_numbers = #tpu.dot_dimension_numbers<[0], [2], [2], [1], [0, 1, 0, 2, 1, 1], [1], [0]>} : vector<8x4x8xf32>, vector<4x8x8xf32>, vector<4x8x8xf32> -> vector<4x8x8xf32>
    %178 = tpu.transpose %177, [2, 0, 1] : vector<4x8x8xf32> -> vector<8x4x8xf32>
    "tpu.trace_stop"() : () -> ()
    %179 = vector.shape_cast %178 : vector<8x4x8xf32> to vector<8x32xf32>
    %180 = vector.extract_strided_slice %155 {offsets = [8, 0], sizes = [8, 32], strides = [1, 1]} : vector<16x32xf32> to vector<8x32xf32>
    %181 = vector.shape_cast %180 : vector<8x32xf32> to vector<8x4x8xf32>
    %182 = vector.extract_strided_slice %156 {offsets = [8, 0], sizes = [8, 32], strides = [1, 1]} : vector<16x32xf32> to vector<8x32xf32>
    %183 = vector.shape_cast %182 : vector<8x32xf32> to vector<8x4x8xf32>
    %184 = vector.extract_strided_slice %157 {offsets = [8, 0], sizes = [8, 32], strides = [1, 1]} : vector<16x32xf32> to vector<8x32xf32>
    %185 = vector.shape_cast %184 : vector<8x32xf32> to vector<8x4x8xf32>
    "tpu.trace_start"() <{level = 10 : i32, message = "qhd,khd->hqk"}> : () -> ()
    %cst_81 = arith.constant dense<0.000000e+00> : vector<4x8x8xf32>
    %186 = tpu.matmul %181, %183, %cst_81 {dimension_numbers = #tpu.dot_dimension_numbers<[2], [2], [0], [0], [0, 1, 0, 0, 1, 0], [1], [1]>} : vector<8x4x8xf32>, vector<8x4x8xf32>, vector<4x8x8xf32> -> vector<4x8x8xf32>
    "tpu.trace_stop"() : () -> ()
    %187 = vector.broadcast %11 : vector<1x8x8xf32> to vector<4x8x8xf32>
    %188 = arith.addf %186, %187 : vector<4x8x8xf32>
    %cst_82 = arith.constant dense<0xFF800000> : vector<4x8xf32>
    %189 = vector.multi_reduction <maximumf>, %188, %cst_82 [2] : vector<4x8x8xf32> to vector<4x8xf32>
    %190 = vector.shape_cast %189 : vector<4x8xf32> to vector<4x8x1xf32>
    %191 = vector.broadcast %190 : vector<4x8x1xf32> to vector<4x8x8xf32>
    %192 = arith.subf %188, %191 : vector<4x8x8xf32>
    %193 = math.exp %192 : vector<4x8x8xf32>
    %cst_83 = arith.constant dense<0.000000e+00> : vector<4x8xf32>
    %194 = vector.multi_reduction <add>, %193, %cst_83 [2] : vector<4x8x8xf32> to vector<4x8xf32>
    %195 = vector.shape_cast %194 : vector<4x8xf32> to vector<4x8x1xf32>
    %196 = tpu.reciprocal %195 {approx = true} : vector<4x8x1xf32> -> vector<4x8x1xf32>
    %197 = vector.broadcast %196 : vector<4x8x1xf32> to vector<4x8x8xf32>
    %198 = arith.mulf %193, %197 : vector<4x8x8xf32>
    "tpu.trace_start"() <{level = 10 : i32, message = "hqk,khd->qhd"}> : () -> ()
    %cst_84 = arith.constant dense<0.000000e+00> : vector<4x8x8xf32>
    %199 = tpu.matmul %185, %198, %cst_84 {dimension_numbers = #tpu.dot_dimension_numbers<[0], [2], [2], [1], [0, 1, 0, 2, 1, 1], [1], [0]>} : vector<8x4x8xf32>, vector<4x8x8xf32>, vector<4x8x8xf32> -> vector<4x8x8xf32>
    %200 = tpu.transpose %199, [2, 0, 1] : vector<4x8x8xf32> -> vector<8x4x8xf32>
    "tpu.trace_stop"() : () -> ()
    %201 = vector.shape_cast %200 : vector<8x4x8xf32> to vector<8x32xf32>
    %202 = tpu.concatenate %179, %201 in 0 : vector<8x32xf32>, vector<8x32xf32> -> vector<16x32xf32>
    %c1_85 = arith.constant 1 : index
    %c0_86 = arith.constant 0 : index
    %c0_87 = arith.constant 0 : index
    %203 = vector.load %arg7[%c1_85, %c0_86, %c0_87] : memref<2x32x32xf32, #tpu.memory_space<vmem>>, vector<1x32x32xf32>
    %204 = vector.shape_cast %203 : vector<1x32x32xf32> to vector<32x32xf32>
    %cst_88 = arith.constant dense<0.000000e+00> : vector<16x32xf32>
    %205 = tpu.matmul %202, %204, %cst_88 {dimension_numbers = #tpu.dot_dimension_numbers<[1], [0], [0], [1], [0, 0, 1, 1], [], []>} : vector<16x32xf32>, vector<32x32xf32>, vector<16x32xf32> -> vector<16x32xf32>
    %c1_89 = arith.constant 1 : index
    %c0_90 = arith.constant 0 : index
    %c0_91 = arith.constant 0 : index
    %206 = vector.load %arg8[%c1_89, %c0_90, %c0_91] : memref<2x1x32xf32, #tpu.memory_space<vmem>>, vector<1x1x32xf32>
    %207 = vector.shape_cast %206 : vector<1x1x32xf32> to vector<1x32xf32>
    %208 = vector.broadcast %207 : vector<1x32xf32> to vector<16x32xf32>
    %209 = arith.addf %205, %208 : vector<16x32xf32>
    %210 = arith.addf %145, %209 : vector<16x32xf32>
    %c1_92 = arith.constant 1 : index
    %c0_93 = arith.constant 0 : index
    %c0_94 = arith.constant 0 : index
    %211 = vector.load %arg13[%c1_92, %c0_93, %c0_94] : memref<2x1x32xf32, #tpu.memory_space<vmem>>, vector<1x1x32xf32>
    %212 = vector.shape_cast %211 : vector<1x1x32xf32> to vector<1x32xf32>
    %c1_95 = arith.constant 1 : index
    %c0_96 = arith.constant 0 : index
    %c0_97 = arith.constant 0 : index
    %213 = vector.load %arg14[%c1_95, %c0_96, %c0_97] : memref<2x1x32xf32, #tpu.memory_space<vmem>>, vector<1x1x32xf32>
    %214 = vector.shape_cast %213 : vector<1x1x32xf32> to vector<1x32xf32>
    %cst_98 = arith.constant dense<0.000000e+00> : vector<16xf32>
    %215 = vector.multi_reduction <add>, %210, %cst_98 [1] : vector<16x32xf32> to vector<16xf32>
    %216 = vector.shape_cast %215 : vector<16xf32> to vector<16x1xf32>
    %cst_99 = arith.constant 3.200000e+01 : f32
    %217 = vector.broadcast %cst_99 : f32 to vector<16x1xf32>
    %218 = arith.divf %216, %217 : vector<16x1xf32>
    %219 = vector.broadcast %218 : vector<16x1xf32> to vector<16x32xf32>
    %220 = arith.subf %210, %219 : vector<16x32xf32>
    %221 = arith.mulf %220, %220 : vector<16x32xf32>
    %cst_100 = arith.constant dense<0.000000e+00> : vector<16xf32>
    %222 = vector.multi_reduction <add>, %221, %cst_100 [1] : vector<16x32xf32> to vector<16xf32>
    %223 = vector.shape_cast %222 : vector<16xf32> to vector<16x1xf32>
    %cst_101 = arith.constant 3.200000e+01 : f32
    %224 = vector.broadcast %cst_101 : f32 to vector<16x1xf32>
    %225 = arith.divf %223, %224 : vector<16x1xf32>
    %226 = vector.broadcast %218 : vector<16x1xf32> to vector<16x32xf32>
    %227 = arith.subf %210, %226 : vector<16x32xf32>
    %cst_102 = arith.constant 9.99999974E-6 : f32
    %228 = vector.broadcast %cst_102 : f32 to vector<16x1xf32>
    %229 = arith.addf %225, %228 : vector<16x1xf32>
    %230 = math.rsqrt %229 : vector<16x1xf32>
    %231 = vector.broadcast %230 : vector<16x1xf32> to vector<16x32xf32>
    %232 = arith.mulf %227, %231 : vector<16x32xf32>
    %233 = vector.broadcast %212 : vector<1x32xf32> to vector<16x32xf32>
    %234 = arith.mulf %232, %233 : vector<16x32xf32>
    %235 = vector.broadcast %214 : vector<1x32xf32> to vector<16x32xf32>
    %236 = arith.addf %234, %235 : vector<16x32xf32>
    %c1_103 = arith.constant 1 : index
    %c0_104 = arith.constant 0 : index
    %c0_105 = arith.constant 0 : index
    %237 = vector.load %arg9[%c1_103, %c0_104, %c0_105] : memref<2x32x64xf32, #tpu.memory_space<vmem>>, vector<1x32x64xf32>
    %238 = vector.shape_cast %237 : vector<1x32x64xf32> to vector<32x64xf32>
    %cst_106 = arith.constant dense<0.000000e+00> : vector<16x64xf32>
    %239 = tpu.matmul %236, %238, %cst_106 {dimension_numbers = #tpu.dot_dimension_numbers<[1], [0], [0], [1], [0, 0, 1, 1], [], []>} : vector<16x32xf32>, vector<32x64xf32>, vector<16x64xf32> -> vector<16x64xf32>
    %c1_107 = arith.constant 1 : index
    %c0_108 = arith.constant 0 : index
    %c0_109 = arith.constant 0 : index
    %240 = vector.load %arg10[%c1_107, %c0_108, %c0_109] : memref<2x1x64xf32, #tpu.memory_space<vmem>>, vector<1x1x64xf32>
    %241 = vector.shape_cast %240 : vector<1x1x64xf32> to vector<1x64xf32>
    %242 = vector.broadcast %241 : vector<1x64xf32> to vector<16x64xf32>
    %243 = arith.addf %239, %242 : vector<16x64xf32>
    %cst_110 = arith.constant 0.000000e+00 : f32
    %244 = vector.broadcast %cst_110 : f32 to vector<16x64xf32>
    %245 = arith.maximumf %243, %244 : vector<16x64xf32>
    %c1_111 = arith.constant 1 : index
    %c0_112 = arith.constant 0 : index
    %c0_113 = arith.constant 0 : index
    %246 = vector.load %arg11[%c1_111, %c0_112, %c0_113] : memref<2x64x32xf32, #tpu.memory_space<vmem>>, vector<1x64x32xf32>
    %247 = vector.shape_cast %246 : vector<1x64x32xf32> to vector<64x32xf32>
    %cst_114 = arith.constant dense<0.000000e+00> : vector<16x32xf32>
    %248 = tpu.matmul %245, %247, %cst_114 {dimension_numbers = #tpu.dot_dimension_numbers<[1], [0], [0], [1], [0, 0, 1, 1], [], []>} : vector<16x64xf32>, vector<64x32xf32>, vector<16x32xf32> -> vector<16x32xf32>
    %c1_115 = arith.constant 1 : index
    %c0_116 = arith.constant 0 : index
    %c0_117 = arith.constant 0 : index
    %249 = vector.load %arg12[%c1_115, %c0_116, %c0_117] : memref<2x1x32xf32, #tpu.memory_space<vmem>>, vector<1x1x32xf32>
    %250 = vector.shape_cast %249 : vector<1x1x32xf32> to vector<1x32xf32>
    %251 = vector.broadcast %250 : vector<1x32xf32> to vector<16x32xf32>
    %252 = arith.addf %248, %251 : vector<16x32xf32>
    %253 = arith.addf %236, %252 : vector<16x32xf32>
    %c1_118 = arith.constant 1 : index
    %c0_119 = arith.constant 0 : index
    %c0_120 = arith.constant 0 : index
    %254 = vector.load %arg15[%c1_118, %c0_119, %c0_120] : memref<2x1x32xf32, #tpu.memory_space<vmem>>, vector<1x1x32xf32>
    %255 = vector.shape_cast %254 : vector<1x1x32xf32> to vector<1x32xf32>
    %c1_121 = arith.constant 1 : index
    %c0_122 = arith.constant 0 : index
    %c0_123 = arith.constant 0 : index
    %256 = vector.load %arg16[%c1_121, %c0_122, %c0_123] : memref<2x1x32xf32, #tpu.memory_space<vmem>>, vector<1x1x32xf32>
    %257 = vector.shape_cast %256 : vector<1x1x32xf32> to vector<1x32xf32>
    %cst_124 = arith.constant dense<0.000000e+00> : vector<16xf32>
    %258 = vector.multi_reduction <add>, %253, %cst_124 [1] : vector<16x32xf32> to vector<16xf32>
    %259 = vector.shape_cast %258 : vector<16xf32> to vector<16x1xf32>
    %cst_125 = arith.constant 3.200000e+01 : f32
    %260 = vector.broadcast %cst_125 : f32 to vector<16x1xf32>
    %261 = arith.divf %259, %260 : vector<16x1xf32>
    %262 = vector.broadcast %261 : vector<16x1xf32> to vector<16x32xf32>
    %263 = arith.subf %253, %262 : vector<16x32xf32>
    %264 = arith.mulf %263, %263 : vector<16x32xf32>
    %cst_126 = arith.constant dense<0.000000e+00> : vector<16xf32>
    %265 = vector.multi_reduction <add>, %264, %cst_126 [1] : vector<16x32xf32> to vector<16xf32>
    %266 = vector.shape_cast %265 : vector<16xf32> to vector<16x1xf32>
    %cst_127 = arith.constant 3.200000e+01 : f32
    %267 = vector.broadcast %cst_127 : f32 to vector<16x1xf32>
    %268 = arith.divf %266, %267 : vector<16x1xf32>
    %269 = vector.broadcast %261 : vector<16x1xf32> to vector<16x32xf32>
    %270 = arith.subf %253, %269 : vector<16x32xf32>
    %cst_128 = arith.constant 9.99999974E-6 : f32
    %271 = vector.broadcast %cst_128 : f32 to vector<16x1xf32>
    %272 = arith.addf %268, %271 : vector<16x1xf32>
    %273 = math.rsqrt %272 : vector<16x1xf32>
    %274 = vector.broadcast %273 : vector<16x1xf32> to vector<16x32xf32>
    %275 = arith.mulf %270, %274 : vector<16x32xf32>
    %276 = vector.broadcast %255 : vector<1x32xf32> to vector<16x32xf32>
    %277 = arith.mulf %275, %276 : vector<16x32xf32>
    %278 = vector.broadcast %257 : vector<1x32xf32> to vector<16x32xf32>
    %279 = arith.addf %277, %278 : vector<16x32xf32>
    %280 = vector.shape_cast %279 : vector<16x32xf32> to vector<2x8x32xf32>
    %cst_129 = arith.constant dense<0.000000e+00> : vector<2x32xf32>
    %281 = vector.multi_reduction <add>, %280, %cst_129 [1] : vector<2x8x32xf32> to vector<2x32xf32>
    %cst_130 = arith.constant 8.000000e+00 : f32
    %282 = vector.broadcast %cst_130 : f32 to vector<2x32xf32>
    %283 = arith.divf %281, %282 : vector<2x32xf32>
    %c0_131 = arith.constant 0 : index
    %c0_132 = arith.constant 0 : index
    %284 = vector.load %arg17[%c0_131, %c0_132] : memref<32x10xf32, #tpu.memory_space<vmem>>, vector<32x10xf32>
    %cst_133 = arith.constant dense<0.000000e+00> : vector<2x10xf32>
    %285 = tpu.matmul %283, %284, %cst_133 {dimension_numbers = #tpu.dot_dimension_numbers<[1], [0], [0], [1], [0, 0, 1, 1], [], []>} : vector<2x32xf32>, vector<32x10xf32>, vector<2x10xf32> -> vector<2x10xf32>
    %c0_134 = arith.constant 0 : index
    %c0_135 = arith.constant 0 : index
    %286 = vector.load %arg18[%c0_134, %c0_135] : memref<1x10xf32, #tpu.memory_space<vmem>>, vector<1x10xf32>
    %287 = vector.broadcast %286 : vector<1x10xf32> to vector<2x10xf32>
    %288 = arith.addf %285, %287 : vector<2x10xf32>
    %c0_136 = arith.constant 0 : index
    %c0_137 = arith.constant 0 : index
    %289 = vector.load %arg19[%c0_136, %c0_137] : memref<2x10xf32, #tpu.memory_space<vmem>>, vector<2x10xf32>
    tpu.vector_store %arg19[%c0_136, %c0_137], %288 {strides = array<i32>} : memref<2x10xf32, #tpu.memory_space<vmem>>, vector<2x10xf32>,
    return
  }
}

</mosaic_0001>

<llo_original>
// kernel: transformer_forward.1
$region0: #{transformer_forward.1}
  #allocation0 [shape = 'u32[]', space=smem, size = 0x4, offset = 0x4, fixed_abs, tag = 'smem constant byte address 0x4 - core index']
  #allocation1 [shape = 'u32[144,128]{1,0:T(1,128)}', space=vmem, size = 0x12000, scoped, tag = 'internal scratch']
  %s0 = inlined_call_operand.vmem [shape: f32[16,12], index: 0, kind: input, shape index: {}]
  %s1 = inlined_call_operand.vmem [shape: f32[8,8], index: 1, kind: input, shape index: {}]
  %s2 = inlined_call_operand.vmem [shape: f32[16,32], index: 2, kind: input, shape index: {}]
  %s3 = inlined_call_operand.vmem [shape: f32[12,32], index: 3, kind: input, shape index: {}]
  %s4 = inlined_call_operand.vmem [shape: f32[1,32], index: 4, kind: input, shape index: {}]
  %s5 = inlined_call_operand.vmem [shape: f32[2,32,96], index: 5, kind: input, shape index: {}]
  %s6 = inlined_call_operand.vmem [shape: f32[2,1,96], index: 6, kind: input, shape index: {}]
  %s7 = inlined_call_operand.vmem [shape: f32[2,32,32], index: 7, kind: input, shape index: {}]
  %s8 = inlined_call_operand.vmem [shape: f32[2,1,32], index: 8, kind: input, shape index: {}]
  %s9 = inlined_call_operand.vmem [shape: f32[2,32,64], index: 9, kind: input, shape index: {}]
  %s10 = inlined_call_operand.vmem [shape: f32[2,1,64], index: 10, kind: input, shape index: {}]
  %s11 = inlined_call_operand.vmem [shape: f32[2,64,32], index: 11, kind: input, shape index: {}]
  %s12 = inlined_call_operand.vmem [shape: f32[2,1,32], index: 12, kind: input, shape index: {}]
  %s13 = inlined_call_operand.vmem [shape: f32[2,1,32], index: 13, kind: input, shape index: {}]
  %s14 = inlined_call_operand.vmem [shape: f32[2,1,32], index: 14, kind: input, shape index: {}]
  %s15 = inlined_call_operand.vmem [shape: f32[2,1,32], index: 15, kind: input, shape index: {}]
  %s16 = inlined_call_operand.vmem [shape: f32[2,1,32], index: 16, kind: input, shape index: {}]
  %s17 = inlined_call_operand.vmem [shape: f32[32,10], index: 17, kind: input, shape index: {}]
  %s18 = inlined_call_operand.vmem [shape: f32[1,10], index: 18, kind: input, shape index: {}]
  %s19 = inlined_call_operand.hbm [shape: f32[2,10], index: 19, kind: output, shape index: {}]
  %s20 = sld [smem:[#allocation0]]
  $region86: #{transformer_forward.1} parent=0
    _
  %s22 = ssub.s32 1, %s20
  %s23 = scalar_select 0, %s22, %s20
  $region1: #{transformer_forward.1} parent=0
    #allocation2 [shape = 'u8[1024]{0}', space=vmem, size = 0x400, scoped, tag = 'output window, operand 0, single buffered']
    #allocation3 [shape = 's32[1]{0}', space=sflag, size = 0x4, scoped, tag = 'scoped memory for transformer_forward.1']
    %24 = vsyncpa [#allocation3], 0
    // Predicated region
    $region2: #{transformer_forward.1} parent=1 // pred_check
      _
    $region3: #{transformer_forward.1} parent=1 // pred_check_branch
      %26 = sbr.rel (0) target = $region5
    $region4: #{transformer_forward.1} parent=1 // pred_region
      _
    $region5: #{transformer_forward.1} parent=1 // pred_fallthru
      _
    // Predicated region
    $region6: #{transformer_forward.1} parent=1 // pred_check
      _
    $region7: #{transformer_forward.1} parent=1 // pred_check_branch
      %28 = sbr.rel (0) target = $region9
    $region8: #{transformer_forward.1} parent=1 // pred_region
      _
    $region9: #{transformer_forward.1} parent=1 // pred_fallthru
      _
    // Predicated region
    $region10: #{transformer_forward.1} parent=1 // pred_check
      _
    $region11: #{transformer_forward.1} parent=1 // pred_check_branch
      %30 = sbr.rel (0) target = $region13
    $region12: #{transformer_forward.1} parent=1 // pred_region
      _
    $region13: #{transformer_forward.1} parent=1 // pred_fallthru
      _
    // Predicated region
    $region14: #{transformer_forward.1} parent=1 // pred_check
      _
    $region15: #{transformer_forward.1} parent=1 // pred_check_branch
      %32 = sbr.rel (0) target = $region17
    $region16: #{transformer_forward.1} parent=1 // pred_region
      _
    $region17: #{transformer_forward.1} parent=1 // pred_fallthru
      _
    // Predicated region
    $region18: #{transformer_forward.1} parent=1 // pred_check
      _
    $region19: #{transformer_forward.1} parent=1 // pred_check_branch
      %34 = sbr.rel (0) target = $region21
    $region20: #{transformer_forward.1} parent=1 // pred_region
      _
    $region21: #{transformer_forward.1} parent=1 // pred_fallthru
      _
    // Predicated region
    $region22: #{transformer_forward.1} parent=1 // pred_check
      _
    $region23: #{transformer_forward.1} parent=1 // pred_check_branch
      %36 = sbr.rel (0) target = $region25
    $region24: #{transformer_forward.1} parent=1 // pred_region
      _
    $region25: #{transformer_forward.1} parent=1 // pred_fallthru
      _
    // Predicated region
    $region26: #{transformer_forward.1} parent=1 // pred_check
      _
    $region27: #{transformer_forward.1} parent=1 // pred_check_branch
      %38 = sbr.rel (0) target = $region29
    $region28: #{transformer_forward.1} parent=1 // pred_region
      _
    $region29: #{transformer_forward.1} parent=1 // pred_fallthru
      _
    // Predicated region
    $region30: #{transformer_forward.1} parent=1 // pred_check
      _
    $region31: #{transformer_forward.1} parent=1 // pred_check_branch
      %40 = sbr.rel (0) target = $region33
    $region32: #{transformer_forward.1} parent=1 // pred_region
      _
    $region33: #{transformer_forward.1} parent=1 // pred_fallthru
      _
    // Predicated region
    $region34: #{transformer_forward.1} parent=1 // pred_check
      _
    $region35: #{transformer_forward.1} parent=1 // pred_check_branch
      %42 = sbr.rel (0) target = $region37
    $region36: #{transformer_forward.1} parent=1 // pred_region
      _
    $region37: #{transformer_forward.1} parent=1 // pred_fallthru
      _
    // Predicated region
    $region38: #{transformer_forward.1} parent=1 // pred_check
      _
    $region39: #{transformer_forward.1} parent=1 // pred_check_branch
      %44 = sbr.rel (0) target = $region41
    $region40: #{transformer_forward.1} parent=1 // pred_region
      _
    $region41: #{transformer_forward.1} parent=1 // pred_fallthru
      _
    // Predicated region
    $region42: #{transformer_forward.1} parent=1 // pred_check
      _
    $region43: #{transformer_forward.1} parent=1 // pred_check_branch
      %46 = sbr.rel (0) target = $region45
    $region44: #{transformer_forward.1} parent=1 // pred_region
      _
    $region45: #{transformer_forward.1} parent=1 // pred_fallthru
      _
    // Predicated region
    $region46: #{transformer_forward.1} parent=1 // pred_check
      _
    $region47: #{transformer_forward.1} parent=1 // pred_check_branch
      %48 = sbr.rel (0) target = $region49
    $region48: #{transformer_forward.1} parent=1 // pred_region
      _
    $region49: #{transformer_forward.1} parent=1 // pred_fallthru
      _
    // Predicated region
    $region50: #{transformer_forward.1} parent=1 // pred_check
      _
    $region51: #{transformer_forward.1} parent=1 // pred_check_branch
      %50 = sbr.rel (0) target = $region53
    $region52: #{transformer_forward.1} parent=1 // pred_region
      _
    $region53: #{transformer_forward.1} parent=1 // pred_fallthru
      _
    // Predicated region
    $region54: #{transformer_forward.1} parent=1 // pred_check
      _
    $region55: #{transformer_forward.1} parent=1 // pred_check_branch
      %52 = sbr.rel (0) target = $region57
    $region56: #{transformer_forward.1} parent=1 // pred_region
      _
    $region57: #{transformer_forward.1} parent=1 // pred_fallthru
      _
    // Predicated region
    $region58: #{transformer_forward.1} parent=1 // pred_check
      _
    $region59: #{transformer_forward.1} parent=1 // pred_check_branch
      %54 = sbr.rel (0) target = $region61
    $region60: #{transformer_forward.1} parent=1 // pred_region
      _
    $region61: #{transformer_forward.1} parent=1 // pred_fallthru
      _
    // Predicated region
    $region62: #{transformer_forward.1} parent=1 // pred_check
      _
    $region63: #{transformer_forward.1} parent=1 // pred_check_branch
      %56 = sbr.rel (0) target = $region65
    $region64: #{transformer_forward.1} parent=1 // pred_region
      _
    $region65: #{transformer_forward.1} parent=1 // pred_fallthru
      _
    // Predicated region
    $region66: #{transformer_forward.1} parent=1 // pred_check
      _
    $region67: #{transformer_forward.1} parent=1 // pred_check_branch
      %58 = sbr.rel (0) target = $region69
    $region68: #{transformer_forward.1} parent=1 // pred_region
      _
    $region69: #{transformer_forward.1} parent=1 // pred_fallthru
      _
    // Predicated region
    $region70: #{transformer_forward.1} parent=1 // pred_check
      _
    $region71: #{transformer_forward.1} parent=1 // pred_check_branch
      %60 = sbr.rel (0) target = $region73
    $region72: #{transformer_forward.1} parent=1 // pred_region
      _
    $region73: #{transformer_forward.1} parent=1 // pred_fallthru
      _
    // Predicated region
    $region74: #{transformer_forward.1} parent=1 // pred_check
      _
    $region75: #{transformer_forward.1} parent=1 // pred_check_branch
      %62 = sbr.rel (0) target = $region77
    $region76: #{transformer_forward.1} parent=1 // pred_region
      _
    $region77: #{transformer_forward.1} parent=1 // pred_fallthru
      _
    %v63 = vld [vmem:[%s0] sm:$0xff]
    %v64 = vld [vmem:[%s0 + $0x8] sm:$0xff]
    %v65 = vld [vmem:[%s3] sm:$0xff]
    %v66 = vld [vmem:[%s3 + $0x8] sm:$0xf]
    %v67 = vld [vmem:[%s4] sm:$0x1]
    %v69 = vlaneseq
    %v70 = vshrl.u32 %v69, 7
    %v71 = vsub.s32 0, %v70
    %v72 = vrot.slane %v67, %v71
    %vm74 = vcmask 97280
    %v76 = vsel %vm74, %v63, 0
    %v79 = vsel %vm74, %v64, 0
    %vm81 = vcmask 1043456
    %v83 = vsel %vm81, %v66, 0
    %85 = vmatprep.subr.mxu0 0.0
    %86 = vmatpush1.msra.mxu0 %v65
    %87 = vmatprep.subr.mxu0 0.0
    %88 = vmatpush1.msra.mxu0 %v83
    %89 = vmatprep.subr.mxu0 0.0
    %90 = vmatpush1.msra.mxu0 0.0
    %91 = vmatprep.subr.mxu0 0.0
    %92 = vmatpush1.msra.mxu0 0.0
    %93 = vmatprep.subr.mxu0 0.0
    %94 = vmatpush1.msra.mxu0 0.0
    %95 = vmatprep.subr.mxu0 0.0
    %96 = vmatpush1.msra.mxu0 0.0
    %97 = vmatprep.subr.mxu0 0.0
    %98 = vmatpush1.msra.mxu0 0.0
    %99 = vmatprep.subr.mxu0 0.0
    %100 = vmatpush1.msra.mxu0 0.0
    %101 = vmatprep.subr.mxu0 0.0
    %102 = vmatpush1.msra.mxu0 0.0
    %103 = vmatprep.subr.mxu0 0.0
    %104 = vmatpush1.msra.mxu0 0.0
    %105 = vmatprep.subr.mxu0 0.0
    %106 = vmatpush1.msra.mxu0 0.0
    %107 = vmatprep.subr.mxu0 0.0
    %108 = vmatpush1.msra.mxu0 0.0
    %109 = vmatprep.subr.mxu0 0.0
    %110 = vmatpush1.msra.mxu0 0.0
    %111 = vmatprep.subr.mxu0 0.0
    %112 = vmatpush1.msra.mxu0 0.0
    %113 = vmatprep.subr.mxu0 0.0
    %114 = vmatpush1.msra.mxu0 0.0
    %115 = vmatprep.subr.mxu0 0.0
    %116 = vmatpush1.msra.mxu0 0.0
    %117 = vmatprep.subr.mxu0 0.0
    %118 = vmatpush1.msra.mxu0 0.0
    %119 = vmatprep.subr.mxu0 0.0
    %120 = vmatpush1.msra.mxu0 0.0
    %121 = vmatprep.subr.mxu0 0.0
    %122 = vmatpush1.msra.mxu0 0.0
    %123 = vmatprep.subr.mxu0 0.0
    %124 = vmatpush1.msra.mxu0 0.0
    %125 = vmatprep.subr.mxu0 0.0
    %126 = vmatpush1.msra.mxu0 0.0
    %127 = vmatprep.subr.mxu0 0.0
    %128 = vmatpush1.msra.mxu0 0.0
    %129 = vmatprep.subr.mxu0 0.0
    %130 = vmatpush1.msra.mxu0 0.0
    %131 = vmatprep.subr.mxu0 0.0
    %132 = vmatpush1.msra.mxu0 0.0
    %133 = vmatprep.subr.mxu0 0.0
    %134 = vmatpush1.msra.mxu0 0.0
    %135 = vmatprep.subr.mxu0 0.0
    %136 = vmatpush1.msra.mxu0 0.0
    %137 = vmatprep.subr.mxu0 0.0
    %138 = vmatpush1.msra.mxu0 0.0
    %139 = vmatprep.subr.mxu0 0.0
    %140 = vmatpush1.msra.mxu0 0.0
    %141 = vmatprep.subr.mxu0 0.0
    %142 = vmatpush1.msra.mxu0 0.0
    %143 = vmatprep.subr.mxu0 0.0
    %144 = vmatpush1.msra.mxu0 0.0
    %145 = vmatprep.subr.mxu0 0.0
    %146 = vmatpush1.msra.mxu0 0.0
    %147 = vmatprep.subr.mxu0 0.0
    %148 = vmatpush1.msra.mxu0 0.0
    %149 = vmatprep.mubr.f32.mxu0 0.0
    %150 = vmatmul.mubr.f32.gmra.mrb[0].mxu0 %v76
    %v151 = vpop.f32.mrb[0].mxu0
    %v152 = vadd.f32 %v72, %v151
    %v153 = vpop.f32.mrb[0].mxu0
    %154 = vmatprep.mubr.f32.mxu0 0.0
    %155 = vmatmul.mubr.f32.gmra.mrb[0].mxu0 %v79
    %v156 = vpop.f32.mrb[0].mxu0
    %v157 = vadd.f32 %v72, %v156
    %v158 = vpop.f32.mrb[0].mxu0
    %159 = vdwg.mxu0
    %v160 = vmul.f32 %v152, 5.656854
    %v161 = vmul.f32 %v157, 5.656854
    %v162 = vld [vmem:[%s2] sm:$0xff]
    %v163 = vld [vmem:[%s2 + $0x8] sm:$0xff]
    %v164 = vadd.f32 %v160, %v162
    %v165 = vadd.f32 %v161, %v163
    %v166 = vld [vmem:[%s1] sm:$0xff]
    %v167 = vld [vmem:[%s5] sm:$0xff]
    %v168 = vld [vmem:[%s5 + $0x8] sm:$0xff]
    %v169 = vld [vmem:[%s5 + $0x10] sm:$0xff]
    %v170 = vld [vmem:[%s5 + $0x18] sm:$0xff]
    %v171 = vld [vmem:[%s6] sm:$0x1]
    %v173 = vlaneseq
    %v174 = vshrl.u32 %v173, 7
    %v175 = vsub.s32 0, %v174
    %v176 = vrot.slane %v171, %v175
    %vm178 = vcmask 261120
    %v180 = vsel %vm178, %v164, 0
    %v183 = vsel %vm178, %v165, 0
    %185 = vmatprep.subr.mxu0 0.0
    %186 = vmatpush1.msra.mxu0 %v167
    %187 = vmatprep.subr.mxu0 0.0
    %188 = vmatpush1.msra.mxu0 %v168
    %189 = vmatprep.subr.mxu0 0.0
    %190 = vmatpush1.msra.mxu0 %v169
    %191 = vmatprep.subr.mxu0 0.0
    %192 = vmatpush1.msra.mxu0 %v170
    %193 = vmatprep.subr.mxu0 0.0
    %194 = vmatpush1.msra.mxu0 0.0
    %195 = vmatprep.subr.mxu0 0.0
    %196 = vmatpush1.msra.mxu0 0.0
    %197 = vmatprep.subr.mxu0 0.0
    %198 = vmatpush1.msra.mxu0 0.0
    %199 = vmatprep.subr.mxu0 0.0
    %200 = vmatpush1.msra.mxu0 0.0
    %201 = vmatprep.subr.mxu0 0.0
    %202 = vmatpush1.msra.mxu0 0.0
    %203 = vmatprep.subr.mxu0 0.0
    %204 = vmatpush1.msra.mxu0 0.0
    %205 = vmatprep.subr.mxu0 0.0
    %206 = vmatpush1.msra.mxu0 0.0
    %207 = vmatprep.subr.mxu0 0.0
    %208 = vmatpush1.msra.mxu0 0.0
    %209 = vmatprep.subr.mxu0 0.0
    %210 = vmatpush1.msra.mxu0 0.0
    %211 = vmatprep.subr.mxu0 0.0
    %212 = vmatpush1.msra.mxu0 0.0
    %213 = vmatprep.subr.mxu0 0.0
    %214 = vmatpush1.msra.mxu0 0.0
    %215 = vmatprep.subr.mxu0 0.0
    %216 = vmatpush1.msra.mxu0 0.0
    %217 = vmatprep.subr.mxu0 0.0
    %218 = vmatpush1.msra.mxu0 0.0
    %219 = vmatprep.subr.mxu0 0.0
    %220 = vmatpush1.msra.mxu0 0.0
    %221 = vmatprep.subr.mxu0 0.0
    %222 = vmatpush1.msra.mxu0 0.0
    %223 = vmatprep.subr.mxu0 0.0
    %224 = vmatpush1.msra.mxu0 0.0
    %225 = vmatprep.subr.mxu0 0.0
    %226 = vmatpush1.msra.mxu0 0.0
    %227 = vmatprep.subr.mxu0 0.0
    %228 = vmatpush1.msra.mxu0 0.0
    %229 = vmatprep.subr.mxu0 0.0
    %230 = vmatpush1.msra.mxu0 0.0
    %231 = vmatprep.subr.mxu0 0.0
    %232 = vmatpush1.msra.mxu0 0.0
    %233 = vmatprep.subr.mxu0 0.0
    %234 = vmatpush1.msra.mxu0 0.0
    %235 = vmatprep.subr.mxu0 0.0
    %236 = vmatpush1.msra.mxu0 0.0
    %237 = vmatprep.subr.mxu0 0.0
    %238 = vmatpush1.msra.mxu0 0.0
    %239 = vmatprep.subr.mxu0 0.0
    %240 = vmatpush1.msra.mxu0 0.0
    %241 = vmatprep.subr.mxu0 0.0
    %242 = vmatpush1.msra.mxu0 0.0
    %243 = vmatprep.subr.mxu0 0.0
    %244 = vmatpush1.msra.mxu0 0.0
    %245 = vmatprep.subr.mxu0 0.0
    %246 = vmatpush1.msra.mxu0 0.0
    %247 = vmatprep.subr.mxu0 0.0
    %248 = vmatpush1.msra.mxu0 0.0
    %249 = vmatprep.mubr.f32.mxu0 0.0
    %250 = vmatmul.mubr.f32.gmra.mrb[0].mxu0 %v180
    %v251 = vpop.f32.mrb[0].mxu0
    %v252 = vadd.f32 %v176, %v251
    %v253 = vpop.f32.mrb[0].mxu0
    %254 = vmatprep.mubr.f32.mxu0 0.0
    %255 = vmatmul.mubr.f32.gmra.mrb[0].mxu0 %v183
    %v256 = vpop.f32.mrb[0].mxu0
    %v257 = vadd.f32 %v176, %v256
    %v258 = vpop.f32.mrb[0].mxu0
    %259 = vdwg.mxu0
    %v260 = vmul.f32 %v252, 0.35355338
    %v261 = vmul.f32 %v257, 0.35355338
    %263 = vrot.lane.b32.xlu0 %v260, 120
    %v264 = vpop.permute.xlu0 %263
    %265 = vrot.lane.b32.xlu0 %v260, 112
    %v266 = vpop.permute.xlu0 %265
    %267 = vrot.lane.b32.xlu0 %v260, 104
    %v268 = vpop.permute.xlu0 %267
    %270 = vrot.lane.b32.xlu0 %v252, 120
    %v271 = vpop.permute.xlu0 %270
    %272 = vrot.lane.b32.xlu0 %v252, 112
    %v273 = vpop.permute.xlu0 %272
    %274 = vrot.lane.b32.xlu0 %v252, 104
    %v275 = vpop.permute.xlu0 %274
    %276 = vrot.lane.b32.xlu0 %v252, 96
    %v277 = vpop.permute.xlu0 %276
    %278 = vrot.lane.b32.xlu0 %v271, 96
    %v279 = vpop.permute.xlu0 %278
    %280 = vrot.lane.b32.xlu0 %v273, 96
    %v281 = vpop.permute.xlu0 %280
    %282 = vrot.lane.b32.xlu0 %v275, 96
    %v283 = vpop.permute.xlu0 %282
    %288 = vxpose.xlu0.b32.start [1/16] %v277, 128
    %289 = vxpose.xlu0.b32.cont [2/16] 0.0, 128
    %290 = vxpose.xlu0.b32.cont [3/16] 0.0, 128
    %291 = vxpose.xlu0.b32.cont [4/16] 0.0, 128
    %292 = vxpose.xlu0.b32.cont [5/16] 0.0, 128
    %293 = vxpose.xlu0.b32.cont [6/16] 0.0, 128
    %294 = vxpose.xlu0.b32.cont [7/16] 0.0, 128
    %295 = vxpose.xlu0.b32.cont [8/16] 0.0, 128
    %296 = vxpose.xlu0.b32.cont [9/16] 0.0, 128
    %297 = vxpose.xlu0.b32.cont [10/16] 0.0, 128
    %298 = vxpose.xlu0.b32.cont [11/16] 0.0, 128
    %299 = vxpose.xlu0.b32.cont [12/16] 0.0, 128
    %300 = vxpose.xlu0.b32.cont [13/16] 0.0, 128
    %301 = vxpose.xlu0.b32.cont [14/16] 0.0, 128
    %302 = vxpose.xlu0.b32.cont [15/16] 0.0, 128
    %303 = vxpose.xlu0.b32.end [16/16] 0.0, 128
    %v304 = vpop.trf.xlu0
    %v305 = vpop.trf.xlu0
    %v306 = vpop.trf.xlu0
    %v307 = vpop.trf.xlu0
    %v308 = vpop.trf.xlu0
    %v309 = vpop.trf.xlu0
    %v310 = vpop.trf.xlu0
    %v311 = vpop.trf.xlu0
    %v312 = vpop.trf.xlu0
    %v313 = vpop.trf.xlu0
    %v314 = vpop.trf.xlu0
    %v315 = vpop.trf.xlu0
    %v316 = vpop.trf.xlu0
    %v317 = vpop.trf.xlu0
    %v318 = vpop.trf.xlu0
    %v319 = vpop.trf.xlu0
    %320 = vxpose.xlu0.b32.start [1/16] %v279, 128
    %321 = vxpose.xlu0.b32.cont [2/16] 0.0, 128
    %322 = vxpose.xlu0.b32.cont [3/16] 0.0, 128
    %323 = vxpose.xlu0.b32.cont [4/16] 0.0, 128
    %324 = vxpose.xlu0.b32.cont [5/16] 0.0, 128
    %325 = vxpose.xlu0.b32.cont [6/16] 0.0, 128
    %326 = vxpose.xlu0.b32.cont [7/16] 0.0, 128
    %327 = vxpose.xlu0.b32.cont [8/16] 0.0, 128
    %328 = vxpose.xlu0.b32.cont [9/16] 0.0, 128
    %329 = vxpose.xlu0.b32.cont [10/16] 0.0, 128
    %330 = vxpose.xlu0.b32.cont [11/16] 0.0, 128
    %331 = vxpose.xlu0.b32.cont [12/16] 0.0, 128
    %332 = vxpose.xlu0.b32.cont [13/16] 0.0, 128
    %333 = vxpose.xlu0.b32.cont [14/16] 0.0, 128
    %334 = vxpose.xlu0.b32.cont [15/16] 0.0, 128
    %335 = vxpose.xlu0.b32.end [16/16] 0.0, 128
    %v336 = vpop.trf.xlu0
    %v337 = vpop.trf.xlu0
    %v338 = vpop.trf.xlu0
    %v339 = vpop.trf.xlu0
    %v340 = vpop.trf.xlu0
    %v341 = vpop.trf.xlu0
    %v342 = vpop.trf.xlu0
    %v343 = vpop.trf.xlu0
    %v344 = vpop.trf.xlu0
    %v345 = vpop.trf.xlu0
    %v346 = vpop.trf.xlu0
    %v347 = vpop.trf.xlu0
    %v348 = vpop.trf.xlu0
    %v349 = vpop.trf.xlu0
    %v350 = vpop.trf.xlu0
    %v351 = vpop.trf.xlu0
    %352 = vxpose.xlu0.b32.start [1/16] %v281, 128
    %353 = vxpose.xlu0.b32.cont [2/16] 0.0, 128
    %354 = vxpose.xlu0.b32.cont [3/16] 0.0, 128
    %355 = vxpose.xlu0.b32.cont [4/16] 0.0, 128
    %356 = vxpose.xlu0.b32.cont [5/16] 0.0, 128
    %357 = vxpose.xlu0.b32.cont [6/16] 0.0, 128
    %358 = vxpose.xlu0.b32.cont [7/16] 0.0, 128
    %359 = vxpose.xlu0.b32.cont [8/16] 0.0, 128
    %360 = vxpose.xlu0.b32.cont [9/16] 0.0, 128
    %361 = vxpose.xlu0.b32.cont [10/16] 0.0, 128
    %362 = vxpose.xlu0.b32.cont [11/16] 0.0, 128
    %363 = vxpose.xlu0.b32.cont [12/16] 0.0, 128
    %364 = vxpose.xlu0.b32.cont [13/16] 0.0, 128
    %365 = vxpose.xlu0.b32.cont [14/16] 0.0, 128
    %366 = vxpose.xlu0.b32.cont [15/16] 0.0, 128
    %367 = vxpose.xlu0.b32.end [16/16] 0.0, 128
    %v368 = vpop.trf.xlu0
    %v369 = vpop.trf.xlu0
    %v370 = vpop.trf.xlu0
    %v371 = vpop.trf.xlu0
    %v372 = vpop.trf.xlu0
    %v373 = vpop.trf.xlu0
    %v374 = vpop.trf.xlu0
    %v375 = vpop.trf.xlu0
    %v376 = vpop.trf.xlu0
    %v377 = vpop.trf.xlu0
    %v378 = vpop.trf.xlu0
    %v379 = vpop.trf.xlu0
    %v380 = vpop.trf.xlu0
    %v381 = vpop.trf.xlu0
    %v382 = vpop.trf.xlu0
    %v383 = vpop.trf.xlu0
    %384 = vxpose.xlu0.b32.start [1/16] %v283, 128
    %385 = vxpose.xlu0.b32.cont [2/16] 0.0, 128
    %386 = vxpose.xlu0.b32.cont [3/16] 0.0, 128
    %387 = vxpose.xlu0.b32.cont [4/16] 0.0, 128
    %388 = vxpose.xlu0.b32.cont [5/16] 0.0, 128
    %389 = vxpose.xlu0.b32.cont [6/16] 0.0, 128
    %390 = vxpose.xlu0.b32.cont [7/16] 0.0, 128
    %391 = vxpose.xlu0.b32.cont [8/16] 0.0, 128
    %392 = vxpose.xlu0.b32.cont [9/16] 0.0, 128
    %393 = vxpose.xlu0.b32.cont [10/16] 0.0, 128
    %394 = vxpose.xlu0.b32.cont [11/16] 0.0, 128
    %395 = vxpose.xlu0.b32.cont [12/16] 0.0, 128
    %396 = vxpose.xlu0.b32.cont [13/16] 0.0, 128
    %397 = vxpose.xlu0.b32.cont [14/16] 0.0, 128
    %398 = vxpose.xlu0.b32.cont [15/16] 0.0, 128
    %399 = vxpose.xlu0.b32.end [16/16] 0.0, 128
    %v400 = vpop.trf.xlu0
    %v401 = vpop.trf.xlu0
    %v402 = vpop.trf.xlu0
    %v403 = vpop.trf.xlu0
    %v404 = vpop.trf.xlu0
    %v405 = vpop.trf.xlu0
    %v406 = vpop.trf.xlu0
    %v407 = vpop.trf.xlu0
    %v408 = vpop.trf.xlu0
    %v409 = vpop.trf.xlu0
    %v410 = vpop.trf.xlu0
    %v411 = vpop.trf.xlu0
    %v412 = vpop.trf.xlu0
    %v413 = vpop.trf.xlu0
    %v414 = vpop.trf.xlu0
    %v415 = vpop.trf.xlu0
    %vm416 = vcmask 64512
    %v417 = vsel %vm416, %v260, 0
    %419 = vmatprep.subr.mxu0 0.0
    %420 = vmatpush1.msra.mxu0 %v304
    %421 = vmatprep.subr.mxu0 0.0
    %422 = vmatpush1.msra.mxu0 0.0
    %423 = vmatprep.subr.mxu0 0.0
    %424 = vmatpush1.msra.mxu0 0.0
    %425 = vmatprep.subr.mxu0 0.0
    %426 = vmatpush1.msra.mxu0 0.0
    %427 = vmatprep.subr.mxu0 0.0
    %428 = vmatpush1.msra.mxu0 0.0
    %429 = vmatprep.subr.mxu0 0.0
    %430 = vmatpush1.msra.mxu0 0.0
    %431 = vmatprep.subr.mxu0 0.0
    %432 = vmatpush1.msra.mxu0 0.0
    %433 = vmatprep.subr.mxu0 0.0
    %434 = vmatpush1.msra.mxu0 0.0
    %435 = vmatprep.subr.mxu0 0.0
    %436 = vmatpush1.msra.mxu0 0.0
    %437 = vmatprep.subr.mxu0 0.0
    %438 = vmatpush1.msra.mxu0 0.0
    %439 = vmatprep.subr.mxu0 0.0
    %440 = vmatpush1.msra.mxu0 0.0
    %441 = vmatprep.subr.mxu0 0.0
    %442 = vmatpush1.msra.mxu0 0.0
    %443 = vmatprep.subr.mxu0 0.0
    %444 = vmatpush1.msra.mxu0 0.0
    %445 = vmatprep.subr.mxu0 0.0
    %446 = vmatpush1.msra.mxu0 0.0
    %447 = vmatprep.subr.mxu0 0.0
    %448 = vmatpush1.msra.mxu0 0.0
    %449 = vmatprep.subr.mxu0 0.0
    %450 = vmatpush1.msra.mxu0 0.0
    %451 = vmatprep.subr.mxu0 0.0
    %452 = vmatpush1.msra.mxu0 0.0
    %453 = vmatprep.subr.mxu0 0.0
    %454 = vmatpush1.msra.mxu0 0.0
    %455 = vmatprep.subr.mxu0 0.0
    %456 = vmatpush1.msra.mxu0 0.0
    %457 = vmatprep.subr.mxu0 0.0
    %458 = vmatpush1.msra.mxu0 0.0
    %459 = vmatprep.subr.mxu0 0.0
    %460 = vmatpush1.msra.mxu0 0.0
    %461 = vmatprep.subr.mxu0 0.0
    %462 = vmatpush1.msra.mxu0 0.0
    %463 = vmatprep.subr.mxu0 0.0
    %464 = vmatpush1.msra.mxu0 0.0
    %465 = vmatprep.subr.mxu0 0.0
    %466 = vmatpush1.msra.mxu0 0.0
    %467 = vmatprep.subr.mxu0 0.0
    %468 = vmatpush1.msra.mxu0 0.0
    %469 = vmatprep.subr.mxu0 0.0
    %470 = vmatpush1.msra.mxu0 0.0
    %471 = vmatprep.subr.mxu0 0.0
    %472 = vmatpush1.msra.mxu0 0.0
    %473 = vmatprep.subr.mxu0 0.0
    %474 = vmatpush1.msra.mxu0 0.0
    %475 = vmatprep.subr.mxu0 0.0
    %476 = vmatpush1.msra.mxu0 0.0
    %477 = vmatprep.subr.mxu0 0.0
    %478 = vmatpush1.msra.mxu0 0.0
    %479 = vmatprep.subr.mxu0 0.0
    %480 = vmatpush1.msra.mxu0 0.0
    %481 = vmatprep.subr.mxu0 0.0
    %482 = vmatpush1.msra.mxu0 0.0
    %483 = vmatprep.mubr.f32.mxu0 0.0
    %484 = vmatmul.mubr.f32.gmra.mrb[0].mxu0 %v417
    %v485 = vpop.f32.mrb[0].mxu0
    %v486 = vadd.f32 %v166, %v485
    %v487 = vpop.f32.mrb[0].mxu0
    %488 = vdwg.mxu0
    %v489 = vsel %vm416, %v264, 0
    %491 = vmatprep.subr.mxu0 0.0
    %492 = vmatpush1.msra.mxu0 %v336
    %493 = vmatprep.subr.mxu0 0.0
    %494 = vmatpush1.msra.mxu0 0.0
    %495 = vmatprep.subr.mxu0 0.0
    %496 = vmatpush1.msra.mxu0 0.0
    %497 = vmatprep.subr.mxu0 0.0
    %498 = vmatpush1.msra.mxu0 0.0
    %499 = vmatprep.subr.mxu0 0.0
    %500 = vmatpush1.msra.mxu0 0.0
    %501 = vmatprep.subr.mxu0 0.0
    %502 = vmatpush1.msra.mxu0 0.0
    %503 = vmatprep.subr.mxu0 0.0
    %504 = vmatpush1.msra.mxu0 0.0
    %505 = vmatprep.subr.mxu0 0.0
    %506 = vmatpush1.msra.mxu0 0.0
    %507 = vmatprep.subr.mxu0 0.0
    %508 = vmatpush1.msra.mxu0 0.0
    %509 = vmatprep.subr.mxu0 0.0
    %510 = vmatpush1.msra.mxu0 0.0
    %511 = vmatprep.subr.mxu0 0.0
    %512 = vmatpush1.msra.mxu0 0.0
    %513 = vmatprep.subr.mxu0 0.0
    %514 = vmatpush1.msra.mxu0 0.0
    %515 = vmatprep.subr.mxu0 0.0
    %516 = vmatpush1.msra.mxu0 0.0
    %517 = vmatprep.subr.mxu0 0.0
    %518 = vmatpush1.msra.mxu0 0.0
    %519 = vmatprep.subr.mxu0 0.0
    %520 = vmatpush1.msra.mxu0 0.0
    %521 = vmatprep.subr.mxu0 0.0
    %522 = vmatpush1.msra.mxu0 0.0
    %523 = vmatprep.subr.mxu0 0.0
    %524 = vmatpush1.msra.mxu0 0.0
    %525 = vmatprep.subr.mxu0 0.0
    %526 = vmatpush1.msra.mxu0 0.0
    %527 = vmatprep.subr.mxu0 0.0
    %528 = vmatpush1.msra.mxu0 0.0
    %529 = vmatprep.subr.mxu0 0.0
    %530 = vmatpush1.msra.mxu0 0.0
    %531 = vmatprep.subr.mxu0 0.0
    %532 = vmatpush1.msra.mxu0 0.0
    %533 = vmatprep.subr.mxu0 0.0
    %534 = vmatpush1.msra.mxu0 0.0
    %535 = vmatprep.subr.mxu0 0.0
    %536 = vmatpush1.msra.mxu0 0.0
    %537 = vmatprep.subr.mxu0 0.0
    %538 = vmatpush1.msra.mxu0 0.0
    %539 = vmatprep.subr.mxu0 0.0
    %540 = vmatpush1.msra.mxu0 0.0
    %541 = vmatprep.subr.mxu0 0.0
    %542 = vmatpush1.msra.mxu0 0.0
    %543 = vmatprep.subr.mxu0 0.0
    %544 = vmatpush1.msra.mxu0 0.0
    %545 = vmatprep.subr.mxu0 0.0
    %546 = vmatpush1.msra.mxu0 0.0
    %547 = vmatprep.subr.mxu0 0.0
    %548 = vmatpush1.msra.mxu0 0.0
    %549 = vmatprep.subr.mxu0 0.0
    %550 = vmatpush1.msra.mxu0 0.0
    %551 = vmatprep.subr.mxu0 0.0
    %552 = vmatpush1.msra.mxu0 0.0
    %553 = vmatprep.subr.mxu0 0.0
    %554 = vmatpush1.msra.mxu0 0.0
    %555 = vmatprep.mubr.f32.mxu0 0.0
    %556 = vmatmul.mubr.f32.gmra.mrb[0].mxu0 %v489
    %v557 = vpop.f32.mrb[0].mxu0
    %v558 = vadd.f32 %v166, %v557
    %v559 = vpop.f32.mrb[0].mxu0
    %560 = vdwg.mxu0
    %v561 = vsel %vm416, %v266, 0
    %563 = vmatprep.subr.mxu0 0.0
    %564 = vmatpush1.msra.mxu0 %v368
    %565 = vmatprep.subr.mxu0 0.0
    %566 = vmatpush1.msra.mxu0 0.0
    %567 = vmatprep.subr.mxu0 0.0
    %568 = vmatpush1.msra.mxu0 0.0
    %569 = vmatprep.subr.mxu0 0.0
    %570 = vmatpush1.msra.mxu0 0.0
    %571 = vmatprep.subr.mxu0 0.0
    %572 = vmatpush1.msra.mxu0 0.0
    %573 = vmatprep.subr.mxu0 0.0
    %574 = vmatpush1.msra.mxu0 0.0
    %575 = vmatprep.subr.mxu0 0.0
    %576 = vmatpush1.msra.mxu0 0.0
    %577 = vmatprep.subr.mxu0 0.0
    %578 = vmatpush1.msra.mxu0 0.0
    %579 = vmatprep.subr.mxu0 0.0
    %580 = vmatpush1.msra.mxu0 0.0
    %581 = vmatprep.subr.mxu0 0.0
    %582 = vmatpush1.msra.mxu0 0.0
    %583 = vmatprep.subr.mxu0 0.0
    %584 = vmatpush1.msra.mxu0 0.0
    %585 = vmatprep.subr.mxu0 0.0
    %586 = vmatpush1.msra.mxu0 0.0
    %587 = vmatprep.subr.mxu0 0.0
    %588 = vmatpush1.msra.mxu0 0.0
    %589 = vmatprep.subr.mxu0 0.0
    %590 = vmatpush1.msra.mxu0 0.0
    %591 = vmatprep.subr.mxu0 0.0
    %592 = vmatpush1.msra.mxu0 0.0
    %593 = vmatprep.subr.mxu0 0.0
    %594 = vmatpush1.msra.mxu0 0.0
    %595 = vmatprep.subr.mxu0 0.0
    %596 = vmatpush1.msra.mxu0 0.0
    %597 = vmatprep.subr.mxu0 0.0
    %598 = vmatpush1.msra.mxu0 0.0
    %599 = vmatprep.subr.mxu0 0.0
    %600 = vmatpush1.msra.mxu0 0.0
    %601 = vmatprep.subr.mxu0 0.0
    %602 = vmatpush1.msra.mxu0 0.0
    %603 = vmatprep.subr.mxu0 0.0
    %604 = vmatpush1.msra.mxu0 0.0
    %605 = vmatprep.subr.mxu0 0.0
    %606 = vmatpush1.msra.mxu0 0.0
    %607 = vmatprep.subr.mxu0 0.0
    %608 = vmatpush1.msra.mxu0 0.0
    %609 = vmatprep.subr.mxu0 0.0
    %610 = vmatpush1.msra.mxu0 0.0
    %611 = vmatprep.subr.mxu0 0.0
    %612 = vmatpush1.msra.mxu0 0.0
    %613 = vmatprep.subr.mxu0 0.0
    %614 = vmatpush1.msra.mxu0 0.0
    %615 = vmatprep.subr.mxu0 0.0
    %616 = vmatpush1.msra.mxu0 0.0
    %617 = vmatprep.subr.mxu0 0.0
    %618 = vmatpush1.msra.mxu0 0.0
    %619 = vmatprep.subr.mxu0 0.0
    %620 = vmatpush1.msra.mxu0 0.0
    %621 = vmatprep.subr.mxu0 0.0
    %622 = vmatpush1.msra.mxu0 0.0
    %623 = vmatprep.subr.mxu0 0.0
    %624 = vmatpush1.msra.mxu0 0.0
    %625 = vmatprep.subr.mxu0 0.0
    %626 = vmatpush1.msra.mxu0 0.0
    %627 = vmatprep.mubr.f32.mxu0 0.0
    %628 = vmatmul.mubr.f32.gmra.mrb[0].mxu0 %v561
    %v629 = vpop.f32.mrb[0].mxu0
    %v630 = vadd.f32 %v166, %v629
    %v631 = vpop.f32.mrb[0].mxu0
    %632 = vdwg.mxu0
    %v633 = vsel %vm416, %v268, 0
    %635 = vmatprep.subr.mxu0 0.0
    %636 = vmatpush1.msra.mxu0 %v400
    %637 = vmatprep.subr.mxu0 0.0
    %638 = vmatpush1.msra.mxu0 0.0
    %639 = vmatprep.subr.mxu0 0.0
    %640 = vmatpush1.msra.mxu0 0.0
    %641 = vmatprep.subr.mxu0 0.0
    %642 = vmatpush1.msra.mxu0 0.0
    %643 = vmatprep.subr.mxu0 0.0
    %644 = vmatpush1.msra.mxu0 0.0
    %645 = vmatprep.subr.mxu0 0.0
    %646 = vmatpush1.msra.mxu0 0.0
    %647 = vmatprep.subr.mxu0 0.0
    %648 = vmatpush1.msra.mxu0 0.0
    %649 = vmatprep.subr.mxu0 0.0
    %650 = vmatpush1.msra.mxu0 0.0
    %651 = vmatprep.subr.mxu0 0.0
    %652 = vmatpush1.msra.mxu0 0.0
    %653 = vmatprep.subr.mxu0 0.0
    %654 = vmatpush1.msra.mxu0 0.0
    %655 = vmatprep.subr.mxu0 0.0
    %656 = vmatpush1.msra.mxu0 0.0
    %657 = vmatprep.subr.mxu0 0.0
    %658 = vmatpush1.msra.mxu0 0.0
    %659 = vmatprep.subr.mxu0 0.0
    %660 = vmatpush1.msra.mxu0 0.0
    %661 = vmatprep.subr.mxu0 0.0
    %662 = vmatpush1.msra.mxu0 0.0
    %663 = vmatprep.subr.mxu0 0.0
    %664 = vmatpush1.msra.mxu0 0.0
    %665 = vmatprep.subr.mxu0 0.0
    %666 = vmatpush1.msra.mxu0 0.0
    %667 = vmatprep.subr.mxu0 0.0
    %668 = vmatpush1.msra.mxu0 0.0
    %669 = vmatprep.subr.mxu0 0.0
    %670 = vmatpush1.msra.mxu0 0.0
    %671 = vmatprep.subr.mxu0 0.0
    %672 = vmatpush1.msra.mxu0 0.0
    %673 = vmatprep.subr.mxu0 0.0
    %674 = vmatpush1.msra.mxu0 0.0
    %675 = vmatprep.subr.mxu0 0.0
    %676 = vmatpush1.msra.mxu0 0.0
    %677 = vmatprep.subr.mxu0 0.0
    %678 = vmatpush1.msra.mxu0 0.0
    %679 = vmatprep.subr.mxu0 0.0
    %680 = vmatpush1.msra.mxu0 0.0
    %681 = vmatprep.subr.mxu0 0.0
    %682 = vmatpush1.msra.mxu0 0.0
    %683 = vmatprep.subr.mxu0 0.0
    %684 = vmatpush1.msra.mxu0 0.0
    %685 = vmatprep.subr.mxu0 0.0
    %686 = vmatpush1.msra.mxu0 0.0
    %687 = vmatprep.subr.mxu0 0.0
    %688 = vmatpush1.msra.mxu0 0.0
    %689 = vmatprep.subr.mxu0 0.0
    %690 = vmatpush1.msra.mxu0 0.0
    %691 = vmatprep.subr.mxu0 0.0
    %692 = vmatpush1.msra.mxu0 0.0
    %693 = vmatprep.subr.mxu0 0.0
    %694 = vmatpush1.msra.mxu0 0.0
    %695 = vmatprep.subr.mxu0 0.0
    %696 = vmatpush1.msra.mxu0 0.0
    %697 = vmatprep.subr.mxu0 0.0
    %698 = vmatpush1.msra.mxu0 0.0
    %699 = vmatprep.mubr.f32.mxu0 0.0
    %700 = vmatmul.mubr.f32.gmra.mrb[0].mxu0 %v633
    %v701 = vpop.f32.mrb[0].mxu0
    %v702 = vadd.f32 %v166, %v701
    %v703 = vpop.f32.mrb[0].mxu0
    %704 = vdwg.mxu0
    %v705 = vsel %vm416, %v486, -inf
    %706 = vmax.xlane.f32.xlu0 %v705
    %v707 = vpop.xlane.xlu0 %706
    %v708 = vsel %vm416, %v558, -inf
    %709 = vmax.xlane.f32.xlu0 %v708
    %v710 = vpop.xlane.xlu0 %709
    %v711 = vsel %vm416, %v630, -inf
    %712 = vmax.xlane.f32.xlu0 %v711
    %v713 = vpop.xlane.xlu0 %712
    %v714 = vsel %vm416, %v702, -inf
    %715 = vmax.xlane.f32.xlu0 %v714
    %v716 = vpop.xlane.xlu0 %715
    %v717 = vsub.f32 %v486, %v707
    %v718 = vsub.f32 %v558, %v710
    %v719 = vsub.f32 %v630, %v713
    %v720 = vsub.f32 %v702, %v716
    %v721 = vmul.f32 %v717, 1.442695
    %v722 = vpow.pop %v721
    %v723 = vmul.f32 %v718, 1.442695
    %v724 = vpow.pop %v723
    %v725 = vmul.f32 %v719, 1.442695
    %v726 = vpow.pop %v725
    %v727 = vmul.f32 %v720, 1.442695
    %v728 = vpow.pop %v727
    %v729 = vsel %vm416, %v722, 0.0
    %730 = vadd.xlane.f32.xlu0 %v729
    %v731 = vpop.xlane.xlu0 %730
    %v732 = vsel %vm416, %v724, 0.0
    %733 = vadd.xlane.f32.xlu0 %v732
    %v734 = vpop.xlane.xlu0 %733
    %v735 = vsel %vm416, %v726, 0.0
    %736 = vadd.xlane.f32.xlu0 %v735
    %v737 = vpop.xlane.xlu0 %736
    %v738 = vsel %vm416, %v728, 0.0
    %739 = vadd.xlane.f32.xlu0 %v738
    %v740 = vpop.xlane.xlu0 %739
    %v741 = vrcp.pop %v731
    %v742 = vrcp.pop %v734
    %v743 = vrcp.pop %v737
    %v744 = vrcp.pop %v740
    %v745 = vmul.f32 %v722, %v741
    %v746 = vmul.f32 %v724, %v742
    %v747 = vmul.f32 %v726, %v743
    %v748 = vmul.f32 %v728, %v744
    %749 = vrot.lane.b32.xlu0 %v252, 64
    %v750 = vpop.permute.xlu0 %749
    %751 = vrot.lane.b32.xlu0 %v271, 64
    %v752 = vpop.permute.xlu0 %751
    %753 = vrot.lane.b32.xlu0 %v273, 64
    %v754 = vpop.permute.xlu0 %753
    %755 = vrot.lane.b32.xlu0 %v275, 64
    %v756 = vpop.permute.xlu0 %755
    %761 = vxpose.xlu0.b32.start [1/16] %v750, 128
    %762 = vxpose.xlu0.b32.cont [2/16] 0.0, 128
    %763 = vxpose.xlu0.b32.cont [3/16] 0.0, 128
    %764 = vxpose.xlu0.b32.cont [4/16] 0.0, 128
    %765 = vxpose.xlu0.b32.cont [5/16] 0.0, 128
    %766 = vxpose.xlu0.b32.cont [6/16] 0.0, 128
    %767 = vxpose.xlu0.b32.cont [7/16] 0.0, 128
    %768 = vxpose.xlu0.b32.cont [8/16] 0.0, 128
    %769 = vxpose.xlu0.b32.cont [9/16] 0.0, 128
    %770 = vxpose.xlu0.b32.cont [10/16] 0.0, 128
    %771 = vxpose.xlu0.b32.cont [11/16] 0.0, 128
    %772 = vxpose.xlu0.b32.cont [12/16] 0.0, 128
    %773 = vxpose.xlu0.b32.cont [13/16] 0.0, 128
    %774 = vxpose.xlu0.b32.cont [14/16] 0.0, 128
    %775 = vxpose.xlu0.b32.cont [15/16] 0.0, 128
    %776 = vxpose.xlu0.b32.end [16/16] 0.0, 128
    %v777 = vpop.trf.xlu0
    %v778 = vpop.trf.xlu0
    %v779 = vpop.trf.xlu0
    %v780 = vpop.trf.xlu0
    %v781 = vpop.trf.xlu0
    %v782 = vpop.trf.xlu0
    %v783 = vpop.trf.xlu0
    %v784 = vpop.trf.xlu0
    %v785 = vpop.trf.xlu0
    %v786 = vpop.trf.xlu0
    %v787 = vpop.trf.xlu0
    %v788 = vpop.trf.xlu0
    %v789 = vpop.trf.xlu0
    %v790 = vpop.trf.xlu0
    %v791 = vpop.trf.xlu0
    %v792 = vpop.trf.xlu0
    %793 = vxpose.xlu0.b32.start [1/16] %v752, 128
    %794 = vxpose.xlu0.b32.cont [2/16] 0.0, 128
    %795 = vxpose.xlu0.b32.cont [3/16] 0.0, 128
    %796 = vxpose.xlu0.b32.cont [4/16] 0.0, 128
    %797 = vxpose.xlu0.b32.cont [5/16] 0.0, 128
    %798 = vxpose.xlu0.b32.cont [6/16] 0.0, 128
    %799 = vxpose.xlu0.b32.cont [7/16] 0.0, 128
    %800 = vxpose.xlu0.b32.cont [8/16] 0.0, 128
    %801 = vxpose.xlu0.b32.cont [9/16] 0.0, 128
    %802 = vxpose.xlu0.b32.cont [10/16] 0.0, 128
    %803 = vxpose.xlu0.b32.cont [11/16] 0.0, 128
    %804 = vxpose.xlu0.b32.cont [12/16] 0.0, 128
    %805 = vxpose.xlu0.b32.cont [13/16] 0.0, 128
    %806 = vxpose.xlu0.b32.cont [14/16] 0.0, 128
    %807 = vxpose.xlu0.b32.cont [15/16] 0.0, 128
    %808 = vxpose.xlu0.b32.end [16/16] 0.0, 128
    %v809 = vpop.trf.xlu0
    %v810 = vpop.trf.xlu0
    %v811 = vpop.trf.xlu0
    %v812 = vpop.trf.xlu0
    %v813 = vpop.trf.xlu0
    %v814 = vpop.trf.xlu0
    %v815 = vpop.trf.xlu0
    %v816 = vpop.trf.xlu0
    %v817 = vpop.trf.xlu0
    %v818 = vpop.trf.xlu0
    %v819 = vpop.trf.xlu0
    %v820 = vpop.trf.xlu0
    %v821 = vpop.trf.xlu0
    %v822 = vpop.trf.xlu0
    %v823 = vpop.trf.xlu0
    %v824 = vpop.trf.xlu0
    %825 = vxpose.xlu0.b32.start [1/16] %v754, 128
    %826 = vxpose.xlu0.b32.cont [2/16] 0.0, 128
    %827 = vxpose.xlu0.b32.cont [3/16] 0.0, 128
    %828 = vxpose.xlu0.b32.cont [4/16] 0.0, 128
    %829 = vxpose.xlu0.b32.cont [5/16] 0.0, 128
    %830 = vxpose.xlu0.b32.cont [6/16] 0.0, 128
    %831 = vxpose.xlu0.b32.cont [7/16] 0.0, 128
    %832 = vxpose.xlu0.b32.cont [8/16] 0.0, 128
    %833 = vxpose.xlu0.b32.cont [9/16] 0.0, 128
    %834 = vxpose.xlu0.b32.cont [10/16] 0.0, 128
    %835 = vxpose.xlu0.b32.cont [11/16] 0.0, 128
    %836 = vxpose.xlu0.b32.cont [12/16] 0.0, 128
    %837 = vxpose.xlu0.b32.cont [13/16] 0.0, 128
    %838 = vxpose.xlu0.b32.cont [14/16] 0.0, 128
    %839 = vxpose.xlu0.b32.cont [15/16] 0.0, 128
    %840 = vxpose.xlu0.b32.end [16/16] 0.0, 128
    %v841 = vpop.trf.xlu0
    %v842 = vpop.trf.xlu0
    %v843 = vpop.trf.xlu0
    %v844 = vpop.trf.xlu0
    %v845 = vpop.trf.xlu0
    %v846 = vpop.trf.xlu0
    %v847 = vpop.trf.xlu0
    %v848 = vpop.trf.xlu0
    %v849 = vpop.trf.xlu0
    %v850 = vpop.trf.xlu0
    %v851 = vpop.trf.xlu0
    %v852 = vpop.trf.xlu0
    %v853 = vpop.trf.xlu0
    %v854 = vpop.trf.xlu0
    %v855 = vpop.trf.xlu0
    %v856 = vpop.trf.xlu0
    %857 = vxpose.xlu0.b32.start [1/16] %v756, 128
    %858 = vxpose.xlu0.b32.cont [2/16] 0.0, 128
    %859 = vxpose.xlu0.b32.cont [3/16] 0.0, 128
    %860 = vxpose.xlu0.b32.cont [4/16] 0.0, 128
    %861 = vxpose.xlu0.b32.cont [5/16] 0.0, 128
    %862 = vxpose.xlu0.b32.cont [6/16] 0.0, 128
    %863 = vxpose.xlu0.b32.cont [7/16] 0.0, 128
    %864 = vxpose.xlu0.b32.cont [8/16] 0.0, 128
    %865 = vxpose.xlu0.b32.cont [9/16] 0.0, 128
    %866 = vxpose.xlu0.b32.cont [10/16] 0.0, 128
    %867 = vxpose.xlu0.b32.cont [11/16] 0.0, 128
    %868 = vxpose.xlu0.b32.cont [12/16] 0.0, 128
    %869 = vxpose.xlu0.b32.cont [13/16] 0.0, 128
    %870 = vxpose.xlu0.b32.cont [14/16] 0.0, 128
    %871 = vxpose.xlu0.b32.cont [15/16] 0.0, 128
    %872 = vxpose.xlu0.b32.end [16/16] 0.0, 128
    %v873 = vpop.trf.xlu0
    %v874 = vpop.trf.xlu0
    %v875 = vpop.trf.xlu0
    %v876 = vpop.trf.xlu0
    %v877 = vpop.trf.xlu0
    %v878 = vpop.trf.xlu0
    %v879 = vpop.trf.xlu0
    %v880 = vpop.trf.xlu0
    %v881 = vpop.trf.xlu0
    %v882 = vpop.trf.xlu0
    %v883 = vpop.trf.xlu0
    %v884 = vpop.trf.xlu0
    %v885 = vpop.trf.xlu0
    %v886 = vpop.trf.xlu0
    %v887 = vpop.trf.xlu0
    %v888 = vpop.trf.xlu0
    %v890 = vsel %vm416, %v777, 0
    %v893 = vsel %vm416, %v745, 0
    %895 = vmatprep.subr.mxu0 0.0
    %896 = vmatpush1.xpose.msra.mxu0 %v893
    %897 = vmatprep.subr.mxu0 0.0
    %898 = vmatpush1.xpose.msra.mxu0 0.0
    %899 = vmatprep.subr.mxu0 0.0
    %900 = vmatpush1.xpose.msra.mxu0 0.0
    %901 = vmatprep.subr.mxu0 0.0
    %902 = vmatpush1.xpose.msra.mxu0 0.0
    %903 = vmatprep.subr.mxu0 0.0
    %904 = vmatpush1.xpose.msra.mxu0 0.0
    %905 = vmatprep.subr.mxu0 0.0
    %906 = vmatpush1.xpose.msra.mxu0 0.0
    %907 = vmatprep.subr.mxu0 0.0
    %908 = vmatpush1.xpose.msra.mxu0 0.0
    %909 = vmatprep.subr.mxu0 0.0
    %910 = vmatpush1.xpose.msra.mxu0 0.0
    %911 = vmatprep.subr.mxu0 0.0
    %912 = vmatpush1.xpose.msra.mxu0 0.0
    %913 = vmatprep.subr.mxu0 0.0
    %914 = vmatpush1.xpose.msra.mxu0 0.0
    %915 = vmatprep.subr.mxu0 0.0
    %916 = vmatpush1.xpose.msra.mxu0 0.0
    %917 = vmatprep.subr.mxu0 0.0
    %918 = vmatpush1.xpose.msra.mxu0 0.0
    %919 = vmatprep.subr.mxu0 0.0
    %920 = vmatpush1.xpose.msra.mxu0 0.0
    %921 = vmatprep.subr.mxu0 0.0
    %922 = vmatpush1.xpose.msra.mxu0 0.0
    %923 = vmatprep.subr.mxu0 0.0
    %924 = vmatpush1.xpose.msra.mxu0 0.0
    %925 = vmatprep.subr.mxu0 0.0
    %926 = vmatpush1.xpose.msra.mxu0 0.0
    %927 = vmatprep.subr.mxu0 0.0
    %928 = vmatpush1.xpose.msra.mxu0 0.0
    %929 = vmatprep.subr.mxu0 0.0
    %930 = vmatpush1.xpose.msra.mxu0 0.0
    %931 = vmatprep.subr.mxu0 0.0
    %932 = vmatpush1.xpose.msra.mxu0 0.0
    %933 = vmatprep.subr.mxu0 0.0
    %934 = vmatpush1.xpose.msra.mxu0 0.0
    %935 = vmatprep.subr.mxu0 0.0
    %936 = vmatpush1.xpose.msra.mxu0 0.0
    %937 = vmatprep.subr.mxu0 0.0
    %938 = vmatpush1.xpose.msra.mxu0 0.0
    %939 = vmatprep.subr.mxu0 0.0
    %940 = vmatpush1.xpose.msra.mxu0 0.0
    %941 = vmatprep.subr.mxu0 0.0
    %942 = vmatpush1.xpose.msra.mxu0 0.0
    %943 = vmatprep.subr.mxu0 0.0
    %944 = vmatpush1.xpose.msra.mxu0 0.0
    %945 = vmatprep.subr.mxu0 0.0
    %946 = vmatpush1.xpose.msra.mxu0 0.0
    %947 = vmatprep.subr.mxu0 0.0
    %948 = vmatpush1.xpose.msra.mxu0 0.0
    %949 = vmatprep.subr.mxu0 0.0
    %950 = vmatpush1.xpose.msra.mxu0 0.0
    %951 = vmatprep.subr.mxu0 0.0
    %952 = vmatpush1.xpose.msra.mxu0 0.0
    %953 = vmatprep.subr.mxu0 0.0
    %954 = vmatpush1.xpose.msra.mxu0 0.0
    %955 = vmatprep.subr.mxu0 0.0
    %956 = vmatpush1.xpose.msra.mxu0 0.0
    %957 = vmatprep.subr.mxu0 0.0
    %958 = vmatpush1.xpose.msra.mxu0 0.0
    %959 = vmatprep.mubr.f32.mxu0 0.0
    %960 = vmatmul.mubr.f32.gmra.mrb[0].mxu0 %v890
    %v961 = vpop.f32.mrb[0].mxu0
    %v962 = vadd.f32 0.0, %v961
    %v963 = vpop.f32.mrb[0].mxu0
    %964 = vdwg.mxu0
    %v966 = vsel %vm416, %v809, 0
    %v969 = vsel %vm416, %v746, 0
    %971 = vmatprep.subr.mxu0 0.0
    %972 = vmatpush1.xpose.msra.mxu0 %v969
    %973 = vmatprep.subr.mxu0 0.0
    %974 = vmatpush1.xpose.msra.mxu0 0.0
    %975 = vmatprep.subr.mxu0 0.0
    %976 = vmatpush1.xpose.msra.mxu0 0.0
    %977 = vmatprep.subr.mxu0 0.0
    %978 = vmatpush1.xpose.msra.mxu0 0.0
    %979 = vmatprep.subr.mxu0 0.0
    %980 = vmatpush1.xpose.msra.mxu0 0.0
    %981 = vmatprep.subr.mxu0 0.0
    %982 = vmatpush1.xpose.msra.mxu0 0.0
    %983 = vmatprep.subr.mxu0 0.0
    %984 = vmatpush1.xpose.msra.mxu0 0.0
    %985 = vmatprep.subr.mxu0 0.0
    %986 = vmatpush1.xpose.msra.mxu0 0.0
    %987 = vmatprep.subr.mxu0 0.0
    %988 = vmatpush1.xpose.msra.mxu0 0.0
    %989 = vmatprep.subr.mxu0 0.0
    %990 = vmatpush1.xpose.msra.mxu0 0.0
    %991 = vmatprep.subr.mxu0 0.0
    %992 = vmatpush1.xpose.msra.mxu0 0.0
    %993 = vmatprep.subr.mxu0 0.0
    %994 = vmatpush1.xpose.msra.mxu0 0.0
    %995 = vmatprep.subr.mxu0 0.0
    %996 = vmatpush1.xpose.msra.mxu0 0.0
    %997 = vmatprep.subr.mxu0 0.0
    %998 = vmatpush1.xpose.msra.mxu0 0.0
    %999 = vmatprep.subr.mxu0 0.0
    %1000 = vmatpush1.xpose.msra.mxu0 0.0
    %1001 = vmatprep.subr.mxu0 0.0
    %1002 = vmatpush1.xpose.msra.mxu0 0.0
    %1003 = vmatprep.subr.mxu0 0.0
    %1004 = vmatpush1.xpose.msra.mxu0 0.0
    %1005 = vmatprep.subr.mxu0 0.0
    %1006 = vmatpush1.xpose.msra.mxu0 0.0
    %1007 = vmatprep.subr.mxu0 0.0
    %1008 = vmatpush1.xpose.msra.mxu0 0.0
    %1009 = vmatprep.subr.mxu0 0.0
    %1010 = vmatpush1.xpose.msra.mxu0 0.0
    %1011 = vmatprep.subr.mxu0 0.0
    %1012 = vmatpush1.xpose.msra.mxu0 0.0
    %1013 = vmatprep.subr.mxu0 0.0
    %1014 = vmatpush1.xpose.msra.mxu0 0.0
    %1015 = vmatprep.subr.mxu0 0.0
    %1016 = vmatpush1.xpose.msra.mxu0 0.0
    %1017 = vmatprep.subr.mxu0 0.0
    %1018 = vmatpush1.xpose.msra.mxu0 0.0
    %1019 = vmatprep.subr.mxu0 0.0
    %1020 = vmatpush1.xpose.msra.mxu0 0.0
    %1021 = vmatprep.subr.mxu0 0.0
    %1022 = vmatpush1.xpose.msra.mxu0 0.0
    %1023 = vmatprep.subr.mxu0 0.0
    %1024 = vmatpush1.xpose.msra.mxu0 0.0
    %1025 = vmatprep.subr.mxu0 0.0
    %1026 = vmatpush1.xpose.msra.mxu0 0.0
    %1027 = vmatprep.subr.mxu0 0.0
    %1028 = vmatpush1.xpose.msra.mxu0 0.0
    %1029 = vmatprep.subr.mxu0 0.0
    %1030 = vmatpush1.xpose.msra.mxu0 0.0
    %1031 = vmatprep.subr.mxu0 0.0
    %1032 = vmatpush1.xpose.msra.mxu0 0.0
    %1033 = vmatprep.subr.mxu0 0.0
    %1034 = vmatpush1.xpose.msra.mxu0 0.0
    %1035 = vmatprep.mubr.f32.mxu0 0.0
    %1036 = vmatmul.mubr.f32.gmra.mrb[0].mxu0 %v966
    %v1037 = vpop.f32.mrb[0].mxu0
    %v1038 = vadd.f32 0.0, %v1037
    %v1039 = vpop.f32.mrb[0].mxu0
    %1040 = vdwg.mxu0
    %v1042 = vsel %vm416, %v841, 0
    %v1045 = vsel %vm416, %v747, 0
    %1047 = vmatprep.subr.mxu0 0.0
    %1048 = vmatpush1.xpose.msra.mxu0 %v1045
    %1049 = vmatprep.subr.mxu0 0.0
    %1050 = vmatpush1.xpose.msra.mxu0 0.0
    %1051 = vmatprep.subr.mxu0 0.0
    %1052 = vmatpush1.xpose.msra.mxu0 0.0
    %1053 = vmatprep.subr.mxu0 0.0
    %1054 = vmatpush1.xpose.msra.mxu0 0.0
    %1055 = vmatprep.subr.mxu0 0.0
    %1056 = vmatpush1.xpose.msra.mxu0 0.0
    %1057 = vmatprep.subr.mxu0 0.0
    %1058 = vmatpush1.xpose.msra.mxu0 0.0
    %1059 = vmatprep.subr.mxu0 0.0
    %1060 = vmatpush1.xpose.msra.mxu0 0.0
    %1061 = vmatprep.subr.mxu0 0.0
    %1062 = vmatpush1.xpose.msra.mxu0 0.0
    %1063 = vmatprep.subr.mxu0 0.0
    %1064 = vmatpush1.xpose.msra.mxu0 0.0
    %1065 = vmatprep.subr.mxu0 0.0
    %1066 = vmatpush1.xpose.msra.mxu0 0.0
    %1067 = vmatprep.subr.mxu0 0.0
    %1068 = vmatpush1.xpose.msra.mxu0 0.0
    %1069 = vmatprep.subr.mxu0 0.0
    %1070 = vmatpush1.xpose.msra.mxu0 0.0
    %1071 = vmatprep.subr.mxu0 0.0
    %1072 = vmatpush1.xpose.msra.mxu0 0.0
    %1073 = vmatprep.subr.mxu0 0.0
    %1074 = vmatpush1.xpose.msra.mxu0 0.0
    %1075 = vmatprep.subr.mxu0 0.0
    %1076 = vmatpush1.xpose.msra.mxu0 0.0
    %1077 = vmatprep.subr.mxu0 0.0
    %1078 = vmatpush1.xpose.msra.mxu0 0.0
    %1079 = vmatprep.subr.mxu0 0.0
    %1080 = vmatpush1.xpose.msra.mxu0 0.0
    %1081 = vmatprep.subr.mxu0 0.0
    %1082 = vmatpush1.xpose.msra.mxu0 0.0
    %1083 = vmatprep.subr.mxu0 0.0
    %1084 = vmatpush1.xpose.msra.mxu0 0.0
    %1085 = vmatprep.subr.mxu0 0.0
    %1086 = vmatpush1.xpose.msra.mxu0 0.0
    %1087 = vmatprep.subr.mxu0 0.0
    %1088 = vmatpush1.xpose.msra.mxu0 0.0
    %1089 = vmatprep.subr.mxu0 0.0
    %1090 = vmatpush1.xpose.msra.mxu0 0.0
    %1091 = vmatprep.subr.mxu0 0.0
    %1092 = vmatpush1.xpose.msra.mxu0 0.0
    %1093 = vmatprep.subr.mxu0 0.0
    %1094 = vmatpush1.xpose.msra.mxu0 0.0
    %1095 = vmatprep.subr.mxu0 0.0
    %1096 = vmatpush1.xpose.msra.mxu0 0.0
    %1097 = vmatprep.subr.mxu0 0.0
    %1098 = vmatpush1.xpose.msra.mxu0 0.0
    %1099 = vmatprep.subr.mxu0 0.0
    %1100 = vmatpush1.xpose.msra.mxu0 0.0
    %1101 = vmatprep.subr.mxu0 0.0
    %1102 = vmatpush1.xpose.msra.mxu0 0.0
    %1103 = vmatprep.subr.mxu0 0.0
    %1104 = vmatpush1.xpose.msra.mxu0 0.0
    %1105 = vmatprep.subr.mxu0 0.0
    %1106 = vmatpush1.xpose.msra.mxu0 0.0
    %1107 = vmatprep.subr.mxu0 0.0
    %1108 = vmatpush1.xpose.msra.mxu0 0.0
    %1109 = vmatprep.subr.mxu0 0.0
    %1110 = vmatpush1.xpose.msra.mxu0 0.0
    %1111 = vmatprep.mubr.f32.mxu0 0.0
    %1112 = vmatmul.mubr.f32.gmra.mrb[0].mxu0 %v1042
    %v1113 = vpop.f32.mrb[0].mxu0
    %v1114 = vadd.f32 0.0, %v1113
    %v1115 = vpop.f32.mrb[0].mxu0
    %1116 = vdwg.mxu0
    %v1118 = vsel %vm416, %v873, 0
    %v1121 = vsel %vm416, %v748, 0
    %1123 = vmatprep.subr.mxu0 0.0
    %1124 = vmatpush1.xpose.msra.mxu0 %v1121
    %1125 = vmatprep.subr.mxu0 0.0
    %1126 = vmatpush1.xpose.msra.mxu0 0.0
    %1127 = vmatprep.subr.mxu0 0.0
    %1128 = vmatpush1.xpose.msra.mxu0 0.0
    %1129 = vmatprep.subr.mxu0 0.0
    %1130 = vmatpush1.xpose.msra.mxu0 0.0
    %1131 = vmatprep.subr.mxu0 0.0
    %1132 = vmatpush1.xpose.msra.mxu0 0.0
    %1133 = vmatprep.subr.mxu0 0.0
    %1134 = vmatpush1.xpose.msra.mxu0 0.0
    %1135 = vmatprep.subr.mxu0 0.0
    %1136 = vmatpush1.xpose.msra.mxu0 0.0
    %1137 = vmatprep.subr.mxu0 0.0
    %1138 = vmatpush1.xpose.msra.mxu0 0.0
    %1139 = vmatprep.subr.mxu0 0.0
    %1140 = vmatpush1.xpose.msra.mxu0 0.0
    %1141 = vmatprep.subr.mxu0 0.0
    %1142 = vmatpush1.xpose.msra.mxu0 0.0
    %1143 = vmatprep.subr.mxu0 0.0
    %1144 = vmatpush1.xpose.msra.mxu0 0.0
    %1145 = vmatprep.subr.mxu0 0.0
    %1146 = vmatpush1.xpose.msra.mxu0 0.0
    %1147 = vmatprep.subr.mxu0 0.0
    %1148 = vmatpush1.xpose.msra.mxu0 0.0
    %1149 = vmatprep.subr.mxu0 0.0
    %1150 = vmatpush1.xpose.msra.mxu0 0.0
    %1151 = vmatprep.subr.mxu0 0.0
    %1152 = vmatpush1.xpose.msra.mxu0 0.0
    %1153 = vmatprep.subr.mxu0 0.0
    %1154 = vmatpush1.xpose.msra.mxu0 0.0
    %1155 = vmatprep.subr.mxu0 0.0
    %1156 = vmatpush1.xpose.msra.mxu0 0.0
    %1157 = vmatprep.subr.mxu0 0.0
    %1158 = vmatpush1.xpose.msra.mxu0 0.0
    %1159 = vmatprep.subr.mxu0 0.0
    %1160 = vmatpush1.xpose.msra.mxu0 0.0
    %1161 = vmatprep.subr.mxu0 0.0
    %1162 = vmatpush1.xpose.msra.mxu0 0.0
    %1163 = vmatprep.subr.mxu0 0.0
    %1164 = vmatpush1.xpose.msra.mxu0 0.0
    %1165 = vmatprep.subr.mxu0 0.0
    %1166 = vmatpush1.xpose.msra.mxu0 0.0
    %1167 = vmatprep.subr.mxu0 0.0
    %1168 = vmatpush1.xpose.msra.mxu0 0.0
    %1169 = vmatprep.subr.mxu0 0.0
    %1170 = vmatpush1.xpose.msra.mxu0 0.0
    %1171 = vmatprep.subr.mxu0 0.0
    %1172 = vmatpush1.xpose.msra.mxu0 0.0
    %1173 = vmatprep.subr.mxu0 0.0
    %1174 = vmatpush1.xpose.msra.mxu0 0.0
    %1175 = vmatprep.subr.mxu0 0.0
    %1176 = vmatpush1.xpose.msra.mxu0 0.0
    %1177 = vmatprep.subr.mxu0 0.0
    %1178 = vmatpush1.xpose.msra.mxu0 0.0
    %1179 = vmatprep.subr.mxu0 0.0
    %1180 = vmatpush1.xpose.msra.mxu0 0.0
    %1181 = vmatprep.subr.mxu0 0.0
    %1182 = vmatpush1.xpose.msra.mxu0 0.0
    %1183 = vmatprep.subr.mxu0 0.0
    %1184 = vmatpush1.xpose.msra.mxu0 0.0
    %1185 = vmatprep.subr.mxu0 0.0
    %1186 = vmatpush1.xpose.msra.mxu0 0.0
    %1187 = vmatprep.mubr.f32.mxu0 0.0
    %1188 = vmatmul.mubr.f32.gmra.mrb[0].mxu0 %v1118
    %v1189 = vpop.f32.mrb[0].mxu0
    %v1190 = vadd.f32 0.0, %v1189
    %v1191 = vpop.f32.mrb[0].mxu0
    %1192 = vdwg.mxu0
    %1193 = vxpose.xlu0.b32.start [1/16] %v962, 128
    %1194 = vxpose.xlu0.b32.cont [2/16] 0.0, 128
    %1195 = vxpose.xlu0.b32.cont [3/16] 0.0, 128
    %1196 = vxpose.xlu0.b32.cont [4/16] 0.0, 128
    %1197 = vxpose.xlu0.b32.cont [5/16] 0.0, 128
    %1198 = vxpose.xlu0.b32.cont [6/16] 0.0, 128
    %1199 = vxpose.xlu0.b32.cont [7/16] 0.0, 128
    %1200 = vxpose.xlu0.b32.cont [8/16] 0.0, 128
    %1201 = vxpose.xlu0.b32.cont [9/16] 0.0, 128
    %1202 = vxpose.xlu0.b32.cont [10/16] 0.0, 128
    %1203 = vxpose.xlu0.b32.cont [11/16] 0.0, 128
    %1204 = vxpose.xlu0.b32.cont [12/16] 0.0, 128
    %1205 = vxpose.xlu0.b32.cont [13/16] 0.0, 128
    %1206 = vxpose.xlu0.b32.cont [14/16] 0.0, 128
    %1207 = vxpose.xlu0.b32.cont [15/16] 0.0, 128
    %1208 = vxpose.xlu0.b32.end [16/16] 0.0, 128
    %v1209 = vpop.trf.xlu0
    %v1210 = vpop.trf.xlu0
    %v1211 = vpop.trf.xlu0
    %v1212 = vpop.trf.xlu0
    %v1213 = vpop.trf.xlu0
    %v1214 = vpop.trf.xlu0
    %v1215 = vpop.trf.xlu0
    %v1216 = vpop.trf.xlu0
    %v1217 = vpop.trf.xlu0
    %v1218 = vpop.trf.xlu0
    %v1219 = vpop.trf.xlu0
    %v1220 = vpop.trf.xlu0
    %v1221 = vpop.trf.xlu0
    %v1222 = vpop.trf.xlu0
    %v1223 = vpop.trf.xlu0
    %v1224 = vpop.trf.xlu0
    %1225 = vxpose.xlu0.b32.start [1/16] %v1038, 128
    %1226 = vxpose.xlu0.b32.cont [2/16] 0.0, 128
    %1227 = vxpose.xlu0.b32.cont [3/16] 0.0, 128
    %1228 = vxpose.xlu0.b32.cont [4/16] 0.0, 128
    %1229 = vxpose.xlu0.b32.cont [5/16] 0.0, 128
    %1230 = vxpose.xlu0.b32.cont [6/16] 0.0, 128
    %1231 = vxpose.xlu0.b32.cont [7/16] 0.0, 128
    %1232 = vxpose.xlu0.b32.cont [8/16] 0.0, 128
    %1233 = vxpose.xlu0.b32.cont [9/16] 0.0, 128
    %1234 = vxpose.xlu0.b32.cont [10/16] 0.0, 128
    %1235 = vxpose.xlu0.b32.cont [11/16] 0.0, 128
    %1236 = vxpose.xlu0.b32.cont [12/16] 0.0, 128
    %1237 = vxpose.xlu0.b32.cont [13/16] 0.0, 128
    %1238 = vxpose.xlu0.b32.cont [14/16] 0.0, 128
    %1239 = vxpose.xlu0.b32.cont [15/16] 0.0, 128
    %1240 = vxpose.xlu0.b32.end [16/16] 0.0, 128
    %v1241 = vpop.trf.xlu0
    %v1242 = vpop.trf.xlu0
    %v1243 = vpop.trf.xlu0
    %v1244 = vpop.trf.xlu0
    %v1245 = vpop.trf.xlu0
    %v1246 = vpop.trf.xlu0
    %v1247 = vpop.trf.xlu0
    %v1248 = vpop.trf.xlu0
    %v1249 = vpop.trf.xlu0
    %v1250 = vpop.trf.xlu0
    %v1251 = vpop.trf.xlu0
    %v1252 = vpop.trf.xlu0
    %v1253 = vpop.trf.xlu0
    %v1254 = vpop.trf.xlu0
    %v1255 = vpop.trf.xlu0
    %v1256 = vpop.trf.xlu0
    %1257 = vxpose.xlu0.b32.start [1/16] %v1114, 128
    %1258 = vxpose.xlu0.b32.cont [2/16] 0.0, 128
    %1259 = vxpose.xlu0.b32.cont [3/16] 0.0, 128
    %1260 = vxpose.xlu0.b32.cont [4/16] 0.0, 128
    %1261 = vxpose.xlu0.b32.cont [5/16] 0.0, 128
    %1262 = vxpose.xlu0.b32.cont [6/16] 0.0, 128
    %1263 = vxpose.xlu0.b32.cont [7/16] 0.0, 128
    %1264 = vxpose.xlu0.b32.cont [8/16] 0.0, 128
    %1265 = vxpose.xlu0.b32.cont [9/16] 0.0, 128
    %1266 = vxpose.xlu0.b32.cont [10/16] 0.0, 128
    %1267 = vxpose.xlu0.b32.cont [11/16] 0.0, 128
    %1268 = vxpose.xlu0.b32.cont [12/16] 0.0, 128
    %1269 = vxpose.xlu0.b32.cont [13/16] 0.0, 128
    %1270 = vxpose.xlu0.b32.cont [14/16] 0.0, 128
    %1271 = vxpose.xlu0.b32.cont [15/16] 0.0, 128
    %1272 = vxpose.xlu0.b32.end [16/16] 0.0, 128
    %v1273 = vpop.trf.xlu0
    %v1274 = vpop.trf.xlu0
    %v1275 = vpop.trf.xlu0
    %v1276 = vpop.trf.xlu0
    %v1277 = vpop.trf.xlu0
    %v1278 = vpop.trf.xlu0
    %v1279 = vpop.trf.xlu0
    %v1280 = vpop.trf.xlu0
    %v1281 = vpop.trf.xlu0
    %v1282 = vpop.trf.xlu0
    %v1283 = vpop.trf.xlu0
    %v1284 = vpop.trf.xlu0
    %v1285 = vpop.trf.xlu0
    %v1286 = vpop.trf.xlu0
    %v1287 = vpop.trf.xlu0
    %v1288 = vpop.trf.xlu0
    %1289 = vxpose.xlu0.b32.start [1/16] %v1190, 128
    %1290 = vxpose.xlu0.b32.cont [2/16] 0.0, 128
    %1291 = vxpose.xlu0.b32.cont [3/16] 0.0, 128
    %1292 = vxpose.xlu0.b32.cont [4/16] 0.0, 128
    %1293 = vxpose.xlu0.b32.cont [5/16] 0.0, 128
    %1294 = vxpose.xlu0.b32.cont [6/16] 0.0, 128
    %1295 = vxpose.xlu0.b32.cont [7/16] 0.0, 128
    %1296 = vxpose.xlu0.b32.cont [8/16] 0.0, 128
    %1297 = vxpose.xlu0.b32.cont [9/16] 0.0, 128
    %1298 = vxpose.xlu0.b32.cont [10/16] 0.0, 128
    %1299 = vxpose.xlu0.b32.cont [11/16] 0.0, 128
    %1300 = vxpose.xlu0.b32.cont [12/16] 0.0, 128
    %1301 = vxpose.xlu0.b32.cont [13/16] 0.0, 128
    %1302 = vxpose.xlu0.b32.cont [14/16] 0.0, 128
    %1303 = vxpose.xlu0.b32.cont [15/16] 0.0, 128
    %1304 = vxpose.xlu0.b32.end [16/16] 0.0, 128
    %v1305 = vpop.trf.xlu0
    %v1306 = vpop.trf.xlu0
    %v1307 = vpop.trf.xlu0
    %v1308 = vpop.trf.xlu0
    %v1309 = vpop.trf.xlu0
    %v1310 = vpop.trf.xlu0
    %v1311 = vpop.trf.xlu0
    %v1312 = vpop.trf.xlu0
    %v1313 = vpop.trf.xlu0
    %v1314 = vpop.trf.xlu0
    %v1315 = vpop.trf.xlu0
    %v1316 = vpop.trf.xlu0
    %v1317 = vpop.trf.xlu0
    %v1318 = vpop.trf.xlu0
    %v1319 = vpop.trf.xlu0
    %v1320 = vpop.trf.xlu0
    %v1321 = vcombine.low %v1209, %v1273
    %v1322 = vcombine.high %v1209, %v1273
    %v1324 = vunpack.c.l.s4 1983009808
    %v1325 = vunpack.c.0.s8 %v1324
    %v1326 = vlaneseq
    %v1327 = vshrl.u32 %v1326, 7
    %v1328 = vsub.s32 %v1325, %v1327
    %v1329 = vrot.slane %v1321, %v1328
    %v1331 = vunpack.c.l.s4 1983009808
    %v1332 = vunpack.c.0.s8 %v1331
    %v1333 = vlaneseq
    %v1334 = vshrl.u32 %v1333, 7
    %v1335 = vsub.s32 %v1332, %v1334
    %v1336 = vrot.slane %v1322, %v1335
    %v1337 = vcombine.low %v1241, %v1305
    %v1338 = vcombine.high %v1241, %v1305
    %v1340 = vunpack.c.l.s4 1983009808
    %v1341 = vunpack.c.0.s8 %v1340
    %v1342 = vlaneseq
    %v1343 = vshrl.u32 %v1342, 7
    %v1344 = vsub.s32 %v1341, %v1343
    %v1345 = vrot.slane %v1337, %v1344
    %v1347 = vunpack.c.l.s4 1983009808
    %v1348 = vunpack.c.0.s8 %v1347
    %v1349 = vlaneseq
    %v1350 = vshrl.u32 %v1349, 7
    %v1351 = vsub.s32 %v1348, %v1350
    %v1352 = vrot.slane %v1338, %v1351
    %v1353 = vcombine.low %v1329, %v1345
    %v1354 = vcombine.high %v1329, %v1345
    %v1356 = vunpack.c.l.s4 1934713408
    %v1357 = vunpack.c.0.s8 %v1356
    %v1358 = vlaneseq
    %v1359 = vshrl.u32 %v1358, 7
    %v1360 = vsub.s32 %v1357, %v1359
    %v1361 = vrot.slane %v1353, %v1360
    %v1363 = vunpack.c.l.s4 1934713408
    %v1364 = vunpack.c.0.s8 %v1363
    %v1365 = vlaneseq
    %v1366 = vshrl.u32 %v1365, 7
    %v1367 = vsub.s32 %v1364, %v1366
    %v1368 = vrot.slane %v1354, %v1367
    %v1369 = vcombine.low %v1336, %v1352
    %v1370 = vcombine.high %v1336, %v1352
    %v1372 = vunpack.c.l.s4 1934713408
    %v1373 = vunpack.c.0.s8 %v1372
    %v1374 = vlaneseq
    %v1375 = vshrl.u32 %v1374, 7
    %v1376 = vsub.s32 %v1373, %v1375
    %v1377 = vrot.slane %v1369, %v1376
    %v1379 = vunpack.c.l.s4 1934713408
    %v1380 = vunpack.c.0.s8 %v1379
    %v1381 = vlaneseq
    %v1382 = vshrl.u32 %v1381, 7
    %v1383 = vsub.s32 %v1380, %v1382
    %v1384 = vrot.slane %v1370, %v1383
    %v1385 = vcombine.high %v1361, 0.0
    %v1386 = vcombine.high %v1368, 0.0
    %v1387 = vcombine.high %v1377, 0.0
    %v1388 = vcombine.high %v1384, 0.0
    %v1389 = vcombine.low %v1361, %v1368
    %v1391 = vunpack.c.l.s4 1983009808
    %v1392 = vunpack.c.0.s8 %v1391
    %v1393 = vlaneseq
    %v1394 = vshrl.u32 %v1393, 7
    %v1395 = vsub.s32 %v1392, %v1394
    %v1396 = vrot.slane %v1389, %v1395
    %v1397 = vcombine.low %v1385, %v1386
    %v1399 = vunpack.c.l.s4 1983009808
    %v1400 = vunpack.c.0.s8 %v1399
    %v1401 = vlaneseq
    %v1402 = vshrl.u32 %v1401, 7
    %v1403 = vsub.s32 %v1400, %v1402
    %v1404 = vrot.slane %v1397, %v1403
    %v1405 = vcombine.low %v1377, %v1384
    %v1407 = vunpack.c.l.s4 1983009808
    %v1408 = vunpack.c.0.s8 %v1407
    %v1409 = vlaneseq
    %v1410 = vshrl.u32 %v1409, 7
    %v1411 = vsub.s32 %v1408, %v1410
    %v1412 = vrot.slane %v1405, %v1411
    %v1413 = vcombine.low %v1387, %v1388
    %v1415 = vunpack.c.l.s4 1983009808
    %v1416 = vunpack.c.0.s8 %v1415
    %v1417 = vlaneseq
    %v1418 = vshrl.u32 %v1417, 7
    %v1419 = vsub.s32 %v1416, %v1418
    %v1420 = vrot.slane %v1413, %v1419
    %v1421 = vcombine.low %v1396, %v1404
    %v1422 = vcombine.high %v1396, %v1404
    %v1424 = vunpack.c.l.s4 1934713408
    %v1425 = vunpack.c.0.s8 %v1424
    %v1426 = vlaneseq
    %v1427 = vshrl.u32 %v1426, 7
    %v1428 = vsub.s32 %v1425, %v1427
    %v1429 = vrot.slane %v1421, %v1428
    %v1431 = vunpack.c.l.s4 1934713408
    %v1432 = vunpack.c.0.s8 %v1431
    %v1433 = vlaneseq
    %v1434 = vshrl.u32 %v1433, 7
    %v1435 = vsub.s32 %v1432, %v1434
    %v1436 = vrot.slane %v1422, %v1435
    %v1437 = vcombine.low %v1412, %v1420
    %v1438 = vcombine.high %v1412, %v1420
    %v1440 = vunpack.c.l.s4 1934713408
    %v1441 = vunpack.c.0.s8 %v1440
    %v1442 = vlaneseq
    %v1443 = vshrl.u32 %v1442, 7
    %v1444 = vsub.s32 %v1441, %v1443
    %v1445 = vrot.slane %v1437, %v1444
    %v1447 = vunpack.c.l.s4 1934713408
    %v1448 = vunpack.c.0.s8 %v1447
    %v1449 = vlaneseq
    %v1450 = vshrl.u32 %v1449, 7
    %v1451 = vsub.s32 %v1448, %v1450
    %v1452 = vrot.slane %v1438, %v1451
    %v1453 = vcombine.low %v1429, %v1445
    %v1454 = vcombine.high %v1429, %v1445
    %v1455 = vcombine.low %v1436, %v1452
    %v1456 = vcombine.high %v1436, %v1452
    %1458 = vrot.lane.b32.xlu0 %v1454, 8
    %v1459 = vpop.permute.xlu0 %1458
    %1462 = vrot.lane.b32.xlu0 %v1455, 16
    %v1463 = vpop.permute.xlu0 %1462
    %1466 = vrot.lane.b32.xlu0 %v1456, 24
    %v1467 = vpop.permute.xlu0 %1466
    %v1469 = vsel %vm416, %v1453, %v1459
    %vm1470 = vcmask 130048
    %v1471 = vsel %vm1470, %v1469, %v1463
    %vm1472 = vcmask 195584
    %v1473 = vsel %vm1472, %v1471, %v1467
    %1475 = vrot.lane.b32.xlu0 %v261, 120
    %v1476 = vpop.permute.xlu0 %1475
    %1477 = vrot.lane.b32.xlu0 %v261, 112
    %v1478 = vpop.permute.xlu0 %1477
    %1479 = vrot.lane.b32.xlu0 %v261, 104
    %v1480 = vpop.permute.xlu0 %1479
    %1482 = vrot.lane.b32.xlu0 %v257, 120
    %v1483 = vpop.permute.xlu0 %1482
    %1484 = vrot.lane.b32.xlu0 %v257, 112
    %v1485 = vpop.permute.xlu0 %1484
    %1486 = vrot.lane.b32.xlu0 %v257, 104
    %v1487 = vpop.permute.xlu0 %1486
    %1488 = vrot.lane.b32.xlu0 %v257, 96
    %v1489 = vpop.permute.xlu0 %1488
    %1490 = vrot.lane.b32.xlu0 %v1483, 96
    %v1491 = vpop.permute.xlu0 %1490
    %1492 = vrot.lane.b32.xlu0 %v1485, 96
    %v1493 = vpop.permute.xlu0 %1492
    %1494 = vrot.lane.b32.xlu0 %v1487, 96
    %v1495 = vpop.permute.xlu0 %1494
    %1500 = vxpose.xlu0.b32.start [1/16] %v1489, 128
    %1501 = vxpose.xlu0.b32.cont [2/16] 0.0, 128
    %1502 = vxpose.xlu0.b32.cont [3/16] 0.0, 128
    %1503 = vxpose.xlu0.b32.cont [4/16] 0.0, 128
    %1504 = vxpose.xlu0.b32.cont [5/16] 0.0, 128
    %1505 = vxpose.xlu0.b32.cont [6/16] 0.0, 128
    %1506 = vxpose.xlu0.b32.cont [7/16] 0.0, 128
    %1507 = vxpose.xlu0.b32.cont [8/16] 0.0, 128
    %1508 = vxpose.xlu0.b32.cont [9/16] 0.0, 128
    %1509 = vxpose.xlu0.b32.cont [10/16] 0.0, 128
    %1510 = vxpose.xlu0.b32.cont [11/16] 0.0, 128
    %1511 = vxpose.xlu0.b32.cont [12/16] 0.0, 128
    %1512 = vxpose.xlu0.b32.cont [13/16] 0.0, 128
    %1513 = vxpose.xlu0.b32.cont [14/16] 0.0, 128
    %1514 = vxpose.xlu0.b32.cont [15/16] 0.0, 128
    %1515 = vxpose.xlu0.b32.end [16/16] 0.0, 128
    %v1516 = vpop.trf.xlu0
    %v1517 = vpop.trf.xlu0
    %v1518 = vpop.trf.xlu0
    %v1519 = vpop.trf.xlu0
    %v1520 = vpop.trf.xlu0
    %v1521 = vpop.trf.xlu0
    %v1522 = vpop.trf.xlu0
    %v1523 = vpop.trf.xlu0
    %v1524 = vpop.trf.xlu0
    %v1525 = vpop.trf.xlu0
    %v1526 = vpop.trf.xlu0
    %v1527 = vpop.trf.xlu0
    %v1528 = vpop.trf.xlu0
    %v1529 = vpop.trf.xlu0
    %v1530 = vpop.trf.xlu0
    %v1531 = vpop.trf.xlu0
    %1532 = vxpose.xlu0.b32.start [1/16] %v1491, 128
    %1533 = vxpose.xlu0.b32.cont [2/16] 0.0, 128
    %1534 = vxpose.xlu0.b32.cont [3/16] 0.0, 128
    %1535 = vxpose.xlu0.b32.cont [4/16] 0.0, 128
    %1536 = vxpose.xlu0.b32.cont [5/16] 0.0, 128
    %1537 = vxpose.xlu0.b32.cont [6/16] 0.0, 128
    %1538 = vxpose.xlu0.b32.cont [7/16] 0.0, 128
    %1539 = vxpose.xlu0.b32.cont [8/16] 0.0, 128
    %1540 = vxpose.xlu0.b32.cont [9/16] 0.0, 128
    %1541 = vxpose.xlu0.b32.cont [10/16] 0.0, 128
    %1542 = vxpose.xlu0.b32.cont [11/16] 0.0, 128
    %1543 = vxpose.xlu0.b32.cont [12/16] 0.0, 128
    %1544 = vxpose.xlu0.b32.cont [13/16] 0.0, 128
    %1545 = vxpose.xlu0.b32.cont [14/16] 0.0, 128
    %1546 = vxpose.xlu0.b32.cont [15/16] 0.0, 128
    %1547 = vxpose.xlu0.b32.end [16/16] 0.0, 128
    %v1548 = vpop.trf.xlu0
    %v1549 = vpop.trf.xlu0
    %v1550 = vpop.trf.xlu0
    %v1551 = vpop.trf.xlu0
    %v1552 = vpop.trf.xlu0
    %v1553 = vpop.trf.xlu0
    %v1554 = vpop.trf.xlu0
    %v1555 = vpop.trf.xlu0
    %v1556 = vpop.trf.xlu0
    %v1557 = vpop.trf.xlu0
    %v1558 = vpop.trf.xlu0
    %v1559 = vpop.trf.xlu0
    %v1560 = vpop.trf.xlu0
    %v1561 = vpop.trf.xlu0
    %v1562 = vpop.trf.xlu0
    %v1563 = vpop.trf.xlu0
    %1564 = vxpose.xlu0.b32.start [1/16] %v1493, 128
    %1565 = vxpose.xlu0.b32.cont [2/16] 0.0, 128
    %1566 = vxpose.xlu0.b32.cont [3/16] 0.0, 128
    %1567 = vxpose.xlu0.b32.cont [4/16] 0.0, 128
    %1568 = vxpose.xlu0.b32.cont [5/16] 0.0, 128
    %1569 = vxpose.xlu0.b32.cont [6/16] 0.0, 128
    %1570 = vxpose.xlu0.b32.cont [7/16] 0.0, 128
    %1571 = vxpose.xlu0.b32.cont [8/16] 0.0, 128
    %1572 = vxpose.xlu0.b32.cont [9/16] 0.0, 128
    %1573 = vxpose.xlu0.b32.cont [10/16] 0.0, 128
    %1574 = vxpose.xlu0.b32.cont [11/16] 0.0, 128
    %1575 = vxpose.xlu0.b32.cont [12/16] 0.0, 128
    %1576 = vxpose.xlu0.b32.cont [13/16] 0.0, 128
    %1577 = vxpose.xlu0.b32.cont [14/16] 0.0, 128
    %1578 = vxpose.xlu0.b32.cont [15/16] 0.0, 128
    %1579 = vxpose.xlu0.b32.end [16/16] 0.0, 128
    %v1580 = vpop.trf.xlu0
    %v1581 = vpop.trf.xlu0
    %v1582 = vpop.trf.xlu0
    %v1583 = vpop.trf.xlu0
    %v1584 = vpop.trf.xlu0
    %v1585 = vpop.trf.xlu0
    %v1586 = vpop.trf.xlu0
    %v1587 = vpop.trf.xlu0
    %v1588 = vpop.trf.xlu0
    %v1589 = vpop.trf.xlu0
    %v1590 = vpop.trf.xlu0
    %v1591 = vpop.trf.xlu0
    %v1592 = vpop.trf.xlu0
    %v1593 = vpop.trf.xlu0
    %v1594 = vpop.trf.xlu0
    %v1595 = vpop.trf.xlu0
    %1596 = vxpose.xlu0.b32.start [1/16] %v1495, 128
    %1597 = vxpose.xlu0.b32.cont [2/16] 0.0, 128
    %1598 = vxpose.xlu0.b32.cont [3/16] 0.0, 128
    %1599 = vxpose.xlu0.b32.cont [4/16] 0.0, 128
    %1600 = vxpose.xlu0.b32.cont [5/16] 0.0, 128
    %1601 = vxpose.xlu0.b32.cont [6/16] 0.0, 128
    %1602 = vxpose.xlu0.b32.cont [7/16] 0.0, 128
    %1603 = vxpose.xlu0.b32.cont [8/16] 0.0, 128
    %1604 = vxpose.xlu0.b32.cont [9/16] 0.0, 128
    %1605 = vxpose.xlu0.b32.cont [10/16] 0.0, 128
    %1606 = vxpose.xlu0.b32.cont [11/16] 0.0, 128
    %1607 = vxpose.xlu0.b32.cont [12/16] 0.0, 128
    %1608 = vxpose.xlu0.b32.cont [13/16] 0.0, 128
    %1609 = vxpose.xlu0.b32.cont [14/16] 0.0, 128
    %1610 = vxpose.xlu0.b32.cont [15/16] 0.0, 128
    %1611 = vxpose.xlu0.b32.end [16/16] 0.0, 128
    %v1612 = vpop.trf.xlu0
    %v1613 = vpop.trf.xlu0
    %v1614 = vpop.trf.xlu0
    %v1615 = vpop.trf.xlu0
    %v1616 = vpop.trf.xlu0
    %v1617 = vpop.trf.xlu0
    %v1618 = vpop.trf.xlu0
    %v1619 = vpop.trf.xlu0
    %v1620 = vpop.trf.xlu0
    %v1621 = vpop.trf.xlu0
    %v1622 = vpop.trf.xlu0
    %v1623 = vpop.trf.xlu0
    %v1624 = vpop.trf.xlu0
    %v1625 = vpop.trf.xlu0
    %v1626 = vpop.trf.xlu0
    %v1627 = vpop.trf.xlu0
    %v1628 = vsel %vm416, %v261, 0
    %1630 = vmatprep.subr.mxu0 0.0
    %1631 = vmatpush1.msra.mxu0 %v1516
    %1632 = vmatprep.subr.mxu0 0.0
    %1633 = vmatpush1.msra.mxu0 0.0
    %1634 = vmatprep.subr.mxu0 0.0
    %1635 = vmatpush1.msra.mxu0 0.0
    %1636 = vmatprep.subr.mxu0 0.0
    %1637 = vmatpush1.msra.mxu0 0.0
    %1638 = vmatprep.subr.mxu0 0.0
    %1639 = vmatpush1.msra.mxu0 0.0
    %1640 = vmatprep.subr.mxu0 0.0
    %1641 = vmatpush1.msra.mxu0 0.0
    %1642 = vmatprep.subr.mxu0 0.0
    %1643 = vmatpush1.msra.mxu0 0.0
    %1644 = vmatprep.subr.mxu0 0.0
    %1645 = vmatpush1.msra.mxu0 0.0
    %1646 = vmatprep.subr.mxu0 0.0
    %1647 = vmatpush1.msra.mxu0 0.0
    %1648 = vmatprep.subr.mxu0 0.0
    %1649 = vmatpush1.msra.mxu0 0.0
    %1650 = vmatprep.subr.mxu0 0.0
    %1651 = vmatpush1.msra.mxu0 0.0
    %1652 = vmatprep.subr.mxu0 0.0
    %1653 = vmatpush1.msra.mxu0 0.0
    %1654 = vmatprep.subr.mxu0 0.0
    %1655 = vmatpush1.msra.mxu0 0.0
    %1656 = vmatprep.subr.mxu0 0.0
    %1657 = vmatpush1.msra.mxu0 0.0
    %1658 = vmatprep.subr.mxu0 0.0
    %1659 = vmatpush1.msra.mxu0 0.0
    %1660 = vmatprep.subr.mxu0 0.0
    %1661 = vmatpush1.msra.mxu0 0.0
    %1662 = vmatprep.subr.mxu0 0.0
    %1663 = vmatpush1.msra.mxu0 0.0
    %1664 = vmatprep.subr.mxu0 0.0
    %1665 = vmatpush1.msra.mxu0 0.0
    %1666 = vmatprep.subr.mxu0 0.0
    %1667 = vmatpush1.msra.mxu0 0.0
    %1668 = vmatprep.subr.mxu0 0.0
    %1669 = vmatpush1.msra.mxu0 0.0
    %1670 = vmatprep.subr.mxu0 0.0
    %1671 = vmatpush1.msra.mxu0 0.0
    %1672 = vmatprep.subr.mxu0 0.0
    %1673 = vmatpush1.msra.mxu0 0.0
    %1674 = vmatprep.subr.mxu0 0.0
    %1675 = vmatpush1.msra.mxu0 0.0
    %1676 = vmatprep.subr.mxu0 0.0
    %1677 = vmatpush1.msra.mxu0 0.0
    %1678 = vmatprep.subr.mxu0 0.0
    %1679 = vmatpush1.msra.mxu0 0.0
    %1680 = vmatprep.subr.mxu0 0.0
    %1681 = vmatpush1.msra.mxu0 0.0
    %1682 = vmatprep.subr.mxu0 0.0
    %1683 = vmatpush1.msra.mxu0 0.0
    %1684 = vmatprep.subr.mxu0 0.0
    %1685 = vmatpush1.msra.mxu0 0.0
    %1686 = vmatprep.subr.mxu0 0.0
    %1687 = vmatpush1.msra.mxu0 0.0
    %1688 = vmatprep.subr.mxu0 0.0
    %1689 = vmatpush1.msra.mxu0 0.0
    %1690 = vmatprep.subr.mxu0 0.0
    %1691 = vmatpush1.msra.mxu0 0.0
    %1692 = vmatprep.subr.mxu0 0.0
    %1693 = vmatpush1.msra.mxu0 0.0
    %1694 = vmatprep.mubr.f32.mxu0 0.0
    %1695 = vmatmul.mubr.f32.gmra.mrb[0].mxu0 %v1628
    %v1696 = vpop.f32.mrb[0].mxu0
    %v1697 = vadd.f32 %v166, %v1696
    %v1698 = vpop.f32.mrb[0].mxu0
    %1699 = vdwg.mxu0
    %v1700 = vsel %vm416, %v1476, 0
    %1702 = vmatprep.subr.mxu0 0.0
    %1703 = vmatpush1.msra.mxu0 %v1548
    %1704 = vmatprep.subr.mxu0 0.0
    %1705 = vmatpush1.msra.mxu0 0.0
    %1706 = vmatprep.subr.mxu0 0.0
    %1707 = vmatpush1.msra.mxu0 0.0
    %1708 = vmatprep.subr.mxu0 0.0
    %1709 = vmatpush1.msra.mxu0 0.0
    %1710 = vmatprep.subr.mxu0 0.0
    %1711 = vmatpush1.msra.mxu0 0.0
    %1712 = vmatprep.subr.mxu0 0.0
    %1713 = vmatpush1.msra.mxu0 0.0
    %1714 = vmatprep.subr.mxu0 0.0
    %1715 = vmatpush1.msra.mxu0 0.0
    %1716 = vmatprep.subr.mxu0 0.0
    %1717 = vmatpush1.msra.mxu0 0.0
    %1718 = vmatprep.subr.mxu0 0.0
    %1719 = vmatpush1.msra.mxu0 0.0
    %1720 = vmatprep.subr.mxu0 0.0
    %1721 = vmatpush1.msra.mxu0 0.0
    %1722 = vmatprep.subr.mxu0 0.0
    %1723 = vmatpush1.msra.mxu0 0.0
    %1724 = vmatprep.subr.mxu0 0.0
    %1725 = vmatpush1.msra.mxu0 0.0
    %1726 = vmatprep.subr.mxu0 0.0
    %1727 = vmatpush1.msra.mxu0 0.0
    %1728 = vmatprep.subr.mxu0 0.0
    %1729 = vmatpush1.msra.mxu0 0.0
    %1730 = vmatprep.subr.mxu0 0.0
    %1731 = vmatpush1.msra.mxu0 0.0
    %1732 = vmatprep.subr.mxu0 0.0
    %1733 = vmatpush1.msra.mxu0 0.0
    %1734 = vmatprep.subr.mxu0 0.0
    %1735 = vmatpush1.msra.mxu0 0.0
    %1736 = vmatprep.subr.mxu0 0.0
    %1737 = vmatpush1.msra.mxu0 0.0
    %1738 = vmatprep.subr.mxu0 0.0
    %1739 = vmatpush1.msra.mxu0 0.0
    %1740 = vmatprep.subr.mxu0 0.0
    %1741 = vmatpush1.msra.mxu0 0.0
    %1742 = vmatprep.subr.mxu0 0.0
    %1743 = vmatpush1.msra.mxu0 0.0
    %1744 = vmatprep.subr.mxu0 0.0
    %1745 = vmatpush1.msra.mxu0 0.0
    %1746 = vmatprep.subr.mxu0 0.0
    %1747 = vmatpush1.msra.mxu0 0.0
    %1748 = vmatprep.subr.mxu0 0.0
    %1749 = vmatpush1.msra.mxu0 0.0
    %1750 = vmatprep.subr.mxu0 0.0
    %1751 = vmatpush1.msra.mxu0 0.0
    %1752 = vmatprep.subr.mxu0 0.0
    %1753 = vmatpush1.msra.mxu0 0.0
    %1754 = vmatprep.subr.mxu0 0.0
    %1755 = vmatpush1.msra.mxu0 0.0
    %1756 = vmatprep.subr.mxu0 0.0
    %1757 = vmatpush1.msra.mxu0 0.0
    %1758 = vmatprep.subr.mxu0 0.0
    %1759 = vmatpush1.msra.mxu0 0.0
    %1760 = vmatprep.subr.mxu0 0.0
    %1761 = vmatpush1.msra.mxu0 0.0
    %1762 = vmatprep.subr.mxu0 0.0
    %1763 = vmatpush1.msra.mxu0 0.0
    %1764 = vmatprep.subr.mxu0 0.0
    %1765 = vmatpush1.msra.mxu0 0.0
    %1766 = vmatprep.mubr.f32.mxu0 0.0
    %1767 = vmatmul.mubr.f32.gmra.mrb[0].mxu0 %v1700
    %v1768 = vpop.f32.mrb[0].mxu0
    %v1769 = vadd.f32 %v166, %v1768
    %v1770 = vpop.f32.mrb[0].mxu0
    %1771 = vdwg.mxu0
    %v1772 = vsel %vm416, %v1478, 0
    %1774 = vmatprep.subr.mxu0 0.0
    %1775 = vmatpush1.msra.mxu0 %v1580
    %1776 = vmatprep.subr.mxu0 0.0
    %1777 = vmatpush1.msra.mxu0 0.0
    %1778 = vmatprep.subr.mxu0 0.0
    %1779 = vmatpush1.msra.mxu0 0.0
    %1780 = vmatprep.subr.mxu0 0.0
    %1781 = vmatpush1.msra.mxu0 0.0
    %1782 = vmatprep.subr.mxu0 0.0
    %1783 = vmatpush1.msra.mxu0 0.0
    %1784 = vmatprep.subr.mxu0 0.0
    %1785 = vmatpush1.msra.mxu0 0.0
    %1786 = vmatprep.subr.mxu0 0.0
    %1787 = vmatpush1.msra.mxu0 0.0
    %1788 = vmatprep.subr.mxu0 0.0
    %1789 = vmatpush1.msra.mxu0 0.0
    %1790 = vmatprep.subr.mxu0 0.0
    %1791 = vmatpush1.msra.mxu0 0.0
    %1792 = vmatprep.subr.mxu0 0.0
    %1793 = vmatpush1.msra.mxu0 0.0
    %1794 = vmatprep.subr.mxu0 0.0
    %1795 = vmatpush1.msra.mxu0 0.0
    %1796 = vmatprep.subr.mxu0 0.0
    %1797 = vmatpush1.msra.mxu0 0.0
    %1798 = vmatprep.subr.mxu0 0.0
    %1799 = vmatpush1.msra.mxu0 0.0
    %1800 = vmatprep.subr.mxu0 0.0
    %1801 = vmatpush1.msra.mxu0 0.0
    %1802 = vmatprep.subr.mxu0 0.0
    %1803 = vmatpush1.msra.mxu0 0.0
    %1804 = vmatprep.subr.mxu0 0.0
    %1805 = vmatpush1.msra.mxu0 0.0
    %1806 = vmatprep.subr.mxu0 0.0
    %1807 = vmatpush1.msra.mxu0 0.0
    %1808 = vmatprep.subr.mxu0 0.0
    %1809 = vmatpush1.msra.mxu0 0.0
    %1810 = vmatprep.subr.mxu0 0.0
    %1811 = vmatpush1.msra.mxu0 0.0
    %1812 = vmatprep.subr.mxu0 0.0
    %1813 = vmatpush1.msra.mxu0 0.0
    %1814 = vmatprep.subr.mxu0 0.0
    %1815 = vmatpush1.msra.mxu0 0.0
    %1816 = vmatprep.subr.mxu0 0.0
    %1817 = vmatpush1.msra.mxu0 0.0
    %1818 = vmatprep.subr.mxu0 0.0
    %1819 = vmatpush1.msra.mxu0 0.0
    %1820 = vmatprep.subr.mxu0 0.0
    %1821 = vmatpush1.msra.mxu0 0.0
    %1822 = vmatprep.subr.mxu0 0.0
    %1823 = vmatpush1.msra.mxu0 0.0
    %1824 = vmatprep.subr.mxu0 0.0
    %1825 = vmatpush1.msra.mxu0 0.0
    %1826 = vmatprep.subr.mxu0 0.0
    %1827 = vmatpush1.msra.mxu0 0.0
    %1828 = vmatprep.subr.mxu0 0.0
    %1829 = vmatpush1.msra.mxu0 0.0
    %1830 = vmatprep.subr.mxu0 0.0
    %1831 = vmatpush1.msra.mxu0 0.0
    %1832 = vmatprep.subr.mxu0 0.0
    %1833 = vmatpush1.msra.mxu0 0.0
    %1834 = vmatprep.subr.mxu0 0.0
    %1835 = vmatpush1.msra.mxu0 0.0
    %1836 = vmatprep.subr.mxu0 0.0
    %1837 = vmatpush1.msra.mxu0 0.0
    %1838 = vmatprep.mubr.f32.mxu0 0.0
    %1839 = vmatmul.mubr.f32.gmra.mrb[0].mxu0 %v1772
    %v1840 = vpop.f32.mrb[0].mxu0
    %v1841 = vadd.f32 %v166, %v1840
    %v1842 = vpop.f32.mrb[0].mxu0
    %1843 = vdwg.mxu0
    %v1844 = vsel %vm416, %v1480, 0
    %1846 = vmatprep.subr.mxu0 0.0
    %1847 = vmatpush1.msra.mxu0 %v1612
    %1848 = vmatprep.subr.mxu0 0.0
    %1849 = vmatpush1.msra.mxu0 0.0
    %1850 = vmatprep.subr.mxu0 0.0
    %1851 = vmatpush1.msra.mxu0 0.0
    %1852 = vmatprep.subr.mxu0 0.0
    %1853 = vmatpush1.msra.mxu0 0.0
    %1854 = vmatprep.subr.mxu0 0.0
    %1855 = vmatpush1.msra.mxu0 0.0
    %1856 = vmatprep.subr.mxu0 0.0
    %1857 = vmatpush1.msra.mxu0 0.0
    %1858 = vmatprep.subr.mxu0 0.0
    %1859 = vmatpush1.msra.mxu0 0.0
    %1860 = vmatprep.subr.mxu0 0.0
    %1861 = vmatpush1.msra.mxu0 0.0
    %1862 = vmatprep.subr.mxu0 0.0
    %1863 = vmatpush1.msra.mxu0 0.0
    %1864 = vmatprep.subr.mxu0 0.0
    %1865 = vmatpush1.msra.mxu0 0.0
    %1866 = vmatprep.subr.mxu0 0.0
    %1867 = vmatpush1.msra.mxu0 0.0
    %1868 = vmatprep.subr.mxu0 0.0
    %1869 = vmatpush1.msra.mxu0 0.0
    %1870 = vmatprep.subr.mxu0 0.0
    %1871 = vmatpush1.msra.mxu0 0.0
    %1872 = vmatprep.subr.mxu0 0.0
    %1873 = vmatpush1.msra.mxu0 0.0
    %1874 = vmatprep.subr.mxu0 0.0
    %1875 = vmatpush1.msra.mxu0 0.0
    %1876 = vmatprep.subr.mxu0 0.0
    %1877 = vmatpush1.msra.mxu0 0.0
    %1878 = vmatprep.subr.mxu0 0.0
    %1879 = vmatpush1.msra.mxu0 0.0
    %1880 = vmatprep.subr.mxu0 0.0
    %1881 = vmatpush1.msra.mxu0 0.0
    %1882 = vmatprep.subr.mxu0 0.0
    %1883 = vmatpush1.msra.mxu0 0.0
    %1884 = vmatprep.subr.mxu0 0.0
    %1885 = vmatpush1.msra.mxu0 0.0
    %1886 = vmatprep.subr.mxu0 0.0
    %1887 = vmatpush1.msra.mxu0 0.0
    %1888 = vmatprep.subr.mxu0 0.0
    %1889 = vmatpush1.msra.mxu0 0.0
    %1890 = vmatprep.subr.mxu0 0.0
    %1891 = vmatpush1.msra.mxu0 0.0
    %1892 = vmatprep.subr.mxu0 0.0
    %1893 = vmatpush1.msra.mxu0 0.0
    %1894 = vmatprep.subr.mxu0 0.0
    %1895 = vmatpush1.msra.mxu0 0.0
    %1896 = vmatprep.subr.mxu0 0.0
    %1897 = vmatpush1.msra.mxu0 0.0
    %1898 = vmatprep.subr.mxu0 0.0
    %1899 = vmatpush1.msra.mxu0 0.0
    %1900 = vmatprep.subr.mxu0 0.0
    %1901 = vmatpush1.msra.mxu0 0.0
    %1902 = vmatprep.subr.mxu0 0.0
    %1903 = vmatpush1.msra.mxu0 0.0
    %1904 = vmatprep.subr.mxu0 0.0
    %1905 = vmatpush1.msra.mxu0 0.0
    %1906 = vmatprep.subr.mxu0 0.0
    %1907 = vmatpush1.msra.mxu0 0.0
    %1908 = vmatprep.subr.mxu0 0.0
    %1909 = vmatpush1.msra.mxu0 0.0
    %1910 = vmatprep.mubr.f32.mxu0 0.0
    %1911 = vmatmul.mubr.f32.gmra.mrb[0].mxu0 %v1844
    %v1912 = vpop.f32.mrb[0].mxu0
    %v1913 = vadd.f32 %v166, %v1912
    %v1914 = vpop.f32.mrb[0].mxu0
    %1915 = vdwg.mxu0
    %v1916 = vsel %vm416, %v1697, -inf
    %1917 = vmax.xlane.f32.xlu0 %v1916
    %v1918 = vpop.xlane.xlu0 %1917
    %v1919 = vsel %vm416, %v1769, -inf
    %1920 = vmax.xlane.f32.xlu0 %v1919
    %v1921 = vpop.xlane.xlu0 %1920
    %v1922 = vsel %vm416, %v1841, -inf
    %1923 = vmax.xlane.f32.xlu0 %v1922
    %v1924 = vpop.xlane.xlu0 %1923
    %v1925 = vsel %vm416, %v1913, -inf
    %1926 = vmax.xlane.f32.xlu0 %v1925
    %v1927 = vpop.xlane.xlu0 %1926
    %v1928 = vsub.f32 %v1697, %v1918
    %v1929 = vsub.f32 %v1769, %v1921
    %v1930 = vsub.f32 %v1841, %v1924
    %v1931 = vsub.f32 %v1913, %v1927
    %v1932 = vmul.f32 %v1928, 1.442695
    %v1933 = vpow.pop %v1932
    %v1934 = vmul.f32 %v1929, 1.442695
    %v1935 = vpow.pop %v1934
    %v1936 = vmul.f32 %v1930, 1.442695
    %v1937 = vpow.pop %v1936
    %v1938 = vmul.f32 %v1931, 1.442695
    %v1939 = vpow.pop %v1938
    %v1940 = vsel %vm416, %v1933, 0.0
    %1941 = vadd.xlane.f32.xlu0 %v1940
    %v1942 = vpop.xlane.xlu0 %1941
    %v1943 = vsel %vm416, %v1935, 0.0
    %1944 = vadd.xlane.f32.xlu0 %v1943
    %v1945 = vpop.xlane.xlu0 %1944
    %v1946 = vsel %vm416, %v1937, 0.0
    %1947 = vadd.xlane.f32.xlu0 %v1946
    %v1948 = vpop.xlane.xlu0 %1947
    %v1949 = vsel %vm416, %v1939, 0.0
    %1950 = vadd.xlane.f32.xlu0 %v1949
    %v1951 = vpop.xlane.xlu0 %1950
    %v1952 = vrcp.pop %v1942
    %v1953 = vrcp.pop %v1945
    %v1954 = vrcp.pop %v1948
    %v1955 = vrcp.pop %v1951
    %v1956 = vmul.f32 %v1933, %v1952
    %v1957 = vmul.f32 %v1935, %v1953
    %v1958 = vmul.f32 %v1937, %v1954
    %v1959 = vmul.f32 %v1939, %v1955
    %1960 = vrot.lane.b32.xlu0 %v257, 64
    %v1961 = vpop.permute.xlu0 %1960
    %1962 = vrot.lane.b32.xlu0 %v1483, 64
    %v1963 = vpop.permute.xlu0 %1962
    %1964 = vrot.lane.b32.xlu0 %v1485, 64
    %v1965 = vpop.permute.xlu0 %1964
    %1966 = vrot.lane.b32.xlu0 %v1487, 64
    %v1967 = vpop.permute.xlu0 %1966
    %1972 = vxpose.xlu0.b32.start [1/16] %v1961, 128
    %1973 = vxpose.xlu0.b32.cont [2/16] 0.0, 128
    %1974 = vxpose.xlu0.b32.cont [3/16] 0.0, 128
    %1975 = vxpose.xlu0.b32.cont [4/16] 0.0, 128
    %1976 = vxpose.xlu0.b32.cont [5/16] 0.0, 128
    %1977 = vxpose.xlu0.b32.cont [6/16] 0.0, 128
    %1978 = vxpose.xlu0.b32.cont [7/16] 0.0, 128
    %1979 = vxpose.xlu0.b32.cont [8/16] 0.0, 128
    %1980 = vxpose.xlu0.b32.cont [9/16] 0.0, 128
    %1981 = vxpose.xlu0.b32.cont [10/16] 0.0, 128
    %1982 = vxpose.xlu0.b32.cont [11/16] 0.0, 128
    %1983 = vxpose.xlu0.b32.cont [12/16] 0.0, 128
    %1984 = vxpose.xlu0.b32.cont [13/16] 0.0, 128
    %1985 = vxpose.xlu0.b32.cont [14/16] 0.0, 128
    %1986 = vxpose.xlu0.b32.cont [15/16] 0.0, 128
    %1987 = vxpose.xlu0.b32.end [16/16] 0.0, 128
    %v1988 = vpop.trf.xlu0
    %v1989 = vpop.trf.xlu0
    %v1990 = vpop.trf.xlu0
    %v1991 = vpop.trf.xlu0
    %v1992 = vpop.trf.xlu0
    %v1993 = vpop.trf.xlu0
    %v1994 = vpop.trf.xlu0
    %v1995 = vpop.trf.xlu0
    %v1996 = vpop.trf.xlu0
    %v1997 = vpop.trf.xlu0
    %v1998 = vpop.trf.xlu0
    %v1999 = vpop.trf.xlu0
    %v2000 = vpop.trf.xlu0
    %v2001 = vpop.trf.xlu0
    %v2002 = vpop.trf.xlu0
    %v2003 = vpop.trf.xlu0
    %2004 = vxpose.xlu0.b32.start [1/16] %v1963, 128
    %2005 = vxpose.xlu0.b32.cont [2/16] 0.0, 128
    %2006 = vxpose.xlu0.b32.cont [3/16] 0.0, 128
    %2007 = vxpose.xlu0.b32.cont [4/16] 0.0, 128
    %2008 = vxpose.xlu0.b32.cont [5/16] 0.0, 128
    %2009 = vxpose.xlu0.b32.cont [6/16] 0.0, 128
    %2010 = vxpose.xlu0.b32.cont [7/16] 0.0, 128
    %2011 = vxpose.xlu0.b32.cont [8/16] 0.0, 128
    %2012 = vxpose.xlu0.b32.cont [9/16] 0.0, 128
    %2013 = vxpose.xlu0.b32.cont [10/16] 0.0, 128
    %2014 = vxpose.xlu0.b32.cont [11/16] 0.0, 128
    %2015 = vxpose.xlu0.b32.cont [12/16] 0.0, 128
    %2016 = vxpose.xlu0.b32.cont [13/16] 0.0, 128
    %2017 = vxpose.xlu0.b32.cont [14/16] 0.0, 128
    %2018 = vxpose.xlu0.b32.cont [15/16] 0.0, 128
    %2019 = vxpose.xlu0.b32.end [16/16] 0.0, 128
    %v2020 = vpop.trf.xlu0
    %v2021 = vpop.trf.xlu0
    %v2022 = vpop.trf.xlu0
    %v2023 = vpop.trf.xlu0
    %v2024 = vpop.trf.xlu0
    %v2025 = vpop.trf.xlu0
    %v2026 = vpop.trf.xlu0
    %v2027 = vpop.trf.xlu0
    %v2028 = vpop.trf.xlu0
    %v2029 = vpop.trf.xlu0
    %v2030 = vpop.trf.xlu0
    %v2031 = vpop.trf.xlu0
    %v2032 = vpop.trf.xlu0
    %v2033 = vpop.trf.xlu0
    %v2034 = vpop.trf.xlu0
    %v2035 = vpop.trf.xlu0
    %2036 = vxpose.xlu0.b32.start [1/16] %v1965, 128
    %2037 = vxpose.xlu0.b32.cont [2/16] 0.0, 128
    %2038 = vxpose.xlu0.b32.cont [3/16] 0.0, 128
    %2039 = vxpose.xlu0.b32.cont [4/16] 0.0, 128
    %2040 = vxpose.xlu0.b32.cont [5/16] 0.0, 128
    %2041 = vxpose.xlu0.b32.cont [6/16] 0.0, 128
    %2042 = vxpose.xlu0.b32.cont [7/16] 0.0, 128
    %2043 = vxpose.xlu0.b32.cont [8/16] 0.0, 128
    %2044 = vxpose.xlu0.b32.cont [9/16] 0.0, 128
    %2045 = vxpose.xlu0.b32.cont [10/16] 0.0, 128
    %2046 = vxpose.xlu0.b32.cont [11/16] 0.0, 128
    %2047 = vxpose.xlu0.b32.cont [12/16] 0.0, 128
    %2048 = vxpose.xlu0.b32.cont [13/16] 0.0, 128
    %2049 = vxpose.xlu0.b32.cont [14/16] 0.0, 128
    %2050 = vxpose.xlu0.b32.cont [15/16] 0.0, 128
    %2051 = vxpose.xlu0.b32.end [16/16] 0.0, 128
    %v2052 = vpop.trf.xlu0
    %v2053 = vpop.trf.xlu0
    %v2054 = vpop.trf.xlu0
    %v2055 = vpop.trf.xlu0
    %v2056 = vpop.trf.xlu0
    %v2057 = vpop.trf.xlu0
    %v2058 = vpop.trf.xlu0
    %v2059 = vpop.trf.xlu0
    %v2060 = vpop.trf.xlu0
    %v2061 = vpop.trf.xlu0
    %v2062 = vpop.trf.xlu0
    %v2063 = vpop.trf.xlu0
    %v2064 = vpop.trf.xlu0
    %v2065 = vpop.trf.xlu0
    %v2066 = vpop.trf.xlu0
    %v2067 = vpop.trf.xlu0
    %2068 = vxpose.xlu0.b32.start [1/16] %v1967, 128
    %2069 = vxpose.xlu0.b32.cont [2/16] 0.0, 128
    %2070 = vxpose.xlu0.b32.cont [3/16] 0.0, 128
    %2071 = vxpose.xlu0.b32.cont [4/16] 0.0, 128
    %2072 = vxpose.xlu0.b32.cont [5/16] 0.0, 128
    %2073 = vxpose.xlu0.b32.cont [6/16] 0.0, 128
    %2074 = vxpose.xlu0.b32.cont [7/16] 0.0, 128
    %2075 = vxpose.xlu0.b32.cont [8/16] 0.0, 128
    %2076 = vxpose.xlu0.b32.cont [9/16] 0.0, 128
    %2077 = vxpose.xlu0.b32.cont [10/16] 0.0, 128
    %2078 = vxpose.xlu0.b32.cont [11/16] 0.0, 128
    %2079 = vxpose.xlu0.b32.cont [12/16] 0.0, 128
    %2080 = vxpose.xlu0.b32.cont [13/16] 0.0, 128
    %2081 = vxpose.xlu0.b32.cont [14/16] 0.0, 128
    %2082 = vxpose.xlu0.b32.cont [15/16] 0.0, 128
    %2083 = vxpose.xlu0.b32.end [16/16] 0.0, 128
    %v2084 = vpop.trf.xlu0
    %v2085 = vpop.trf.xlu0
    %v2086 = vpop.trf.xlu0
    %v2087 = vpop.trf.xlu0
    %v2088 = vpop.trf.xlu0
    %v2089 = vpop.trf.xlu0
    %v2090 = vpop.trf.xlu0
    %v2091 = vpop.trf.xlu0
    %v2092 = vpop.trf.xlu0
    %v2093 = vpop.trf.xlu0
    %v2094 = vpop.trf.xlu0
    %v2095 = vpop.trf.xlu0
    %v2096 = vpop.trf.xlu0
    %v2097 = vpop.trf.xlu0
    %v2098 = vpop.trf.xlu0
    %v2099 = vpop.trf.xlu0
    %v2101 = vsel %vm416, %v1988, 0
    %v2104 = vsel %vm416, %v1956, 0
    %2106 = vmatprep.subr.mxu0 0.0
    %2107 = vmatpush1.xpose.msra.mxu0 %v2104
    %2108 = vmatprep.subr.mxu0 0.0
    %2109 = vmatpush1.xpose.msra.mxu0 0.0
    %2110 = vmatprep.subr.mxu0 0.0
    %2111 = vmatpush1.xpose.msra.mxu0 0.0
    %2112 = vmatprep.subr.mxu0 0.0
    %2113 = vmatpush1.xpose.msra.mxu0 0.0
    %2114 = vmatprep.subr.mxu0 0.0
    %2115 = vmatpush1.xpose.msra.mxu0 0.0
    %2116 = vmatprep.subr.mxu0 0.0
    %2117 = vmatpush1.xpose.msra.mxu0 0.0
    %2118 = vmatprep.subr.mxu0 0.0
    %2119 = vmatpush1.xpose.msra.mxu0 0.0
    %2120 = vmatprep.subr.mxu0 0.0
    %2121 = vmatpush1.xpose.msra.mxu0 0.0
    %2122 = vmatprep.subr.mxu0 0.0
    %2123 = vmatpush1.xpose.msra.mxu0 0.0
    %2124 = vmatprep.subr.mxu0 0.0
    %2125 = vmatpush1.xpose.msra.mxu0 0.0
    %2126 = vmatprep.subr.mxu0 0.0
    %2127 = vmatpush1.xpose.msra.mxu0 0.0
    %2128 = vmatprep.subr.mxu0 0.0
    %2129 = vmatpush1.xpose.msra.mxu0 0.0
    %2130 = vmatprep.subr.mxu0 0.0
    %2131 = vmatpush1.xpose.msra.mxu0 0.0
    %2132 = vmatprep.subr.mxu0 0.0
    %2133 = vmatpush1.xpose.msra.mxu0 0.0
    %2134 = vmatprep.subr.mxu0 0.0
    %2135 = vmatpush1.xpose.msra.mxu0 0.0
    %2136 = vmatprep.subr.mxu0 0.0
    %2137 = vmatpush1.xpose.msra.mxu0 0.0
    %2138 = vmatprep.subr.mxu0 0.0
    %2139 = vmatpush1.xpose.msra.mxu0 0.0
    %2140 = vmatprep.subr.mxu0 0.0
    %2141 = vmatpush1.xpose.msra.mxu0 0.0
    %2142 = vmatprep.subr.mxu0 0.0
    %2143 = vmatpush1.xpose.msra.mxu0 0.0
    %2144 = vmatprep.subr.mxu0 0.0
    %2145 = vmatpush1.xpose.msra.mxu0 0.0
    %2146 = vmatprep.subr.mxu0 0.0
    %2147 = vmatpush1.xpose.msra.mxu0 0.0
    %2148 = vmatprep.subr.mxu0 0.0
    %2149 = vmatpush1.xpose.msra.mxu0 0.0
    %2150 = vmatprep.subr.mxu0 0.0
    %2151 = vmatpush1.xpose.msra.mxu0 0.0
    %2152 = vmatprep.subr.mxu0 0.0
    %2153 = vmatpush1.xpose.msra.mxu0 0.0
    %2154 = vmatprep.subr.mxu0 0.0
    %2155 = vmatpush1.xpose.msra.mxu0 0.0
    %2156 = vmatprep.subr.mxu0 0.0
    %2157 = vmatpush1.xpose.msra.mxu0 0.0
    %2158 = vmatprep.subr.mxu0 0.0
    %2159 = vmatpush1.xpose.msra.mxu0 0.0
    %2160 = vmatprep.subr.mxu0 0.0
    %2161 = vmatpush1.xpose.msra.mxu0 0.0
    %2162 = vmatprep.subr.mxu0 0.0
    %2163 = vmatpush1.xpose.msra.mxu0 0.0
    %2164 = vmatprep.subr.mxu0 0.0
    %2165 = vmatpush1.xpose.msra.mxu0 0.0
    %2166 = vmatprep.subr.mxu0 0.0
    %2167 = vmatpush1.xpose.msra.mxu0 0.0
    %2168 = vmatprep.subr.mxu0 0.0
    %2169 = vmatpush1.xpose.msra.mxu0 0.0
    %2170 = vmatprep.mubr.f32.mxu0 0.0
    %2171 = vmatmul.mubr.f32.gmra.mrb[0].mxu0 %v2101
    %v2172 = vpop.f32.mrb[0].mxu0
    %v2173 = vadd.f32 0.0, %v2172
    %v2174 = vpop.f32.mrb[0].mxu0
    %2175 = vdwg.mxu0
    %v2177 = vsel %vm416, %v2020, 0
    %v2180 = vsel %vm416, %v1957, 0
    %2182 = vmatprep.subr.mxu0 0.0
    %2183 = vmatpush1.xpose.msra.mxu0 %v2180
    %2184 = vmatprep.subr.mxu0 0.0
    %2185 = vmatpush1.xpose.msra.mxu0 0.0
    %2186 = vmatprep.subr.mxu0 0.0
    %2187 = vmatpush1.xpose.msra.mxu0 0.0
    %2188 = vmatprep.subr.mxu0 0.0
    %2189 = vmatpush1.xpose.msra.mxu0 0.0
    %2190 = vmatprep.subr.mxu0 0.0
    %2191 = vmatpush1.xpose.msra.mxu0 0.0
    %2192 = vmatprep.subr.mxu0 0.0
    %2193 = vmatpush1.xpose.msra.mxu0 0.0
    %2194 = vmatprep.subr.mxu0 0.0
    %2195 = vmatpush1.xpose.msra.mxu0 0.0
    %2196 = vmatprep.subr.mxu0 0.0
    %2197 = vmatpush1.xpose.msra.mxu0 0.0
    %2198 = vmatprep.subr.mxu0 0.0
    %2199 = vmatpush1.xpose.msra.mxu0 0.0
    %2200 = vmatprep.subr.mxu0 0.0
    %2201 = vmatpush1.xpose.msra.mxu0 0.0
    %2202 = vmatprep.subr.mxu0 0.0
    %2203 = vmatpush1.xpose.msra.mxu0 0.0
    %2204 = vmatprep.subr.mxu0 0.0
    %2205 = vmatpush1.xpose.msra.mxu0 0.0
    %2206 = vmatprep.subr.mxu0 0.0
    %2207 = vmatpush1.xpose.msra.mxu0 0.0
    %2208 = vmatprep.subr.mxu0 0.0
    %2209 = vmatpush1.xpose.msra.mxu0 0.0
    %2210 = vmatprep.subr.mxu0 0.0
    %2211 = vmatpush1.xpose.msra.mxu0 0.0
    %2212 = vmatprep.subr.mxu0 0.0
    %2213 = vmatpush1.xpose.msra.mxu0 0.0
    %2214 = vmatprep.subr.mxu0 0.0
    %2215 = vmatpush1.xpose.msra.mxu0 0.0
    %2216 = vmatprep.subr.mxu0 0.0
    %2217 = vmatpush1.xpose.msra.mxu0 0.0
    %2218 = vmatprep.subr.mxu0 0.0
    %2219 = vmatpush1.xpose.msra.mxu0 0.0
    %2220 = vmatprep.subr.mxu0 0.0
    %2221 = vmatpush1.xpose.msra.mxu0 0.0
    %2222 = vmatprep.subr.mxu0 0.0
    %2223 = vmatpush1.xpose.msra.mxu0 0.0
    %2224 = vmatprep.subr.mxu0 0.0
    %2225 = vmatpush1.xpose.msra.mxu0 0.0
    %2226 = vmatprep.subr.mxu0 0.0
    %2227 = vmatpush1.xpose.msra.mxu0 0.0
    %2228 = vmatprep.subr.mxu0 0.0
    %2229 = vmatpush1.xpose.msra.mxu0 0.0
    %2230 = vmatprep.subr.mxu0 0.0
    %2231 = vmatpush1.xpose.msra.mxu0 0.0
    %2232 = vmatprep.subr.mxu0 0.0
    %2233 = vmatpush1.xpose.msra.mxu0 0.0
    %2234 = vmatprep.subr.mxu0 0.0
    %2235 = vmatpush1.xpose.msra.mxu0 0.0
    %2236 = vmatprep.subr.mxu0 0.0
    %2237 = vmatpush1.xpose.msra.mxu0 0.0
    %2238 = vmatprep.subr.mxu0 0.0
    %2239 = vmatpush1.xpose.msra.mxu0 0.0
    %2240 = vmatprep.subr.mxu0 0.0
    %2241 = vmatpush1.xpose.msra.mxu0 0.0
    %2242 = vmatprep.subr.mxu0 0.0
    %2243 = vmatpush1.xpose.msra.mxu0 0.0
    %2244 = vmatprep.subr.mxu0 0.0
    %2245 = vmatpush1.xpose.msra.mxu0 0.0
    %2246 = vmatprep.mubr.f32.mxu0 0.0
    %2247 = vmatmul.mubr.f32.gmra.mrb[0].mxu0 %v2177
    %v2248 = vpop.f32.mrb[0].mxu0
    %v2249 = vadd.f32 0.0, %v2248
    %v2250 = vpop.f32.mrb[0].mxu0
    %2251 = vdwg.mxu0
    %v2253 = vsel %vm416, %v2052, 0
    %v2256 = vsel %vm416, %v1958, 0
    %2258 = vmatprep.subr.mxu0 0.0
    %2259 = vmatpush1.xpose.msra.mxu0 %v2256
    %2260 = vmatprep.subr.mxu0 0.0
    %2261 = vmatpush1.xpose.msra.mxu0 0.0
    %2262 = vmatprep.subr.mxu0 0.0
    %2263 = vmatpush1.xpose.msra.mxu0 0.0
    %2264 = vmatprep.subr.mxu0 0.0
    %2265 = vmatpush1.xpose.msra.mxu0 0.0
    %2266 = vmatprep.subr.mxu0 0.0
    %2267 = vmatpush1.xpose.msra.mxu0 0.0
    %2268 = vmatprep.subr.mxu0 0.0
    %2269 = vmatpush1.xpose.msra.mxu0 0.0
    %2270 = vmatprep.subr.mxu0 0.0
    %2271 = vmatpush1.xpose.msra.mxu0 0.0
    %2272 = vmatprep.subr.mxu0 0.0
    %2273 = vmatpush1.xpose.msra.mxu0 0.0
    %2274 = vmatprep.subr.mxu0 0.0
    %2275 = vmatpush1.xpose.msra.mxu0 0.0
    %2276 = vmatprep.subr.mxu0 0.0
    %2277 = vmatpush1.xpose.msra.mxu0 0.0
    %2278 = vmatprep.subr.mxu0 0.0
    %2279 = vmatpush1.xpose.msra.mxu0 0.0
    %2280 = vmatprep.subr.mxu0 0.0
    %2281 = vmatpush1.xpose.msra.mxu0 0.0
    %2282 = vmatprep.subr.mxu0 0.0
    %2283 = vmatpush1.xpose.msra.mxu0 0.0
    %2284 = vmatprep.subr.mxu0 0.0
    %2285 = vmatpush1.xpose.msra.mxu0 0.0
    %2286 = vmatprep.subr.mxu0 0.0
    %2287 = vmatpush1.xpose.msra.mxu0 0.0
    %2288 = vmatprep.subr.mxu0 0.0
    %2289 = vmatpush1.xpose.msra.mxu0 0.0
    %2290 = vmatprep.subr.mxu0 0.0
    %2291 = vmatpush1.xpose.msra.mxu0 0.0
    %2292 = vmatprep.subr.mxu0 0.0
    %2293 = vmatpush1.xpose.msra.mxu0 0.0
    %2294 = vmatprep.subr.mxu0 0.0
    %2295 = vmatpush1.xpose.msra.mxu0 0.0
    %2296 = vmatprep.subr.mxu0 0.0
    %2297 = vmatpush1.xpose.msra.mxu0 0.0
    %2298 = vmatprep.subr.mxu0 0.0
    %2299 = vmatpush1.xpose.msra.mxu0 0.0
    %2300 = vmatprep.subr.mxu0 0.0
    %2301 = vmatpush1.xpose.msra.mxu0 0.0
    %2302 = vmatprep.subr.mxu0 0.0
    %2303 = vmatpush1.xpose.msra.mxu0 0.0
    %2304 = vmatprep.subr.mxu0 0.0
    %2305 = vmatpush1.xpose.msra.mxu0 0.0
    %2306 = vmatprep.subr.mxu0 0.0
    %2307 = vmatpush1.xpose.msra.mxu0 0.0
    %2308 = vmatprep.subr.mxu0 0.0
    %2309 = vmatpush1.xpose.msra.mxu0 0.0
    %2310 = vmatprep.subr.mxu0 0.0
    %2311 = vmatpush1.xpose.msra.mxu0 0.0
    %2312 = vmatprep.subr.mxu0 0.0
    %2313 = vmatpush1.xpose.msra.mxu0 0.0
    %2314 = vmatprep.subr.mxu0 0.0
    %2315 = vmatpush1.xpose.msra.mxu0 0.0
    %2316 = vmatprep.subr.mxu0 0.0
    %2317 = vmatpush1.xpose.msra.mxu0 0.0
    %2318 = vmatprep.subr.mxu0 0.0
    %2319 = vmatpush1.xpose.msra.mxu0 0.0
    %2320 = vmatprep.subr.mxu0 0.0
    %2321 = vmatpush1.xpose.msra.mxu0 0.0
    %2322 = vmatprep.mubr.f32.mxu0 0.0
    %2323 = vmatmul.mubr.f32.gmra.mrb[0].mxu0 %v2253
    %v2324 = vpop.f32.mrb[0].mxu0
    %v2325 = vadd.f32 0.0, %v2324
    %v2326 = vpop.f32.mrb[0].mxu0
    %2327 = vdwg.mxu0
    %v2329 = vsel %vm416, %v2084, 0
    %v2332 = vsel %vm416, %v1959, 0
    %2334 = vmatprep.subr.mxu0 0.0
    %2335 = vmatpush1.xpose.msra.mxu0 %v2332
    %2336 = vmatprep.subr.mxu0 0.0
    %2337 = vmatpush1.xpose.msra.mxu0 0.0
    %2338 = vmatprep.subr.mxu0 0.0
    %2339 = vmatpush1.xpose.msra.mxu0 0.0
    %2340 = vmatprep.subr.mxu0 0.0
    %2341 = vmatpush1.xpose.msra.mxu0 0.0
    %2342 = vmatprep.subr.mxu0 0.0
    %2343 = vmatpush1.xpose.msra.mxu0 0.0
    %2344 = vmatprep.subr.mxu0 0.0
    %2345 = vmatpush1.xpose.msra.mxu0 0.0
    %2346 = vmatprep.subr.mxu0 0.0
    %2347 = vmatpush1.xpose.msra.mxu0 0.0
    %2348 = vmatprep.subr.mxu0 0.0
    %2349 = vmatpush1.xpose.msra.mxu0 0.0
    %2350 = vmatprep.subr.mxu0 0.0
    %2351 = vmatpush1.xpose.msra.mxu0 0.0
    %2352 = vmatprep.subr.mxu0 0.0
    %2353 = vmatpush1.xpose.msra.mxu0 0.0
    %2354 = vmatprep.subr.mxu0 0.0
    %2355 = vmatpush1.xpose.msra.mxu0 0.0
    %2356 = vmatprep.subr.mxu0 0.0
    %2357 = vmatpush1.xpose.msra.mxu0 0.0
    %2358 = vmatprep.subr.mxu0 0.0
    %2359 = vmatpush1.xpose.msra.mxu0 0.0
    %2360 = vmatprep.subr.mxu0 0.0
    %2361 = vmatpush1.xpose.msra.mxu0 0.0
    %2362 = vmatprep.subr.mxu0 0.0
    %2363 = vmatpush1.xpose.msra.mxu0 0.0
    %2364 = vmatprep.subr.mxu0 0.0
    %2365 = vmatpush1.xpose.msra.mxu0 0.0
    %2366 = vmatprep.subr.mxu0 0.0
    %2367 = vmatpush1.xpose.msra.mxu0 0.0
    %2368 = vmatprep.subr.mxu0 0.0
    %2369 = vmatpush1.xpose.msra.mxu0 0.0
    %2370 = vmatprep.subr.mxu0 0.0
    %2371 = vmatpush1.xpose.msra.mxu0 0.0
    %2372 = vmatprep.subr.mxu0 0.0
    %2373 = vmatpush1.xpose.msra.mxu0 0.0
    %2374 = vmatprep.subr.mxu0 0.0
    %2375 = vmatpush1.xpose.msra.mxu0 0.0
    %2376 = vmatprep.subr.mxu0 0.0
    %2377 = vmatpush1.xpose.msra.mxu0 0.0
    %2378 = vmatprep.subr.mxu0 0.0
    %2379 = vmatpush1.xpose.msra.mxu0 0.0
    %2380 = vmatprep.subr.mxu0 0.0
    %2381 = vmatpush1.xpose.msra.mxu0 0.0
    %2382 = vmatprep.subr.mxu0 0.0
    %2383 = vmatpush1.xpose.msra.mxu0 0.0
    %2384 = vmatprep.subr.mxu0 0.0
    %2385 = vmatpush1.xpose.msra.mxu0 0.0
    %2386 = vmatprep.subr.mxu0 0.0
    %2387 = vmatpush1.xpose.msra.mxu0 0.0
    %2388 = vmatprep.subr.mxu0 0.0
    %2389 = vmatpush1.xpose.msra.mxu0 0.0
    %2390 = vmatprep.subr.mxu0 0.0
    %2391 = vmatpush1.xpose.msra.mxu0 0.0
    %2392 = vmatprep.subr.mxu0 0.0
    %2393 = vmatpush1.xpose.msra.mxu0 0.0
    %2394 = vmatprep.subr.mxu0 0.0
    %2395 = vmatpush1.xpose.msra.mxu0 0.0
    %2396 = vmatprep.subr.mxu0 0.0
    %2397 = vmatpush1.xpose.msra.mxu0 0.0
    %2398 = vmatprep.mubr.f32.mxu0 0.0
    %2399 = vmatmul.mubr.f32.gmra.mrb[0].mxu0 %v2329
    %v2400 = vpop.f32.mrb[0].mxu0
    %v2401 = vadd.f32 0.0, %v2400
    %v2402 = vpop.f32.mrb[0].mxu0
    %2403 = vdwg.mxu0
    %2404 = vxpose.xlu0.b32.start [1/16] %v2173, 128
    %2405 = vxpose.xlu0.b32.cont [2/16] 0.0, 128
    %2406 = vxpose.xlu0.b32.cont [3/16] 0.0, 128
    %2407 = vxpose.xlu0.b32.cont [4/16] 0.0, 128
    %2408 = vxpose.xlu0.b32.cont [5/16] 0.0, 128
    %2409 = vxpose.xlu0.b32.cont [6/16] 0.0, 128
    %2410 = vxpose.xlu0.b32.cont [7/16] 0.0, 128
    %2411 = vxpose.xlu0.b32.cont [8/16] 0.0, 128
    %2412 = vxpose.xlu0.b32.cont [9/16] 0.0, 128
    %2413 = vxpose.xlu0.b32.cont [10/16] 0.0, 128
    %2414 = vxpose.xlu0.b32.cont [11/16] 0.0, 128
    %2415 = vxpose.xlu0.b32.cont [12/16] 0.0, 128
    %2416 = vxpose.xlu0.b32.cont [13/16] 0.0, 128
    %2417 = vxpose.xlu0.b32.cont [14/16] 0.0, 128
    %2418 = vxpose.xlu0.b32.cont [15/16] 0.0, 128
    %2419 = vxpose.xlu0.b32.end [16/16] 0.0, 128
    %v2420 = vpop.trf.xlu0
    %v2421 = vpop.trf.xlu0
    %v2422 = vpop.trf.xlu0
    %v2423 = vpop.trf.xlu0
    %v2424 = vpop.trf.xlu0
    %v2425 = vpop.trf.xlu0
    %v2426 = vpop.trf.xlu0
    %v2427 = vpop.trf.xlu0
    %v2428 = vpop.trf.xlu0
    %v2429 = vpop.trf.xlu0
    %v2430 = vpop.trf.xlu0
    %v2431 = vpop.trf.xlu0
    %v2432 = vpop.trf.xlu0
    %v2433 = vpop.trf.xlu0
    %v2434 = vpop.trf.xlu0
    %v2435 = vpop.trf.xlu0
    %2436 = vxpose.xlu0.b32.start [1/16] %v2249, 128
    %2437 = vxpose.xlu0.b32.cont [2/16] 0.0, 128
    %2438 = vxpose.xlu0.b32.cont [3/16] 0.0, 128
    %2439 = vxpose.xlu0.b32.cont [4/16] 0.0, 128
    %2440 = vxpose.xlu0.b32.cont [5/16] 0.0, 128
    %2441 = vxpose.xlu0.b32.cont [6/16] 0.0, 128
    %2442 = vxpose.xlu0.b32.cont [7/16] 0.0, 128
    %2443 = vxpose.xlu0.b32.cont [8/16] 0.0, 128
    %2444 = vxpose.xlu0.b32.cont [9/16] 0.0, 128
    %2445 = vxpose.xlu0.b32.cont [10/16] 0.0, 128
    %2446 = vxpose.xlu0.b32.cont [11/16] 0.0, 128
    %2447 = vxpose.xlu0.b32.cont [12/16] 0.0, 128
    %2448 = vxpose.xlu0.b32.cont [13/16] 0.0, 128
    %2449 = vxpose.xlu0.b32.cont [14/16] 0.0, 128
    %2450 = vxpose.xlu0.b32.cont [15/16] 0.0, 128
    %2451 = vxpose.xlu0.b32.end [16/16] 0.0, 128
    %v2452 = vpop.trf.xlu0
    %v2453 = vpop.trf.xlu0
    %v2454 = vpop.trf.xlu0
    %v2455 = vpop.trf.xlu0
    %v2456 = vpop.trf.xlu0
    %v2457 = vpop.trf.xlu0
    %v2458 = vpop.trf.xlu0
    %v2459 = vpop.trf.xlu0
    %v2460 = vpop.trf.xlu0
    %v2461 = vpop.trf.xlu0
    %v2462 = vpop.trf.xlu0
    %v2463 = vpop.trf.xlu0
    %v2464 = vpop.trf.xlu0
    %v2465 = vpop.trf.xlu0
    %v2466 = vpop.trf.xlu0
    %v2467 = vpop.trf.xlu0
    %2468 = vxpose.xlu0.b32.start [1/16] %v2325, 128
    %2469 = vxpose.xlu0.b32.cont [2/16] 0.0, 128
    %2470 = vxpose.xlu0.b32.cont [3/16] 0.0, 128
    %2471 = vxpose.xlu0.b32.cont [4/16] 0.0, 128
    %2472 = vxpose.xlu0.b32.cont [5/16] 0.0, 128
    %2473 = vxpose.xlu0.b32.cont [6/16] 0.0, 128
    %2474 = vxpose.xlu0.b32.cont [7/16] 0.0, 128
    %2475 = vxpose.xlu0.b32.cont [8/16] 0.0, 128
    %2476 = vxpose.xlu0.b32.cont [9/16] 0.0, 128
    %2477 = vxpose.xlu0.b32.cont [10/16] 0.0, 128
    %2478 = vxpose.xlu0.b32.cont [11/16] 0.0, 128
    %2479 = vxpose.xlu0.b32.cont [12/16] 0.0, 128
    %2480 = vxpose.xlu0.b32.cont [13/16] 0.0, 128
    %2481 = vxpose.xlu0.b32.cont [14/16] 0.0, 128
    %2482 = vxpose.xlu0.b32.cont [15/16] 0.0, 128
    %2483 = vxpose.xlu0.b32.end [16/16] 0.0, 128
    %v2484 = vpop.trf.xlu0
    %v2485 = vpop.trf.xlu0
    %v2486 = vpop.trf.xlu0
    %v2487 = vpop.trf.xlu0
    %v2488 = vpop.trf.xlu0
    %v2489 = vpop.trf.xlu0
    %v2490 = vpop.trf.xlu0
    %v2491 = vpop.trf.xlu0
    %v2492 = vpop.trf.xlu0
    %v2493 = vpop.trf.xlu0
    %v2494 = vpop.trf.xlu0
    %v2495 = vpop.trf.xlu0
    %v2496 = vpop.trf.xlu0
    %v2497 = vpop.trf.xlu0
    %v2498 = vpop.trf.xlu0
    %v2499 = vpop.trf.xlu0
    %2500 = vxpose.xlu0.b32.start [1/16] %v2401, 128
    %2501 = vxpose.xlu0.b32.cont [2/16] 0.0, 128
    %2502 = vxpose.xlu0.b32.cont [3/16] 0.0, 128
    %2503 = vxpose.xlu0.b32.cont [4/16] 0.0, 128
    %2504 = vxpose.xlu0.b32.cont [5/16] 0.0, 128
    %2505 = vxpose.xlu0.b32.cont [6/16] 0.0, 128
    %2506 = vxpose.xlu0.b32.cont [7/16] 0.0, 128
    %2507 = vxpose.xlu0.b32.cont [8/16] 0.0, 128
    %2508 = vxpose.xlu0.b32.cont [9/16] 0.0, 128
    %2509 = vxpose.xlu0.b32.cont [10/16] 0.0, 128
    %2510 = vxpose.xlu0.b32.cont [11/16] 0.0, 128
    %2511 = vxpose.xlu0.b32.cont [12/16] 0.0, 128
    %2512 = vxpose.xlu0.b32.cont [13/16] 0.0, 128
    %2513 = vxpose.xlu0.b32.cont [14/16] 0.0, 128
    %2514 = vxpose.xlu0.b32.cont [15/16] 0.0, 128
    %2515 = vxpose.xlu0.b32.end [16/16] 0.0, 128
    %v2516 = vpop.trf.xlu0
    %v2517 = vpop.trf.xlu0
    %v2518 = vpop.trf.xlu0
    %v2519 = vpop.trf.xlu0
    %v2520 = vpop.trf.xlu0
    %v2521 = vpop.trf.xlu0
    %v2522 = vpop.trf.xlu0
    %v2523 = vpop.trf.xlu0
    %v2524 = vpop.trf.xlu0
    %v2525 = vpop.trf.xlu0
    %v2526 = vpop.trf.xlu0
    %v2527 = vpop.trf.xlu0
    %v2528 = vpop.trf.xlu0
    %v2529 = vpop.trf.xlu0
    %v2530 = vpop.trf.xlu0
    %v2531 = vpop.trf.xlu0
    %v2532 = vcombine.low %v2420, %v2484
    %v2533 = vcombine.high %v2420, %v2484
    %v2535 = vunpack.c.l.s4 1983009808
    %v2536 = vunpack.c.0.s8 %v2535
    %v2537 = vlaneseq
    %v2538 = vshrl.u32 %v2537, 7
    %v2539 = vsub.s32 %v2536, %v2538
    %v2540 = vrot.slane %v2532, %v2539
    %v2542 = vunpack.c.l.s4 1983009808
    %v2543 = vunpack.c.0.s8 %v2542
    %v2544 = vlaneseq
    %v2545 = vshrl.u32 %v2544, 7
    %v2546 = vsub.s32 %v2543, %v2545
    %v2547 = vrot.slane %v2533, %v2546
    %v2548 = vcombine.low %v2452, %v2516
    %v2549 = vcombine.high %v2452, %v2516
    %v2551 = vunpack.c.l.s4 1983009808
    %v2552 = vunpack.c.0.s8 %v2551
    %v2553 = vlaneseq
    %v2554 = vshrl.u32 %v2553, 7
    %v2555 = vsub.s32 %v2552, %v2554
    %v2556 = vrot.slane %v2548, %v2555
    %v2558 = vunpack.c.l.s4 1983009808
    %v2559 = vunpack.c.0.s8 %v2558
    %v2560 = vlaneseq
    %v2561 = vshrl.u32 %v2560, 7
    %v2562 = vsub.s32 %v2559, %v2561
    %v2563 = vrot.slane %v2549, %v2562
    %v2564 = vcombine.low %v2540, %v2556
    %v2565 = vcombine.high %v2540, %v2556
    %v2567 = vunpack.c.l.s4 1934713408
    %v2568 = vunpack.c.0.s8 %v2567
    %v2569 = vlaneseq
    %v2570 = vshrl.u32 %v2569, 7
    %v2571 = vsub.s32 %v2568, %v2570
    %v2572 = vrot.slane %v2564, %v2571
    %v2574 = vunpack.c.l.s4 1934713408
    %v2575 = vunpack.c.0.s8 %v2574
    %v2576 = vlaneseq
    %v2577 = vshrl.u32 %v2576, 7
    %v2578 = vsub.s32 %v2575, %v2577
    %v2579 = vrot.slane %v2565, %v2578
    %v2580 = vcombine.low %v2547, %v2563
    %v2581 = vcombine.high %v2547, %v2563
    %v2583 = vunpack.c.l.s4 1934713408
    %v2584 = vunpack.c.0.s8 %v2583
    %v2585 = vlaneseq
    %v2586 = vshrl.u32 %v2585, 7
    %v2587 = vsub.s32 %v2584, %v2586
    %v2588 = vrot.slane %v2580, %v2587
    %v2590 = vunpack.c.l.s4 1934713408
    %v2591 = vunpack.c.0.s8 %v2590
    %v2592 = vlaneseq
    %v2593 = vshrl.u32 %v2592, 7
    %v2594 = vsub.s32 %v2591, %v2593
    %v2595 = vrot.slane %v2581, %v2594
    %v2596 = vcombine.high %v2572, 0.0
    %v2597 = vcombine.high %v2579, 0.0
    %v2598 = vcombine.high %v2588, 0.0
    %v2599 = vcombine.high %v2595, 0.0
    %v2600 = vcombine.low %v2572, %v2579
    %v2602 = vunpack.c.l.s4 1983009808
    %v2603 = vunpack.c.0.s8 %v2602
    %v2604 = vlaneseq
    %v2605 = vshrl.u32 %v2604, 7
    %v2606 = vsub.s32 %v2603, %v2605
    %v2607 = vrot.slane %v2600, %v2606
    %v2608 = vcombine.low %v2596, %v2597
    %v2610 = vunpack.c.l.s4 1983009808
    %v2611 = vunpack.c.0.s8 %v2610
    %v2612 = vlaneseq
    %v2613 = vshrl.u32 %v2612, 7
    %v2614 = vsub.s32 %v2611, %v2613
    %v2615 = vrot.slane %v2608, %v2614
    %v2616 = vcombine.low %v2588, %v2595
    %v2618 = vunpack.c.l.s4 1983009808
    %v2619 = vunpack.c.0.s8 %v2618
    %v2620 = vlaneseq
    %v2621 = vshrl.u32 %v2620, 7
    %v2622 = vsub.s32 %v2619, %v2621
    %v2623 = vrot.slane %v2616, %v2622
    %v2624 = vcombine.low %v2598, %v2599
    %v2626 = vunpack.c.l.s4 1983009808
    %v2627 = vunpack.c.0.s8 %v2626
    %v2628 = vlaneseq
    %v2629 = vshrl.u32 %v2628, 7
    %v2630 = vsub.s32 %v2627, %v2629
    %v2631 = vrot.slane %v2624, %v2630
    %v2632 = vcombine.low %v2607, %v2615
    %v2633 = vcombine.high %v2607, %v2615
    %v2635 = vunpack.c.l.s4 1934713408
    %v2636 = vunpack.c.0.s8 %v2635
    %v2637 = vlaneseq
    %v2638 = vshrl.u32 %v2637, 7
    %v2639 = vsub.s32 %v2636, %v2638
    %v2640 = vrot.slane %v2632, %v2639
    %v2642 = vunpack.c.l.s4 1934713408
    %v2643 = vunpack.c.0.s8 %v2642
    %v2644 = vlaneseq
    %v2645 = vshrl.u32 %v2644, 7
    %v2646 = vsub.s32 %v2643, %v2645
    %v2647 = vrot.slane %v2633, %v2646
    %v2648 = vcombine.low %v2623, %v2631
    %v2649 = vcombine.high %v2623, %v2631
    %v2651 = vunpack.c.l.s4 1934713408
    %v2652 = vunpack.c.0.s8 %v2651
    %v2653 = vlaneseq
    %v2654 = vshrl.u32 %v2653, 7
    %v2655 = vsub.s32 %v2652, %v2654
    %v2656 = vrot.slane %v2648, %v2655
    %v2658 = vunpack.c.l.s4 1934713408
    %v2659 = vunpack.c.0.s8 %v2658
    %v2660 = vlaneseq
    %v2661 = vshrl.u32 %v2660, 7
    %v2662 = vsub.s32 %v2659, %v2661
    %v2663 = vrot.slane %v2649, %v2662
    %v2664 = vcombine.low %v2640, %v2656
    %v2665 = vcombine.high %v2640, %v2656
    %v2666 = vcombine.low %v2647, %v2663
    %v2667 = vcombine.high %v2647, %v2663
    %2669 = vrot.lane.b32.xlu0 %v2665, 8
    %v2670 = vpop.permute.xlu0 %2669
    %2673 = vrot.lane.b32.xlu0 %v2666, 16
    %v2674 = vpop.permute.xlu0 %2673
    %2677 = vrot.lane.b32.xlu0 %v2667, 24
    %v2678 = vpop.permute.xlu0 %2677
    %v2680 = vsel %vm416, %v2664, %v2670
    %v2681 = vsel %vm1470, %v2680, %v2674
    %v2682 = vsel %vm1472, %v2681, %v2678
    %v2683 = vld [vmem:[%s7] sm:$0xff]
    %v2684 = vld [vmem:[%s7 + $0x8] sm:$0xff]
    %v2685 = vld [vmem:[%s7 + $0x10] sm:$0xff]
    %v2686 = vld [vmem:[%s7 + $0x18] sm:$0xff]
    %v2687 = vld [vmem:[%s8] sm:$0x1]
    %v2689 = vlaneseq
    %v2690 = vshrl.u32 %v2689, 7
    %v2691 = vsub.s32 0, %v2690
    %v2692 = vrot.slane %v2687, %v2691
    %v2695 = vsel %vm178, %v1473, 0
    %v2698 = vsel %vm178, %v2682, 0
    %2700 = vmatprep.subr.mxu0 0.0
    %2701 = vmatpush1.msra.mxu0 %v2683
    %2702 = vmatprep.subr.mxu0 0.0
    %2703 = vmatpush1.msra.mxu0 %v2684
    %2704 = vmatprep.subr.mxu0 0.0
    %2705 = vmatpush1.msra.mxu0 %v2685
    %2706 = vmatprep.subr.mxu0 0.0
    %2707 = vmatpush1.msra.mxu0 %v2686
    %2708 = vmatprep.subr.mxu0 0.0
    %2709 = vmatpush1.msra.mxu0 0.0
    %2710 = vmatprep.subr.mxu0 0.0
    %2711 = vmatpush1.msra.mxu0 0.0
    %2712 = vmatprep.subr.mxu0 0.0
    %2713 = vmatpush1.msra.mxu0 0.0
    %2714 = vmatprep.subr.mxu0 0.0
    %2715 = vmatpush1.msra.mxu0 0.0
    %2716 = vmatprep.subr.mxu0 0.0
    %2717 = vmatpush1.msra.mxu0 0.0
    %2718 = vmatprep.subr.mxu0 0.0
    %2719 = vmatpush1.msra.mxu0 0.0
    %2720 = vmatprep.subr.mxu0 0.0
    %2721 = vmatpush1.msra.mxu0 0.0
    %2722 = vmatprep.subr.mxu0 0.0
    %2723 = vmatpush1.msra.mxu0 0.0
    %2724 = vmatprep.subr.mxu0 0.0
    %2725 = vmatpush1.msra.mxu0 0.0
    %2726 = vmatprep.subr.mxu0 0.0
    %2727 = vmatpush1.msra.mxu0 0.0
    %2728 = vmatprep.subr.mxu0 0.0
    %2729 = vmatpush1.msra.mxu0 0.0
    %2730 = vmatprep.subr.mxu0 0.0
    %2731 = vmatpush1.msra.mxu0 0.0
    %2732 = vmatprep.subr.mxu0 0.0
    %2733 = vmatpush1.msra.mxu0 0.0
    %2734 = vmatprep.subr.mxu0 0.0
    %2735 = vmatpush1.msra.mxu0 0.0
    %2736 = vmatprep.subr.mxu0 0.0
    %2737 = vmatpush1.msra.mxu0 0.0
    %2738 = vmatprep.subr.mxu0 0.0
    %2739 = vmatpush1.msra.mxu0 0.0
    %2740 = vmatprep.subr.mxu0 0.0
    %2741 = vmatpush1.msra.mxu0 0.0
    %2742 = vmatprep.subr.mxu0 0.0
    %2743 = vmatpush1.msra.mxu0 0.0
    %2744 = vmatprep.subr.mxu0 0.0
    %2745 = vmatpush1.msra.mxu0 0.0
    %2746 = vmatprep.subr.mxu0 0.0
    %2747 = vmatpush1.msra.mxu0 0.0
    %2748 = vmatprep.subr.mxu0 0.0
    %2749 = vmatpush1.msra.mxu0 0.0
    %2750 = vmatprep.subr.mxu0 0.0
    %2751 = vmatpush1.msra.mxu0 0.0
    %2752 = vmatprep.subr.mxu0 0.0
    %2753 = vmatpush1.msra.mxu0 0.0
    %2754 = vmatprep.subr.mxu0 0.0
    %2755 = vmatpush1.msra.mxu0 0.0
    %2756 = vmatprep.subr.mxu0 0.0
    %2757 = vmatpush1.msra.mxu0 0.0
    %2758 = vmatprep.subr.mxu0 0.0
    %2759 = vmatpush1.msra.mxu0 0.0
    %2760 = vmatprep.subr.mxu0 0.0
    %2761 = vmatpush1.msra.mxu0 0.0
    %2762 = vmatprep.subr.mxu0 0.0
    %2763 = vmatpush1.msra.mxu0 0.0
    %2764 = vmatprep.mubr.f32.mxu0 0.0
    %2765 = vmatmul.mubr.f32.gmra.mrb[0].mxu0 %v2695
    %v2766 = vpop.f32.mrb[0].mxu0
    %v2767 = vadd.f32 %v2692, %v2766
    %v2768 = vpop.f32.mrb[0].mxu0
    %2769 = vmatprep.mubr.f32.mxu0 0.0
    %2770 = vmatmul.mubr.f32.gmra.mrb[0].mxu0 %v2698
    %v2771 = vpop.f32.mrb[0].mxu0
    %v2772 = vadd.f32 %v2692, %v2771
    %v2773 = vpop.f32.mrb[0].mxu0
    %2774 = vdwg.mxu0
    %v2775 = vadd.f32 %v164, %v2767
    %v2776 = vadd.f32 %v165, %v2772
    %v2777 = vld [vmem:[%s13] sm:$0x1]
    %v2778 = vld [vmem:[%s14] sm:$0x1]
    %v2779 = vsel %vm178, %v2775, 0.0
    %2780 = vadd.xlane.f32.xlu0 %v2779
    %v2781 = vpop.xlane.xlu0 %2780
    %v2782 = vsel %vm178, %v2776, 0.0
    %2783 = vadd.xlane.f32.xlu0 %v2782
    %v2784 = vpop.xlane.xlu0 %2783
    %v2785 = vrcp.pop 32.0
    %v2786 = vmul.f32 %v2781, %v2785
    %v2787 = vmul.f32 %v2784, %v2785
    %v2788 = vsub.f32 %v2775, %v2786
    %v2789 = vsub.f32 %v2776, %v2787
    %v2790 = vmul.f32 %v2788, %v2788
    %v2791 = vmul.f32 %v2789, %v2789
    %v2792 = vsel %vm178, %v2790, 0.0
    %2793 = vadd.xlane.f32.xlu0 %v2792
    %v2794 = vpop.xlane.xlu0 %2793
    %v2795 = vsel %vm178, %v2791, 0.0
    %2796 = vadd.xlane.f32.xlu0 %v2795
    %v2797 = vpop.xlane.xlu0 %2796
    %v2798 = vmul.f32 %v2794, %v2785
    %v2799 = vmul.f32 %v2797, %v2785
    %v2800 = vadd.f32 %v2798, 1e-05
    %v2801 = vadd.f32 %v2799, 1e-05
    %v2802 = vrsqrt.pop %v2800
    %v2803 = vrsqrt.pop %v2801
    %v2804 = vmul.f32 %v2788, %v2802
    %v2805 = vmul.f32 %v2789, %v2803
    %v2807 = vlaneseq
    %v2808 = vshrl.u32 %v2807, 7
    %v2809 = vsub.s32 0, %v2808
    %v2810 = vrot.slane %v2777, %v2809
    %v2812 = vmul.f32 %v2804, %v2810
    %v2813 = vmul.f32 %v2805, %v2810
    %v2815 = vlaneseq
    %v2816 = vshrl.u32 %v2815, 7
    %v2817 = vsub.s32 0, %v2816
    %v2818 = vrot.slane %v2778, %v2817
    %v2820 = vadd.f32 %v2812, %v2818
    %v2821 = vadd.f32 %v2813, %v2818
    %v2822 = vld [vmem:[%s9] sm:$0xff]
    %v2823 = vld [vmem:[%s9 + $0x8] sm:$0xff]
    %v2824 = vld [vmem:[%s9 + $0x10] sm:$0xff]
    %v2825 = vld [vmem:[%s9 + $0x18] sm:$0xff]
    %v2826 = vld [vmem:[%s10] sm:$0x1]
    %v2828 = vlaneseq
    %v2829 = vshrl.u32 %v2828, 7
    %v2830 = vsub.s32 0, %v2829
    %v2831 = vrot.slane %v2826, %v2830
    %v2834 = vsel %vm178, %v2820, 0
    %v2837 = vsel %vm178, %v2821, 0
    %2839 = vmatprep.subr.mxu0 0.0
    %2840 = vmatpush1.msra.mxu0 %v2822
    %2841 = vmatprep.subr.mxu0 0.0
    %2842 = vmatpush1.msra.mxu0 %v2823
    %2843 = vmatprep.subr.mxu0 0.0
    %2844 = vmatpush1.msra.mxu0 %v2824
    %2845 = vmatprep.subr.mxu0 0.0
    %2846 = vmatpush1.msra.mxu0 %v2825
    %2847 = vmatprep.subr.mxu0 0.0
    %2848 = vmatpush1.msra.mxu0 0.0
    %2849 = vmatprep.subr.mxu0 0.0
    %2850 = vmatpush1.msra.mxu0 0.0
    %2851 = vmatprep.subr.mxu0 0.0
    %2852 = vmatpush1.msra.mxu0 0.0
    %2853 = vmatprep.subr.mxu0 0.0
    %2854 = vmatpush1.msra.mxu0 0.0
    %2855 = vmatprep.subr.mxu0 0.0
    %2856 = vmatpush1.msra.mxu0 0.0
    %2857 = vmatprep.subr.mxu0 0.0
    %2858 = vmatpush1.msra.mxu0 0.0
    %2859 = vmatprep.subr.mxu0 0.0
    %2860 = vmatpush1.msra.mxu0 0.0
    %2861 = vmatprep.subr.mxu0 0.0
    %2862 = vmatpush1.msra.mxu0 0.0
    %2863 = vmatprep.subr.mxu0 0.0
    %2864 = vmatpush1.msra.mxu0 0.0
    %2865 = vmatprep.subr.mxu0 0.0
    %2866 = vmatpush1.msra.mxu0 0.0
    %2867 = vmatprep.subr.mxu0 0.0
    %2868 = vmatpush1.msra.mxu0 0.0
    %2869 = vmatprep.subr.mxu0 0.0
    %2870 = vmatpush1.msra.mxu0 0.0
    %2871 = vmatprep.subr.mxu0 0.0
    %2872 = vmatpush1.msra.mxu0 0.0
    %2873 = vmatprep.subr.mxu0 0.0
    %2874 = vmatpush1.msra.mxu0 0.0
    %2875 = vmatprep.subr.mxu0 0.0
    %2876 = vmatpush1.msra.mxu0 0.0
    %2877 = vmatprep.subr.mxu0 0.0
    %2878 = vmatpush1.msra.mxu0 0.0
    %2879 = vmatprep.subr.mxu0 0.0
    %2880 = vmatpush1.msra.mxu0 0.0
    %2881 = vmatprep.subr.mxu0 0.0
    %2882 = vmatpush1.msra.mxu0 0.0
    %2883 = vmatprep.subr.mxu0 0.0
    %2884 = vmatpush1.msra.mxu0 0.0
    %2885 = vmatprep.subr.mxu0 0.0
    %2886 = vmatpush1.msra.mxu0 0.0
    %2887 = vmatprep.subr.mxu0 0.0
    %2888 = vmatpush1.msra.mxu0 0.0
    %2889 = vmatprep.subr.mxu0 0.0
    %2890 = vmatpush1.msra.mxu0 0.0
    %2891 = vmatprep.subr.mxu0 0.0
    %2892 = vmatpush1.msra.mxu0 0.0
    %2893 = vmatprep.subr.mxu0 0.0
    %2894 = vmatpush1.msra.mxu0 0.0
    %2895 = vmatprep.subr.mxu0 0.0
    %2896 = vmatpush1.msra.mxu0 0.0
    %2897 = vmatprep.subr.mxu0 0.0
    %2898 = vmatpush1.msra.mxu0 0.0
    %2899 = vmatprep.subr.mxu0 0.0
    %2900 = vmatpush1.msra.mxu0 0.0
    %2901 = vmatprep.subr.mxu0 0.0
    %2902 = vmatpush1.msra.mxu0 0.0
    %2903 = vmatprep.mubr.f32.mxu0 0.0
    %2904 = vmatmul.mubr.f32.gmra.mrb[0].mxu0 %v2834
    %v2905 = vpop.f32.mrb[0].mxu0
    %v2906 = vadd.f32 %v2831, %v2905
    %v2907 = vpop.f32.mrb[0].mxu0
    %2908 = vmatprep.mubr.f32.mxu0 0.0
    %2909 = vmatmul.mubr.f32.gmra.mrb[0].mxu0 %v2837
    %v2910 = vpop.f32.mrb[0].mxu0
    %v2911 = vadd.f32 %v2831, %v2910
    %v2912 = vpop.f32.mrb[0].mxu0
    %2913 = vdwg.mxu0
    %v2914 = vmax.f32 %v2906, 0.0
    %v2915 = vmax.f32 %v2911, 0.0
    %v2916 = vld [vmem:[%s11] sm:$0xff]
    %v2917 = vld [vmem:[%s11 + $0x8] sm:$0xff]
    %v2918 = vld [vmem:[%s11 + $0x10] sm:$0xff]
    %v2919 = vld [vmem:[%s11 + $0x18] sm:$0xff]
    %v2920 = vld [vmem:[%s11 + $0x20] sm:$0xff]
    %v2921 = vld [vmem:[%s11 + $0x28] sm:$0xff]
    %v2922 = vld [vmem:[%s11 + $0x30] sm:$0xff]
    %v2923 = vld [vmem:[%s11 + $0x38] sm:$0xff]
    %v2924 = vld [vmem:[%s12] sm:$0x1]
    %v2926 = vlaneseq
    %v2927 = vshrl.u32 %v2926, 7
    %v2928 = vsub.s32 0, %v2927
    %v2929 = vrot.slane %v2924, %v2928
    %vm2931 = vcmask 523264
    %v2933 = vsel %vm2931, %v2914, 0
    %v2936 = vsel %vm2931, %v2915, 0
    %2938 = vmatprep.subr.mxu0 0.0
    %2939 = vmatpush1.msra.mxu0 %v2916
    %2940 = vmatprep.subr.mxu0 0.0
    %2941 = vmatpush1.msra.mxu0 %v2917
    %2942 = vmatprep.subr.mxu0 0.0
    %2943 = vmatpush1.msra.mxu0 %v2918
    %2944 = vmatprep.subr.mxu0 0.0
    %2945 = vmatpush1.msra.mxu0 %v2919
    %2946 = vmatprep.subr.mxu0 0.0
    %2947 = vmatpush1.msra.mxu0 %v2920
    %2948 = vmatprep.subr.mxu0 0.0
    %2949 = vmatpush1.msra.mxu0 %v2921
    %2950 = vmatprep.subr.mxu0 0.0
    %2951 = vmatpush1.msra.mxu0 %v2922
    %2952 = vmatprep.subr.mxu0 0.0
    %2953 = vmatpush1.msra.mxu0 %v2923
    %2954 = vmatprep.subr.mxu0 0.0
    %2955 = vmatpush1.msra.mxu0 0.0
    %2956 = vmatprep.subr.mxu0 0.0
    %2957 = vmatpush1.msra.mxu0 0.0
    %2958 = vmatprep.subr.mxu0 0.0
    %2959 = vmatpush1.msra.mxu0 0.0
    %2960 = vmatprep.subr.mxu0 0.0
    %2961 = vmatpush1.msra.mxu0 0.0
    %2962 = vmatprep.subr.mxu0 0.0
    %2963 = vmatpush1.msra.mxu0 0.0
    %2964 = vmatprep.subr.mxu0 0.0
    %2965 = vmatpush1.msra.mxu0 0.0
    %2966 = vmatprep.subr.mxu0 0.0
    %2967 = vmatpush1.msra.mxu0 0.0
    %2968 = vmatprep.subr.mxu0 0.0
    %2969 = vmatpush1.msra.mxu0 0.0
    %2970 = vmatprep.subr.mxu0 0.0
    %2971 = vmatpush1.msra.mxu0 0.0
    %2972 = vmatprep.subr.mxu0 0.0
    %2973 = vmatpush1.msra.mxu0 0.0
    %2974 = vmatprep.subr.mxu0 0.0
    %2975 = vmatpush1.msra.mxu0 0.0
    %2976 = vmatprep.subr.mxu0 0.0
    %2977 = vmatpush1.msra.mxu0 0.0
    %2978 = vmatprep.subr.mxu0 0.0
    %2979 = vmatpush1.msra.mxu0 0.0
    %2980 = vmatprep.subr.mxu0 0.0
    %2981 = vmatpush1.msra.mxu0 0.0
    %2982 = vmatprep.subr.mxu0 0.0
    %2983 = vmatpush1.msra.mxu0 0.0
    %2984 = vmatprep.subr.mxu0 0.0
    %2985 = vmatpush1.msra.mxu0 0.0
    %2986 = vmatprep.subr.mxu0 0.0
    %2987 = vmatpush1.msra.mxu0 0.0
    %2988 = vmatprep.subr.mxu0 0.0
    %2989 = vmatpush1.msra.mxu0 0.0
    %2990 = vmatprep.subr.mxu0 0.0
    %2991 = vmatpush1.msra.mxu0 0.0
    %2992 = vmatprep.subr.mxu0 0.0
    %2993 = vmatpush1.msra.mxu0 0.0
    %2994 = vmatprep.subr.mxu0 0.0
    %2995 = vmatpush1.msra.mxu0 0.0
    %2996 = vmatprep.subr.mxu0 0.0
    %2997 = vmatpush1.msra.mxu0 0.0
    %2998 = vmatprep.subr.mxu0 0.0
    %2999 = vmatpush1.msra.mxu0 0.0
    %3000 = vmatprep.subr.mxu0 0.0
    %3001 = vmatpush1.msra.mxu0 0.0
    %3002 = vmatprep.mubr.f32.mxu0 0.0
    %3003 = vmatmul.mubr.f32.gmra.mrb[0].mxu0 %v2933
    %v3004 = vpop.f32.mrb[0].mxu0
    %v3005 = vadd.f32 %v2929, %v3004
    %v3006 = vpop.f32.mrb[0].mxu0
    %3007 = vmatprep.mubr.f32.mxu0 0.0
    %3008 = vmatmul.mubr.f32.gmra.mrb[0].mxu0 %v2936
    %v3009 = vpop.f32.mrb[0].mxu0
    %v3010 = vadd.f32 %v2929, %v3009
    %v3011 = vpop.f32.mrb[0].mxu0
    %3012 = vdwg.mxu0
    %v3013 = vadd.f32 %v2820, %v3005
    %v3014 = vadd.f32 %v2821, %v3010
    %v3015 = vld [vmem:[%s15] sm:$0x1]
    %v3016 = vld [vmem:[%s16] sm:$0x1]
    %v3017 = vsel %vm178, %v3013, 0.0
    %3018 = vadd.xlane.f32.xlu0 %v3017
    %v3019 = vpop.xlane.xlu0 %3018
    %v3020 = vsel %vm178, %v3014, 0.0
    %3021 = vadd.xlane.f32.xlu0 %v3020
    %v3022 = vpop.xlane.xlu0 %3021
    %v3023 = vmul.f32 %v3019, %v2785
    %v3024 = vmul.f32 %v3022, %v2785
    %v3025 = vsub.f32 %v3013, %v3023
    %v3026 = vsub.f32 %v3014, %v3024
    %v3027 = vmul.f32 %v3025, %v3025
    %v3028 = vmul.f32 %v3026, %v3026
    %v3029 = vsel %vm178, %v3027, 0.0
    %3030 = vadd.xlane.f32.xlu0 %v3029
    %v3031 = vpop.xlane.xlu0 %3030
    %v3032 = vsel %vm178, %v3028, 0.0
    %3033 = vadd.xlane.f32.xlu0 %v3032
    %v3034 = vpop.xlane.xlu0 %3033
    %v3035 = vmul.f32 %v3031, %v2785
    %v3036 = vmul.f32 %v3034, %v2785
    %v3037 = vadd.f32 %v3035, 1e-05
    %v3038 = vadd.f32 %v3036, 1e-05
    %v3039 = vrsqrt.pop %v3037
    %v3040 = vrsqrt.pop %v3038
    %v3041 = vmul.f32 %v3025, %v3039
    %v3042 = vmul.f32 %v3026, %v3040
    %v3044 = vlaneseq
    %v3045 = vshrl.u32 %v3044, 7
    %v3046 = vsub.s32 0, %v3045
    %v3047 = vrot.slane %v3015, %v3046
    %v3049 = vmul.f32 %v3041, %v3047
    %v3050 = vmul.f32 %v3042, %v3047
    %v3052 = vlaneseq
    %v3053 = vshrl.u32 %v3052, 7
    %v3054 = vsub.s32 0, %v3053
    %v3055 = vrot.slane %v3016, %v3054
    %v3057 = vadd.f32 %v3049, %v3055
    %v3058 = vadd.f32 %v3050, %v3055
    %s3059 = scalar_lea.vmem %s5, 32
    %v3060 = vld [vmem:[%s3059] sm:$0xff]
    %v3061 = vld [vmem:[%s3059 + $0x8] sm:$0xff]
    %v3062 = vld [vmem:[%s3059 + $0x10] sm:$0xff]
    %v3063 = vld [vmem:[%s3059 + $0x18] sm:$0xff]
    %s3064 = scalar_lea.vmem %s6, 1
    %v3065 = vld [vmem:[%s3064] sm:$0x1]
    %v3067 = vlaneseq
    %v3068 = vshrl.u32 %v3067, 7
    %v3069 = vsub.s32 0, %v3068
    %v3070 = vrot.slane %v3065, %v3069
    %v3073 = vsel %vm178, %v3057, 0
    %v3076 = vsel %vm178, %v3058, 0
    %3078 = vmatprep.subr.mxu0 0.0
    %3079 = vmatpush1.msra.mxu0 %v3060
    %3080 = vmatprep.subr.mxu0 0.0
    %3081 = vmatpush1.msra.mxu0 %v3061
    %3082 = vmatprep.subr.mxu0 0.0
    %3083 = vmatpush1.msra.mxu0 %v3062
    %3084 = vmatprep.subr.mxu0 0.0
    %3085 = vmatpush1.msra.mxu0 %v3063
    %3086 = vmatprep.subr.mxu0 0.0
    %3087 = vmatpush1.msra.mxu0 0.0
    %3088 = vmatprep.subr.mxu0 0.0
    %3089 = vmatpush1.msra.mxu0 0.0
    %3090 = vmatprep.subr.mxu0 0.0
    %3091 = vmatpush1.msra.mxu0 0.0
    %3092 = vmatprep.subr.mxu0 0.0
    %3093 = vmatpush1.msra.mxu0 0.0
    %3094 = vmatprep.subr.mxu0 0.0
    %3095 = vmatpush1.msra.mxu0 0.0
    %3096 = vmatprep.subr.mxu0 0.0
    %3097 = vmatpush1.msra.mxu0 0.0
    %3098 = vmatprep.subr.mxu0 0.0
    %3099 = vmatpush1.msra.mxu0 0.0
    %3100 = vmatprep.subr.mxu0 0.0
    %3101 = vmatpush1.msra.mxu0 0.0
    %3102 = vmatprep.subr.mxu0 0.0
    %3103 = vmatpush1.msra.mxu0 0.0
    %3104 = vmatprep.subr.mxu0 0.0
    %3105 = vmatpush1.msra.mxu0 0.0
    %3106 = vmatprep.subr.mxu0 0.0
    %3107 = vmatpush1.msra.mxu0 0.0
    %3108 = vmatprep.subr.mxu0 0.0
    %3109 = vmatpush1.msra.mxu0 0.0
    %3110 = vmatprep.subr.mxu0 0.0
    %3111 = vmatpush1.msra.mxu0 0.0
    %3112 = vmatprep.subr.mxu0 0.0
    %3113 = vmatpush1.msra.mxu0 0.0
    %3114 = vmatprep.subr.mxu0 0.0
    %3115 = vmatpush1.msra.mxu0 0.0
    %3116 = vmatprep.subr.mxu0 0.0
    %3117 = vmatpush1.msra.mxu0 0.0
    %3118 = vmatprep.subr.mxu0 0.0
    %3119 = vmatpush1.msra.mxu0 0.0
    %3120 = vmatprep.subr.mxu0 0.0
    %3121 = vmatpush1.msra.mxu0 0.0
    %3122 = vmatprep.subr.mxu0 0.0
    %3123 = vmatpush1.msra.mxu0 0.0
    %3124 = vmatprep.subr.mxu0 0.0
    %3125 = vmatpush1.msra.mxu0 0.0
    %3126 = vmatprep.subr.mxu0 0.0
    %3127 = vmatpush1.msra.mxu0 0.0
    %3128 = vmatprep.subr.mxu0 0.0
    %3129 = vmatpush1.msra.mxu0 0.0
    %3130 = vmatprep.subr.mxu0 0.0
    %3131 = vmatpush1.msra.mxu0 0.0
    %3132 = vmatprep.subr.mxu0 0.0
    %3133 = vmatpush1.msra.mxu0 0.0
    %3134 = vmatprep.subr.mxu0 0.0
    %3135 = vmatpush1.msra.mxu0 0.0
    %3136 = vmatprep.subr.mxu0 0.0
    %3137 = vmatpush1.msra.mxu0 0.0
    %3138 = vmatprep.subr.mxu0 0.0
    %3139 = vmatpush1.msra.mxu0 0.0
    %3140 = vmatprep.subr.mxu0 0.0
    %3141 = vmatpush1.msra.mxu0 0.0
    %3142 = vmatprep.mubr.f32.mxu0 0.0
    %3143 = vmatmul.mubr.f32.gmra.mrb[0].mxu0 %v3073
    %v3144 = vpop.f32.mrb[0].mxu0
    %v3145 = vadd.f32 %v3070, %v3144
    %v3146 = vpop.f32.mrb[0].mxu0
    %3147 = vmatprep.mubr.f32.mxu0 0.0
    %3148 = vmatmul.mubr.f32.gmra.mrb[0].mxu0 %v3076
    %v3149 = vpop.f32.mrb[0].mxu0
    %v3150 = vadd.f32 %v3070, %v3149
    %v3151 = vpop.f32.mrb[0].mxu0
    %3152 = vdwg.mxu0
    %v3153 = vmul.f32 %v3145, 0.35355338
    %v3154 = vmul.f32 %v3150, 0.35355338
    %3156 = vrot.lane.b32.xlu0 %v3153, 120
    %v3157 = vpop.permute.xlu0 %3156
    %3158 = vrot.lane.b32.xlu0 %v3153, 112
    %v3159 = vpop.permute.xlu0 %3158
    %3160 = vrot.lane.b32.xlu0 %v3153, 104
    %v3161 = vpop.permute.xlu0 %3160
    %3163 = vrot.lane.b32.xlu0 %v3145, 120
    %v3164 = vpop.permute.xlu0 %3163
    %3165 = vrot.lane.b32.xlu0 %v3145, 112
    %v3166 = vpop.permute.xlu0 %3165
    %3167 = vrot.lane.b32.xlu0 %v3145, 104
    %v3168 = vpop.permute.xlu0 %3167
    %3169 = vrot.lane.b32.xlu0 %v3145, 96
    %v3170 = vpop.permute.xlu0 %3169
    %3171 = vrot.lane.b32.xlu0 %v3164, 96
    %v3172 = vpop.permute.xlu0 %3171
    %3173 = vrot.lane.b32.xlu0 %v3166, 96
    %v3174 = vpop.permute.xlu0 %3173
    %3175 = vrot.lane.b32.xlu0 %v3168, 96
    %v3176 = vpop.permute.xlu0 %3175
    %3181 = vxpose.xlu0.b32.start [1/16] %v3170, 128
    %3182 = vxpose.xlu0.b32.cont [2/16] 0.0, 128
    %3183 = vxpose.xlu0.b32.cont [3/16] 0.0, 128
    %3184 = vxpose.xlu0.b32.cont [4/16] 0.0, 128
    %3185 = vxpose.xlu0.b32.cont [5/16] 0.0, 128
    %3186 = vxpose.xlu0.b32.cont [6/16] 0.0, 128
    %3187 = vxpose.xlu0.b32.cont [7/16] 0.0, 128
    %3188 = vxpose.xlu0.b32.cont [8/16] 0.0, 128
    %3189 = vxpose.xlu0.b32.cont [9/16] 0.0, 128
    %3190 = vxpose.xlu0.b32.cont [10/16] 0.0, 128
    %3191 = vxpose.xlu0.b32.cont [11/16] 0.0, 128
    %3192 = vxpose.xlu0.b32.cont [12/16] 0.0, 128
    %3193 = vxpose.xlu0.b32.cont [13/16] 0.0, 128
    %3194 = vxpose.xlu0.b32.cont [14/16] 0.0, 128
    %3195 = vxpose.xlu0.b32.cont [15/16] 0.0, 128
    %3196 = vxpose.xlu0.b32.end [16/16] 0.0, 128
    %v3197 = vpop.trf.xlu0
    %v3198 = vpop.trf.xlu0
    %v3199 = vpop.trf.xlu0
    %v3200 = vpop.trf.xlu0
    %v3201 = vpop.trf.xlu0
    %v3202 = vpop.trf.xlu0
    %v3203 = vpop.trf.xlu0
    %v3204 = vpop.trf.xlu0
    %v3205 = vpop.trf.xlu0
    %v3206 = vpop.trf.xlu0
    %v3207 = vpop.trf.xlu0
    %v3208 = vpop.trf.xlu0
    %v3209 = vpop.trf.xlu0
    %v3210 = vpop.trf.xlu0
    %v3211 = vpop.trf.xlu0
    %v3212 = vpop.trf.xlu0
    %3213 = vxpose.xlu0.b32.start [1/16] %v3172, 128
    %3214 = vxpose.xlu0.b32.cont [2/16] 0.0, 128
    %3215 = vxpose.xlu0.b32.cont [3/16] 0.0, 128
    %3216 = vxpose.xlu0.b32.cont [4/16] 0.0, 128
    %3217 = vxpose.xlu0.b32.cont [5/16] 0.0, 128
    %3218 = vxpose.xlu0.b32.cont [6/16] 0.0, 128
    %3219 = vxpose.xlu0.b32.cont [7/16] 0.0, 128
    %3220 = vxpose.xlu0.b32.cont [8/16] 0.0, 128
    %3221 = vxpose.xlu0.b32.cont [9/16] 0.0, 128
    %3222 = vxpose.xlu0.b32.cont [10/16] 0.0, 128
    %3223 = vxpose.xlu0.b32.cont [11/16] 0.0, 128
    %3224 = vxpose.xlu0.b32.cont [12/16] 0.0, 128
    %3225 = vxpose.xlu0.b32.cont [13/16] 0.0, 128
    %3226 = vxpose.xlu0.b32.cont [14/16] 0.0, 128
    %3227 = vxpose.xlu0.b32.cont [15/16] 0.0, 128
    %3228 = vxpose.xlu0.b32.end [16/16] 0.0, 128
    %v3229 = vpop.trf.xlu0
    %v3230 = vpop.trf.xlu0
    %v3231 = vpop.trf.xlu0
    %v3232 = vpop.trf.xlu0
    %v3233 = vpop.trf.xlu0
    %v3234 = vpop.trf.xlu0
    %v3235 = vpop.trf.xlu0
    %v3236 = vpop.trf.xlu0
    %v3237 = vpop.trf.xlu0
    %v3238 = vpop.trf.xlu0
    %v3239 = vpop.trf.xlu0
    %v3240 = vpop.trf.xlu0
    %v3241 = vpop.trf.xlu0
    %v3242 = vpop.trf.xlu0
    %v3243 = vpop.trf.xlu0
    %v3244 = vpop.trf.xlu0
    %3245 = vxpose.xlu0.b32.start [1/16] %v3174, 128
    %3246 = vxpose.xlu0.b32.cont [2/16] 0.0, 128
    %3247 = vxpose.xlu0.b32.cont [3/16] 0.0, 128
    %3248 = vxpose.xlu0.b32.cont [4/16] 0.0, 128
    %3249 = vxpose.xlu0.b32.cont [5/16] 0.0, 128
    %3250 = vxpose.xlu0.b32.cont [6/16] 0.0, 128
    %3251 = vxpose.xlu0.b32.cont [7/16] 0.0, 128
    %3252 = vxpose.xlu0.b32.cont [8/16] 0.0, 128
    %3253 = vxpose.xlu0.b32.cont [9/16] 0.0, 128
    %3254 = vxpose.xlu0.b32.cont [10/16] 0.0, 128
    %3255 = vxpose.xlu0.b32.cont [11/16] 0.0, 128
    %3256 = vxpose.xlu0.b32.cont [12/16] 0.0, 128
    %3257 = vxpose.xlu0.b32.cont [13/16] 0.0, 128
    %3258 = vxpose.xlu0.b32.cont [14/16] 0.0, 128
    %3259 = vxpose.xlu0.b32.cont [15/16] 0.0, 128
    %3260 = vxpose.xlu0.b32.end [16/16] 0.0, 128
    %v3261 = vpop.trf.xlu0
    %v3262 = vpop.trf.xlu0
    %v3263 = vpop.trf.xlu0
    %v3264 = vpop.trf.xlu0
    %v3265 = vpop.trf.xlu0
    %v3266 = vpop.trf.xlu0
    %v3267 = vpop.trf.xlu0
    %v3268 = vpop.trf.xlu0
    %v3269 = vpop.trf.xlu0
    %v3270 = vpop.trf.xlu0
    %v3271 = vpop.trf.xlu0
    %v3272 = vpop.trf.xlu0
    %v3273 = vpop.trf.xlu0
    %v3274 = vpop.trf.xlu0
    %v3275 = vpop.trf.xlu0
    %v3276 = vpop.trf.xlu0
    %3277 = vxpose.xlu0.b32.start [1/16] %v3176, 128
    %3278 = vxpose.xlu0.b32.cont [2/16] 0.0, 128
    %3279 = vxpose.xlu0.b32.cont [3/16] 0.0, 128
    %3280 = vxpose.xlu0.b32.cont [4/16] 0.0, 128
    %3281 = vxpose.xlu0.b32.cont [5/16] 0.0, 128
    %3282 = vxpose.xlu0.b32.cont [6/16] 0.0, 128
    %3283 = vxpose.xlu0.b32.cont [7/16] 0.0, 128
    %3284 = vxpose.xlu0.b32.cont [8/16] 0.0, 128
    %3285 = vxpose.xlu0.b32.cont [9/16] 0.0, 128
    %3286 = vxpose.xlu0.b32.cont [10/16] 0.0, 128
    %3287 = vxpose.xlu0.b32.cont [11/16] 0.0, 128
    %3288 = vxpose.xlu0.b32.cont [12/16] 0.0, 128
    %3289 = vxpose.xlu0.b32.cont [13/16] 0.0, 128
    %3290 = vxpose.xlu0.b32.cont [14/16] 0.0, 128
    %3291 = vxpose.xlu0.b32.cont [15/16] 0.0, 128
    %3292 = vxpose.xlu0.b32.end [16/16] 0.0, 128
    %v3293 = vpop.trf.xlu0
    %v3294 = vpop.trf.xlu0
    %v3295 = vpop.trf.xlu0
    %v3296 = vpop.trf.xlu0
    %v3297 = vpop.trf.xlu0
    %v3298 = vpop.trf.xlu0
    %v3299 = vpop.trf.xlu0
    %v3300 = vpop.trf.xlu0
    %v3301 = vpop.trf.xlu0
    %v3302 = vpop.trf.xlu0
    %v3303 = vpop.trf.xlu0
    %v3304 = vpop.trf.xlu0
    %v3305 = vpop.trf.xlu0
    %v3306 = vpop.trf.xlu0
    %v3307 = vpop.trf.xlu0
    %v3308 = vpop.trf.xlu0
    %v3309 = vsel %vm416, %v3153, 0
    %3311 = vmatprep.subr.mxu0 0.0
    %3312 = vmatpush1.msra.mxu0 %v3197
    %3313 = vmatprep.subr.mxu0 0.0
    %3314 = vmatpush1.msra.mxu0 0.0
    %3315 = vmatprep.subr.mxu0 0.0
    %3316 = vmatpush1.msra.mxu0 0.0
    %3317 = vmatprep.subr.mxu0 0.0
    %3318 = vmatpush1.msra.mxu0 0.0
    %3319 = vmatprep.subr.mxu0 0.0
    %3320 = vmatpush1.msra.mxu0 0.0
    %3321 = vmatprep.subr.mxu0 0.0
    %3322 = vmatpush1.msra.mxu0 0.0
    %3323 = vmatprep.subr.mxu0 0.0
    %3324 = vmatpush1.msra.mxu0 0.0
    %3325 = vmatprep.subr.mxu0 0.0
    %3326 = vmatpush1.msra.mxu0 0.0
    %3327 = vmatprep.subr.mxu0 0.0
    %3328 = vmatpush1.msra.mxu0 0.0
    %3329 = vmatprep.subr.mxu0 0.0
    %3330 = vmatpush1.msra.mxu0 0.0
    %3331 = vmatprep.subr.mxu0 0.0
    %3332 = vmatpush1.msra.mxu0 0.0
    %3333 = vmatprep.subr.mxu0 0.0
    %3334 = vmatpush1.msra.mxu0 0.0
    %3335 = vmatprep.subr.mxu0 0.0
    %3336 = vmatpush1.msra.mxu0 0.0
    %3337 = vmatprep.subr.mxu0 0.0
    %3338 = vmatpush1.msra.mxu0 0.0
    %3339 = vmatprep.subr.mxu0 0.0
    %3340 = vmatpush1.msra.mxu0 0.0
    %3341 = vmatprep.subr.mxu0 0.0
    %3342 = vmatpush1.msra.mxu0 0.0
    %3343 = vmatprep.subr.mxu0 0.0
    %3344 = vmatpush1.msra.mxu0 0.0
    %3345 = vmatprep.subr.mxu0 0.0
    %3346 = vmatpush1.msra.mxu0 0.0
    %3347 = vmatprep.subr.mxu0 0.0
    %3348 = vmatpush1.msra.mxu0 0.0
    %3349 = vmatprep.subr.mxu0 0.0
    %3350 = vmatpush1.msra.mxu0 0.0
    %3351 = vmatprep.subr.mxu0 0.0
    %3352 = vmatpush1.msra.mxu0 0.0
    %3353 = vmatprep.subr.mxu0 0.0
    %3354 = vmatpush1.msra.mxu0 0.0
    %3355 = vmatprep.subr.mxu0 0.0
    %3356 = vmatpush1.msra.mxu0 0.0
    %3357 = vmatprep.subr.mxu0 0.0
    %3358 = vmatpush1.msra.mxu0 0.0
    %3359 = vmatprep.subr.mxu0 0.0
    %3360 = vmatpush1.msra.mxu0 0.0
    %3361 = vmatprep.subr.mxu0 0.0
    %3362 = vmatpush1.msra.mxu0 0.0
    %3363 = vmatprep.subr.mxu0 0.0
    %3364 = vmatpush1.msra.mxu0 0.0
    %3365 = vmatprep.subr.mxu0 0.0
    %3366 = vmatpush1.msra.mxu0 0.0
    %3367 = vmatprep.subr.mxu0 0.0
    %3368 = vmatpush1.msra.mxu0 0.0
    %3369 = vmatprep.subr.mxu0 0.0
    %3370 = vmatpush1.msra.mxu0 0.0
    %3371 = vmatprep.subr.mxu0 0.0
    %3372 = vmatpush1.msra.mxu0 0.0
    %3373 = vmatprep.subr.mxu0 0.0
    %3374 = vmatpush1.msra.mxu0 0.0
    %3375 = vmatprep.mubr.f32.mxu0 0.0
    %3376 = vmatmul.mubr.f32.gmra.mrb[0].mxu0 %v3309
    %v3377 = vpop.f32.mrb[0].mxu0
    %v3378 = vadd.f32 %v166, %v3377
    %v3379 = vpop.f32.mrb[0].mxu0
    %3380 = vdwg.mxu0
    %v3381 = vsel %vm416, %v3157, 0
    %3383 = vmatprep.subr.mxu0 0.0
    %3384 = vmatpush1.msra.mxu0 %v3229
    %3385 = vmatprep.subr.mxu0 0.0
    %3386 = vmatpush1.msra.mxu0 0.0
    %3387 = vmatprep.subr.mxu0 0.0
    %3388 = vmatpush1.msra.mxu0 0.0
    %3389 = vmatprep.subr.mxu0 0.0
    %3390 = vmatpush1.msra.mxu0 0.0
    %3391 = vmatprep.subr.mxu0 0.0
    %3392 = vmatpush1.msra.mxu0 0.0
    %3393 = vmatprep.subr.mxu0 0.0
    %3394 = vmatpush1.msra.mxu0 0.0
    %3395 = vmatprep.subr.mxu0 0.0
    %3396 = vmatpush1.msra.mxu0 0.0
    %3397 = vmatprep.subr.mxu0 0.0
    %3398 = vmatpush1.msra.mxu0 0.0
    %3399 = vmatprep.subr.mxu0 0.0
    %3400 = vmatpush1.msra.mxu0 0.0
    %3401 = vmatprep.subr.mxu0 0.0
    %3402 = vmatpush1.msra.mxu0 0.0
    %3403 = vmatprep.subr.mxu0 0.0
    %3404 = vmatpush1.msra.mxu0 0.0
    %3405 = vmatprep.subr.mxu0 0.0
    %3406 = vmatpush1.msra.mxu0 0.0
    %3407 = vmatprep.subr.mxu0 0.0
    %3408 = vmatpush1.msra.mxu0 0.0
    %3409 = vmatprep.subr.mxu0 0.0
    %3410 = vmatpush1.msra.mxu0 0.0
    %3411 = vmatprep.subr.mxu0 0.0
    %3412 = vmatpush1.msra.mxu0 0.0
    %3413 = vmatprep.subr.mxu0 0.0
    %3414 = vmatpush1.msra.mxu0 0.0
    %3415 = vmatprep.subr.mxu0 0.0
    %3416 = vmatpush1.msra.mxu0 0.0
    %3417 = vmatprep.subr.mxu0 0.0
    %3418 = vmatpush1.msra.mxu0 0.0
    %3419 = vmatprep.subr.mxu0 0.0
    %3420 = vmatpush1.msra.mxu0 0.0
    %3421 = vmatprep.subr.mxu0 0.0
    %3422 = vmatpush1.msra.mxu0 0.0
    %3423 = vmatprep.subr.mxu0 0.0
    %3424 = vmatpush1.msra.mxu0 0.0
    %3425 = vmatprep.subr.mxu0 0.0
    %3426 = vmatpush1.msra.mxu0 0.0
    %3427 = vmatprep.subr.mxu0 0.0
    %3428 = vmatpush1.msra.mxu0 0.0
    %3429 = vmatprep.subr.mxu0 0.0
    %3430 = vmatpush1.msra.mxu0 0.0
    %3431 = vmatprep.subr.mxu0 0.0
    %3432 = vmatpush1.msra.mxu0 0.0
    %3433 = vmatprep.subr.mxu0 0.0
    %3434 = vmatpush1.msra.mxu0 0.0
    %3435 = vmatprep.subr.mxu0 0.0
    %3436 = vmatpush1.msra.mxu0 0.0
    %3437 = vmatprep.subr.mxu0 0.0
    %3438 = vmatpush1.msra.mxu0 0.0
    %3439 = vmatprep.subr.mxu0 0.0
    %3440 = vmatpush1.msra.mxu0 0.0
    %3441 = vmatprep.subr.mxu0 0.0
    %3442 = vmatpush1.msra.mxu0 0.0
    %3443 = vmatprep.subr.mxu0 0.0
    %3444 = vmatpush1.msra.mxu0 0.0
    %3445 = vmatprep.subr.mxu0 0.0
    %3446 = vmatpush1.msra.mxu0 0.0
    %3447 = vmatprep.mubr.f32.mxu0 0.0
    %3448 = vmatmul.mubr.f32.gmra.mrb[0].mxu0 %v3381
    %v3449 = vpop.f32.mrb[0].mxu0
    %v3450 = vadd.f32 %v166, %v3449
    %v3451 = vpop.f32.mrb[0].mxu0
    %3452 = vdwg.mxu0
    %v3453 = vsel %vm416, %v3159, 0
    %3455 = vmatprep.subr.mxu0 0.0
    %3456 = vmatpush1.msra.mxu0 %v3261
    %3457 = vmatprep.subr.mxu0 0.0
    %3458 = vmatpush1.msra.mxu0 0.0
    %3459 = vmatprep.subr.mxu0 0.0
    %3460 = vmatpush1.msra.mxu0 0.0
    %3461 = vmatprep.subr.mxu0 0.0
    %3462 = vmatpush1.msra.mxu0 0.0
    %3463 = vmatprep.subr.mxu0 0.0
    %3464 = vmatpush1.msra.mxu0 0.0
    %3465 = vmatprep.subr.mxu0 0.0
    %3466 = vmatpush1.msra.mxu0 0.0
    %3467 = vmatprep.subr.mxu0 0.0
    %3468 = vmatpush1.msra.mxu0 0.0
    %3469 = vmatprep.subr.mxu0 0.0
    %3470 = vmatpush1.msra.mxu0 0.0
    %3471 = vmatprep.subr.mxu0 0.0
    %3472 = vmatpush1.msra.mxu0 0.0
    %3473 = vmatprep.subr.mxu0 0.0
    %3474 = vmatpush1.msra.mxu0 0.0
    %3475 = vmatprep.subr.mxu0 0.0
    %3476 = vmatpush1.msra.mxu0 0.0
    %3477 = vmatprep.subr.mxu0 0.0
    %3478 = vmatpush1.msra.mxu0 0.0
    %3479 = vmatprep.subr.mxu0 0.0
    %3480 = vmatpush1.msra.mxu0 0.0
    %3481 = vmatprep.subr.mxu0 0.0
    %3482 = vmatpush1.msra.mxu0 0.0
    %3483 = vmatprep.subr.mxu0 0.0
    %3484 = vmatpush1.msra.mxu0 0.0
    %3485 = vmatprep.subr.mxu0 0.0
    %3486 = vmatpush1.msra.mxu0 0.0
    %3487 = vmatprep.subr.mxu0 0.0
    %3488 = vmatpush1.msra.mxu0 0.0
    %3489 = vmatprep.subr.mxu0 0.0
    %3490 = vmatpush1.msra.mxu0 0.0
    %3491 = vmatprep.subr.mxu0 0.0
    %3492 = vmatpush1.msra.mxu0 0.0
    %3493 = vmatprep.subr.mxu0 0.0
    %3494 = vmatpush1.msra.mxu0 0.0
    %3495 = vmatprep.subr.mxu0 0.0
    %3496 = vmatpush1.msra.mxu0 0.0
    %3497 = vmatprep.subr.mxu0 0.0
    %3498 = vmatpush1.msra.mxu0 0.0
    %3499 = vmatprep.subr.mxu0 0.0
    %3500 = vmatpush1.msra.mxu0 0.0
    %3501 = vmatprep.subr.mxu0 0.0
    %3502 = vmatpush1.msra.mxu0 0.0
    %3503 = vmatprep.subr.mxu0 0.0
    %3504 = vmatpush1.msra.mxu0 0.0
    %3505 = vmatprep.subr.mxu0 0.0
    %3506 = vmatpush1.msra.mxu0 0.0
    %3507 = vmatprep.subr.mxu0 0.0
    %3508 = vmatpush1.msra.mxu0 0.0
    %3509 = vmatprep.subr.mxu0 0.0
    %3510 = vmatpush1.msra.mxu0 0.0
    %3511 = vmatprep.subr.mxu0 0.0
    %3512 = vmatpush1.msra.mxu0 0.0
    %3513 = vmatprep.subr.mxu0 0.0
    %3514 = vmatpush1.msra.mxu0 0.0
    %3515 = vmatprep.subr.mxu0 0.0
    %3516 = vmatpush1.msra.mxu0 0.0
    %3517 = vmatprep.subr.mxu0 0.0
    %3518 = vmatpush1.msra.mxu0 0.0
    %3519 = vmatprep.mubr.f32.mxu0 0.0
    %3520 = vmatmul.mubr.f32.gmra.mrb[0].mxu0 %v3453
    %v3521 = vpop.f32.mrb[0].mxu0
    %v3522 = vadd.f32 %v166, %v3521
    %v3523 = vpop.f32.mrb[0].mxu0
    %3524 = vdwg.mxu0
    %v3525 = vsel %vm416, %v3161, 0
    %3527 = vmatprep.subr.mxu0 0.0
    %3528 = vmatpush1.msra.mxu0 %v3293
    %3529 = vmatprep.subr.mxu0 0.0
    %3530 = vmatpush1.msra.mxu0 0.0
    %3531 = vmatprep.subr.mxu0 0.0
    %3532 = vmatpush1.msra.mxu0 0.0
    %3533 = vmatprep.subr.mxu0 0.0
    %3534 = vmatpush1.msra.mxu0 0.0
    %3535 = vmatprep.subr.mxu0 0.0
    %3536 = vmatpush1.msra.mxu0 0.0
    %3537 = vmatprep.subr.mxu0 0.0
    %3538 = vmatpush1.msra.mxu0 0.0
    %3539 = vmatprep.subr.mxu0 0.0
    %3540 = vmatpush1.msra.mxu0 0.0
    %3541 = vmatprep.subr.mxu0 0.0
    %3542 = vmatpush1.msra.mxu0 0.0
    %3543 = vmatprep.subr.mxu0 0.0
    %3544 = vmatpush1.msra.mxu0 0.0
    %3545 = vmatprep.subr.mxu0 0.0
    %3546 = vmatpush1.msra.mxu0 0.0
    %3547 = vmatprep.subr.mxu0 0.0
    %3548 = vmatpush1.msra.mxu0 0.0
    %3549 = vmatprep.subr.mxu0 0.0
    %3550 = vmatpush1.msra.mxu0 0.0
    %3551 = vmatprep.subr.mxu0 0.0
    %3552 = vmatpush1.msra.mxu0 0.0
    %3553 = vmatprep.subr.mxu0 0.0
    %3554 = vmatpush1.msra.mxu0 0.0
    %3555 = vmatprep.subr.mxu0 0.0
    %3556 = vmatpush1.msra.mxu0 0.0
    %3557 = vmatprep.subr.mxu0 0.0
    %3558 = vmatpush1.msra.mxu0 0.0
    %3559 = vmatprep.subr.mxu0 0.0
    %3560 = vmatpush1.msra.mxu0 0.0
    %3561 = vmatprep.subr.mxu0 0.0
    %3562 = vmatpush1.msra.mxu0 0.0
    %3563 = vmatprep.subr.mxu0 0.0
    %3564 = vmatpush1.msra.mxu0 0.0
    %3565 = vmatprep.subr.mxu0 0.0
    %3566 = vmatpush1.msra.mxu0 0.0
    %3567 = vmatprep.subr.mxu0 0.0
    %3568 = vmatpush1.msra.mxu0 0.0
    %3569 = vmatprep.subr.mxu0 0.0
    %3570 = vmatpush1.msra.mxu0 0.0
    %3571 = vmatprep.subr.mxu0 0.0
    %3572 = vmatpush1.msra.mxu0 0.0
    %3573 = vmatprep.subr.mxu0 0.0
    %3574 = vmatpush1.msra.mxu0 0.0
    %3575 = vmatprep.subr.mxu0 0.0
    %3576 = vmatpush1.msra.mxu0 0.0
    %3577 = vmatprep.subr.mxu0 0.0
    %3578 = vmatpush1.msra.mxu0 0.0
    %3579 = vmatprep.subr.mxu0 0.0
    %3580 = vmatpush1.msra.mxu0 0.0
    %3581 = vmatprep.subr.mxu0 0.0
    %3582 = vmatpush1.msra.mxu0 0.0
    %3583 = vmatprep.subr.mxu0 0.0
    %3584 = vmatpush1.msra.mxu0 0.0
    %3585 = vmatprep.subr.mxu0 0.0
    %3586 = vmatpush1.msra.mxu0 0.0
    %3587 = vmatprep.subr.mxu0 0.0
    %3588 = vmatpush1.msra.mxu0 0.0
    %3589 = vmatprep.subr.mxu0 0.0
    %3590 = vmatpush1.msra.mxu0 0.0
    %3591 = vmatprep.mubr.f32.mxu0 0.0
    %3592 = vmatmul.mubr.f32.gmra.mrb[0].mxu0 %v3525
    %v3593 = vpop.f32.mrb[0].mxu0
    %v3594 = vadd.f32 %v166, %v3593
    %v3595 = vpop.f32.mrb[0].mxu0
    %3596 = vdwg.mxu0
    %v3597 = vsel %vm416, %v3378, -inf
    %3598 = vmax.xlane.f32.xlu0 %v3597
    %v3599 = vpop.xlane.xlu0 %3598
    %v3600 = vsel %vm416, %v3450, -inf
    %3601 = vmax.xlane.f32.xlu0 %v3600
    %v3602 = vpop.xlane.xlu0 %3601
    %v3603 = vsel %vm416, %v3522, -inf
    %3604 = vmax.xlane.f32.xlu0 %v3603
    %v3605 = vpop.xlane.xlu0 %3604
    %v3606 = vsel %vm416, %v3594, -inf
    %3607 = vmax.xlane.f32.xlu0 %v3606
    %v3608 = vpop.xlane.xlu0 %3607
    %v3609 = vsub.f32 %v3378, %v3599
    %v3610 = vsub.f32 %v3450, %v3602
    %v3611 = vsub.f32 %v3522, %v3605
    %v3612 = vsub.f32 %v3594, %v3608
    %v3613 = vmul.f32 %v3609, 1.442695
    %v3614 = vpow.pop %v3613
    %v3615 = vmul.f32 %v3610, 1.442695
    %v3616 = vpow.pop %v3615
    %v3617 = vmul.f32 %v3611, 1.442695
    %v3618 = vpow.pop %v3617
    %v3619 = vmul.f32 %v3612, 1.442695
    %v3620 = vpow.pop %v3619
    %v3621 = vsel %vm416, %v3614, 0.0
    %3622 = vadd.xlane.f32.xlu0 %v3621
    %v3623 = vpop.xlane.xlu0 %3622
    %v3624 = vsel %vm416, %v3616, 0.0
    %3625 = vadd.xlane.f32.xlu0 %v3624
    %v3626 = vpop.xlane.xlu0 %3625
    %v3627 = vsel %vm416, %v3618, 0.0
    %3628 = vadd.xlane.f32.xlu0 %v3627
    %v3629 = vpop.xlane.xlu0 %3628
    %v3630 = vsel %vm416, %v3620, 0.0
    %3631 = vadd.xlane.f32.xlu0 %v3630
    %v3632 = vpop.xlane.xlu0 %3631
    %v3633 = vrcp.pop %v3623
    %v3634 = vrcp.pop %v3626
    %v3635 = vrcp.pop %v3629
    %v3636 = vrcp.pop %v3632
    %v3637 = vmul.f32 %v3614, %v3633
    %v3638 = vmul.f32 %v3616, %v3634
    %v3639 = vmul.f32 %v3618, %v3635
    %v3640 = vmul.f32 %v3620, %v3636
    %3641 = vrot.lane.b32.xlu0 %v3145, 64
    %v3642 = vpop.permute.xlu0 %3641
    %3643 = vrot.lane.b32.xlu0 %v3164, 64
    %v3644 = vpop.permute.xlu0 %3643
    %3645 = vrot.lane.b32.xlu0 %v3166, 64
    %v3646 = vpop.permute.xlu0 %3645
    %3647 = vrot.lane.b32.xlu0 %v3168, 64
    %v3648 = vpop.permute.xlu0 %3647
    %3653 = vxpose.xlu0.b32.start [1/16] %v3642, 128
    %3654 = vxpose.xlu0.b32.cont [2/16] 0.0, 128
    %3655 = vxpose.xlu0.b32.cont [3/16] 0.0, 128
    %3656 = vxpose.xlu0.b32.cont [4/16] 0.0, 128
    %3657 = vxpose.xlu0.b32.cont [5/16] 0.0, 128
    %3658 = vxpose.xlu0.b32.cont [6/16] 0.0, 128
    %3659 = vxpose.xlu0.b32.cont [7/16] 0.0, 128
    %3660 = vxpose.xlu0.b32.cont [8/16] 0.0, 128
    %3661 = vxpose.xlu0.b32.cont [9/16] 0.0, 128
    %3662 = vxpose.xlu0.b32.cont [10/16] 0.0, 128
    %3663 = vxpose.xlu0.b32.cont [11/16] 0.0, 128
    %3664 = vxpose.xlu0.b32.cont [12/16] 0.0, 128
    %3665 = vxpose.xlu0.b32.cont [13/16] 0.0, 128
    %3666 = vxpose.xlu0.b32.cont [14/16] 0.0, 128
    %3667 = vxpose.xlu0.b32.cont [15/16] 0.0, 128
    %3668 = vxpose.xlu0.b32.end [16/16] 0.0, 128
    %v3669 = vpop.trf.xlu0
    %v3670 = vpop.trf.xlu0
    %v3671 = vpop.trf.xlu0
    %v3672 = vpop.trf.xlu0
    %v3673 = vpop.trf.xlu0
    %v3674 = vpop.trf.xlu0
    %v3675 = vpop.trf.xlu0
    %v3676 = vpop.trf.xlu0
    %v3677 = vpop.trf.xlu0
    %v3678 = vpop.trf.xlu0
    %v3679 = vpop.trf.xlu0
    %v3680 = vpop.trf.xlu0
    %v3681 = vpop.trf.xlu0
    %v3682 = vpop.trf.xlu0
    %v3683 = vpop.trf.xlu0
    %v3684 = vpop.trf.xlu0
    %3685 = vxpose.xlu0.b32.start [1/16] %v3644, 128
    %3686 = vxpose.xlu0.b32.cont [2/16] 0.0, 128
    %3687 = vxpose.xlu0.b32.cont [3/16] 0.0, 128
    %3688 = vxpose.xlu0.b32.cont [4/16] 0.0, 128
    %3689 = vxpose.xlu0.b32.cont [5/16] 0.0, 128
    %3690 = vxpose.xlu0.b32.cont [6/16] 0.0, 128
    %3691 = vxpose.xlu0.b32.cont [7/16] 0.0, 128
    %3692 = vxpose.xlu0.b32.cont [8/16] 0.0, 128
    %3693 = vxpose.xlu0.b32.cont [9/16] 0.0, 128
    %3694 = vxpose.xlu0.b32.cont [10/16] 0.0, 128
    %3695 = vxpose.xlu0.b32.cont [11/16] 0.0, 128
    %3696 = vxpose.xlu0.b32.cont [12/16] 0.0, 128
    %3697 = vxpose.xlu0.b32.cont [13/16] 0.0, 128
    %3698 = vxpose.xlu0.b32.cont [14/16] 0.0, 128
    %3699 = vxpose.xlu0.b32.cont [15/16] 0.0, 128
    %3700 = vxpose.xlu0.b32.end [16/16] 0.0, 128
    %v3701 = vpop.trf.xlu0
    %v3702 = vpop.trf.xlu0
    %v3703 = vpop.trf.xlu0
    %v3704 = vpop.trf.xlu0
    %v3705 = vpop.trf.xlu0
    %v3706 = vpop.trf.xlu0
    %v3707 = vpop.trf.xlu0
    %v3708 = vpop.trf.xlu0
    %v3709 = vpop.trf.xlu0
    %v3710 = vpop.trf.xlu0
    %v3711 = vpop.trf.xlu0
    %v3712 = vpop.trf.xlu0
    %v3713 = vpop.trf.xlu0
    %v3714 = vpop.trf.xlu0
    %v3715 = vpop.trf.xlu0
    %v3716 = vpop.trf.xlu0
    %3717 = vxpose.xlu0.b32.start [1/16] %v3646, 128
    %3718 = vxpose.xlu0.b32.cont [2/16] 0.0, 128
    %3719 = vxpose.xlu0.b32.cont [3/16] 0.0, 128
    %3720 = vxpose.xlu0.b32.cont [4/16] 0.0, 128
    %3721 = vxpose.xlu0.b32.cont [5/16] 0.0, 128
    %3722 = vxpose.xlu0.b32.cont [6/16] 0.0, 128
    %3723 = vxpose.xlu0.b32.cont [7/16] 0.0, 128
    %3724 = vxpose.xlu0.b32.cont [8/16] 0.0, 128
    %3725 = vxpose.xlu0.b32.cont [9/16] 0.0, 128
    %3726 = vxpose.xlu0.b32.cont [10/16] 0.0, 128
    %3727 = vxpose.xlu0.b32.cont [11/16] 0.0, 128
    %3728 = vxpose.xlu0.b32.cont [12/16] 0.0, 128
    %3729 = vxpose.xlu0.b32.cont [13/16] 0.0, 128
    %3730 = vxpose.xlu0.b32.cont [14/16] 0.0, 128
    %3731 = vxpose.xlu0.b32.cont [15/16] 0.0, 128
    %3732 = vxpose.xlu0.b32.end [16/16] 0.0, 128
    %v3733 = vpop.trf.xlu0
    %v3734 = vpop.trf.xlu0
    %v3735 = vpop.trf.xlu0
    %v3736 = vpop.trf.xlu0
    %v3737 = vpop.trf.xlu0
    %v3738 = vpop.trf.xlu0
    %v3739 = vpop.trf.xlu0
    %v3740 = vpop.trf.xlu0
    %v3741 = vpop.trf.xlu0
    %v3742 = vpop.trf.xlu0
    %v3743 = vpop.trf.xlu0
    %v3744 = vpop.trf.xlu0
    %v3745 = vpop.trf.xlu0
    %v3746 = vpop.trf.xlu0
    %v3747 = vpop.trf.xlu0
    %v3748 = vpop.trf.xlu0
    %3749 = vxpose.xlu0.b32.start [1/16] %v3648, 128
    %3750 = vxpose.xlu0.b32.cont [2/16] 0.0, 128
    %3751 = vxpose.xlu0.b32.cont [3/16] 0.0, 128
    %3752 = vxpose.xlu0.b32.cont [4/16] 0.0, 128
    %3753 = vxpose.xlu0.b32.cont [5/16] 0.0, 128
    %3754 = vxpose.xlu0.b32.cont [6/16] 0.0, 128
    %3755 = vxpose.xlu0.b32.cont [7/16] 0.0, 128
    %3756 = vxpose.xlu0.b32.cont [8/16] 0.0, 128
    %3757 = vxpose.xlu0.b32.cont [9/16] 0.0, 128
    %3758 = vxpose.xlu0.b32.cont [10/16] 0.0, 128
    %3759 = vxpose.xlu0.b32.cont [11/16] 0.0, 128
    %3760 = vxpose.xlu0.b32.cont [12/16] 0.0, 128
    %3761 = vxpose.xlu0.b32.cont [13/16] 0.0, 128
    %3762 = vxpose.xlu0.b32.cont [14/16] 0.0, 128
    %3763 = vxpose.xlu0.b32.cont [15/16] 0.0, 128
    %3764 = vxpose.xlu0.b32.end [16/16] 0.0, 128
    %v3765 = vpop.trf.xlu0
    %v3766 = vpop.trf.xlu0
    %v3767 = vpop.trf.xlu0
    %v3768 = vpop.trf.xlu0
    %v3769 = vpop.trf.xlu0
    %v3770 = vpop.trf.xlu0
    %v3771 = vpop.trf.xlu0
    %v3772 = vpop.trf.xlu0
    %v3773 = vpop.trf.xlu0
    %v3774 = vpop.trf.xlu0
    %v3775 = vpop.trf.xlu0
    %v3776 = vpop.trf.xlu0
    %v3777 = vpop.trf.xlu0
    %v3778 = vpop.trf.xlu0
    %v3779 = vpop.trf.xlu0
    %v3780 = vpop.trf.xlu0
    %v3782 = vsel %vm416, %v3669, 0
    %v3785 = vsel %vm416, %v3637, 0
    %3787 = vmatprep.subr.mxu0 0.0
    %3788 = vmatpush1.xpose.msra.mxu0 %v3785
    %3789 = vmatprep.subr.mxu0 0.0
    %3790 = vmatpush1.xpose.msra.mxu0 0.0
    %3791 = vmatprep.subr.mxu0 0.0
    %3792 = vmatpush1.xpose.msra.mxu0 0.0
    %3793 = vmatprep.subr.mxu0 0.0
    %3794 = vmatpush1.xpose.msra.mxu0 0.0
    %3795 = vmatprep.subr.mxu0 0.0
    %3796 = vmatpush1.xpose.msra.mxu0 0.0
    %3797 = vmatprep.subr.mxu0 0.0
    %3798 = vmatpush1.xpose.msra.mxu0 0.0
    %3799 = vmatprep.subr.mxu0 0.0
    %3800 = vmatpush1.xpose.msra.mxu0 0.0
    %3801 = vmatprep.subr.mxu0 0.0
    %3802 = vmatpush1.xpose.msra.mxu0 0.0
    %3803 = vmatprep.subr.mxu0 0.0
    %3804 = vmatpush1.xpose.msra.mxu0 0.0
    %3805 = vmatprep.subr.mxu0 0.0
    %3806 = vmatpush1.xpose.msra.mxu0 0.0
    %3807 = vmatprep.subr.mxu0 0.0
    %3808 = vmatpush1.xpose.msra.mxu0 0.0
    %3809 = vmatprep.subr.mxu0 0.0
    %3810 = vmatpush1.xpose.msra.mxu0 0.0
    %3811 = vmatprep.subr.mxu0 0.0
    %3812 = vmatpush1.xpose.msra.mxu0 0.0
    %3813 = vmatprep.subr.mxu0 0.0
    %3814 = vmatpush1.xpose.msra.mxu0 0.0
    %3815 = vmatprep.subr.mxu0 0.0
    %3816 = vmatpush1.xpose.msra.mxu0 0.0
    %3817 = vmatprep.subr.mxu0 0.0
    %3818 = vmatpush1.xpose.msra.mxu0 0.0
    %3819 = vmatprep.subr.mxu0 0.0
    %3820 = vmatpush1.xpose.msra.mxu0 0.0
    %3821 = vmatprep.subr.mxu0 0.0
    %3822 = vmatpush1.xpose.msra.mxu0 0.0
    %3823 = vmatprep.subr.mxu0 0.0
    %3824 = vmatpush1.xpose.msra.mxu0 0.0
    %3825 = vmatprep.subr.mxu0 0.0
    %3826 = vmatpush1.xpose.msra.mxu0 0.0
    %3827 = vmatprep.subr.mxu0 0.0
    %3828 = vmatpush1.xpose.msra.mxu0 0.0
    %3829 = vmatprep.subr.mxu0 0.0
    %3830 = vmatpush1.xpose.msra.mxu0 0.0
    %3831 = vmatprep.subr.mxu0 0.0
    %3832 = vmatpush1.xpose.msra.mxu0 0.0
    %3833 = vmatprep.subr.mxu0 0.0
    %3834 = vmatpush1.xpose.msra.mxu0 0.0
    %3835 = vmatprep.subr.mxu0 0.0
    %3836 = vmatpush1.xpose.msra.mxu0 0.0
    %3837 = vmatprep.subr.mxu0 0.0
    %3838 = vmatpush1.xpose.msra.mxu0 0.0
    %3839 = vmatprep.subr.mxu0 0.0
    %3840 = vmatpush1.xpose.msra.mxu0 0.0
    %3841 = vmatprep.subr.mxu0 0.0
    %3842 = vmatpush1.xpose.msra.mxu0 0.0
    %3843 = vmatprep.subr.mxu0 0.0
    %3844 = vmatpush1.xpose.msra.mxu0 0.0
    %3845 = vmatprep.subr.mxu0 0.0
    %3846 = vmatpush1.xpose.msra.mxu0 0.0
    %3847 = vmatprep.subr.mxu0 0.0
    %3848 = vmatpush1.xpose.msra.mxu0 0.0
    %3849 = vmatprep.subr.mxu0 0.0
    %3850 = vmatpush1.xpose.msra.mxu0 0.0
    %3851 = vmatprep.mubr.f32.mxu0 0.0
    %3852 = vmatmul.mubr.f32.gmra.mrb[0].mxu0 %v3782
    %v3853 = vpop.f32.mrb[0].mxu0
    %v3854 = vadd.f32 0.0, %v3853
    %v3855 = vpop.f32.mrb[0].mxu0
    %3856 = vdwg.mxu0
    %v3858 = vsel %vm416, %v3701, 0
    %v3861 = vsel %vm416, %v3638, 0
    %3863 = vmatprep.subr.mxu0 0.0
    %3864 = vmatpush1.xpose.msra.mxu0 %v3861
    %3865 = vmatprep.subr.mxu0 0.0
    %3866 = vmatpush1.xpose.msra.mxu0 0.0
    %3867 = vmatprep.subr.mxu0 0.0
    %3868 = vmatpush1.xpose.msra.mxu0 0.0
    %3869 = vmatprep.subr.mxu0 0.0
    %3870 = vmatpush1.xpose.msra.mxu0 0.0
    %3871 = vmatprep.subr.mxu0 0.0
    %3872 = vmatpush1.xpose.msra.mxu0 0.0
    %3873 = vmatprep.subr.mxu0 0.0
    %3874 = vmatpush1.xpose.msra.mxu0 0.0
    %3875 = vmatprep.subr.mxu0 0.0
    %3876 = vmatpush1.xpose.msra.mxu0 0.0
    %3877 = vmatprep.subr.mxu0 0.0
    %3878 = vmatpush1.xpose.msra.mxu0 0.0
    %3879 = vmatprep.subr.mxu0 0.0
    %3880 = vmatpush1.xpose.msra.mxu0 0.0
    %3881 = vmatprep.subr.mxu0 0.0
    %3882 = vmatpush1.xpose.msra.mxu0 0.0
    %3883 = vmatprep.subr.mxu0 0.0
    %3884 = vmatpush1.xpose.msra.mxu0 0.0
    %3885 = vmatprep.subr.mxu0 0.0
    %3886 = vmatpush1.xpose.msra.mxu0 0.0
    %3887 = vmatprep.subr.mxu0 0.0
    %3888 = vmatpush1.xpose.msra.mxu0 0.0
    %3889 = vmatprep.subr.mxu0 0.0
    %3890 = vmatpush1.xpose.msra.mxu0 0.0
    %3891 = vmatprep.subr.mxu0 0.0
    %3892 = vmatpush1.xpose.msra.mxu0 0.0
    %3893 = vmatprep.subr.mxu0 0.0
    %3894 = vmatpush1.xpose.msra.mxu0 0.0
    %3895 = vmatprep.subr.mxu0 0.0
    %3896 = vmatpush1.xpose.msra.mxu0 0.0
    %3897 = vmatprep.subr.mxu0 0.0
    %3898 = vmatpush1.xpose.msra.mxu0 0.0
    %3899 = vmatprep.subr.mxu0 0.0
    %3900 = vmatpush1.xpose.msra.mxu0 0.0
    %3901 = vmatprep.subr.mxu0 0.0
    %3902 = vmatpush1.xpose.msra.mxu0 0.0
    %3903 = vmatprep.subr.mxu0 0.0
    %3904 = vmatpush1.xpose.msra.mxu0 0.0
    %3905 = vmatprep.subr.mxu0 0.0
    %3906 = vmatpush1.xpose.msra.mxu0 0.0
    %3907 = vmatprep.subr.mxu0 0.0
    %3908 = vmatpush1.xpose.msra.mxu0 0.0
    %3909 = vmatprep.subr.mxu0 0.0
    %3910 = vmatpush1.xpose.msra.mxu0 0.0
    %3911 = vmatprep.subr.mxu0 0.0
    %3912 = vmatpush1.xpose.msra.mxu0 0.0
    %3913 = vmatprep.subr.mxu0 0.0
    %3914 = vmatpush1.xpose.msra.mxu0 0.0
    %3915 = vmatprep.subr.mxu0 0.0
    %3916 = vmatpush1.xpose.msra.mxu0 0.0
    %3917 = vmatprep.subr.mxu0 0.0
    %3918 = vmatpush1.xpose.msra.mxu0 0.0
    %3919 = vmatprep.subr.mxu0 0.0
    %3920 = vmatpush1.xpose.msra.mxu0 0.0
    %3921 = vmatprep.subr.mxu0 0.0
    %3922 = vmatpush1.xpose.msra.mxu0 0.0
    %3923 = vmatprep.subr.mxu0 0.0
    %3924 = vmatpush1.xpose.msra.mxu0 0.0
    %3925 = vmatprep.subr.mxu0 0.0
    %3926 = vmatpush1.xpose.msra.mxu0 0.0
    %3927 = vmatprep.mubr.f32.mxu0 0.0
    %3928 = vmatmul.mubr.f32.gmra.mrb[0].mxu0 %v3858
    %v3929 = vpop.f32.mrb[0].mxu0
    %v3930 = vadd.f32 0.0, %v3929
    %v3931 = vpop.f32.mrb[0].mxu0
    %3932 = vdwg.mxu0
    %v3934 = vsel %vm416, %v3733, 0
    %v3937 = vsel %vm416, %v3639, 0
    %3939 = vmatprep.subr.mxu0 0.0
    %3940 = vmatpush1.xpose.msra.mxu0 %v3937
    %3941 = vmatprep.subr.mxu0 0.0
    %3942 = vmatpush1.xpose.msra.mxu0 0.0
    %3943 = vmatprep.subr.mxu0 0.0
    %3944 = vmatpush1.xpose.msra.mxu0 0.0
    %3945 = vmatprep.subr.mxu0 0.0
    %3946 = vmatpush1.xpose.msra.mxu0 0.0
    %3947 = vmatprep.subr.mxu0 0.0
    %3948 = vmatpush1.xpose.msra.mxu0 0.0
    %3949 = vmatprep.subr.mxu0 0.0
    %3950 = vmatpush1.xpose.msra.mxu0 0.0
    %3951 = vmatprep.subr.mxu0 0.0
    %3952 = vmatpush1.xpose.msra.mxu0 0.0
    %3953 = vmatprep.subr.mxu0 0.0
    %3954 = vmatpush1.xpose.msra.mxu0 0.0
    %3955 = vmatprep.subr.mxu0 0.0
    %3956 = vmatpush1.xpose.msra.mxu0 0.0
    %3957 = vmatprep.subr.mxu0 0.0
    %3958 = vmatpush1.xpose.msra.mxu0 0.0
    %3959 = vmatprep.subr.mxu0 0.0
    %3960 = vmatpush1.xpose.msra.mxu0 0.0
    %3961 = vmatprep.subr.mxu0 0.0
    %3962 = vmatpush1.xpose.msra.mxu0 0.0
    %3963 = vmatprep.subr.mxu0 0.0
    %3964 = vmatpush1.xpose.msra.mxu0 0.0
    %3965 = vmatprep.subr.mxu0 0.0
    %3966 = vmatpush1.xpose.msra.mxu0 0.0
    %3967 = vmatprep.subr.mxu0 0.0
    %3968 = vmatpush1.xpose.msra.mxu0 0.0
    %3969 = vmatprep.subr.mxu0 0.0
    %3970 = vmatpush1.xpose.msra.mxu0 0.0
    %3971 = vmatprep.subr.mxu0 0.0
    %3972 = vmatpush1.xpose.msra.mxu0 0.0
    %3973 = vmatprep.subr.mxu0 0.0
    %3974 = vmatpush1.xpose.msra.mxu0 0.0
    %3975 = vmatprep.subr.mxu0 0.0
    %3976 = vmatpush1.xpose.msra.mxu0 0.0
    %3977 = vmatprep.subr.mxu0 0.0
    %3978 = vmatpush1.xpose.msra.mxu0 0.0
    %3979 = vmatprep.subr.mxu0 0.0
    %3980 = vmatpush1.xpose.msra.mxu0 0.0
    %3981 = vmatprep.subr.mxu0 0.0
    %3982 = vmatpush1.xpose.msra.mxu0 0.0
    %3983 = vmatprep.subr.mxu0 0.0
    %3984 = vmatpush1.xpose.msra.mxu0 0.0
    %3985 = vmatprep.subr.mxu0 0.0
    %3986 = vmatpush1.xpose.msra.mxu0 0.0
    %3987 = vmatprep.subr.mxu0 0.0
    %3988 = vmatpush1.xpose.msra.mxu0 0.0
    %3989 = vmatprep.subr.mxu0 0.0
    %3990 = vmatpush1.xpose.msra.mxu0 0.0
    %3991 = vmatprep.subr.mxu0 0.0
    %3992 = vmatpush1.xpose.msra.mxu0 0.0
    %3993 = vmatprep.subr.mxu0 0.0
    %3994 = vmatpush1.xpose.msra.mxu0 0.0
    %3995 = vmatprep.subr.mxu0 0.0
    %3996 = vmatpush1.xpose.msra.mxu0 0.0
    %3997 = vmatprep.subr.mxu0 0.0
    %3998 = vmatpush1.xpose.msra.mxu0 0.0
    %3999 = vmatprep.subr.mxu0 0.0
    %4000 = vmatpush1.xpose.msra.mxu0 0.0
    %4001 = vmatprep.subr.mxu0 0.0
    %4002 = vmatpush1.xpose.msra.mxu0 0.0
    %4003 = vmatprep.mubr.f32.mxu0 0.0
    %4004 = vmatmul.mubr.f32.gmra.mrb[0].mxu0 %v3934
    %v4005 = vpop.f32.mrb[0].mxu0
    %v4006 = vadd.f32 0.0, %v4005
    %v4007 = vpop.f32.mrb[0].mxu0
    %4008 = vdwg.mxu0
    %v4010 = vsel %vm416, %v3765, 0
    %v4013 = vsel %vm416, %v3640, 0
    %4015 = vmatprep.subr.mxu0 0.0
    %4016 = vmatpush1.xpose.msra.mxu0 %v4013
    %4017 = vmatprep.subr.mxu0 0.0
    %4018 = vmatpush1.xpose.msra.mxu0 0.0
    %4019 = vmatprep.subr.mxu0 0.0
    %4020 = vmatpush1.xpose.msra.mxu0 0.0
    %4021 = vmatprep.subr.mxu0 0.0
    %4022 = vmatpush1.xpose.msra.mxu0 0.0
    %4023 = vmatprep.subr.mxu0 0.0
    %4024 = vmatpush1.xpose.msra.mxu0 0.0
    %4025 = vmatprep.subr.mxu0 0.0
    %4026 = vmatpush1.xpose.msra.mxu0 0.0
    %4027 = vmatprep.subr.mxu0 0.0
    %4028 = vmatpush1.xpose.msra.mxu0 0.0
    %4029 = vmatprep.subr.mxu0 0.0
    %4030 = vmatpush1.xpose.msra.mxu0 0.0
    %4031 = vmatprep.subr.mxu0 0.0
    %4032 = vmatpush1.xpose.msra.mxu0 0.0
    %4033 = vmatprep.subr.mxu0 0.0
    %4034 = vmatpush1.xpose.msra.mxu0 0.0
    %4035 = vmatprep.subr.mxu0 0.0
    %4036 = vmatpush1.xpose.msra.mxu0 0.0
    %4037 = vmatprep.subr.mxu0 0.0
    %4038 = vmatpush1.xpose.msra.mxu0 0.0
    %4039 = vmatprep.subr.mxu0 0.0
    %4040 = vmatpush1.xpose.msra.mxu0 0.0
    %4041 = vmatprep.subr.mxu0 0.0
    %4042 = vmatpush1.xpose.msra.mxu0 0.0
    %4043 = vmatprep.subr.mxu0 0.0
    %4044 = vmatpush1.xpose.msra.mxu0 0.0
    %4045 = vmatprep.subr.mxu0 0.0
    %4046 = vmatpush1.xpose.msra.mxu0 0.0
    %4047 = vmatprep.subr.mxu0 0.0
    %4048 = vmatpush1.xpose.msra.mxu0 0.0
    %4049 = vmatprep.subr.mxu0 0.0
    %4050 = vmatpush1.xpose.msra.mxu0 0.0
    %4051 = vmatprep.subr.mxu0 0.0
    %4052 = vmatpush1.xpose.msra.mxu0 0.0
    %4053 = vmatprep.subr.mxu0 0.0
    %4054 = vmatpush1.xpose.msra.mxu0 0.0
    %4055 = vmatprep.subr.mxu0 0.0
    %4056 = vmatpush1.xpose.msra.mxu0 0.0
    %4057 = vmatprep.subr.mxu0 0.0
    %4058 = vmatpush1.xpose.msra.mxu0 0.0
    %4059 = vmatprep.subr.mxu0 0.0
    %4060 = vmatpush1.xpose.msra.mxu0 0.0
    %4061 = vmatprep.subr.mxu0 0.0
    %4062 = vmatpush1.xpose.msra.mxu0 0.0
    %4063 = vmatprep.subr.mxu0 0.0
    %4064 = vmatpush1.xpose.msra.mxu0 0.0
    %4065 = vmatprep.subr.mxu0 0.0
    %4066 = vmatpush1.xpose.msra.mxu0 0.0
    %4067 = vmatprep.subr.mxu0 0.0
    %4068 = vmatpush1.xpose.msra.mxu0 0.0
    %4069 = vmatprep.subr.mxu0 0.0
    %4070 = vmatpush1.xpose.msra.mxu0 0.0
    %4071 = vmatprep.subr.mxu0 0.0
    %4072 = vmatpush1.xpose.msra.mxu0 0.0
    %4073 = vmatprep.subr.mxu0 0.0
    %4074 = vmatpush1.xpose.msra.mxu0 0.0
    %4075 = vmatprep.subr.mxu0 0.0
    %4076 = vmatpush1.xpose.msra.mxu0 0.0
    %4077 = vmatprep.subr.mxu0 0.0
    %4078 = vmatpush1.xpose.msra.mxu0 0.0
    %4079 = vmatprep.mubr.f32.mxu0 0.0
    %4080 = vmatmul.mubr.f32.gmra.mrb[0].mxu0 %v4010
    %v4081 = vpop.f32.mrb[0].mxu0
    %v4082 = vadd.f32 0.0, %v4081
    %v4083 = vpop.f32.mrb[0].mxu0
    %4084 = vdwg.mxu0
    %4085 = vxpose.xlu0.b32.start [1/16] %v3854, 128
    %4086 = vxpose.xlu0.b32.cont [2/16] 0.0, 128
    %4087 = vxpose.xlu0.b32.cont [3/16] 0.0, 128
    %4088 = vxpose.xlu0.b32.cont [4/16] 0.0, 128
    %4089 = vxpose.xlu0.b32.cont [5/16] 0.0, 128
    %4090 = vxpose.xlu0.b32.cont [6/16] 0.0, 128
    %4091 = vxpose.xlu0.b32.cont [7/16] 0.0, 128
    %4092 = vxpose.xlu0.b32.cont [8/16] 0.0, 128
    %4093 = vxpose.xlu0.b32.cont [9/16] 0.0, 128
    %4094 = vxpose.xlu0.b32.cont [10/16] 0.0, 128
    %4095 = vxpose.xlu0.b32.cont [11/16] 0.0, 128
    %4096 = vxpose.xlu0.b32.cont [12/16] 0.0, 128
    %4097 = vxpose.xlu0.b32.cont [13/16] 0.0, 128
    %4098 = vxpose.xlu0.b32.cont [14/16] 0.0, 128
    %4099 = vxpose.xlu0.b32.cont [15/16] 0.0, 128
    %4100 = vxpose.xlu0.b32.end [16/16] 0.0, 128
    %v4101 = vpop.trf.xlu0
    %v4102 = vpop.trf.xlu0
    %v4103 = vpop.trf.xlu0
    %v4104 = vpop.trf.xlu0
    %v4105 = vpop.trf.xlu0
    %v4106 = vpop.trf.xlu0
    %v4107 = vpop.trf.xlu0
    %v4108 = vpop.trf.xlu0
    %v4109 = vpop.trf.xlu0
    %v4110 = vpop.trf.xlu0
    %v4111 = vpop.trf.xlu0
    %v4112 = vpop.trf.xlu0
    %v4113 = vpop.trf.xlu0
    %v4114 = vpop.trf.xlu0
    %v4115 = vpop.trf.xlu0
    %v4116 = vpop.trf.xlu0
    %4117 = vxpose.xlu0.b32.start [1/16] %v3930, 128
    %4118 = vxpose.xlu0.b32.cont [2/16] 0.0, 128
    %4119 = vxpose.xlu0.b32.cont [3/16] 0.0, 128
    %4120 = vxpose.xlu0.b32.cont [4/16] 0.0, 128
    %4121 = vxpose.xlu0.b32.cont [5/16] 0.0, 128
    %4122 = vxpose.xlu0.b32.cont [6/16] 0.0, 128
    %4123 = vxpose.xlu0.b32.cont [7/16] 0.0, 128
    %4124 = vxpose.xlu0.b32.cont [8/16] 0.0, 128
    %4125 = vxpose.xlu0.b32.cont [9/16] 0.0, 128
    %4126 = vxpose.xlu0.b32.cont [10/16] 0.0, 128
    %4127 = vxpose.xlu0.b32.cont [11/16] 0.0, 128
    %4128 = vxpose.xlu0.b32.cont [12/16] 0.0, 128
    %4129 = vxpose.xlu0.b32.cont [13/16] 0.0, 128
    %4130 = vxpose.xlu0.b32.cont [14/16] 0.0, 128
    %4131 = vxpose.xlu0.b32.cont [15/16] 0.0, 128
    %4132 = vxpose.xlu0.b32.end [16/16] 0.0, 128
    %v4133 = vpop.trf.xlu0
    %v4134 = vpop.trf.xlu0
    %v4135 = vpop.trf.xlu0
    %v4136 = vpop.trf.xlu0
    %v4137 = vpop.trf.xlu0
    %v4138 = vpop.trf.xlu0
    %v4139 = vpop.trf.xlu0
    %v4140 = vpop.trf.xlu0
    %v4141 = vpop.trf.xlu0
    %v4142 = vpop.trf.xlu0
    %v4143 = vpop.trf.xlu0
    %v4144 = vpop.trf.xlu0
    %v4145 = vpop.trf.xlu0
    %v4146 = vpop.trf.xlu0
    %v4147 = vpop.trf.xlu0
    %v4148 = vpop.trf.xlu0
    %4149 = vxpose.xlu0.b32.start [1/16] %v4006, 128
    %4150 = vxpose.xlu0.b32.cont [2/16] 0.0, 128
    %4151 = vxpose.xlu0.b32.cont [3/16] 0.0, 128
    %4152 = vxpose.xlu0.b32.cont [4/16] 0.0, 128
    %4153 = vxpose.xlu0.b32.cont [5/16] 0.0, 128
    %4154 = vxpose.xlu0.b32.cont [6/16] 0.0, 128
    %4155 = vxpose.xlu0.b32.cont [7/16] 0.0, 128
    %4156 = vxpose.xlu0.b32.cont [8/16] 0.0, 128
    %4157 = vxpose.xlu0.b32.cont [9/16] 0.0, 128
    %4158 = vxpose.xlu0.b32.cont [10/16] 0.0, 128
    %4159 = vxpose.xlu0.b32.cont [11/16] 0.0, 128
    %4160 = vxpose.xlu0.b32.cont [12/16] 0.0, 128
    %4161 = vxpose.xlu0.b32.cont [13/16] 0.0, 128
    %4162 = vxpose.xlu0.b32.cont [14/16] 0.0, 128
    %4163 = vxpose.xlu0.b32.cont [15/16] 0.0, 128
    %4164 = vxpose.xlu0.b32.end [16/16] 0.0, 128
    %v4165 = vpop.trf.xlu0
    %v4166 = vpop.trf.xlu0
    %v4167 = vpop.trf.xlu0
    %v4168 = vpop.trf.xlu0
    %v4169 = vpop.trf.xlu0
    %v4170 = vpop.trf.xlu0
    %v4171 = vpop.trf.xlu0
    %v4172 = vpop.trf.xlu0
    %v4173 = vpop.trf.xlu0
    %v4174 = vpop.trf.xlu0
    %v4175 = vpop.trf.xlu0
    %v4176 = vpop.trf.xlu0
    %v4177 = vpop.trf.xlu0
    %v4178 = vpop.trf.xlu0
    %v4179 = vpop.trf.xlu0
    %v4180 = vpop.trf.xlu0
    %4181 = vxpose.xlu0.b32.start [1/16] %v4082, 128
    %4182 = vxpose.xlu0.b32.cont [2/16] 0.0, 128
    %4183 = vxpose.xlu0.b32.cont [3/16] 0.0, 128
    %4184 = vxpose.xlu0.b32.cont [4/16] 0.0, 128
    %4185 = vxpose.xlu0.b32.cont [5/16] 0.0, 128
    %4186 = vxpose.xlu0.b32.cont [6/16] 0.0, 128
    %4187 = vxpose.xlu0.b32.cont [7/16] 0.0, 128
    %4188 = vxpose.xlu0.b32.cont [8/16] 0.0, 128
    %4189 = vxpose.xlu0.b32.cont [9/16] 0.0, 128
    %4190 = vxpose.xlu0.b32.cont [10/16] 0.0, 128
    %4191 = vxpose.xlu0.b32.cont [11/16] 0.0, 128
    %4192 = vxpose.xlu0.b32.cont [12/16] 0.0, 128
    %4193 = vxpose.xlu0.b32.cont [13/16] 0.0, 128
    %4194 = vxpose.xlu0.b32.cont [14/16] 0.0, 128
    %4195 = vxpose.xlu0.b32.cont [15/16] 0.0, 128
    %4196 = vxpose.xlu0.b32.end [16/16] 0.0, 128
    %v4197 = vpop.trf.xlu0
    %v4198 = vpop.trf.xlu0
    %v4199 = vpop.trf.xlu0
    %v4200 = vpop.trf.xlu0
    %v4201 = vpop.trf.xlu0
    %v4202 = vpop.trf.xlu0
    %v4203 = vpop.trf.xlu0
    %v4204 = vpop.trf.xlu0
    %v4205 = vpop.trf.xlu0
    %v4206 = vpop.trf.xlu0
    %v4207 = vpop.trf.xlu0
    %v4208 = vpop.trf.xlu0
    %v4209 = vpop.trf.xlu0
    %v4210 = vpop.trf.xlu0
    %v4211 = vpop.trf.xlu0
    %v4212 = vpop.trf.xlu0
    %v4213 = vcombine.low %v4101, %v4165
    %v4214 = vcombine.high %v4101, %v4165
    %v4216 = vunpack.c.l.s4 1983009808
    %v4217 = vunpack.c.0.s8 %v4216
    %v4218 = vlaneseq
    %v4219 = vshrl.u32 %v4218, 7
    %v4220 = vsub.s32 %v4217, %v4219
    %v4221 = vrot.slane %v4213, %v4220
    %v4223 = vunpack.c.l.s4 1983009808
    %v4224 = vunpack.c.0.s8 %v4223
    %v4225 = vlaneseq
    %v4226 = vshrl.u32 %v4225, 7
    %v4227 = vsub.s32 %v4224, %v4226
    %v4228 = vrot.slane %v4214, %v4227
    %v4229 = vcombine.low %v4133, %v4197
    %v4230 = vcombine.high %v4133, %v4197
    %v4232 = vunpack.c.l.s4 1983009808
    %v4233 = vunpack.c.0.s8 %v4232
    %v4234 = vlaneseq
    %v4235 = vshrl.u32 %v4234, 7
    %v4236 = vsub.s32 %v4233, %v4235
    %v4237 = vrot.slane %v4229, %v4236
    %v4239 = vunpack.c.l.s4 1983009808
    %v4240 = vunpack.c.0.s8 %v4239
    %v4241 = vlaneseq
    %v4242 = vshrl.u32 %v4241, 7
    %v4243 = vsub.s32 %v4240, %v4242
    %v4244 = vrot.slane %v4230, %v4243
    %v4245 = vcombine.low %v4221, %v4237
    %v4246 = vcombine.high %v4221, %v4237
    %v4248 = vunpack.c.l.s4 1934713408
    %v4249 = vunpack.c.0.s8 %v4248
    %v4250 = vlaneseq
    %v4251 = vshrl.u32 %v4250, 7
    %v4252 = vsub.s32 %v4249, %v4251
    %v4253 = vrot.slane %v4245, %v4252
    %v4255 = vunpack.c.l.s4 1934713408
    %v4256 = vunpack.c.0.s8 %v4255
    %v4257 = vlaneseq
    %v4258 = vshrl.u32 %v4257, 7
    %v4259 = vsub.s32 %v4256, %v4258
    %v4260 = vrot.slane %v4246, %v4259
    %v4261 = vcombine.low %v4228, %v4244
    %v4262 = vcombine.high %v4228, %v4244
    %v4264 = vunpack.c.l.s4 1934713408
    %v4265 = vunpack.c.0.s8 %v4264
    %v4266 = vlaneseq
    %v4267 = vshrl.u32 %v4266, 7
    %v4268 = vsub.s32 %v4265, %v4267
    %v4269 = vrot.slane %v4261, %v4268
    %v4271 = vunpack.c.l.s4 1934713408
    %v4272 = vunpack.c.0.s8 %v4271
    %v4273 = vlaneseq
    %v4274 = vshrl.u32 %v4273, 7
    %v4275 = vsub.s32 %v4272, %v4274
    %v4276 = vrot.slane %v4262, %v4275
    %v4277 = vcombine.high %v4253, 0.0
    %v4278 = vcombine.high %v4260, 0.0
    %v4279 = vcombine.high %v4269, 0.0
    %v4280 = vcombine.high %v4276, 0.0
    %v4281 = vcombine.low %v4253, %v4260
    %v4283 = vunpack.c.l.s4 1983009808
    %v4284 = vunpack.c.0.s8 %v4283
    %v4285 = vlaneseq
    %v4286 = vshrl.u32 %v4285, 7
    %v4287 = vsub.s32 %v4284, %v4286
    %v4288 = vrot.slane %v4281, %v4287
    %v4289 = vcombine.low %v4277, %v4278
    %v4291 = vunpack.c.l.s4 1983009808
    %v4292 = vunpack.c.0.s8 %v4291
    %v4293 = vlaneseq
    %v4294 = vshrl.u32 %v4293, 7
    %v4295 = vsub.s32 %v4292, %v4294
    %v4296 = vrot.slane %v4289, %v4295
    %v4297 = vcombine.low %v4269, %v4276
    %v4299 = vunpack.c.l.s4 1983009808
    %v4300 = vunpack.c.0.s8 %v4299
    %v4301 = vlaneseq
    %v4302 = vshrl.u32 %v4301, 7
    %v4303 = vsub.s32 %v4300, %v4302
    %v4304 = vrot.slane %v4297, %v4303
    %v4305 = vcombine.low %v4279, %v4280
    %v4307 = vunpack.c.l.s4 1983009808
    %v4308 = vunpack.c.0.s8 %v4307
    %v4309 = vlaneseq
    %v4310 = vshrl.u32 %v4309, 7
    %v4311 = vsub.s32 %v4308, %v4310
    %v4312 = vrot.slane %v4305, %v4311
    %v4313 = vcombine.low %v4288, %v4296
    %v4314 = vcombine.high %v4288, %v4296
    %v4316 = vunpack.c.l.s4 1934713408
    %v4317 = vunpack.c.0.s8 %v4316
    %v4318 = vlaneseq
    %v4319 = vshrl.u32 %v4318, 7
    %v4320 = vsub.s32 %v4317, %v4319
    %v4321 = vrot.slane %v4313, %v4320
    %v4323 = vunpack.c.l.s4 1934713408
    %v4324 = vunpack.c.0.s8 %v4323
    %v4325 = vlaneseq
    %v4326 = vshrl.u32 %v4325, 7
    %v4327 = vsub.s32 %v4324, %v4326
    %v4328 = vrot.slane %v4314, %v4327
    %v4329 = vcombine.low %v4304, %v4312
    %v4330 = vcombine.high %v4304, %v4312
    %v4332 = vunpack.c.l.s4 1934713408
    %v4333 = vunpack.c.0.s8 %v4332
    %v4334 = vlaneseq
    %v4335 = vshrl.u32 %v4334, 7
    %v4336 = vsub.s32 %v4333, %v4335
    %v4337 = vrot.slane %v4329, %v4336
    %v4339 = vunpack.c.l.s4 1934713408
    %v4340 = vunpack.c.0.s8 %v4339
    %v4341 = vlaneseq
    %v4342 = vshrl.u32 %v4341, 7
    %v4343 = vsub.s32 %v4340, %v4342
    %v4344 = vrot.slane %v4330, %v4343
    %v4345 = vcombine.low %v4321, %v4337
    %v4346 = vcombine.high %v4321, %v4337
    %v4347 = vcombine.low %v4328, %v4344
    %v4348 = vcombine.high %v4328, %v4344
    %4350 = vrot.lane.b32.xlu0 %v4346, 8
    %v4351 = vpop.permute.xlu0 %4350
    %4354 = vrot.lane.b32.xlu0 %v4347, 16
    %v4355 = vpop.permute.xlu0 %4354
    %4358 = vrot.lane.b32.xlu0 %v4348, 24
    %v4359 = vpop.permute.xlu0 %4358
    %v4361 = vsel %vm416, %v4345, %v4351
    %v4362 = vsel %vm1470, %v4361, %v4355
    %v4363 = vsel %vm1472, %v4362, %v4359
    %4365 = vrot.lane.b32.xlu0 %v3154, 120
    %v4366 = vpop.permute.xlu0 %4365
    %4367 = vrot.lane.b32.xlu0 %v3154, 112
    %v4368 = vpop.permute.xlu0 %4367
    %4369 = vrot.lane.b32.xlu0 %v3154, 104
    %v4370 = vpop.permute.xlu0 %4369
    %4372 = vrot.lane.b32.xlu0 %v3150, 120
    %v4373 = vpop.permute.xlu0 %4372
    %4374 = vrot.lane.b32.xlu0 %v3150, 112
    %v4375 = vpop.permute.xlu0 %4374
    %4376 = vrot.lane.b32.xlu0 %v3150, 104
    %v4377 = vpop.permute.xlu0 %4376
    %4378 = vrot.lane.b32.xlu0 %v3150, 96
    %v4379 = vpop.permute.xlu0 %4378
    %4380 = vrot.lane.b32.xlu0 %v4373, 96
    %v4381 = vpop.permute.xlu0 %4380
    %4382 = vrot.lane.b32.xlu0 %v4375, 96
    %v4383 = vpop.permute.xlu0 %4382
    %4384 = vrot.lane.b32.xlu0 %v4377, 96
    %v4385 = vpop.permute.xlu0 %4384
    %4390 = vxpose.xlu0.b32.start [1/16] %v4379, 128
    %4391 = vxpose.xlu0.b32.cont [2/16] 0.0, 128
    %4392 = vxpose.xlu0.b32.cont [3/16] 0.0, 128
    %4393 = vxpose.xlu0.b32.cont [4/16] 0.0, 128
    %4394 = vxpose.xlu0.b32.cont [5/16] 0.0, 128
    %4395 = vxpose.xlu0.b32.cont [6/16] 0.0, 128
    %4396 = vxpose.xlu0.b32.cont [7/16] 0.0, 128
    %4397 = vxpose.xlu0.b32.cont [8/16] 0.0, 128
    %4398 = vxpose.xlu0.b32.cont [9/16] 0.0, 128
    %4399 = vxpose.xlu0.b32.cont [10/16] 0.0, 128
    %4400 = vxpose.xlu0.b32.cont [11/16] 0.0, 128
    %4401 = vxpose.xlu0.b32.cont [12/16] 0.0, 128
    %4402 = vxpose.xlu0.b32.cont [13/16] 0.0, 128
    %4403 = vxpose.xlu0.b32.cont [14/16] 0.0, 128
    %4404 = vxpose.xlu0.b32.cont [15/16] 0.0, 128
    %4405 = vxpose.xlu0.b32.end [16/16] 0.0, 128
    %v4406 = vpop.trf.xlu0
    %v4407 = vpop.trf.xlu0
    %v4408 = vpop.trf.xlu0
    %v4409 = vpop.trf.xlu0
    %v4410 = vpop.trf.xlu0
    %v4411 = vpop.trf.xlu0
    %v4412 = vpop.trf.xlu0
    %v4413 = vpop.trf.xlu0
    %v4414 = vpop.trf.xlu0
    %v4415 = vpop.trf.xlu0
    %v4416 = vpop.trf.xlu0
    %v4417 = vpop.trf.xlu0
    %v4418 = vpop.trf.xlu0
    %v4419 = vpop.trf.xlu0
    %v4420 = vpop.trf.xlu0
    %v4421 = vpop.trf.xlu0
    %4422 = vxpose.xlu0.b32.start [1/16] %v4381, 128
    %4423 = vxpose.xlu0.b32.cont [2/16] 0.0, 128
    %4424 = vxpose.xlu0.b32.cont [3/16] 0.0, 128
    %4425 = vxpose.xlu0.b32.cont [4/16] 0.0, 128
    %4426 = vxpose.xlu0.b32.cont [5/16] 0.0, 128
    %4427 = vxpose.xlu0.b32.cont [6/16] 0.0, 128
    %4428 = vxpose.xlu0.b32.cont [7/16] 0.0, 128
    %4429 = vxpose.xlu0.b32.cont [8/16] 0.0, 128
    %4430 = vxpose.xlu0.b32.cont [9/16] 0.0, 128
    %4431 = vxpose.xlu0.b32.cont [10/16] 0.0, 128
    %4432 = vxpose.xlu0.b32.cont [11/16] 0.0, 128
    %4433 = vxpose.xlu0.b32.cont [12/16] 0.0, 128
    %4434 = vxpose.xlu0.b32.cont [13/16] 0.0, 128
    %4435 = vxpose.xlu0.b32.cont [14/16] 0.0, 128
    %4436 = vxpose.xlu0.b32.cont [15/16] 0.0, 128
    %4437 = vxpose.xlu0.b32.end [16/16] 0.0, 128
    %v4438 = vpop.trf.xlu0
    %v4439 = vpop.trf.xlu0
    %v4440 = vpop.trf.xlu0
    %v4441 = vpop.trf.xlu0
    %v4442 = vpop.trf.xlu0
    %v4443 = vpop.trf.xlu0
    %v4444 = vpop.trf.xlu0
    %v4445 = vpop.trf.xlu0
    %v4446 = vpop.trf.xlu0
    %v4447 = vpop.trf.xlu0
    %v4448 = vpop.trf.xlu0
    %v4449 = vpop.trf.xlu0
    %v4450 = vpop.trf.xlu0
    %v4451 = vpop.trf.xlu0
    %v4452 = vpop.trf.xlu0
    %v4453 = vpop.trf.xlu0
    %4454 = vxpose.xlu0.b32.start [1/16] %v4383, 128
    %4455 = vxpose.xlu0.b32.cont [2/16] 0.0, 128
    %4456 = vxpose.xlu0.b32.cont [3/16] 0.0, 128
    %4457 = vxpose.xlu0.b32.cont [4/16] 0.0, 128
    %4458 = vxpose.xlu0.b32.cont [5/16] 0.0, 128
    %4459 = vxpose.xlu0.b32.cont [6/16] 0.0, 128
    %4460 = vxpose.xlu0.b32.cont [7/16] 0.0, 128
    %4461 = vxpose.xlu0.b32.cont [8/16] 0.0, 128
    %4462 = vxpose.xlu0.b32.cont [9/16] 0.0, 128
    %4463 = vxpose.xlu0.b32.cont [10/16] 0.0, 128
    %4464 = vxpose.xlu0.b32.cont [11/16] 0.0, 128
    %4465 = vxpose.xlu0.b32.cont [12/16] 0.0, 128
    %4466 = vxpose.xlu0.b32.cont [13/16] 0.0, 128
    %4467 = vxpose.xlu0.b32.cont [14/16] 0.0, 128
    %4468 = vxpose.xlu0.b32.cont [15/16] 0.0, 128
    %4469 = vxpose.xlu0.b32.end [16/16] 0.0, 128
    %v4470 = vpop.trf.xlu0
    %v4471 = vpop.trf.xlu0
    %v4472 = vpop.trf.xlu0
    %v4473 = vpop.trf.xlu0
    %v4474 = vpop.trf.xlu0
    %v4475 = vpop.trf.xlu0
    %v4476 = vpop.trf.xlu0
    %v4477 = vpop.trf.xlu0
    %v4478 = vpop.trf.xlu0
    %v4479 = vpop.trf.xlu0
    %v4480 = vpop.trf.xlu0
    %v4481 = vpop.trf.xlu0
    %v4482 = vpop.trf.xlu0
    %v4483 = vpop.trf.xlu0
    %v4484 = vpop.trf.xlu0
    %v4485 = vpop.trf.xlu0
    %4486 = vxpose.xlu0.b32.start [1/16] %v4385, 128
    %4487 = vxpose.xlu0.b32.cont [2/16] 0.0, 128
    %4488 = vxpose.xlu0.b32.cont [3/16] 0.0, 128
    %4489 = vxpose.xlu0.b32.cont [4/16] 0.0, 128
    %4490 = vxpose.xlu0.b32.cont [5/16] 0.0, 128
    %4491 = vxpose.xlu0.b32.cont [6/16] 0.0, 128
    %4492 = vxpose.xlu0.b32.cont [7/16] 0.0, 128
    %4493 = vxpose.xlu0.b32.cont [8/16] 0.0, 128
    %4494 = vxpose.xlu0.b32.cont [9/16] 0.0, 128
    %4495 = vxpose.xlu0.b32.cont [10/16] 0.0, 128
    %4496 = vxpose.xlu0.b32.cont [11/16] 0.0, 128
    %4497 = vxpose.xlu0.b32.cont [12/16] 0.0, 128
    %4498 = vxpose.xlu0.b32.cont [13/16] 0.0, 128
    %4499 = vxpose.xlu0.b32.cont [14/16] 0.0, 128
    %4500 = vxpose.xlu0.b32.cont [15/16] 0.0, 128
    %4501 = vxpose.xlu0.b32.end [16/16] 0.0, 128
    %v4502 = vpop.trf.xlu0
    %v4503 = vpop.trf.xlu0
    %v4504 = vpop.trf.xlu0
    %v4505 = vpop.trf.xlu0
    %v4506 = vpop.trf.xlu0
    %v4507 = vpop.trf.xlu0
    %v4508 = vpop.trf.xlu0
    %v4509 = vpop.trf.xlu0
    %v4510 = vpop.trf.xlu0
    %v4511 = vpop.trf.xlu0
    %v4512 = vpop.trf.xlu0
    %v4513 = vpop.trf.xlu0
    %v4514 = vpop.trf.xlu0
    %v4515 = vpop.trf.xlu0
    %v4516 = vpop.trf.xlu0
    %v4517 = vpop.trf.xlu0
    %v4518 = vsel %vm416, %v3154, 0
    %4520 = vmatprep.subr.mxu0 0.0
    %4521 = vmatpush1.msra.mxu0 %v4406
    %4522 = vmatprep.subr.mxu0 0.0
    %4523 = vmatpush1.msra.mxu0 0.0
    %4524 = vmatprep.subr.mxu0 0.0
    %4525 = vmatpush1.msra.mxu0 0.0
    %4526 = vmatprep.subr.mxu0 0.0
    %4527 = vmatpush1.msra.mxu0 0.0
    %4528 = vmatprep.subr.mxu0 0.0
    %4529 = vmatpush1.msra.mxu0 0.0
    %4530 = vmatprep.subr.mxu0 0.0
    %4531 = vmatpush1.msra.mxu0 0.0
    %4532 = vmatprep.subr.mxu0 0.0
    %4533 = vmatpush1.msra.mxu0 0.0
    %4534 = vmatprep.subr.mxu0 0.0
    %4535 = vmatpush1.msra.mxu0 0.0
    %4536 = vmatprep.subr.mxu0 0.0
    %4537 = vmatpush1.msra.mxu0 0.0
    %4538 = vmatprep.subr.mxu0 0.0
    %4539 = vmatpush1.msra.mxu0 0.0
    %4540 = vmatprep.subr.mxu0 0.0
    %4541 = vmatpush1.msra.mxu0 0.0
    %4542 = vmatprep.subr.mxu0 0.0
    %4543 = vmatpush1.msra.mxu0 0.0
    %4544 = vmatprep.subr.mxu0 0.0
    %4545 = vmatpush1.msra.mxu0 0.0
    %4546 = vmatprep.subr.mxu0 0.0
    %4547 = vmatpush1.msra.mxu0 0.0
    %4548 = vmatprep.subr.mxu0 0.0
    %4549 = vmatpush1.msra.mxu0 0.0
    %4550 = vmatprep.subr.mxu0 0.0
    %4551 = vmatpush1.msra.mxu0 0.0
    %4552 = vmatprep.subr.mxu0 0.0
    %4553 = vmatpush1.msra.mxu0 0.0
    %4554 = vmatprep.subr.mxu0 0.0
    %4555 = vmatpush1.msra.mxu0 0.0
    %4556 = vmatprep.subr.mxu0 0.0
    %4557 = vmatpush1.msra.mxu0 0.0
    %4558 = vmatprep.subr.mxu0 0.0
    %4559 = vmatpush1.msra.mxu0 0.0
    %4560 = vmatprep.subr.mxu0 0.0
    %4561 = vmatpush1.msra.mxu0 0.0
    %4562 = vmatprep.subr.mxu0 0.0
    %4563 = vmatpush1.msra.mxu0 0.0
    %4564 = vmatprep.subr.mxu0 0.0
    %4565 = vmatpush1.msra.mxu0 0.0
    %4566 = vmatprep.subr.mxu0 0.0
    %4567 = vmatpush1.msra.mxu0 0.0
    %4568 = vmatprep.subr.mxu0 0.0
    %4569 = vmatpush1.msra.mxu0 0.0
    %4570 = vmatprep.subr.mxu0 0.0
    %4571 = vmatpush1.msra.mxu0 0.0
    %4572 = vmatprep.subr.mxu0 0.0
    %4573 = vmatpush1.msra.mxu0 0.0
    %4574 = vmatprep.subr.mxu0 0.0
    %4575 = vmatpush1.msra.mxu0 0.0
    %4576 = vmatprep.subr.mxu0 0.0
    %4577 = vmatpush1.msra.mxu0 0.0
    %4578 = vmatprep.subr.mxu0 0.0
    %4579 = vmatpush1.msra.mxu0 0.0
    %4580 = vmatprep.subr.mxu0 0.0
    %4581 = vmatpush1.msra.mxu0 0.0
    %4582 = vmatprep.subr.mxu0 0.0
    %4583 = vmatpush1.msra.mxu0 0.0
    %4584 = vmatprep.mubr.f32.mxu0 0.0
    %4585 = vmatmul.mubr.f32.gmra.mrb[0].mxu0 %v4518
    %v4586 = vpop.f32.mrb[0].mxu0
    %v4587 = vadd.f32 %v166, %v4586
    %v4588 = vpop.f32.mrb[0].mxu0
    %4589 = vdwg.mxu0
    %v4590 = vsel %vm416, %v4366, 0
    %4592 = vmatprep.subr.mxu0 0.0
    %4593 = vmatpush1.msra.mxu0 %v4438
    %4594 = vmatprep.subr.mxu0 0.0
    %4595 = vmatpush1.msra.mxu0 0.0
    %4596 = vmatprep.subr.mxu0 0.0
    %4597 = vmatpush1.msra.mxu0 0.0
    %4598 = vmatprep.subr.mxu0 0.0
    %4599 = vmatpush1.msra.mxu0 0.0
    %4600 = vmatprep.subr.mxu0 0.0
    %4601 = vmatpush1.msra.mxu0 0.0
    %4602 = vmatprep.subr.mxu0 0.0
    %4603 = vmatpush1.msra.mxu0 0.0
    %4604 = vmatprep.subr.mxu0 0.0
    %4605 = vmatpush1.msra.mxu0 0.0
    %4606 = vmatprep.subr.mxu0 0.0
    %4607 = vmatpush1.msra.mxu0 0.0
    %4608 = vmatprep.subr.mxu0 0.0
    %4609 = vmatpush1.msra.mxu0 0.0
    %4610 = vmatprep.subr.mxu0 0.0
    %4611 = vmatpush1.msra.mxu0 0.0
    %4612 = vmatprep.subr.mxu0 0.0
    %4613 = vmatpush1.msra.mxu0 0.0
    %4614 = vmatprep.subr.mxu0 0.0
    %4615 = vmatpush1.msra.mxu0 0.0
    %4616 = vmatprep.subr.mxu0 0.0
    %4617 = vmatpush1.msra.mxu0 0.0
    %4618 = vmatprep.subr.mxu0 0.0
    %4619 = vmatpush1.msra.mxu0 0.0
    %4620 = vmatprep.subr.mxu0 0.0
    %4621 = vmatpush1.msra.mxu0 0.0
    %4622 = vmatprep.subr.mxu0 0.0
    %4623 = vmatpush1.msra.mxu0 0.0
    %4624 = vmatprep.subr.mxu0 0.0
    %4625 = vmatpush1.msra.mxu0 0.0
    %4626 = vmatprep.subr.mxu0 0.0
    %4627 = vmatpush1.msra.mxu0 0.0
    %4628 = vmatprep.subr.mxu0 0.0
    %4629 = vmatpush1.msra.mxu0 0.0
    %4630 = vmatprep.subr.mxu0 0.0
    %4631 = vmatpush1.msra.mxu0 0.0
    %4632 = vmatprep.subr.mxu0 0.0
    %4633 = vmatpush1.msra.mxu0 0.0
    %4634 = vmatprep.subr.mxu0 0.0
    %4635 = vmatpush1.msra.mxu0 0.0
    %4636 = vmatprep.subr.mxu0 0.0
    %4637 = vmatpush1.msra.mxu0 0.0
    %4638 = vmatprep.subr.mxu0 0.0
    %4639 = vmatpush1.msra.mxu0 0.0
    %4640 = vmatprep.subr.mxu0 0.0
    %4641 = vmatpush1.msra.mxu0 0.0
    %4642 = vmatprep.subr.mxu0 0.0
    %4643 = vmatpush1.msra.mxu0 0.0
    %4644 = vmatprep.subr.mxu0 0.0
    %4645 = vmatpush1.msra.mxu0 0.0
    %4646 = vmatprep.subr.mxu0 0.0
    %4647 = vmatpush1.msra.mxu0 0.0
    %4648 = vmatprep.subr.mxu0 0.0
    %4649 = vmatpush1.msra.mxu0 0.0
    %4650 = vmatprep.subr.mxu0 0.0
    %4651 = vmatpush1.msra.mxu0 0.0
    %4652 = vmatprep.subr.mxu0 0.0
    %4653 = vmatpush1.msra.mxu0 0.0
    %4654 = vmatprep.subr.mxu0 0.0
    %4655 = vmatpush1.msra.mxu0 0.0
    %4656 = vmatprep.mubr.f32.mxu0 0.0
    %4657 = vmatmul.mubr.f32.gmra.mrb[0].mxu0 %v4590
    %v4658 = vpop.f32.mrb[0].mxu0
    %v4659 = vadd.f32 %v166, %v4658
    %v4660 = vpop.f32.mrb[0].mxu0
    %4661 = vdwg.mxu0
    %v4662 = vsel %vm416, %v4368, 0
    %4664 = vmatprep.subr.mxu0 0.0
    %4665 = vmatpush1.msra.mxu0 %v4470
    %4666 = vmatprep.subr.mxu0 0.0
    %4667 = vmatpush1.msra.mxu0 0.0
    %4668 = vmatprep.subr.mxu0 0.0
    %4669 = vmatpush1.msra.mxu0 0.0
    %4670 = vmatprep.subr.mxu0 0.0
    %4671 = vmatpush1.msra.mxu0 0.0
    %4672 = vmatprep.subr.mxu0 0.0
    %4673 = vmatpush1.msra.mxu0 0.0
    %4674 = vmatprep.subr.mxu0 0.0
    %4675 = vmatpush1.msra.mxu0 0.0
    %4676 = vmatprep.subr.mxu0 0.0
    %4677 = vmatpush1.msra.mxu0 0.0
    %4678 = vmatprep.subr.mxu0 0.0
    %4679 = vmatpush1.msra.mxu0 0.0
    %4680 = vmatprep.subr.mxu0 0.0
    %4681 = vmatpush1.msra.mxu0 0.0
    %4682 = vmatprep.subr.mxu0 0.0
    %4683 = vmatpush1.msra.mxu0 0.0
    %4684 = vmatprep.subr.mxu0 0.0
    %4685 = vmatpush1.msra.mxu0 0.0
    %4686 = vmatprep.subr.mxu0 0.0
    %4687 = vmatpush1.msra.mxu0 0.0
    %4688 = vmatprep.subr.mxu0 0.0
    %4689 = vmatpush1.msra.mxu0 0.0
    %4690 = vmatprep.subr.mxu0 0.0
    %4691 = vmatpush1.msra.mxu0 0.0
    %4692 = vmatprep.subr.mxu0 0.0
    %4693 = vmatpush1.msra.mxu0 0.0
    %4694 = vmatprep.subr.mxu0 0.0
    %4695 = vmatpush1.msra.mxu0 0.0
    %4696 = vmatprep.subr.mxu0 0.0
    %4697 = vmatpush1.msra.mxu0 0.0
    %4698 = vmatprep.subr.mxu0 0.0
    %4699 = vmatpush1.msra.mxu0 0.0
    %4700 = vmatprep.subr.mxu0 0.0
    %4701 = vmatpush1.msra.mxu0 0.0
    %4702 = vmatprep.subr.mxu0 0.0
    %4703 = vmatpush1.msra.mxu0 0.0
    %4704 = vmatprep.subr.mxu0 0.0
    %4705 = vmatpush1.msra.mxu0 0.0
    %4706 = vmatprep.subr.mxu0 0.0
    %4707 = vmatpush1.msra.mxu0 0.0
    %4708 = vmatprep.subr.mxu0 0.0
    %4709 = vmatpush1.msra.mxu0 0.0
    %4710 = vmatprep.subr.mxu0 0.0
    %4711 = vmatpush1.msra.mxu0 0.0
    %4712 = vmatprep.subr.mxu0 0.0
    %4713 = vmatpush1.msra.mxu0 0.0
    %4714 = vmatprep.subr.mxu0 0.0
    %4715 = vmatpush1.msra.mxu0 0.0
    %4716 = vmatprep.subr.mxu0 0.0
    %4717 = vmatpush1.msra.mxu0 0.0
    %4718 = vmatprep.subr.mxu0 0.0
    %4719 = vmatpush1.msra.mxu0 0.0
    %4720 = vmatprep.subr.mxu0 0.0
    %4721 = vmatpush1.msra.mxu0 0.0
    %4722 = vmatprep.subr.mxu0 0.0
    %4723 = vmatpush1.msra.mxu0 0.0
    %4724 = vmatprep.subr.mxu0 0.0
    %4725 = vmatpush1.msra.mxu0 0.0
    %4726 = vmatprep.subr.mxu0 0.0
    %4727 = vmatpush1.msra.mxu0 0.0
    %4728 = vmatprep.mubr.f32.mxu0 0.0
    %4729 = vmatmul.mubr.f32.gmra.mrb[0].mxu0 %v4662
    %v4730 = vpop.f32.mrb[0].mxu0
    %v4731 = vadd.f32 %v166, %v4730
    %v4732 = vpop.f32.mrb[0].mxu0
    %4733 = vdwg.mxu0
    %v4734 = vsel %vm416, %v4370, 0
    %4736 = vmatprep.subr.mxu0 0.0
    %4737 = vmatpush1.msra.mxu0 %v4502
    %4738 = vmatprep.subr.mxu0 0.0
    %4739 = vmatpush1.msra.mxu0 0.0
    %4740 = vmatprep.subr.mxu0 0.0
    %4741 = vmatpush1.msra.mxu0 0.0
    %4742 = vmatprep.subr.mxu0 0.0
    %4743 = vmatpush1.msra.mxu0 0.0
    %4744 = vmatprep.subr.mxu0 0.0
    %4745 = vmatpush1.msra.mxu0 0.0
    %4746 = vmatprep.subr.mxu0 0.0
    %4747 = vmatpush1.msra.mxu0 0.0
    %4748 = vmatprep.subr.mxu0 0.0
    %4749 = vmatpush1.msra.mxu0 0.0
    %4750 = vmatprep.subr.mxu0 0.0
    %4751 = vmatpush1.msra.mxu0 0.0
    %4752 = vmatprep.subr.mxu0 0.0
    %4753 = vmatpush1.msra.mxu0 0.0
    %4754 = vmatprep.subr.mxu0 0.0
    %4755 = vmatpush1.msra.mxu0 0.0
    %4756 = vmatprep.subr.mxu0 0.0
    %4757 = vmatpush1.msra.mxu0 0.0
    %4758 = vmatprep.subr.mxu0 0.0
    %4759 = vmatpush1.msra.mxu0 0.0
    %4760 = vmatprep.subr.mxu0 0.0
    %4761 = vmatpush1.msra.mxu0 0.0
    %4762 = vmatprep.subr.mxu0 0.0
    %4763 = vmatpush1.msra.mxu0 0.0
    %4764 = vmatprep.subr.mxu0 0.0
    %4765 = vmatpush1.msra.mxu0 0.0
    %4766 = vmatprep.subr.mxu0 0.0
    %4767 = vmatpush1.msra.mxu0 0.0
    %4768 = vmatprep.subr.mxu0 0.0
    %4769 = vmatpush1.msra.mxu0 0.0
    %4770 = vmatprep.subr.mxu0 0.0
    %4771 = vmatpush1.msra.mxu0 0.0
    %4772 = vmatprep.subr.mxu0 0.0
    %4773 = vmatpush1.msra.mxu0 0.0
    %4774 = vmatprep.subr.mxu0 0.0
    %4775 = vmatpush1.msra.mxu0 0.0
    %4776 = vmatprep.subr.mxu0 0.0
    %4777 = vmatpush1.msra.mxu0 0.0
    %4778 = vmatprep.subr.mxu0 0.0
    %4779 = vmatpush1.msra.mxu0 0.0
    %4780 = vmatprep.subr.mxu0 0.0
    %4781 = vmatpush1.msra.mxu0 0.0
    %4782 = vmatprep.subr.mxu0 0.0
    %4783 = vmatpush1.msra.mxu0 0.0
    %4784 = vmatprep.subr.mxu0 0.0
    %4785 = vmatpush1.msra.mxu0 0.0
    %4786 = vmatprep.subr.mxu0 0.0
    %4787 = vmatpush1.msra.mxu0 0.0
    %4788 = vmatprep.subr.mxu0 0.0
    %4789 = vmatpush1.msra.mxu0 0.0
    %4790 = vmatprep.subr.mxu0 0.0
    %4791 = vmatpush1.msra.mxu0 0.0
    %4792 = vmatprep.subr.mxu0 0.0
    %4793 = vmatpush1.msra.mxu0 0.0
    %4794 = vmatprep.subr.mxu0 0.0
    %4795 = vmatpush1.msra.mxu0 0.0
    %4796 = vmatprep.subr.mxu0 0.0
    %4797 = vmatpush1.msra.mxu0 0.0
    %4798 = vmatprep.subr.mxu0 0.0
    %4799 = vmatpush1.msra.mxu0 0.0
    %4800 = vmatprep.mubr.f32.mxu0 0.0
    %4801 = vmatmul.mubr.f32.gmra.mrb[0].mxu0 %v4734
    %v4802 = vpop.f32.mrb[0].mxu0
    %v4803 = vadd.f32 %v166, %v4802
    %v4804 = vpop.f32.mrb[0].mxu0
    %4805 = vdwg.mxu0
    %v4806 = vsel %vm416, %v4587, -inf
    %4807 = vmax.xlane.f32.xlu0 %v4806
    %v4808 = vpop.xlane.xlu0 %4807
    %v4809 = vsel %vm416, %v4659, -inf
    %4810 = vmax.xlane.f32.xlu0 %v4809
    %v4811 = vpop.xlane.xlu0 %4810
    %v4812 = vsel %vm416, %v4731, -inf
    %4813 = vmax.xlane.f32.xlu0 %v4812
    %v4814 = vpop.xlane.xlu0 %4813
    %v4815 = vsel %vm416, %v4803, -inf
    %4816 = vmax.xlane.f32.xlu0 %v4815
    %v4817 = vpop.xlane.xlu0 %4816
    %v4818 = vsub.f32 %v4587, %v4808
    %v4819 = vsub.f32 %v4659, %v4811
    %v4820 = vsub.f32 %v4731, %v4814
    %v4821 = vsub.f32 %v4803, %v4817
    %v4822 = vmul.f32 %v4818, 1.442695
    %v4823 = vpow.pop %v4822
    %v4824 = vmul.f32 %v4819, 1.442695
    %v4825 = vpow.pop %v4824
    %v4826 = vmul.f32 %v4820, 1.442695
    %v4827 = vpow.pop %v4826
    %v4828 = vmul.f32 %v4821, 1.442695
    %v4829 = vpow.pop %v4828
    %v4830 = vsel %vm416, %v4823, 0.0
    %4831 = vadd.xlane.f32.xlu0 %v4830
    %v4832 = vpop.xlane.xlu0 %4831
    %v4833 = vsel %vm416, %v4825, 0.0
    %4834 = vadd.xlane.f32.xlu0 %v4833
    %v4835 = vpop.xlane.xlu0 %4834
    %v4836 = vsel %vm416, %v4827, 0.0
    %4837 = vadd.xlane.f32.xlu0 %v4836
    %v4838 = vpop.xlane.xlu0 %4837
    %v4839 = vsel %vm416, %v4829, 0.0
    %4840 = vadd.xlane.f32.xlu0 %v4839
    %v4841 = vpop.xlane.xlu0 %4840
    %v4842 = vrcp.pop %v4832
    %v4843 = vrcp.pop %v4835
    %v4844 = vrcp.pop %v4838
    %v4845 = vrcp.pop %v4841
    %v4846 = vmul.f32 %v4823, %v4842
    %v4847 = vmul.f32 %v4825, %v4843
    %v4848 = vmul.f32 %v4827, %v4844
    %v4849 = vmul.f32 %v4829, %v4845
    %4850 = vrot.lane.b32.xlu0 %v3150, 64
    %v4851 = vpop.permute.xlu0 %4850
    %4852 = vrot.lane.b32.xlu0 %v4373, 64
    %v4853 = vpop.permute.xlu0 %4852
    %4854 = vrot.lane.b32.xlu0 %v4375, 64
    %v4855 = vpop.permute.xlu0 %4854
    %4856 = vrot.lane.b32.xlu0 %v4377, 64
    %v4857 = vpop.permute.xlu0 %4856
    %4862 = vxpose.xlu0.b32.start [1/16] %v4851, 128
    %4863 = vxpose.xlu0.b32.cont [2/16] 0.0, 128
    %4864 = vxpose.xlu0.b32.cont [3/16] 0.0, 128
    %4865 = vxpose.xlu0.b32.cont [4/16] 0.0, 128
    %4866 = vxpose.xlu0.b32.cont [5/16] 0.0, 128
    %4867 = vxpose.xlu0.b32.cont [6/16] 0.0, 128
    %4868 = vxpose.xlu0.b32.cont [7/16] 0.0, 128
    %4869 = vxpose.xlu0.b32.cont [8/16] 0.0, 128
    %4870 = vxpose.xlu0.b32.cont [9/16] 0.0, 128
    %4871 = vxpose.xlu0.b32.cont [10/16] 0.0, 128
    %4872 = vxpose.xlu0.b32.cont [11/16] 0.0, 128
    %4873 = vxpose.xlu0.b32.cont [12/16] 0.0, 128
    %4874 = vxpose.xlu0.b32.cont [13/16] 0.0, 128
    %4875 = vxpose.xlu0.b32.cont [14/16] 0.0, 128
    %4876 = vxpose.xlu0.b32.cont [15/16] 0.0, 128
    %4877 = vxpose.xlu0.b32.end [16/16] 0.0, 128
    %v4878 = vpop.trf.xlu0
    %v4879 = vpop.trf.xlu0
    %v4880 = vpop.trf.xlu0
    %v4881 = vpop.trf.xlu0
    %v4882 = vpop.trf.xlu0
    %v4883 = vpop.trf.xlu0
    %v4884 = vpop.trf.xlu0
    %v4885 = vpop.trf.xlu0
    %v4886 = vpop.trf.xlu0
    %v4887 = vpop.trf.xlu0
    %v4888 = vpop.trf.xlu0
    %v4889 = vpop.trf.xlu0
    %v4890 = vpop.trf.xlu0
    %v4891 = vpop.trf.xlu0
    %v4892 = vpop.trf.xlu0
    %v4893 = vpop.trf.xlu0
    %4894 = vxpose.xlu0.b32.start [1/16] %v4853, 128
    %4895 = vxpose.xlu0.b32.cont [2/16] 0.0, 128
    %4896 = vxpose.xlu0.b32.cont [3/16] 0.0, 128
    %4897 = vxpose.xlu0.b32.cont [4/16] 0.0, 128
    %4898 = vxpose.xlu0.b32.cont [5/16] 0.0, 128
    %4899 = vxpose.xlu0.b32.cont [6/16] 0.0, 128
    %4900 = vxpose.xlu0.b32.cont [7/16] 0.0, 128
    %4901 = vxpose.xlu0.b32.cont [8/16] 0.0, 128
    %4902 = vxpose.xlu0.b32.cont [9/16] 0.0, 128
    %4903 = vxpose.xlu0.b32.cont [10/16] 0.0, 128
    %4904 = vxpose.xlu0.b32.cont [11/16] 0.0, 128
    %4905 = vxpose.xlu0.b32.cont [12/16] 0.0, 128
    %4906 = vxpose.xlu0.b32.cont [13/16] 0.0, 128
    %4907 = vxpose.xlu0.b32.cont [14/16] 0.0, 128
    %4908 = vxpose.xlu0.b32.cont [15/16] 0.0, 128
    %4909 = vxpose.xlu0.b32.end [16/16] 0.0, 128
    %v4910 = vpop.trf.xlu0
    %v4911 = vpop.trf.xlu0
    %v4912 = vpop.trf.xlu0
    %v4913 = vpop.trf.xlu0
    %v4914 = vpop.trf.xlu0
    %v4915 = vpop.trf.xlu0
    %v4916 = vpop.trf.xlu0
    %v4917 = vpop.trf.xlu0
    %v4918 = vpop.trf.xlu0
    %v4919 = vpop.trf.xlu0
    %v4920 = vpop.trf.xlu0
    %v4921 = vpop.trf.xlu0
    %v4922 = vpop.trf.xlu0
    %v4923 = vpop.trf.xlu0
    %v4924 = vpop.trf.xlu0
    %v4925 = vpop.trf.xlu0
    %4926 = vxpose.xlu0.b32.start [1/16] %v4855, 128
    %4927 = vxpose.xlu0.b32.cont [2/16] 0.0, 128
    %4928 = vxpose.xlu0.b32.cont [3/16] 0.0, 128
    %4929 = vxpose.xlu0.b32.cont [4/16] 0.0, 128
    %4930 = vxpose.xlu0.b32.cont [5/16] 0.0, 128
    %4931 = vxpose.xlu0.b32.cont [6/16] 0.0, 128
    %4932 = vxpose.xlu0.b32.cont [7/16] 0.0, 128
    %4933 = vxpose.xlu0.b32.cont [8/16] 0.0, 128
    %4934 = vxpose.xlu0.b32.cont [9/16] 0.0, 128
    %4935 = vxpose.xlu0.b32.cont [10/16] 0.0, 128
    %4936 = vxpose.xlu0.b32.cont [11/16] 0.0, 128
    %4937 = vxpose.xlu0.b32.cont [12/16] 0.0, 128
    %4938 = vxpose.xlu0.b32.cont [13/16] 0.0, 128
    %4939 = vxpose.xlu0.b32.cont [14/16] 0.0, 128
    %4940 = vxpose.xlu0.b32.cont [15/16] 0.0, 128
    %4941 = vxpose.xlu0.b32.end [16/16] 0.0, 128
    %v4942 = vpop.trf.xlu0
    %v4943 = vpop.trf.xlu0
    %v4944 = vpop.trf.xlu0
    %v4945 = vpop.trf.xlu0
    %v4946 = vpop.trf.xlu0
    %v4947 = vpop.trf.xlu0
    %v4948 = vpop.trf.xlu0
    %v4949 = vpop.trf.xlu0
    %v4950 = vpop.trf.xlu0
    %v4951 = vpop.trf.xlu0
    %v4952 = vpop.trf.xlu0
    %v4953 = vpop.trf.xlu0
    %v4954 = vpop.trf.xlu0
    %v4955 = vpop.trf.xlu0
    %v4956 = vpop.trf.xlu0
    %v4957 = vpop.trf.xlu0
    %4958 = vxpose.xlu0.b32.start [1/16] %v4857, 128
    %4959 = vxpose.xlu0.b32.cont [2/16] 0.0, 128
    %4960 = vxpose.xlu0.b32.cont [3/16] 0.0, 128
    %4961 = vxpose.xlu0.b32.cont [4/16] 0.0, 128
    %4962 = vxpose.xlu0.b32.cont [5/16] 0.0, 128
    %4963 = vxpose.xlu0.b32.cont [6/16] 0.0, 128
    %4964 = vxpose.xlu0.b32.cont [7/16] 0.0, 128
    %4965 = vxpose.xlu0.b32.cont [8/16] 0.0, 128
    %4966 = vxpose.xlu0.b32.cont [9/16] 0.0, 128
    %4967 = vxpose.xlu0.b32.cont [10/16] 0.0, 128
    %4968 = vxpose.xlu0.b32.cont [11/16] 0.0, 128
    %4969 = vxpose.xlu0.b32.cont [12/16] 0.0, 128
    %4970 = vxpose.xlu0.b32.cont [13/16] 0.0, 128
    %4971 = vxpose.xlu0.b32.cont [14/16] 0.0, 128
    %4972 = vxpose.xlu0.b32.cont [15/16] 0.0, 128
    %4973 = vxpose.xlu0.b32.end [16/16] 0.0, 128
    %v4974 = vpop.trf.xlu0
    %v4975 = vpop.trf.xlu0
    %v4976 = vpop.trf.xlu0
    %v4977 = vpop.trf.xlu0
    %v4978 = vpop.trf.xlu0
    %v4979 = vpop.trf.xlu0
    %v4980 = vpop.trf.xlu0
    %v4981 = vpop.trf.xlu0
    %v4982 = vpop.trf.xlu0
    %v4983 = vpop.trf.xlu0
    %v4984 = vpop.trf.xlu0
    %v4985 = vpop.trf.xlu0
    %v4986 = vpop.trf.xlu0
    %v4987 = vpop.trf.xlu0
    %v4988 = vpop.trf.xlu0
    %v4989 = vpop.trf.xlu0
    %v4991 = vsel %vm416, %v4878, 0
    %v4994 = vsel %vm416, %v4846, 0
    %4996 = vmatprep.subr.mxu0 0.0
    %4997 = vmatpush1.xpose.msra.mxu0 %v4994
    %4998 = vmatprep.subr.mxu0 0.0
    %4999 = vmatpush1.xpose.msra.mxu0 0.0
    %5000 = vmatprep.subr.mxu0 0.0
    %5001 = vmatpush1.xpose.msra.mxu0 0.0
    %5002 = vmatprep.subr.mxu0 0.0
    %5003 = vmatpush1.xpose.msra.mxu0 0.0
    %5004 = vmatprep.subr.mxu0 0.0
    %5005 = vmatpush1.xpose.msra.mxu0 0.0
    %5006 = vmatprep.subr.mxu0 0.0
    %5007 = vmatpush1.xpose.msra.mxu0 0.0
    %5008 = vmatprep.subr.mxu0 0.0
    %5009 = vmatpush1.xpose.msra.mxu0 0.0
    %5010 = vmatprep.subr.mxu0 0.0
    %5011 = vmatpush1.xpose.msra.mxu0 0.0
    %5012 = vmatprep.subr.mxu0 0.0
    %5013 = vmatpush1.xpose.msra.mxu0 0.0
    %5014 = vmatprep.subr.mxu0 0.0
    %5015 = vmatpush1.xpose.msra.mxu0 0.0
    %5016 = vmatprep.subr.mxu0 0.0
    %5017 = vmatpush1.xpose.msra.mxu0 0.0
    %5018 = vmatprep.subr.mxu0 0.0
    %5019 = vmatpush1.xpose.msra.mxu0 0.0
    %5020 = vmatprep.subr.mxu0 0.0
    %5021 = vmatpush1.xpose.msra.mxu0 0.0
    %5022 = vmatprep.subr.mxu0 0.0
    %5023 = vmatpush1.xpose.msra.mxu0 0.0
    %5024 = vmatprep.subr.mxu0 0.0
    %5025 = vmatpush1.xpose.msra.mxu0 0.0
    %5026 = vmatprep.subr.mxu0 0.0
    %5027 = vmatpush1.xpose.msra.mxu0 0.0
    %5028 = vmatprep.subr.mxu0 0.0
    %5029 = vmatpush1.xpose.msra.mxu0 0.0
    %5030 = vmatprep.subr.mxu0 0.0
    %5031 = vmatpush1.xpose.msra.mxu0 0.0
    %5032 = vmatprep.subr.mxu0 0.0
    %5033 = vmatpush1.xpose.msra.mxu0 0.0
    %5034 = vmatprep.subr.mxu0 0.0
    %5035 = vmatpush1.xpose.msra.mxu0 0.0
    %5036 = vmatprep.subr.mxu0 0.0
    %5037 = vmatpush1.xpose.msra.mxu0 0.0
    %5038 = vmatprep.subr.mxu0 0.0
    %5039 = vmatpush1.xpose.msra.mxu0 0.0
    %5040 = vmatprep.subr.mxu0 0.0
    %5041 = vmatpush1.xpose.msra.mxu0 0.0
    %5042 = vmatprep.subr.mxu0 0.0
    %5043 = vmatpush1.xpose.msra.mxu0 0.0
    %5044 = vmatprep.subr.mxu0 0.0
    %5045 = vmatpush1.xpose.msra.mxu0 0.0
    %5046 = vmatprep.subr.mxu0 0.0
    %5047 = vmatpush1.xpose.msra.mxu0 0.0
    %5048 = vmatprep.subr.mxu0 0.0
    %5049 = vmatpush1.xpose.msra.mxu0 0.0
    %5050 = vmatprep.subr.mxu0 0.0
    %5051 = vmatpush1.xpose.msra.mxu0 0.0
    %5052 = vmatprep.subr.mxu0 0.0
    %5053 = vmatpush1.xpose.msra.mxu0 0.0
    %5054 = vmatprep.subr.mxu0 0.0
    %5055 = vmatpush1.xpose.msra.mxu0 0.0
    %5056 = vmatprep.subr.mxu0 0.0
    %5057 = vmatpush1.xpose.msra.mxu0 0.0
    %5058 = vmatprep.subr.mxu0 0.0
    %5059 = vmatpush1.xpose.msra.mxu0 0.0
    %5060 = vmatprep.mubr.f32.mxu0 0.0
    %5061 = vmatmul.mubr.f32.gmra.mrb[0].mxu0 %v4991
    %v5062 = vpop.f32.mrb[0].mxu0
    %v5063 = vadd.f32 0.0, %v5062
    %v5064 = vpop.f32.mrb[0].mxu0
    %5065 = vdwg.mxu0
    %v5067 = vsel %vm416, %v4910, 0
    %v5070 = vsel %vm416, %v4847, 0
    %5072 = vmatprep.subr.mxu0 0.0
    %5073 = vmatpush1.xpose.msra.mxu0 %v5070
    %5074 = vmatprep.subr.mxu0 0.0
    %5075 = vmatpush1.xpose.msra.mxu0 0.0
    %5076 = vmatprep.subr.mxu0 0.0
    %5077 = vmatpush1.xpose.msra.mxu0 0.0
    %5078 = vmatprep.subr.mxu0 0.0
    %5079 = vmatpush1.xpose.msra.mxu0 0.0
    %5080 = vmatprep.subr.mxu0 0.0
    %5081 = vmatpush1.xpose.msra.mxu0 0.0
    %5082 = vmatprep.subr.mxu0 0.0
    %5083 = vmatpush1.xpose.msra.mxu0 0.0
    %5084 = vmatprep.subr.mxu0 0.0
    %5085 = vmatpush1.xpose.msra.mxu0 0.0
    %5086 = vmatprep.subr.mxu0 0.0
    %5087 = vmatpush1.xpose.msra.mxu0 0.0
    %5088 = vmatprep.subr.mxu0 0.0
    %5089 = vmatpush1.xpose.msra.mxu0 0.0
    %5090 = vmatprep.subr.mxu0 0.0
    %5091 = vmatpush1.xpose.msra.mxu0 0.0
    %5092 = vmatprep.subr.mxu0 0.0
    %5093 = vmatpush1.xpose.msra.mxu0 0.0
    %5094 = vmatprep.subr.mxu0 0.0
    %5095 = vmatpush1.xpose.msra.mxu0 0.0
    %5096 = vmatprep.subr.mxu0 0.0
    %5097 = vmatpush1.xpose.msra.mxu0 0.0
    %5098 = vmatprep.subr.mxu0 0.0
    %5099 = vmatpush1.xpose.msra.mxu0 0.0
    %5100 = vmatprep.subr.mxu0 0.0
    %5101 = vmatpush1.xpose.msra.mxu0 0.0
    %5102 = vmatprep.subr.mxu0 0.0
    %5103 = vmatpush1.xpose.msra.mxu0 0.0
    %5104 = vmatprep.subr.mxu0 0.0
    %5105 = vmatpush1.xpose.msra.mxu0 0.0
    %5106 = vmatprep.subr.mxu0 0.0
    %5107 = vmatpush1.xpose.msra.mxu0 0.0
    %5108 = vmatprep.subr.mxu0 0.0
    %5109 = vmatpush1.xpose.msra.mxu0 0.0
    %5110 = vmatprep.subr.mxu0 0.0
    %5111 = vmatpush1.xpose.msra.mxu0 0.0
    %5112 = vmatprep.subr.mxu0 0.0
    %5113 = vmatpush1.xpose.msra.mxu0 0.0
    %5114 = vmatprep.subr.mxu0 0.0
    %5115 = vmatpush1.xpose.msra.mxu0 0.0
    %5116 = vmatprep.subr.mxu0 0.0
    %5117 = vmatpush1.xpose.msra.mxu0 0.0
    %5118 = vmatprep.subr.mxu0 0.0
    %5119 = vmatpush1.xpose.msra.mxu0 0.0
    %5120 = vmatprep.subr.mxu0 0.0
    %5121 = vmatpush1.xpose.msra.mxu0 0.0
    %5122 = vmatprep.subr.mxu0 0.0
    %5123 = vmatpush1.xpose.msra.mxu0 0.0
    %5124 = vmatprep.subr.mxu0 0.0
    %5125 = vmatpush1.xpose.msra.mxu0 0.0
    %5126 = vmatprep.subr.mxu0 0.0
    %5127 = vmatpush1.xpose.msra.mxu0 0.0
    %5128 = vmatprep.subr.mxu0 0.0
    %5129 = vmatpush1.xpose.msra.mxu0 0.0
    %5130 = vmatprep.subr.mxu0 0.0
    %5131 = vmatpush1.xpose.msra.mxu0 0.0
    %5132 = vmatprep.subr.mxu0 0.0
    %5133 = vmatpush1.xpose.msra.mxu0 0.0
    %5134 = vmatprep.subr.mxu0 0.0
    %5135 = vmatpush1.xpose.msra.mxu0 0.0
    %5136 = vmatprep.mubr.f32.mxu0 0.0
    %5137 = vmatmul.mubr.f32.gmra.mrb[0].mxu0 %v5067
    %v5138 = vpop.f32.mrb[0].mxu0
    %v5139 = vadd.f32 0.0, %v5138
    %v5140 = vpop.f32.mrb[0].mxu0
    %5141 = vdwg.mxu0
    %v5143 = vsel %vm416, %v4942, 0
    %v5146 = vsel %vm416, %v4848, 0
    %5148 = vmatprep.subr.mxu0 0.0
    %5149 = vmatpush1.xpose.msra.mxu0 %v5146
    %5150 = vmatprep.subr.mxu0 0.0
    %5151 = vmatpush1.xpose.msra.mxu0 0.0
    %5152 = vmatprep.subr.mxu0 0.0
    %5153 = vmatpush1.xpose.msra.mxu0 0.0
    %5154 = vmatprep.subr.mxu0 0.0
    %5155 = vmatpush1.xpose.msra.mxu0 0.0
    %5156 = vmatprep.subr.mxu0 0.0
    %5157 = vmatpush1.xpose.msra.mxu0 0.0
    %5158 = vmatprep.subr.mxu0 0.0
    %5159 = vmatpush1.xpose.msra.mxu0 0.0
    %5160 = vmatprep.subr.mxu0 0.0
    %5161 = vmatpush1.xpose.msra.mxu0 0.0
    %5162 = vmatprep.subr.mxu0 0.0
    %5163 = vmatpush1.xpose.msra.mxu0 0.0
    %5164 = vmatprep.subr.mxu0 0.0
    %5165 = vmatpush1.xpose.msra.mxu0 0.0
    %5166 = vmatprep.subr.mxu0 0.0
    %5167 = vmatpush1.xpose.msra.mxu0 0.0
    %5168 = vmatprep.subr.mxu0 0.0
    %5169 = vmatpush1.xpose.msra.mxu0 0.0
    %5170 = vmatprep.subr.mxu0 0.0
    %5171 = vmatpush1.xpose.msra.mxu0 0.0
    %5172 = vmatprep.subr.mxu0 0.0
    %5173 = vmatpush1.xpose.msra.mxu0 0.0
    %5174 = vmatprep.subr.mxu0 0.0
    %5175 = vmatpush1.xpose.msra.mxu0 0.0
    %5176 = vmatprep.subr.mxu0 0.0
    %5177 = vmatpush1.xpose.msra.mxu0 0.0
    %5178 = vmatprep.subr.mxu0 0.0
    %5179 = vmatpush1.xpose.msra.mxu0 0.0
    %5180 = vmatprep.subr.mxu0 0.0
    %5181 = vmatpush1.xpose.msra.mxu0 0.0
    %5182 = vmatprep.subr.mxu0 0.0
    %5183 = vmatpush1.xpose.msra.mxu0 0.0
    %5184 = vmatprep.subr.mxu0 0.0
    %5185 = vmatpush1.xpose.msra.mxu0 0.0
    %5186 = vmatprep.subr.mxu0 0.0
    %5187 = vmatpush1.xpose.msra.mxu0 0.0
    %5188 = vmatprep.subr.mxu0 0.0
    %5189 = vmatpush1.xpose.msra.mxu0 0.0
    %5190 = vmatprep.subr.mxu0 0.0
    %5191 = vmatpush1.xpose.msra.mxu0 0.0
    %5192 = vmatprep.subr.mxu0 0.0
    %5193 = vmatpush1.xpose.msra.mxu0 0.0
    %5194 = vmatprep.subr.mxu0 0.0
    %5195 = vmatpush1.xpose.msra.mxu0 0.0
    %5196 = vmatprep.subr.mxu0 0.0
    %5197 = vmatpush1.xpose.msra.mxu0 0.0
    %5198 = vmatprep.subr.mxu0 0.0
    %5199 = vmatpush1.xpose.msra.mxu0 0.0
    %5200 = vmatprep.subr.mxu0 0.0
    %5201 = vmatpush1.xpose.msra.mxu0 0.0
    %5202 = vmatprep.subr.mxu0 0.0
    %5203 = vmatpush1.xpose.msra.mxu0 0.0
    %5204 = vmatprep.subr.mxu0 0.0
    %5205 = vmatpush1.xpose.msra.mxu0 0.0
    %5206 = vmatprep.subr.mxu0 0.0
    %5207 = vmatpush1.xpose.msra.mxu0 0.0
    %5208 = vmatprep.subr.mxu0 0.0
    %5209 = vmatpush1.xpose.msra.mxu0 0.0
    %5210 = vmatprep.subr.mxu0 0.0
    %5211 = vmatpush1.xpose.msra.mxu0 0.0
    %5212 = vmatprep.mubr.f32.mxu0 0.0
    %5213 = vmatmul.mubr.f32.gmra.mrb[0].mxu0 %v5143
    %v5214 = vpop.f32.mrb[0].mxu0
    %v5215 = vadd.f32 0.0, %v5214
    %v5216 = vpop.f32.mrb[0].mxu0
    %5217 = vdwg.mxu0
    %v5219 = vsel %vm416, %v4974, 0
    %v5222 = vsel %vm416, %v4849, 0
    %5224 = vmatprep.subr.mxu0 0.0
    %5225 = vmatpush1.xpose.msra.mxu0 %v5222
    %5226 = vmatprep.subr.mxu0 0.0
    %5227 = vmatpush1.xpose.msra.mxu0 0.0
    %5228 = vmatprep.subr.mxu0 0.0
    %5229 = vmatpush1.xpose.msra.mxu0 0.0
    %5230 = vmatprep.subr.mxu0 0.0
    %5231 = vmatpush1.xpose.msra.mxu0 0.0
    %5232 = vmatprep.subr.mxu0 0.0
    %5233 = vmatpush1.xpose.msra.mxu0 0.0
    %5234 = vmatprep.subr.mxu0 0.0
    %5235 = vmatpush1.xpose.msra.mxu0 0.0
    %5236 = vmatprep.subr.mxu0 0.0
    %5237 = vmatpush1.xpose.msra.mxu0 0.0
    %5238 = vmatprep.subr.mxu0 0.0
    %5239 = vmatpush1.xpose.msra.mxu0 0.0
    %5240 = vmatprep.subr.mxu0 0.0
    %5241 = vmatpush1.xpose.msra.mxu0 0.0
    %5242 = vmatprep.subr.mxu0 0.0
    %5243 = vmatpush1.xpose.msra.mxu0 0.0
    %5244 = vmatprep.subr.mxu0 0.0
    %5245 = vmatpush1.xpose.msra.mxu0 0.0
    %5246 = vmatprep.subr.mxu0 0.0
    %5247 = vmatpush1.xpose.msra.mxu0 0.0
    %5248 = vmatprep.subr.mxu0 0.0
    %5249 = vmatpush1.xpose.msra.mxu0 0.0
    %5250 = vmatprep.subr.mxu0 0.0
    %5251 = vmatpush1.xpose.msra.mxu0 0.0
    %5252 = vmatprep.subr.mxu0 0.0
    %5253 = vmatpush1.xpose.msra.mxu0 0.0
    %5254 = vmatprep.subr.mxu0 0.0
    %5255 = vmatpush1.xpose.msra.mxu0 0.0
    %5256 = vmatprep.subr.mxu0 0.0
    %5257 = vmatpush1.xpose.msra.mxu0 0.0
    %5258 = vmatprep.subr.mxu0 0.0
    %5259 = vmatpush1.xpose.msra.mxu0 0.0
    %5260 = vmatprep.subr.mxu0 0.0
    %5261 = vmatpush1.xpose.msra.mxu0 0.0
    %5262 = vmatprep.subr.mxu0 0.0
    %5263 = vmatpush1.xpose.msra.mxu0 0.0
    %5264 = vmatprep.subr.mxu0 0.0
    %5265 = vmatpush1.xpose.msra.mxu0 0.0
    %5266 = vmatprep.subr.mxu0 0.0
    %5267 = vmatpush1.xpose.msra.mxu0 0.0
    %5268 = vmatprep.subr.mxu0 0.0
    %5269 = vmatpush1.xpose.msra.mxu0 0.0
    %5270 = vmatprep.subr.mxu0 0.0
    %5271 = vmatpush1.xpose.msra.mxu0 0.0
    %5272 = vmatprep.subr.mxu0 0.0
    %5273 = vmatpush1.xpose.msra.mxu0 0.0
    %5274 = vmatprep.subr.mxu0 0.0
    %5275 = vmatpush1.xpose.msra.mxu0 0.0
    %5276 = vmatprep.subr.mxu0 0.0
    %5277 = vmatpush1.xpose.msra.mxu0 0.0
    %5278 = vmatprep.subr.mxu0 0.0
    %5279 = vmatpush1.xpose.msra.mxu0 0.0
    %5280 = vmatprep.subr.mxu0 0.0
    %5281 = vmatpush1.xpose.msra.mxu0 0.0
    %5282 = vmatprep.subr.mxu0 0.0
    %5283 = vmatpush1.xpose.msra.mxu0 0.0
    %5284 = vmatprep.subr.mxu0 0.0
    %5285 = vmatpush1.xpose.msra.mxu0 0.0
    %5286 = vmatprep.subr.mxu0 0.0
    %5287 = vmatpush1.xpose.msra.mxu0 0.0
    %5288 = vmatprep.mubr.f32.mxu0 0.0
    %5289 = vmatmul.mubr.f32.gmra.mrb[0].mxu0 %v5219
    %v5290 = vpop.f32.mrb[0].mxu0
    %v5291 = vadd.f32 0.0, %v5290
    %v5292 = vpop.f32.mrb[0].mxu0
    %5293 = vdwg.mxu0
    %5294 = vxpose.xlu0.b32.start [1/16] %v5063, 128
    %5295 = vxpose.xlu0.b32.cont [2/16] 0.0, 128
    %5296 = vxpose.xlu0.b32.cont [3/16] 0.0, 128
    %5297 = vxpose.xlu0.b32.cont [4/16] 0.0, 128
    %5298 = vxpose.xlu0.b32.cont [5/16] 0.0, 128
    %5299 = vxpose.xlu0.b32.cont [6/16] 0.0, 128
    %5300 = vxpose.xlu0.b32.cont [7/16] 0.0, 128
    %5301 = vxpose.xlu0.b32.cont [8/16] 0.0, 128
    %5302 = vxpose.xlu0.b32.cont [9/16] 0.0, 128
    %5303 = vxpose.xlu0.b32.cont [10/16] 0.0, 128
    %5304 = vxpose.xlu0.b32.cont [11/16] 0.0, 128
    %5305 = vxpose.xlu0.b32.cont [12/16] 0.0, 128
    %5306 = vxpose.xlu0.b32.cont [13/16] 0.0, 128
    %5307 = vxpose.xlu0.b32.cont [14/16] 0.0, 128
    %5308 = vxpose.xlu0.b32.cont [15/16] 0.0, 128
    %5309 = vxpose.xlu0.b32.end [16/16] 0.0, 128
    %v5310 = vpop.trf.xlu0
    %v5311 = vpop.trf.xlu0
    %v5312 = vpop.trf.xlu0
    %v5313 = vpop.trf.xlu0
    %v5314 = vpop.trf.xlu0
    %v5315 = vpop.trf.xlu0
    %v5316 = vpop.trf.xlu0
    %v5317 = vpop.trf.xlu0
    %v5318 = vpop.trf.xlu0
    %v5319 = vpop.trf.xlu0
    %v5320 = vpop.trf.xlu0
    %v5321 = vpop.trf.xlu0
    %v5322 = vpop.trf.xlu0
    %v5323 = vpop.trf.xlu0
    %v5324 = vpop.trf.xlu0
    %v5325 = vpop.trf.xlu0
    %5326 = vxpose.xlu0.b32.start [1/16] %v5139, 128
    %5327 = vxpose.xlu0.b32.cont [2/16] 0.0, 128
    %5328 = vxpose.xlu0.b32.cont [3/16] 0.0, 128
    %5329 = vxpose.xlu0.b32.cont [4/16] 0.0, 128
    %5330 = vxpose.xlu0.b32.cont [5/16] 0.0, 128
    %5331 = vxpose.xlu0.b32.cont [6/16] 0.0, 128
    %5332 = vxpose.xlu0.b32.cont [7/16] 0.0, 128
    %5333 = vxpose.xlu0.b32.cont [8/16] 0.0, 128
    %5334 = vxpose.xlu0.b32.cont [9/16] 0.0, 128
    %5335 = vxpose.xlu0.b32.cont [10/16] 0.0, 128
    %5336 = vxpose.xlu0.b32.cont [11/16] 0.0, 128
    %5337 = vxpose.xlu0.b32.cont [12/16] 0.0, 128
    %5338 = vxpose.xlu0.b32.cont [13/16] 0.0, 128
    %5339 = vxpose.xlu0.b32.cont [14/16] 0.0, 128
    %5340 = vxpose.xlu0.b32.cont [15/16] 0.0, 128
    %5341 = vxpose.xlu0.b32.end [16/16] 0.0, 128
    %v5342 = vpop.trf.xlu0
    %v5343 = vpop.trf.xlu0
    %v5344 = vpop.trf.xlu0
    %v5345 = vpop.trf.xlu0
    %v5346 = vpop.trf.xlu0
    %v5347 = vpop.trf.xlu0
    %v5348 = vpop.trf.xlu0
    %v5349 = vpop.trf.xlu0
    %v5350 = vpop.trf.xlu0
    %v5351 = vpop.trf.xlu0
    %v5352 = vpop.trf.xlu0
    %v5353 = vpop.trf.xlu0
    %v5354 = vpop.trf.xlu0
    %v5355 = vpop.trf.xlu0
    %v5356 = vpop.trf.xlu0
    %v5357 = vpop.trf.xlu0
    %5358 = vxpose.xlu0.b32.start [1/16] %v5215, 128
    %5359 = vxpose.xlu0.b32.cont [2/16] 0.0, 128
    %5360 = vxpose.xlu0.b32.cont [3/16] 0.0, 128
    %5361 = vxpose.xlu0.b32.cont [4/16] 0.0, 128
    %5362 = vxpose.xlu0.b32.cont [5/16] 0.0, 128
    %5363 = vxpose.xlu0.b32.cont [6/16] 0.0, 128
    %5364 = vxpose.xlu0.b32.cont [7/16] 0.0, 128
    %5365 = vxpose.xlu0.b32.cont [8/16] 0.0, 128
    %5366 = vxpose.xlu0.b32.cont [9/16] 0.0, 128
    %5367 = vxpose.xlu0.b32.cont [10/16] 0.0, 128
    %5368 = vxpose.xlu0.b32.cont [11/16] 0.0, 128
    %5369 = vxpose.xlu0.b32.cont [12/16] 0.0, 128
    %5370 = vxpose.xlu0.b32.cont [13/16] 0.0, 128
    %5371 = vxpose.xlu0.b32.cont [14/16] 0.0, 128
    %5372 = vxpose.xlu0.b32.cont [15/16] 0.0, 128
    %5373 = vxpose.xlu0.b32.end [16/16] 0.0, 128
    %v5374 = vpop.trf.xlu0
    %v5375 = vpop.trf.xlu0
    %v5376 = vpop.trf.xlu0
    %v5377 = vpop.trf.xlu0
    %v5378 = vpop.trf.xlu0
    %v5379 = vpop.trf.xlu0
    %v5380 = vpop.trf.xlu0
    %v5381 = vpop.trf.xlu0
    %v5382 = vpop.trf.xlu0
    %v5383 = vpop.trf.xlu0
    %v5384 = vpop.trf.xlu0
    %v5385 = vpop.trf.xlu0
    %v5386 = vpop.trf.xlu0
    %v5387 = vpop.trf.xlu0
    %v5388 = vpop.trf.xlu0
    %v5389 = vpop.trf.xlu0
    %5390 = vxpose.xlu0.b32.start [1/16] %v5291, 128
    %5391 = vxpose.xlu0.b32.cont [2/16] 0.0, 128
    %5392 = vxpose.xlu0.b32.cont [3/16] 0.0, 128
    %5393 = vxpose.xlu0.b32.cont [4/16] 0.0, 128
    %5394 = vxpose.xlu0.b32.cont [5/16] 0.0, 128
    %5395 = vxpose.xlu0.b32.cont [6/16] 0.0, 128
    %5396 = vxpose.xlu0.b32.cont [7/16] 0.0, 128
    %5397 = vxpose.xlu0.b32.cont [8/16] 0.0, 128
    %5398 = vxpose.xlu0.b32.cont [9/16] 0.0, 128
    %5399 = vxpose.xlu0.b32.cont [10/16] 0.0, 128
    %5400 = vxpose.xlu0.b32.cont [11/16] 0.0, 128
    %5401 = vxpose.xlu0.b32.cont [12/16] 0.0, 128
    %5402 = vxpose.xlu0.b32.cont [13/16] 0.0, 128
    %5403 = vxpose.xlu0.b32.cont [14/16] 0.0, 128
    %5404 = vxpose.xlu0.b32.cont [15/16] 0.0, 128
    %5405 = vxpose.xlu0.b32.end [16/16] 0.0, 128
    %v5406 = vpop.trf.xlu0
    %v5407 = vpop.trf.xlu0
    %v5408 = vpop.trf.xlu0
    %v5409 = vpop.trf.xlu0
    %v5410 = vpop.trf.xlu0
    %v5411 = vpop.trf.xlu0
    %v5412 = vpop.trf.xlu0
    %v5413 = vpop.trf.xlu0
    %v5414 = vpop.trf.xlu0
    %v5415 = vpop.trf.xlu0
    %v5416 = vpop.trf.xlu0
    %v5417 = vpop.trf.xlu0
    %v5418 = vpop.trf.xlu0
    %v5419 = vpop.trf.xlu0
    %v5420 = vpop.trf.xlu0
    %v5421 = vpop.trf.xlu0
    %v5422 = vcombine.low %v5310, %v5374
    %v5423 = vcombine.high %v5310, %v5374
    %v5425 = vunpack.c.l.s4 1983009808
    %v5426 = vunpack.c.0.s8 %v5425
    %v5427 = vlaneseq
    %v5428 = vshrl.u32 %v5427, 7
    %v5429 = vsub.s32 %v5426, %v5428
    %v5430 = vrot.slane %v5422, %v5429
    %v5432 = vunpack.c.l.s4 1983009808
    %v5433 = vunpack.c.0.s8 %v5432
    %v5434 = vlaneseq
    %v5435 = vshrl.u32 %v5434, 7
    %v5436 = vsub.s32 %v5433, %v5435
    %v5437 = vrot.slane %v5423, %v5436
    %v5438 = vcombine.low %v5342, %v5406
    %v5439 = vcombine.high %v5342, %v5406
    %v5441 = vunpack.c.l.s4 1983009808
    %v5442 = vunpack.c.0.s8 %v5441
    %v5443 = vlaneseq
    %v5444 = vshrl.u32 %v5443, 7
    %v5445 = vsub.s32 %v5442, %v5444
    %v5446 = vrot.slane %v5438, %v5445
    %v5448 = vunpack.c.l.s4 1983009808
    %v5449 = vunpack.c.0.s8 %v5448
    %v5450 = vlaneseq
    %v5451 = vshrl.u32 %v5450, 7
    %v5452 = vsub.s32 %v5449, %v5451
    %v5453 = vrot.slane %v5439, %v5452
    %v5454 = vcombine.low %v5430, %v5446
    %v5455 = vcombine.high %v5430, %v5446
    %v5457 = vunpack.c.l.s4 1934713408
    %v5458 = vunpack.c.0.s8 %v5457
    %v5459 = vlaneseq
    %v5460 = vshrl.u32 %v5459, 7
    %v5461 = vsub.s32 %v5458, %v5460
    %v5462 = vrot.slane %v5454, %v5461
    %v5464 = vunpack.c.l.s4 1934713408
    %v5465 = vunpack.c.0.s8 %v5464
    %v5466 = vlaneseq
    %v5467 = vshrl.u32 %v5466, 7
    %v5468 = vsub.s32 %v5465, %v5467
    %v5469 = vrot.slane %v5455, %v5468
    %v5470 = vcombine.low %v5437, %v5453
    %v5471 = vcombine.high %v5437, %v5453
    %v5473 = vunpack.c.l.s4 1934713408
    %v5474 = vunpack.c.0.s8 %v5473
    %v5475 = vlaneseq
    %v5476 = vshrl.u32 %v5475, 7
    %v5477 = vsub.s32 %v5474, %v5476
    %v5478 = vrot.slane %v5470, %v5477
    %v5480 = vunpack.c.l.s4 1934713408
    %v5481 = vunpack.c.0.s8 %v5480
    %v5482 = vlaneseq
    %v5483 = vshrl.u32 %v5482, 7
    %v5484 = vsub.s32 %v5481, %v5483
    %v5485 = vrot.slane %v5471, %v5484
    %v5486 = vcombine.high %v5462, 0.0
    %v5487 = vcombine.high %v5469, 0.0
    %v5488 = vcombine.high %v5478, 0.0
    %v5489 = vcombine.high %v5485, 0.0
    %v5490 = vcombine.low %v5462, %v5469
    %v5492 = vunpack.c.l.s4 1983009808
    %v5493 = vunpack.c.0.s8 %v5492
    %v5494 = vlaneseq
    %v5495 = vshrl.u32 %v5494, 7
    %v5496 = vsub.s32 %v5493, %v5495
    %v5497 = vrot.slane %v5490, %v5496
    %v5498 = vcombine.low %v5486, %v5487
    %v5500 = vunpack.c.l.s4 1983009808
    %v5501 = vunpack.c.0.s8 %v5500
    %v5502 = vlaneseq
    %v5503 = vshrl.u32 %v5502, 7
    %v5504 = vsub.s32 %v5501, %v5503
    %v5505 = vrot.slane %v5498, %v5504
    %v5506 = vcombine.low %v5478, %v5485
    %v5508 = vunpack.c.l.s4 1983009808
    %v5509 = vunpack.c.0.s8 %v5508
    %v5510 = vlaneseq
    %v5511 = vshrl.u32 %v5510, 7
    %v5512 = vsub.s32 %v5509, %v5511
    %v5513 = vrot.slane %v5506, %v5512
    %v5514 = vcombine.low %v5488, %v5489
    %v5516 = vunpack.c.l.s4 1983009808
    %v5517 = vunpack.c.0.s8 %v5516
    %v5518 = vlaneseq
    %v5519 = vshrl.u32 %v5518, 7
    %v5520 = vsub.s32 %v5517, %v5519
    %v5521 = vrot.slane %v5514, %v5520
    %v5522 = vcombine.low %v5497, %v5505
    %v5523 = vcombine.high %v5497, %v5505
    %v5525 = vunpack.c.l.s4 1934713408
    %v5526 = vunpack.c.0.s8 %v5525
    %v5527 = vlaneseq
    %v5528 = vshrl.u32 %v5527, 7
    %v5529 = vsub.s32 %v5526, %v5528
    %v5530 = vrot.slane %v5522, %v5529
    %v5532 = vunpack.c.l.s4 1934713408
    %v5533 = vunpack.c.0.s8 %v5532
    %v5534 = vlaneseq
    %v5535 = vshrl.u32 %v5534, 7
    %v5536 = vsub.s32 %v5533, %v5535
    %v5537 = vrot.slane %v5523, %v5536
    %v5538 = vcombine.low %v5513, %v5521
    %v5539 = vcombine.high %v5513, %v5521
    %v5541 = vunpack.c.l.s4 1934713408
    %v5542 = vunpack.c.0.s8 %v5541
    %v5543 = vlaneseq
    %v5544 = vshrl.u32 %v5543, 7
    %v5545 = vsub.s32 %v5542, %v5544
    %v5546 = vrot.slane %v5538, %v5545
    %v5548 = vunpack.c.l.s4 1934713408
    %v5549 = vunpack.c.0.s8 %v5548
    %v5550 = vlaneseq
    %v5551 = vshrl.u32 %v5550, 7
    %v5552 = vsub.s32 %v5549, %v5551
    %v5553 = vrot.slane %v5539, %v5552
    %v5554 = vcombine.low %v5530, %v5546
    %v5555 = vcombine.high %v5530, %v5546
    %v5556 = vcombine.low %v5537, %v5553
    %v5557 = vcombine.high %v5537, %v5553
    %5559 = vrot.lane.b32.xlu0 %v5555, 8
    %v5560 = vpop.permute.xlu0 %5559
    %5563 = vrot.lane.b32.xlu0 %v5556, 16
    %v5564 = vpop.permute.xlu0 %5563
    %5567 = vrot.lane.b32.xlu0 %v5557, 24
    %v5568 = vpop.permute.xlu0 %5567
    %v5570 = vsel %vm416, %v5554, %v5560
    %v5571 = vsel %vm1470, %v5570, %v5564
    %v5572 = vsel %vm1472, %v5571, %v5568
    %s5573 = scalar_lea.vmem %s7, 32
    %v5574 = vld [vmem:[%s5573] sm:$0xff]
    %v5575 = vld [vmem:[%s5573 + $0x8] sm:$0xff]
    %v5576 = vld [vmem:[%s5573 + $0x10] sm:$0xff]
    %v5577 = vld [vmem:[%s5573 + $0x18] sm:$0xff]
    %s5578 = scalar_lea.vmem %s8, 1
    %v5579 = vld [vmem:[%s5578] sm:$0x1]
    %v5581 = vlaneseq
    %v5582 = vshrl.u32 %v5581, 7
    %v5583 = vsub.s32 0, %v5582
    %v5584 = vrot.slane %v5579, %v5583
    %v5587 = vsel %vm178, %v4363, 0
    %v5590 = vsel %vm178, %v5572, 0
    %5592 = vmatprep.subr.mxu0 0.0
    %5593 = vmatpush1.msra.mxu0 %v5574
    %5594 = vmatprep.subr.mxu0 0.0
    %5595 = vmatpush1.msra.mxu0 %v5575
    %5596 = vmatprep.subr.mxu0 0.0
    %5597 = vmatpush1.msra.mxu0 %v5576
    %5598 = vmatprep.subr.mxu0 0.0
    %5599 = vmatpush1.msra.mxu0 %v5577
    %5600 = vmatprep.subr.mxu0 0.0
    %5601 = vmatpush1.msra.mxu0 0.0
    %5602 = vmatprep.subr.mxu0 0.0
    %5603 = vmatpush1.msra.mxu0 0.0
    %5604 = vmatprep.subr.mxu0 0.0
    %5605 = vmatpush1.msra.mxu0 0.0
    %5606 = vmatprep.subr.mxu0 0.0
    %5607 = vmatpush1.msra.mxu0 0.0
    %5608 = vmatprep.subr.mxu0 0.0
    %5609 = vmatpush1.msra.mxu0 0.0
    %5610 = vmatprep.subr.mxu0 0.0
    %5611 = vmatpush1.msra.mxu0 0.0
    %5612 = vmatprep.subr.mxu0 0.0
    %5613 = vmatpush1.msra.mxu0 0.0
    %5614 = vmatprep.subr.mxu0 0.0
    %5615 = vmatpush1.msra.mxu0 0.0
    %5616 = vmatprep.subr.mxu0 0.0
    %5617 = vmatpush1.msra.mxu0 0.0
    %5618 = vmatprep.subr.mxu0 0.0
    %5619 = vmatpush1.msra.mxu0 0.0
    %5620 = vmatprep.subr.mxu0 0.0
    %5621 = vmatpush1.msra.mxu0 0.0
    %5622 = vmatprep.subr.mxu0 0.0
    %5623 = vmatpush1.msra.mxu0 0.0
    %5624 = vmatprep.subr.mxu0 0.0
    %5625 = vmatpush1.msra.mxu0 0.0
    %5626 = vmatprep.subr.mxu0 0.0
    %5627 = vmatpush1.msra.mxu0 0.0
    %5628 = vmatprep.subr.mxu0 0.0
    %5629 = vmatpush1.msra.mxu0 0.0
    %5630 = vmatprep.subr.mxu0 0.0
    %5631 = vmatpush1.msra.mxu0 0.0
    %5632 = vmatprep.subr.mxu0 0.0
    %5633 = vmatpush1.msra.mxu0 0.0
    %5634 = vmatprep.subr.mxu0 0.0
    %5635 = vmatpush1.msra.mxu0 0.0
    %5636 = vmatprep.subr.mxu0 0.0
    %5637 = vmatpush1.msra.mxu0 0.0
    %5638 = vmatprep.subr.mxu0 0.0
    %5639 = vmatpush1.msra.mxu0 0.0
    %5640 = vmatprep.subr.mxu0 0.0
    %5641 = vmatpush1.msra.mxu0 0.0
    %5642 = vmatprep.subr.mxu0 0.0
    %5643 = vmatpush1.msra.mxu0 0.0
    %5644 = vmatprep.subr.mxu0 0.0
    %5645 = vmatpush1.msra.mxu0 0.0
    %5646 = vmatprep.subr.mxu0 0.0
    %5647 = vmatpush1.msra.mxu0 0.0
    %5648 = vmatprep.subr.mxu0 0.0
    %5649 = vmatpush1.msra.mxu0 0.0
    %5650 = vmatprep.subr.mxu0 0.0
    %5651 = vmatpush1.msra.mxu0 0.0
    %5652 = vmatprep.subr.mxu0 0.0
    %5653 = vmatpush1.msra.mxu0 0.0
    %5654 = vmatprep.subr.mxu0 0.0
    %5655 = vmatpush1.msra.mxu0 0.0
    %5656 = vmatprep.mubr.f32.mxu0 0.0
    %5657 = vmatmul.mubr.f32.gmra.mrb[0].mxu0 %v5587
    %v5658 = vpop.f32.mrb[0].mxu0
    %v5659 = vadd.f32 %v5584, %v5658
    %v5660 = vpop.f32.mrb[0].mxu0
    %5661 = vmatprep.mubr.f32.mxu0 0.0
    %5662 = vmatmul.mubr.f32.gmra.mrb[0].mxu0 %v5590
    %v5663 = vpop.f32.mrb[0].mxu0
    %v5664 = vadd.f32 %v5584, %v5663
    %v5665 = vpop.f32.mrb[0].mxu0
    %5666 = vdwg.mxu0
    %v5667 = vadd.f32 %v3057, %v5659
    %v5668 = vadd.f32 %v3058, %v5664
    %s5669 = scalar_lea.vmem %s13, 1
    %v5670 = vld [vmem:[%s5669] sm:$0x1]
    %s5671 = scalar_lea.vmem %s14, 1
    %v5672 = vld [vmem:[%s5671] sm:$0x1]
    %v5673 = vsel %vm178, %v5667, 0.0
    %5674 = vadd.xlane.f32.xlu0 %v5673
    %v5675 = vpop.xlane.xlu0 %5674
    %v5676 = vsel %vm178, %v5668, 0.0
    %5677 = vadd.xlane.f32.xlu0 %v5676
    %v5678 = vpop.xlane.xlu0 %5677
    %v5679 = vmul.f32 %v5675, %v2785
    %v5680 = vmul.f32 %v5678, %v2785
    %v5681 = vsub.f32 %v5667, %v5679
    %v5682 = vsub.f32 %v5668, %v5680
    %v5683 = vmul.f32 %v5681, %v5681
    %v5684 = vmul.f32 %v5682, %v5682
    %v5685 = vsel %vm178, %v5683, 0.0
    %5686 = vadd.xlane.f32.xlu0 %v5685
    %v5687 = vpop.xlane.xlu0 %5686
    %v5688 = vsel %vm178, %v5684, 0.0
    %5689 = vadd.xlane.f32.xlu0 %v5688
    %v5690 = vpop.xlane.xlu0 %5689
    %v5691 = vmul.f32 %v5687, %v2785
    %v5692 = vmul.f32 %v5690, %v2785
    %v5693 = vadd.f32 %v5691, 1e-05
    %v5694 = vadd.f32 %v5692, 1e-05
    %v5695 = vrsqrt.pop %v5693
    %v5696 = vrsqrt.pop %v5694
    %v5697 = vmul.f32 %v5681, %v5695
    %v5698 = vmul.f32 %v5682, %v5696
    %v5700 = vlaneseq
    %v5701 = vshrl.u32 %v5700, 7
    %v5702 = vsub.s32 0, %v5701
    %v5703 = vrot.slane %v5670, %v5702
    %v5705 = vmul.f32 %v5697, %v5703
    %v5706 = vmul.f32 %v5698, %v5703
    %v5708 = vlaneseq
    %v5709 = vshrl.u32 %v5708, 7
    %v5710 = vsub.s32 0, %v5709
    %v5711 = vrot.slane %v5672, %v5710
    %v5713 = vadd.f32 %v5705, %v5711
    %v5714 = vadd.f32 %v5706, %v5711
    %s5715 = scalar_lea.vmem %s9, 32
    %v5716 = vld [vmem:[%s5715] sm:$0xff]
    %v5717 = vld [vmem:[%s5715 + $0x8] sm:$0xff]
    %v5718 = vld [vmem:[%s5715 + $0x10] sm:$0xff]
    %v5719 = vld [vmem:[%s5715 + $0x18] sm:$0xff]
    %s5720 = scalar_lea.vmem %s10, 1
    %v5721 = vld [vmem:[%s5720] sm:$0x1]
    %v5723 = vlaneseq
    %v5724 = vshrl.u32 %v5723, 7
    %v5725 = vsub.s32 0, %v5724
    %v5726 = vrot.slane %v5721, %v5725
    %v5729 = vsel %vm178, %v5713, 0
    %v5732 = vsel %vm178, %v5714, 0
    %5734 = vmatprep.subr.mxu0 0.0
    %5735 = vmatpush1.msra.mxu0 %v5716
    %5736 = vmatprep.subr.mxu0 0.0
    %5737 = vmatpush1.msra.mxu0 %v5717
    %5738 = vmatprep.subr.mxu0 0.0
    %5739 = vmatpush1.msra.mxu0 %v5718
    %5740 = vmatprep.subr.mxu0 0.0
    %5741 = vmatpush1.msra.mxu0 %v5719
    %5742 = vmatprep.subr.mxu0 0.0
    %5743 = vmatpush1.msra.mxu0 0.0
    %5744 = vmatprep.subr.mxu0 0.0
    %5745 = vmatpush1.msra.mxu0 0.0
    %5746 = vmatprep.subr.mxu0 0.0
    %5747 = vmatpush1.msra.mxu0 0.0
    %5748 = vmatprep.subr.mxu0 0.0
    %5749 = vmatpush1.msra.mxu0 0.0
    %5750 = vmatprep.subr.mxu0 0.0
    %5751 = vmatpush1.msra.mxu0 0.0
    %5752 = vmatprep.subr.mxu0 0.0
    %5753 = vmatpush1.msra.mxu0 0.0
    %5754 = vmatprep.subr.mxu0 0.0
    %5755 = vmatpush1.msra.mxu0 0.0
    %5756 = vmatprep.subr.mxu0 0.0
    %5757 = vmatpush1.msra.mxu0 0.0
    %5758 = vmatprep.subr.mxu0 0.0
    %5759 = vmatpush1.msra.mxu0 0.0
    %5760 = vmatprep.subr.mxu0 0.0
    %5761 = vmatpush1.msra.mxu0 0.0
    %5762 = vmatprep.subr.mxu0 0.0
    %5763 = vmatpush1.msra.mxu0 0.0
    %5764 = vmatprep.subr.mxu0 0.0
    %5765 = vmatpush1.msra.mxu0 0.0
    %5766 = vmatprep.subr.mxu0 0.0
    %5767 = vmatpush1.msra.mxu0 0.0
    %5768 = vmatprep.subr.mxu0 0.0
    %5769 = vmatpush1.msra.mxu0 0.0
    %5770 = vmatprep.subr.mxu0 0.0
    %5771 = vmatpush1.msra.mxu0 0.0
    %5772 = vmatprep.subr.mxu0 0.0
    %5773 = vmatpush1.msra.mxu0 0.0
    %5774 = vmatprep.subr.mxu0 0.0
    %5775 = vmatpush1.msra.mxu0 0.0
    %5776 = vmatprep.subr.mxu0 0.0
    %5777 = vmatpush1.msra.mxu0 0.0
    %5778 = vmatprep.subr.mxu0 0.0
    %5779 = vmatpush1.msra.mxu0 0.0
    %5780 = vmatprep.subr.mxu0 0.0
    %5781 = vmatpush1.msra.mxu0 0.0
    %5782 = vmatprep.subr.mxu0 0.0
    %5783 = vmatpush1.msra.mxu0 0.0
    %5784 = vmatprep.subr.mxu0 0.0
    %5785 = vmatpush1.msra.mxu0 0.0
    %5786 = vmatprep.subr.mxu0 0.0
    %5787 = vmatpush1.msra.mxu0 0.0
    %5788 = vmatprep.subr.mxu0 0.0
    %5789 = vmatpush1.msra.mxu0 0.0
    %5790 = vmatprep.subr.mxu0 0.0
    %5791 = vmatpush1.msra.mxu0 0.0
    %5792 = vmatprep.subr.mxu0 0.0
    %5793 = vmatpush1.msra.mxu0 0.0
    %5794 = vmatprep.subr.mxu0 0.0
    %5795 = vmatpush1.msra.mxu0 0.0
    %5796 = vmatprep.subr.mxu0 0.0
    %5797 = vmatpush1.msra.mxu0 0.0
    %5798 = vmatprep.mubr.f32.mxu0 0.0
    %5799 = vmatmul.mubr.f32.gmra.mrb[0].mxu0 %v5729
    %v5800 = vpop.f32.mrb[0].mxu0
    %v5801 = vadd.f32 %v5726, %v5800
    %v5802 = vpop.f32.mrb[0].mxu0
    %5803 = vmatprep.mubr.f32.mxu0 0.0
    %5804 = vmatmul.mubr.f32.gmra.mrb[0].mxu0 %v5732
    %v5805 = vpop.f32.mrb[0].mxu0
    %v5806 = vadd.f32 %v5726, %v5805
    %v5807 = vpop.f32.mrb[0].mxu0
    %5808 = vdwg.mxu0
    %v5809 = vmax.f32 %v5801, 0.0
    %v5810 = vmax.f32 %v5806, 0.0
    %s5811 = scalar_lea.vmem %s11, 64
    %v5812 = vld [vmem:[%s5811] sm:$0xff]
    %v5813 = vld [vmem:[%s5811 + $0x8] sm:$0xff]
    %v5814 = vld [vmem:[%s5811 + $0x10] sm:$0xff]
    %v5815 = vld [vmem:[%s5811 + $0x18] sm:$0xff]
    %v5816 = vld [vmem:[%s5811 + $0x20] sm:$0xff]
    %v5817 = vld [vmem:[%s5811 + $0x28] sm:$0xff]
    %v5818 = vld [vmem:[%s5811 + $0x30] sm:$0xff]
    %v5819 = vld [vmem:[%s5811 + $0x38] sm:$0xff]
    %s5820 = scalar_lea.vmem %s12, 1
    %v5821 = vld [vmem:[%s5820] sm:$0x1]
    %v5823 = vlaneseq
    %v5824 = vshrl.u32 %v5823, 7
    %v5825 = vsub.s32 0, %v5824
    %v5826 = vrot.slane %v5821, %v5825
    %v5829 = vsel %vm2931, %v5809, 0
    %v5832 = vsel %vm2931, %v5810, 0
    %5834 = vmatprep.subr.mxu0 0.0
    %5835 = vmatpush1.msra.mxu0 %v5812
    %5836 = vmatprep.subr.mxu0 0.0
    %5837 = vmatpush1.msra.mxu0 %v5813
    %5838 = vmatprep.subr.mxu0 0.0
    %5839 = vmatpush1.msra.mxu0 %v5814
    %5840 = vmatprep.subr.mxu0 0.0
    %5841 = vmatpush1.msra.mxu0 %v5815
    %5842 = vmatprep.subr.mxu0 0.0
    %5843 = vmatpush1.msra.mxu0 %v5816
    %5844 = vmatprep.subr.mxu0 0.0
    %5845 = vmatpush1.msra.mxu0 %v5817
    %5846 = vmatprep.subr.mxu0 0.0
    %5847 = vmatpush1.msra.mxu0 %v5818
    %5848 = vmatprep.subr.mxu0 0.0
    %5849 = vmatpush1.msra.mxu0 %v5819
    %5850 = vmatprep.subr.mxu0 0.0
    %5851 = vmatpush1.msra.mxu0 0.0
    %5852 = vmatprep.subr.mxu0 0.0
    %5853 = vmatpush1.msra.mxu0 0.0
    %5854 = vmatprep.subr.mxu0 0.0
    %5855 = vmatpush1.msra.mxu0 0.0
    %5856 = vmatprep.subr.mxu0 0.0
    %5857 = vmatpush1.msra.mxu0 0.0
    %5858 = vmatprep.subr.mxu0 0.0
    %5859 = vmatpush1.msra.mxu0 0.0
    %5860 = vmatprep.subr.mxu0 0.0
    %5861 = vmatpush1.msra.mxu0 0.0
    %5862 = vmatprep.subr.mxu0 0.0
    %5863 = vmatpush1.msra.mxu0 0.0
    %5864 = vmatprep.subr.mxu0 0.0
    %5865 = vmatpush1.msra.mxu0 0.0
    %5866 = vmatprep.subr.mxu0 0.0
    %5867 = vmatpush1.msra.mxu0 0.0
    %5868 = vmatprep.subr.mxu0 0.0
    %5869 = vmatpush1.msra.mxu0 0.0
    %5870 = vmatprep.subr.mxu0 0.0
    %5871 = vmatpush1.msra.mxu0 0.0
    %5872 = vmatprep.subr.mxu0 0.0
    %5873 = vmatpush1.msra.mxu0 0.0
    %5874 = vmatprep.subr.mxu0 0.0
    %5875 = vmatpush1.msra.mxu0 0.0
    %5876 = vmatprep.subr.mxu0 0.0
    %5877 = vmatpush1.msra.mxu0 0.0
    %5878 = vmatprep.subr.mxu0 0.0
    %5879 = vmatpush1.msra.mxu0 0.0
    %5880 = vmatprep.subr.mxu0 0.0
    %5881 = vmatpush1.msra.mxu0 0.0
    %5882 = vmatprep.subr.mxu0 0.0
    %5883 = vmatpush1.msra.mxu0 0.0
    %5884 = vmatprep.subr.mxu0 0.0
    %5885 = vmatpush1.msra.mxu0 0.0
    %5886 = vmatprep.subr.mxu0 0.0
    %5887 = vmatpush1.msra.mxu0 0.0
    %5888 = vmatprep.subr.mxu0 0.0
    %5889 = vmatpush1.msra.mxu0 0.0
    %5890 = vmatprep.subr.mxu0 0.0
    %5891 = vmatpush1.msra.mxu0 0.0
    %5892 = vmatprep.subr.mxu0 0.0
    %5893 = vmatpush1.msra.mxu0 0.0
    %5894 = vmatprep.subr.mxu0 0.0
    %5895 = vmatpush1.msra.mxu0 0.0
    %5896 = vmatprep.subr.mxu0 0.0
    %5897 = vmatpush1.msra.mxu0 0.0
    %5898 = vmatprep.mubr.f32.mxu0 0.0
    %5899 = vmatmul.mubr.f32.gmra.mrb[0].mxu0 %v5829
    %v5900 = vpop.f32.mrb[0].mxu0
    %v5901 = vadd.f32 %v5826, %v5900
    %v5902 = vpop.f32.mrb[0].mxu0
    %5903 = vmatprep.mubr.f32.mxu0 0.0
    %5904 = vmatmul.mubr.f32.gmra.mrb[0].mxu0 %v5832
    %v5905 = vpop.f32.mrb[0].mxu0
    %v5906 = vadd.f32 %v5826, %v5905
    %v5907 = vpop.f32.mrb[0].mxu0
    %5908 = vdwg.mxu0
    %v5909 = vadd.f32 %v5713, %v5901
    %v5910 = vadd.f32 %v5714, %v5906
    %s5911 = scalar_lea.vmem %s15, 1
    %v5912 = vld [vmem:[%s5911] sm:$0x1]
    %s5913 = scalar_lea.vmem %s16, 1
    %v5914 = vld [vmem:[%s5913] sm:$0x1]
    %v5915 = vsel %vm178, %v5909, 0.0
    %5916 = vadd.xlane.f32.xlu0 %v5915
    %v5917 = vpop.xlane.xlu0 %5916
    %v5918 = vsel %vm178, %v5910, 0.0
    %5919 = vadd.xlane.f32.xlu0 %v5918
    %v5920 = vpop.xlane.xlu0 %5919
    %v5921 = vmul.f32 %v5917, %v2785
    %v5922 = vmul.f32 %v5920, %v2785
    %v5923 = vsub.f32 %v5909, %v5921
    %v5924 = vsub.f32 %v5910, %v5922
    %v5925 = vmul.f32 %v5923, %v5923
    %v5926 = vmul.f32 %v5924, %v5924
    %v5927 = vsel %vm178, %v5925, 0.0
    %5928 = vadd.xlane.f32.xlu0 %v5927
    %v5929 = vpop.xlane.xlu0 %5928
    %v5930 = vsel %vm178, %v5926, 0.0
    %5931 = vadd.xlane.f32.xlu0 %v5930
    %v5932 = vpop.xlane.xlu0 %5931
    %v5933 = vmul.f32 %v5929, %v2785
    %v5934 = vmul.f32 %v5932, %v2785
    %v5935 = vadd.f32 %v5933, 1e-05
    %v5936 = vadd.f32 %v5934, 1e-05
    %v5937 = vrsqrt.pop %v5935
    %v5938 = vrsqrt.pop %v5936
    %v5939 = vmul.f32 %v5923, %v5937
    %v5940 = vmul.f32 %v5924, %v5938
    %v5942 = vlaneseq
    %v5943 = vshrl.u32 %v5942, 7
    %v5944 = vsub.s32 0, %v5943
    %v5945 = vrot.slane %v5912, %v5944
    %v5947 = vmul.f32 %v5939, %v5945
    %v5948 = vmul.f32 %v5940, %v5945
    %v5950 = vlaneseq
    %v5951 = vshrl.u32 %v5950, 7
    %v5952 = vsub.s32 0, %v5951
    %v5953 = vrot.slane %v5914, %v5952
    %v5955 = vadd.f32 %v5947, %v5953
    %v5956 = vadd.f32 %v5948, %v5953
    %v5957 = vsel %vm178, %v5955, 0.0
    %v5958 = vrot.slane %v5957, 4
    %v5959 = vadd.f32 %v5957, %v5958
    %v5960 = vrot.slane %v5959, 2
    %v5961 = vadd.f32 %v5959, %v5960
    %v5962 = vrot.slane %v5961, 1
    %v5963 = vadd.f32 %v5961, %v5962
    %v5964 = vsel %vm178, %v5956, 0.0
    %v5965 = vrot.slane %v5964, 4
    %v5966 = vadd.f32 %v5964, %v5965
    %v5967 = vrot.slane %v5966, 2
    %v5968 = vadd.f32 %v5966, %v5967
    %v5969 = vrot.slane %v5968, 1
    %v5970 = vadd.f32 %v5968, %v5969
    %v5971 = vrcp.pop 8.0
    %v5972 = vmul.f32 %v5963, %v5971
    %v5973 = vmul.f32 %v5970, %v5971
    %v5974 = vld [vmem:[%s17] sm:$0xff]
    %v5975 = vld [vmem:[%s17 + $0x8] sm:$0xff]
    %v5976 = vld [vmem:[%s17 + $0x10] sm:$0xff]
    %v5977 = vld [vmem:[%s17 + $0x18] sm:$0xff]
    %v5978 = vld [vmem:[%s18] sm:$0x1]
    %v5980 = vlaneseq
    %v5981 = vshrl.u32 %v5980, 7
    %v5982 = vsub.s32 0, %v5981
    %v5983 = vrot.slane %v5978, %v5982
    %vm5987 = vcmask 1041409
    %v5988 = vsel %vm5987, %v5973, %v5972
    %v5989 = vsel %vm178, %v5988, 0
    %5991 = vmatprep.subr.mxu0 0.0
    %5992 = vmatpush1.msra.mxu0 %v5974
    %5993 = vmatprep.subr.mxu0 0.0
    %5994 = vmatpush1.msra.mxu0 %v5975
    %5995 = vmatprep.subr.mxu0 0.0
    %5996 = vmatpush1.msra.mxu0 %v5976
    %5997 = vmatprep.subr.mxu0 0.0
    %5998 = vmatpush1.msra.mxu0 %v5977
    %5999 = vmatprep.subr.mxu0 0.0
    %6000 = vmatpush1.msra.mxu0 0.0
    %6001 = vmatprep.subr.mxu0 0.0
    %6002 = vmatpush1.msra.mxu0 0.0
    %6003 = vmatprep.subr.mxu0 0.0
    %6004 = vmatpush1.msra.mxu0 0.0
    %6005 = vmatprep.subr.mxu0 0.0
    %6006 = vmatpush1.msra.mxu0 0.0
    %6007 = vmatprep.subr.mxu0 0.0
    %6008 = vmatpush1.msra.mxu0 0.0
    %6009 = vmatprep.subr.mxu0 0.0
    %6010 = vmatpush1.msra.mxu0 0.0
    %6011 = vmatprep.subr.mxu0 0.0
    %6012 = vmatpush1.msra.mxu0 0.0
    %6013 = vmatprep.subr.mxu0 0.0
    %6014 = vmatpush1.msra.mxu0 0.0
    %6015 = vmatprep.subr.mxu0 0.0
    %6016 = vmatpush1.msra.mxu0 0.0
    %6017 = vmatprep.subr.mxu0 0.0
    %6018 = vmatpush1.msra.mxu0 0.0
    %6019 = vmatprep.subr.mxu0 0.0
    %6020 = vmatpush1.msra.mxu0 0.0
    %6021 = vmatprep.subr.mxu0 0.0
    %6022 = vmatpush1.msra.mxu0 0.0
    %6023 = vmatprep.subr.mxu0 0.0
    %6024 = vmatpush1.msra.mxu0 0.0
    %6025 = vmatprep.subr.mxu0 0.0
    %6026 = vmatpush1.msra.mxu0 0.0
    %6027 = vmatprep.subr.mxu0 0.0
    %6028 = vmatpush1.msra.mxu0 0.0
    %6029 = vmatprep.subr.mxu0 0.0
    %6030 = vmatpush1.msra.mxu0 0.0
    %6031 = vmatprep.subr.mxu0 0.0
    %6032 = vmatpush1.msra.mxu0 0.0
    %6033 = vmatprep.subr.mxu0 0.0
    %6034 = vmatpush1.msra.mxu0 0.0
    %6035 = vmatprep.subr.mxu0 0.0
    %6036 = vmatpush1.msra.mxu0 0.0
    %6037 = vmatprep.subr.mxu0 0.0
    %6038 = vmatpush1.msra.mxu0 0.0
    %6039 = vmatprep.subr.mxu0 0.0
    %6040 = vmatpush1.msra.mxu0 0.0
    %6041 = vmatprep.subr.mxu0 0.0
    %6042 = vmatpush1.msra.mxu0 0.0
    %6043 = vmatprep.subr.mxu0 0.0
    %6044 = vmatpush1.msra.mxu0 0.0
    %6045 = vmatprep.subr.mxu0 0.0
    %6046 = vmatpush1.msra.mxu0 0.0
    %6047 = vmatprep.subr.mxu0 0.0
    %6048 = vmatpush1.msra.mxu0 0.0
    %6049 = vmatprep.subr.mxu0 0.0
    %6050 = vmatpush1.msra.mxu0 0.0
    %6051 = vmatprep.subr.mxu0 0.0
    %6052 = vmatpush1.msra.mxu0 0.0
    %6053 = vmatprep.subr.mxu0 0.0
    %6054 = vmatpush1.msra.mxu0 0.0
    %6055 = vmatprep.mubr.f32.mxu0 0.0
    %6056 = vmatmul.mubr.f32.gmra.mrb[0].mxu0 %v5989
    %v6057 = vpop.f32.mrb[0].mxu0
    %v6058 = vadd.f32 %v5983, %v6057
    %v6059 = vpop.f32.mrb[0].mxu0
    %6060 = vdwg.mxu0
    %vm6061 = vcmask 74752
    %6062 = vst.msk [vmem:[#allocation2] sm:$0x3] %vm6061, %v6058
    // Predicated region
    $region78: #{transformer_forward.1} parent=1 // pred_check
      _
    $region79: #{transformer_forward.1} parent=1 // pred_check_branch
      %6064 = sbr.rel (0) target = $region81
    $region80: #{transformer_forward.1} parent=1 // pred_region
      %s6066 = ssub.s32 32, 32
      %6067 = vsyncadd [#allocation3], %s6066
      %s6069 = sshll.u32 [#allocation2], 4
      %s6070 = int_to_ptr.vmem [resolvable:$true] %s6069
      %6072 = dma.vmem_to_hbm [thread:$0]  %s6070, 32, %s19, [#allocation3]
    $region81: #{transformer_forward.1} parent=1 // pred_fallthru
      _
    // Predicated region
    $region82: #{transformer_forward.1} parent=1 // pred_check
      _
    $region83: #{transformer_forward.1} parent=1 // pred_check_branch
      %6074 = sbr.rel (0) target = $region85
    $region84: #{transformer_forward.1} parent=1 // pred_region
      %6075 = dma.done [#allocation3], 32
    $region85: #{transformer_forward.1} parent=1 // pred_fallthru
      _
    %6076 = vsyncpa [#allocation3], 1

</llo_original>
